<compile_context>
chip_gen: v7x
topology: tpu7x:2x2x1
jax: 0.10.0
libtpu: 0.0.40
codegen_flags: <defaults>
</compile_context>

<pallas_src>
import jax
import jax.numpy as jnp
from jax.experimental import pallas as pl
from jax.experimental.pallas import tpu as pltpu

HPAD = 128   # padded hidden size == per-gate lane block width
TB = 128     # batch tile (sequences per grid step)


def lstm_fc_kernel(seq_ref, w_ih_ref, w_hh_ref, b_ref, w_fc_ref, b_fc_ref,
                   out_ref):
    """Batched fused-gate LSTM recurrence + final Linear for one batch tile.

    seq_ref  : (TB, L)          f32  one scalar input per (sequence, timestep)
    w_ih_ref : (1, 4*HPAD)      f32  fused input weights, gate order (i,f,o,g)
    w_hh_ref : (HPAD, 4*HPAD)   f32  fused recurrent weights, same order
    b_ref    : (1, 4*HPAD)      f32  b_ih + b_hh, fused / zero-padded
    w_fc_ref : (HPAD, output)   f32  pre-transposed, padded rows zero
    b_fc_ref : (1, output)      f32
    out_ref  : (output, TB)     f32  lane-dense per-sequence predictions
    """
    tb, L = seq_ref.shape
    HP = w_hh_ref.shape[0]                               # 128

    w_ih_row = w_ih_ref[...]                             # (1, 4*HP), tiny
    bias = b_ref[...]                                    # (1, 4*HP), tiny

    h_prev = jnp.zeros((tb, HP), jnp.float32)
    c_prev = jnp.zeros((tb, HP), jnp.float32)

    # Fully unrolled recurrence (L is static): one (TB,128)x(128,512) MXU
    # matmul, one broadcast multiply-add for the input term, one sigmoid slab
    # (i|f|o) and one tanh (g) per step.
    for t in range(L):
        x_t = seq_ref[:, t:t + 1]                        # (TB, 1) static slice
        gates = (jnp.dot(h_prev, w_hh_ref[...],
                         preferred_element_type=jnp.float32)
                 + x_t * w_ih_row + bias)                # (TB, 4*HP)
        sig = jax.nn.sigmoid(gates[:, :3 * HP])          # (TB, 3*HP): i | f | o
        i_g = sig[:, 0 * HP:1 * HP]
        f_g = sig[:, 1 * HP:2 * HP]
        o_g = sig[:, 2 * HP:3 * HP]
        g_g = jnp.tanh(gates[:, 3 * HP:4 * HP])
        c_prev = f_g * c_prev + i_g * g_g
        h_prev = o_g * jnp.tanh(c_prev)

    # Final Linear on the last hidden state (== fc(out)[-1] per sequence).
    out_col = (jnp.dot(h_prev, w_fc_ref[...],
                       preferred_element_type=jnp.float32)
               + b_fc_ref[...])                          # (TB, output)
    out_ref[...] = out_col.T                             # (output, TB), lane-dense


def model_forward_batched(seqs, packed, *, tb=TB):
    """seqs: (B, L) f32, B independent scalar sequences.  Returns (B, output)."""
    w_ih_fused, w_hh_fused, bias_fused, w_fc_pad, b_fc_row = packed
    B, L = seqs.shape
    out_dim = w_fc_pad.shape[1]

    num_tiles = pl.cdiv(B, tb)
    B_pad = num_tiles * tb
    seqs_p = jnp.zeros((B_pad, L), jnp.float32).at[:B, :].set(seqs)

    out = pl.pallas_call(
        lstm_fc_kernel,
        out_shape=jax.ShapeDtypeStruct((out_dim, B_pad), jnp.float32),
        grid_spec=pltpu.PrefetchScalarGridSpec(
            num_scalar_prefetch=0,
            grid=(num_tiles,),
            in_specs=[
                pl.BlockSpec((tb, L), lambda i: (i, 0)),            # seq tile
                pl.BlockSpec(w_ih_fused.shape, lambda i: (0, 0)),   # resident
                pl.BlockSpec(w_hh_fused.shape, lambda i: (0, 0)),   # resident
                pl.BlockSpec(bias_fused.shape, lambda i: (0, 0)),   # resident
                pl.BlockSpec(w_fc_pad.shape, lambda i: (0, 0)),     # resident
                pl.BlockSpec(b_fc_row.shape, lambda i: (0, 0)),     # resident
            ],
            out_specs=pl.BlockSpec((out_dim, tb), lambda i: (0, i)),
        ),
        compiler_params=pltpu.CompilerParams(
            dimension_semantics=("parallel",)),
    )(seqs_p, w_ih_fused, w_hh_fused, bias_fused, w_fc_pad, b_fc_row)

    return out[:, :B].T                                  # (B, output)


def model_forward(seq_1d, packed):
    """Exact module semantics: seq (L,) -> out[-1] of shape (output,)."""
    return model_forward_batched(seq_1d.reshape(1, -1), packed)[0]


def pack_params(W_ih, W_hh, b_ih, b_hh, W_fc, b_fc, *, h, input_dim, output,
                h_pad=HPAD):
    """Repack PyTorch-layout LSTM/Linear params into the fused, padded layout.

    PyTorch gate order in the stacked weights is (i, f, g, o); repacked to
    (i, f, o, g) so the three sigmoid gates are lane-contiguous.  Each gate
    occupies its own `h_pad`-lane block; padding columns/rows are zero so
    padded lanes of h/c remain exactly zero throughout the recurrence
    (initial state is zero, matching the module's self.hidden).
    """
    assert input_dim == 1, "kernel folds x_t via scalar broadcast (input=1)"
    order = (0, 1, 3, 2)                                 # (i, f, o, g)
    W_ih_g = W_ih.reshape(4, h, input_dim)
    W_hh_g = W_hh.reshape(4, h, h)
    b_g = (b_ih + b_hh).reshape(4, h)

    w_ih_fused = jnp.zeros((input_dim, 4 * h_pad), jnp.float32)
    w_hh_fused = jnp.zeros((h_pad, 4 * h_pad), jnp.float32)
    bias_fused = jnp.zeros((1, 4 * h_pad), jnp.float32)
    for blk, g in enumerate(order):
        lo = blk * h_pad
        w_ih_fused = w_ih_fused.at[:, lo:lo + h].set(W_ih_g[g].T)
        w_hh_fused = w_hh_fused.at[:h, lo:lo + h].set(W_hh_g[g].T)
        bias_fused = bias_fused.at[:, lo:lo + h].set(b_g[g][None, :])

    w_fc_pad = jnp.zeros((h_pad, output), jnp.float32).at[:h, :].set(W_fc.T)
    b_fc_row = b_fc.reshape(1, output)
    return w_ih_fused, w_hh_fused, bias_fused, w_fc_pad, b_fc_row


def reference_forward(seq_1d, W_ih, W_hh, b_ih, b_hh, W_fc, b_fc):
    """Pure-JAX reference with exact torch.nn.LSTM semantics (single sequence)."""
    h = W_hh.shape[1]

    def step(carry, x):
        h_prev, c_prev = carry
        gates = W_ih @ x + b_ih + W_hh @ h_prev + b_hh    # (4h,)
        i, f, g, o = jnp.split(gates, 4)
        i = jax.nn.sigmoid(i)
        f = jax.nn.sigmoid(f)
        g = jnp.tanh(g)
        o = jax.nn.sigmoid(o)
        c = f * c_prev + i * g
        hh = o * jnp.tanh(c)
        return (hh, c), hh

    x_seq = seq_1d.reshape(-1, 1)
    (h_last, _), _ = jax.lax.scan(
        step, (jnp.zeros(h, jnp.float32), jnp.zeros(h, jnp.float32)), x_seq)
    return W_fc @ h_last + b_fc


if __name__ == "__main__":
    # Module defaults: input=1, h=50, output=1.  Small sequence length.
    L, input_dim, h, output = 8, 1, 50, 1
    B = 256                                              # 2 batch tiles of 128

    key = jax.random.PRNGKey(0)
    keys = jax.random.split(key, 7)
    k = 1.0 / jnp.sqrt(jnp.float32(h))

    # Deterministic synthetic parameters (PyTorch-style uniform(-1/sqrt(h), 1/sqrt(h))).
    W_ih = jax.random.uniform(keys[0], (4 * h, input_dim), jnp.float32, -k, k)
    W_hh = jax.random.uniform(keys[1], (4 * h, h), jnp.float32, -k, k)
    b_ih = jax.random.uniform(keys[2], (4 * h,), jnp.float32, -k, k)
    b_hh = jax.random.uniform(keys[3], (4 * h,), jnp.float32, -k, k)
    W_fc = jax.random.uniform(keys[4], (output, h), jnp.float32, -k, k)
    b_fc = jax.random.uniform(keys[5], (output,), jnp.float32, -k, k)

    packed = pack_params(W_ih, W_hh, b_ih, b_hh, W_fc, b_fc,
                         h=h, input_dim=input_dim, output=output)

    # "Stock price" sequences: B independent 1-D series of length L
    # (the module views each as (L, 1, 1)).
    seqs = jax.random.normal(keys[6], (B, L), jnp.float32)

    # Batched kernel (the throughput path).
    out_b = jax.block_until_ready(model_forward_batched(seqs, packed))
    ref_b = jax.vmap(
        lambda s: reference_forward(s, W_ih, W_hh, b_ih, b_hh, W_fc, b_fc))(seqs)
    assert out_b.shape == (B, output), out_b.shape
    assert jnp.allclose(out_b, ref_b, atol=1e-4, rtol=1e-4), (
        float(jnp.max(jnp.abs(out_b - ref_b))))

    # Single-sequence path, exact module semantics: forward(seq) -> out[-1].
    seq = seqs[0]
    out1 = jax.block_until_ready(model_forward(seq, packed))
    ref1 = reference_forward(seq, W_ih, W_hh, b_ih, b_hh, W_fc, b_fc)
    assert out1.shape == (output,), out1.shape
    assert jnp.allclose(out1, ref1, atol=1e-4, rtol=1e-4), (out1, ref1)

    print("KERNEL_OK")
</pallas_src>

<mosaic_0001>
module attributes {stable_mosaic.version = 11 : i64} {
  func.func @lstm_fc_kernel(%arg0: i32, %arg1: memref<128x8xf32, #tpu.memory_space<vmem>>, %arg2: memref<1x512xf32, #tpu.memory_space<vmem>>, %arg3: memref<128x512xf32, #tpu.memory_space<vmem>>, %arg4: memref<1x512xf32, #tpu.memory_space<vmem>>, %arg5: memref<128x1xf32, #tpu.memory_space<vmem>>, %arg6: memref<1x1xf32, #tpu.memory_space<vmem>>, %arg7: memref<1x128xf32, #tpu.memory_space<vmem>>) attributes {dimension_semantics = [#tpu.dimension_semantics<parallel>], iteration_bounds = array<i64: 2>, scalar_prefetch = 0 : i64, scratch_operands = 0 : i64, tpu.core_type = #tpu.core_type<tc>, window_params = [{transform_indices = @transform_0, window_bounds = array<i64: 128, 8>}, {pipeline_mode = #tpu.pipeline_mode<synchronous>, transform_indices = @transform_1, window_bounds = array<i64: 1, 512>}, {pipeline_mode = #tpu.pipeline_mode<synchronous>, transform_indices = @transform_2, window_bounds = array<i64: 128, 512>}, {pipeline_mode = #tpu.pipeline_mode<synchronous>, transform_indices = @transform_3, window_bounds = array<i64: 1, 512>}, {pipeline_mode = #tpu.pipeline_mode<synchronous>, transform_indices = @transform_4, window_bounds = array<i64: 128, 1>}, {pipeline_mode = #tpu.pipeline_mode<synchronous>, transform_indices = @transform_5, window_bounds = array<i64: 1, 1>}, {transform_indices = @transform_6, window_bounds = array<i64: 1, 128>}]} {
    %c0 = arith.constant 0 : index
    %c0_0 = arith.constant 0 : index
    %0 = vector.load %arg2[%c0, %c0_0] : memref<1x512xf32, #tpu.memory_space<vmem>>, vector<1x512xf32>
    %c0_1 = arith.constant 0 : index
    %c0_2 = arith.constant 0 : index
    %1 = vector.load %arg4[%c0_1, %c0_2] : memref<1x512xf32, #tpu.memory_space<vmem>>, vector<1x512xf32>
    %cst = arith.constant 0.000000e+00 : f32
    %2 = vector.broadcast %cst : f32 to vector<128x128xf32>
    %cst_3 = arith.constant 0.000000e+00 : f32
    %3 = vector.broadcast %cst_3 : f32 to vector<128x128xf32>
    %c0_4 = arith.constant 0 : index
    %c0_5 = arith.constant 0 : index
    %4 = vector.load %arg1[%c0_4, %c0_5] : memref<128x8xf32, #tpu.memory_space<vmem>>, vector<128x1xf32>
    %c0_6 = arith.constant 0 : index
    %c0_7 = arith.constant 0 : index
    %5 = vector.load %arg3[%c0_6, %c0_7] : memref<128x512xf32, #tpu.memory_space<vmem>>, vector<128x512xf32>
    %cst_8 = arith.constant dense<0.000000e+00> : vector<128x512xf32>
    %6 = tpu.matmul %2, %5, %cst_8 {dimension_numbers = #tpu.dot_dimension_numbers<[1], [0], [0], [1], [0, 0, 1, 1], [], []>} : vector<128x128xf32>, vector<128x512xf32>, vector<128x512xf32> -> vector<128x512xf32>
    %7 = vector.broadcast %4 : vector<128x1xf32> to vector<128x512xf32>
    %8 = vector.broadcast %0 : vector<1x512xf32> to vector<128x512xf32>
    %9 = arith.mulf %7, %8 : vector<128x512xf32>
    %10 = arith.addf %6, %9 : vector<128x512xf32>
    %11 = vector.broadcast %1 : vector<1x512xf32> to vector<128x512xf32>
    %12 = arith.addf %10, %11 : vector<128x512xf32>
    %13 = vector.extract_strided_slice %12 {offsets = [0, 0], sizes = [128, 384], strides = [1, 1]} : vector<128x512xf32> to vector<128x384xf32>
    %14 = arith.negf %13 : vector<128x384xf32>
    %15 = math.exp %14 : vector<128x384xf32>
    %cst_9 = arith.constant 1.000000e+00 : f32
    %16 = vector.broadcast %cst_9 : f32 to vector<128x384xf32>
    %17 = arith.addf %16, %15 : vector<128x384xf32>
    %18 = arith.divf %16, %17 : vector<128x384xf32>
    %19 = vector.extract_strided_slice %18 {offsets = [0, 0], sizes = [128, 128], strides = [1, 1]} : vector<128x384xf32> to vector<128x128xf32>
    %20 = vector.extract_strided_slice %18 {offsets = [0, 128], sizes = [128, 128], strides = [1, 1]} : vector<128x384xf32> to vector<128x128xf32>
    %21 = vector.extract_strided_slice %18 {offsets = [0, 256], sizes = [128, 128], strides = [1, 1]} : vector<128x384xf32> to vector<128x128xf32>
    %22 = vector.extract_strided_slice %12 {offsets = [0, 384], sizes = [128, 128], strides = [1, 1]} : vector<128x512xf32> to vector<128x128xf32>
    %23 = math.tanh %22 : vector<128x128xf32>
    %24 = arith.mulf %20, %3 : vector<128x128xf32>
    %25 = arith.mulf %19, %23 : vector<128x128xf32>
    %26 = arith.addf %24, %25 : vector<128x128xf32>
    %27 = math.tanh %26 : vector<128x128xf32>
    %28 = arith.mulf %21, %27 : vector<128x128xf32>
    %c0_10 = arith.constant 0 : index
    %c1 = arith.constant 1 : index
    %29 = vector.load %arg1[%c0_10, %c1] : memref<128x8xf32, #tpu.memory_space<vmem>>, vector<128x1xf32>
    %c0_11 = arith.constant 0 : index
    %c0_12 = arith.constant 0 : index
    %30 = vector.load %arg3[%c0_11, %c0_12] : memref<128x512xf32, #tpu.memory_space<vmem>>, vector<128x512xf32>
    %cst_13 = arith.constant dense<0.000000e+00> : vector<128x512xf32>
    %31 = tpu.matmul %28, %30, %cst_13 {dimension_numbers = #tpu.dot_dimension_numbers<[1], [0], [0], [1], [0, 0, 1, 1], [], []>} : vector<128x128xf32>, vector<128x512xf32>, vector<128x512xf32> -> vector<128x512xf32>
    %32 = vector.broadcast %29 : vector<128x1xf32> to vector<128x512xf32>
    %33 = vector.broadcast %0 : vector<1x512xf32> to vector<128x512xf32>
    %34 = arith.mulf %32, %33 : vector<128x512xf32>
    %35 = arith.addf %31, %34 : vector<128x512xf32>
    %36 = vector.broadcast %1 : vector<1x512xf32> to vector<128x512xf32>
    %37 = arith.addf %35, %36 : vector<128x512xf32>
    %38 = vector.extract_strided_slice %37 {offsets = [0, 0], sizes = [128, 384], strides = [1, 1]} : vector<128x512xf32> to vector<128x384xf32>
    %39 = arith.negf %38 : vector<128x384xf32>
    %40 = math.exp %39 : vector<128x384xf32>
    %cst_14 = arith.constant 1.000000e+00 : f32
    %41 = vector.broadcast %cst_14 : f32 to vector<128x384xf32>
    %42 = arith.addf %41, %40 : vector<128x384xf32>
    %43 = arith.divf %41, %42 : vector<128x384xf32>
    %44 = vector.extract_strided_slice %43 {offsets = [0, 0], sizes = [128, 128], strides = [1, 1]} : vector<128x384xf32> to vector<128x128xf32>
    %45 = vector.extract_strided_slice %43 {offsets = [0, 128], sizes = [128, 128], strides = [1, 1]} : vector<128x384xf32> to vector<128x128xf32>
    %46 = vector.extract_strided_slice %43 {offsets = [0, 256], sizes = [128, 128], strides = [1, 1]} : vector<128x384xf32> to vector<128x128xf32>
    %47 = vector.extract_strided_slice %37 {offsets = [0, 384], sizes = [128, 128], strides = [1, 1]} : vector<128x512xf32> to vector<128x128xf32>
    %48 = math.tanh %47 : vector<128x128xf32>
    %49 = arith.mulf %45, %26 : vector<128x128xf32>
    %50 = arith.mulf %44, %48 : vector<128x128xf32>
    %51 = arith.addf %49, %50 : vector<128x128xf32>
    %52 = math.tanh %51 : vector<128x128xf32>
    %53 = arith.mulf %46, %52 : vector<128x128xf32>
    %c0_15 = arith.constant 0 : index
    %c2 = arith.constant 2 : index
    %54 = vector.load %arg1[%c0_15, %c2] : memref<128x8xf32, #tpu.memory_space<vmem>>, vector<128x1xf32>
    %c0_16 = arith.constant 0 : index
    %c0_17 = arith.constant 0 : index
    %55 = vector.load %arg3[%c0_16, %c0_17] : memref<128x512xf32, #tpu.memory_space<vmem>>, vector<128x512xf32>
    %cst_18 = arith.constant dense<0.000000e+00> : vector<128x512xf32>
    %56 = tpu.matmul %53, %55, %cst_18 {dimension_numbers = #tpu.dot_dimension_numbers<[1], [0], [0], [1], [0, 0, 1, 1], [], []>} : vector<128x128xf32>, vector<128x512xf32>, vector<128x512xf32> -> vector<128x512xf32>
    %57 = vector.broadcast %54 : vector<128x1xf32> to vector<128x512xf32>
    %58 = vector.broadcast %0 : vector<1x512xf32> to vector<128x512xf32>
    %59 = arith.mulf %57, %58 : vector<128x512xf32>
    %60 = arith.addf %56, %59 : vector<128x512xf32>
    %61 = vector.broadcast %1 : vector<1x512xf32> to vector<128x512xf32>
    %62 = arith.addf %60, %61 : vector<128x512xf32>
    %63 = vector.extract_strided_slice %62 {offsets = [0, 0], sizes = [128, 384], strides = [1, 1]} : vector<128x512xf32> to vector<128x384xf32>
    %64 = arith.negf %63 : vector<128x384xf32>
    %65 = math.exp %64 : vector<128x384xf32>
    %cst_19 = arith.constant 1.000000e+00 : f32
    %66 = vector.broadcast %cst_19 : f32 to vector<128x384xf32>
    %67 = arith.addf %66, %65 : vector<128x384xf32>
    %68 = arith.divf %66, %67 : vector<128x384xf32>
    %69 = vector.extract_strided_slice %68 {offsets = [0, 0], sizes = [128, 128], strides = [1, 1]} : vector<128x384xf32> to vector<128x128xf32>
    %70 = vector.extract_strided_slice %68 {offsets = [0, 128], sizes = [128, 128], strides = [1, 1]} : vector<128x384xf32> to vector<128x128xf32>
    %71 = vector.extract_strided_slice %68 {offsets = [0, 256], sizes = [128, 128], strides = [1, 1]} : vector<128x384xf32> to vector<128x128xf32>
    %72 = vector.extract_strided_slice %62 {offsets = [0, 384], sizes = [128, 128], strides = [1, 1]} : vector<128x512xf32> to vector<128x128xf32>
    %73 = math.tanh %72 : vector<128x128xf32>
    %74 = arith.mulf %70, %51 : vector<128x128xf32>
    %75 = arith.mulf %69, %73 : vector<128x128xf32>
    %76 = arith.addf %74, %75 : vector<128x128xf32>
    %77 = math.tanh %76 : vector<128x128xf32>
    %78 = arith.mulf %71, %77 : vector<128x128xf32>
    %c0_20 = arith.constant 0 : index
    %c3 = arith.constant 3 : index
    %79 = vector.load %arg1[%c0_20, %c3] : memref<128x8xf32, #tpu.memory_space<vmem>>, vector<128x1xf32>
    %c0_21 = arith.constant 0 : index
    %c0_22 = arith.constant 0 : index
    %80 = vector.load %arg3[%c0_21, %c0_22] : memref<128x512xf32, #tpu.memory_space<vmem>>, vector<128x512xf32>
    %cst_23 = arith.constant dense<0.000000e+00> : vector<128x512xf32>
    %81 = tpu.matmul %78, %80, %cst_23 {dimension_numbers = #tpu.dot_dimension_numbers<[1], [0], [0], [1], [0, 0, 1, 1], [], []>} : vector<128x128xf32>, vector<128x512xf32>, vector<128x512xf32> -> vector<128x512xf32>
    %82 = vector.broadcast %79 : vector<128x1xf32> to vector<128x512xf32>
    %83 = vector.broadcast %0 : vector<1x512xf32> to vector<128x512xf32>
    %84 = arith.mulf %82, %83 : vector<128x512xf32>
    %85 = arith.addf %81, %84 : vector<128x512xf32>
    %86 = vector.broadcast %1 : vector<1x512xf32> to vector<128x512xf32>
    %87 = arith.addf %85, %86 : vector<128x512xf32>
    %88 = vector.extract_strided_slice %87 {offsets = [0, 0], sizes = [128, 384], strides = [1, 1]} : vector<128x512xf32> to vector<128x384xf32>
    %89 = arith.negf %88 : vector<128x384xf32>
    %90 = math.exp %89 : vector<128x384xf32>
    %cst_24 = arith.constant 1.000000e+00 : f32
    %91 = vector.broadcast %cst_24 : f32 to vector<128x384xf32>
    %92 = arith.addf %91, %90 : vector<128x384xf32>
    %93 = arith.divf %91, %92 : vector<128x384xf32>
    %94 = vector.extract_strided_slice %93 {offsets = [0, 0], sizes = [128, 128], strides = [1, 1]} : vector<128x384xf32> to vector<128x128xf32>
    %95 = vector.extract_strided_slice %93 {offsets = [0, 128], sizes = [128, 128], strides = [1, 1]} : vector<128x384xf32> to vector<128x128xf32>
    %96 = vector.extract_strided_slice %93 {offsets = [0, 256], sizes = [128, 128], strides = [1, 1]} : vector<128x384xf32> to vector<128x128xf32>
    %97 = vector.extract_strided_slice %87 {offsets = [0, 384], sizes = [128, 128], strides = [1, 1]} : vector<128x512xf32> to vector<128x128xf32>
    %98 = math.tanh %97 : vector<128x128xf32>
    %99 = arith.mulf %95, %76 : vector<128x128xf32>
    %100 = arith.mulf %94, %98 : vector<128x128xf32>
    %101 = arith.addf %99, %100 : vector<128x128xf32>
    %102 = math.tanh %101 : vector<128x128xf32>
    %103 = arith.mulf %96, %102 : vector<128x128xf32>
    %c0_25 = arith.constant 0 : index
    %c4 = arith.constant 4 : index
    %104 = vector.load %arg1[%c0_25, %c4] : memref<128x8xf32, #tpu.memory_space<vmem>>, vector<128x1xf32>
    %c0_26 = arith.constant 0 : index
    %c0_27 = arith.constant 0 : index
    %105 = vector.load %arg3[%c0_26, %c0_27] : memref<128x512xf32, #tpu.memory_space<vmem>>, vector<128x512xf32>
    %cst_28 = arith.constant dense<0.000000e+00> : vector<128x512xf32>
    %106 = tpu.matmul %103, %105, %cst_28 {dimension_numbers = #tpu.dot_dimension_numbers<[1], [0], [0], [1], [0, 0, 1, 1], [], []>} : vector<128x128xf32>, vector<128x512xf32>, vector<128x512xf32> -> vector<128x512xf32>
    %107 = vector.broadcast %104 : vector<128x1xf32> to vector<128x512xf32>
    %108 = vector.broadcast %0 : vector<1x512xf32> to vector<128x512xf32>
    %109 = arith.mulf %107, %108 : vector<128x512xf32>
    %110 = arith.addf %106, %109 : vector<128x512xf32>
    %111 = vector.broadcast %1 : vector<1x512xf32> to vector<128x512xf32>
    %112 = arith.addf %110, %111 : vector<128x512xf32>
    %113 = vector.extract_strided_slice %112 {offsets = [0, 0], sizes = [128, 384], strides = [1, 1]} : vector<128x512xf32> to vector<128x384xf32>
    %114 = arith.negf %113 : vector<128x384xf32>
    %115 = math.exp %114 : vector<128x384xf32>
    %cst_29 = arith.constant 1.000000e+00 : f32
    %116 = vector.broadcast %cst_29 : f32 to vector<128x384xf32>
    %117 = arith.addf %116, %115 : vector<128x384xf32>
    %118 = arith.divf %116, %117 : vector<128x384xf32>
    %119 = vector.extract_strided_slice %118 {offsets = [0, 0], sizes = [128, 128], strides = [1, 1]} : vector<128x384xf32> to vector<128x128xf32>
    %120 = vector.extract_strided_slice %118 {offsets = [0, 128], sizes = [128, 128], strides = [1, 1]} : vector<128x384xf32> to vector<128x128xf32>
    %121 = vector.extract_strided_slice %118 {offsets = [0, 256], sizes = [128, 128], strides = [1, 1]} : vector<128x384xf32> to vector<128x128xf32>
    %122 = vector.extract_strided_slice %112 {offsets = [0, 384], sizes = [128, 128], strides = [1, 1]} : vector<128x512xf32> to vector<128x128xf32>
    %123 = math.tanh %122 : vector<128x128xf32>
    %124 = arith.mulf %120, %101 : vector<128x128xf32>
    %125 = arith.mulf %119, %123 : vector<128x128xf32>
    %126 = arith.addf %124, %125 : vector<128x128xf32>
    %127 = math.tanh %126 : vector<128x128xf32>
    %128 = arith.mulf %121, %127 : vector<128x128xf32>
    %c0_30 = arith.constant 0 : index
    %c5 = arith.constant 5 : index
    %129 = vector.load %arg1[%c0_30, %c5] : memref<128x8xf32, #tpu.memory_space<vmem>>, vector<128x1xf32>
    %c0_31 = arith.constant 0 : index
    %c0_32 = arith.constant 0 : index
    %130 = vector.load %arg3[%c0_31, %c0_32] : memref<128x512xf32, #tpu.memory_space<vmem>>, vector<128x512xf32>
    %cst_33 = arith.constant dense<0.000000e+00> : vector<128x512xf32>
    %131 = tpu.matmul %128, %130, %cst_33 {dimension_numbers = #tpu.dot_dimension_numbers<[1], [0], [0], [1], [0, 0, 1, 1], [], []>} : vector<128x128xf32>, vector<128x512xf32>, vector<128x512xf32> -> vector<128x512xf32>
    %132 = vector.broadcast %129 : vector<128x1xf32> to vector<128x512xf32>
    %133 = vector.broadcast %0 : vector<1x512xf32> to vector<128x512xf32>
    %134 = arith.mulf %132, %133 : vector<128x512xf32>
    %135 = arith.addf %131, %134 : vector<128x512xf32>
    %136 = vector.broadcast %1 : vector<1x512xf32> to vector<128x512xf32>
    %137 = arith.addf %135, %136 : vector<128x512xf32>
    %138 = vector.extract_strided_slice %137 {offsets = [0, 0], sizes = [128, 384], strides = [1, 1]} : vector<128x512xf32> to vector<128x384xf32>
    %139 = arith.negf %138 : vector<128x384xf32>
    %140 = math.exp %139 : vector<128x384xf32>
    %cst_34 = arith.constant 1.000000e+00 : f32
    %141 = vector.broadcast %cst_34 : f32 to vector<128x384xf32>
    %142 = arith.addf %141, %140 : vector<128x384xf32>
    %143 = arith.divf %141, %142 : vector<128x384xf32>
    %144 = vector.extract_strided_slice %143 {offsets = [0, 0], sizes = [128, 128], strides = [1, 1]} : vector<128x384xf32> to vector<128x128xf32>
    %145 = vector.extract_strided_slice %143 {offsets = [0, 128], sizes = [128, 128], strides = [1, 1]} : vector<128x384xf32> to vector<128x128xf32>
    %146 = vector.extract_strided_slice %143 {offsets = [0, 256], sizes = [128, 128], strides = [1, 1]} : vector<128x384xf32> to vector<128x128xf32>
    %147 = vector.extract_strided_slice %137 {offsets = [0, 384], sizes = [128, 128], strides = [1, 1]} : vector<128x512xf32> to vector<128x128xf32>
    %148 = math.tanh %147 : vector<128x128xf32>
    %149 = arith.mulf %145, %126 : vector<128x128xf32>
    %150 = arith.mulf %144, %148 : vector<128x128xf32>
    %151 = arith.addf %149, %150 : vector<128x128xf32>
    %152 = math.tanh %151 : vector<128x128xf32>
    %153 = arith.mulf %146, %152 : vector<128x128xf32>
    %c0_35 = arith.constant 0 : index
    %c6 = arith.constant 6 : index
    %154 = vector.load %arg1[%c0_35, %c6] : memref<128x8xf32, #tpu.memory_space<vmem>>, vector<128x1xf32>
    %c0_36 = arith.constant 0 : index
    %c0_37 = arith.constant 0 : index
    %155 = vector.load %arg3[%c0_36, %c0_37] : memref<128x512xf32, #tpu.memory_space<vmem>>, vector<128x512xf32>
    %cst_38 = arith.constant dense<0.000000e+00> : vector<128x512xf32>
    %156 = tpu.matmul %153, %155, %cst_38 {dimension_numbers = #tpu.dot_dimension_numbers<[1], [0], [0], [1], [0, 0, 1, 1], [], []>} : vector<128x128xf32>, vector<128x512xf32>, vector<128x512xf32> -> vector<128x512xf32>
    %157 = vector.broadcast %154 : vector<128x1xf32> to vector<128x512xf32>
    %158 = vector.broadcast %0 : vector<1x512xf32> to vector<128x512xf32>
    %159 = arith.mulf %157, %158 : vector<128x512xf32>
    %160 = arith.addf %156, %159 : vector<128x512xf32>
    %161 = vector.broadcast %1 : vector<1x512xf32> to vector<128x512xf32>
    %162 = arith.addf %160, %161 : vector<128x512xf32>
    %163 = vector.extract_strided_slice %162 {offsets = [0, 0], sizes = [128, 384], strides = [1, 1]} : vector<128x512xf32> to vector<128x384xf32>
    %164 = arith.negf %163 : vector<128x384xf32>
    %165 = math.exp %164 : vector<128x384xf32>
    %cst_39 = arith.constant 1.000000e+00 : f32
    %166 = vector.broadcast %cst_39 : f32 to vector<128x384xf32>
    %167 = arith.addf %166, %165 : vector<128x384xf32>
    %168 = arith.divf %166, %167 : vector<128x384xf32>
    %169 = vector.extract_strided_slice %168 {offsets = [0, 0], sizes = [128, 128], strides = [1, 1]} : vector<128x384xf32> to vector<128x128xf32>
    %170 = vector.extract_strided_slice %168 {offsets = [0, 128], sizes = [128, 128], strides = [1, 1]} : vector<128x384xf32> to vector<128x128xf32>
    %171 = vector.extract_strided_slice %168 {offsets = [0, 256], sizes = [128, 128], strides = [1, 1]} : vector<128x384xf32> to vector<128x128xf32>
    %172 = vector.extract_strided_slice %162 {offsets = [0, 384], sizes = [128, 128], strides = [1, 1]} : vector<128x512xf32> to vector<128x128xf32>
    %173 = math.tanh %172 : vector<128x128xf32>
    %174 = arith.mulf %170, %151 : vector<128x128xf32>
    %175 = arith.mulf %169, %173 : vector<128x128xf32>
    %176 = arith.addf %174, %175 : vector<128x128xf32>
    %177 = math.tanh %176 : vector<128x128xf32>
    %178 = arith.mulf %171, %177 : vector<128x128xf32>
    %c0_40 = arith.constant 0 : index
    %c7 = arith.constant 7 : index
    %179 = vector.load %arg1[%c0_40, %c7] : memref<128x8xf32, #tpu.memory_space<vmem>>, vector<128x1xf32>
    %c0_41 = arith.constant 0 : index
    %c0_42 = arith.constant 0 : index
    %180 = vector.load %arg3[%c0_41, %c0_42] : memref<128x512xf32, #tpu.memory_space<vmem>>, vector<128x512xf32>
    %cst_43 = arith.constant dense<0.000000e+00> : vector<128x512xf32>
    %181 = tpu.matmul %178, %180, %cst_43 {dimension_numbers = #tpu.dot_dimension_numbers<[1], [0], [0], [1], [0, 0, 1, 1], [], []>} : vector<128x128xf32>, vector<128x512xf32>, vector<128x512xf32> -> vector<128x512xf32>
    %182 = vector.broadcast %179 : vector<128x1xf32> to vector<128x512xf32>
    %183 = vector.broadcast %0 : vector<1x512xf32> to vector<128x512xf32>
    %184 = arith.mulf %182, %183 : vector<128x512xf32>
    %185 = arith.addf %181, %184 : vector<128x512xf32>
    %186 = vector.broadcast %1 : vector<1x512xf32> to vector<128x512xf32>
    %187 = arith.addf %185, %186 : vector<128x512xf32>
    %188 = vector.extract_strided_slice %187 {offsets = [0, 0], sizes = [128, 384], strides = [1, 1]} : vector<128x512xf32> to vector<128x384xf32>
    %189 = arith.negf %188 : vector<128x384xf32>
    %190 = math.exp %189 : vector<128x384xf32>
    %cst_44 = arith.constant 1.000000e+00 : f32
    %191 = vector.broadcast %cst_44 : f32 to vector<128x384xf32>
    %192 = arith.addf %191, %190 : vector<128x384xf32>
    %193 = arith.divf %191, %192 : vector<128x384xf32>
    %194 = vector.extract_strided_slice %193 {offsets = [0, 0], sizes = [128, 128], strides = [1, 1]} : vector<128x384xf32> to vector<128x128xf32>
    %195 = vector.extract_strided_slice %193 {offsets = [0, 128], sizes = [128, 128], strides = [1, 1]} : vector<128x384xf32> to vector<128x128xf32>
    %196 = vector.extract_strided_slice %193 {offsets = [0, 256], sizes = [128, 128], strides = [1, 1]} : vector<128x384xf32> to vector<128x128xf32>
    %197 = vector.extract_strided_slice %187 {offsets = [0, 384], sizes = [128, 128], strides = [1, 1]} : vector<128x512xf32> to vector<128x128xf32>
    %198 = math.tanh %197 : vector<128x128xf32>
    %199 = arith.mulf %195, %176 : vector<128x128xf32>
    %200 = arith.mulf %194, %198 : vector<128x128xf32>
    %201 = arith.addf %199, %200 : vector<128x128xf32>
    %202 = math.tanh %201 : vector<128x128xf32>
    %203 = arith.mulf %196, %202 : vector<128x128xf32>
    %c0_45 = arith.constant 0 : index
    %c0_46 = arith.constant 0 : index
    %204 = vector.load %arg5[%c0_45, %c0_46] : memref<128x1xf32, #tpu.memory_space<vmem>>, vector<128x1xf32>
    %cst_47 = arith.constant dense<0.000000e+00> : vector<128x1xf32>
    %205 = tpu.matmul %203, %204, %cst_47 {dimension_numbers = #tpu.dot_dimension_numbers<[1], [0], [0], [1], [0, 0, 1, 1], [], []>} : vector<128x128xf32>, vector<128x1xf32>, vector<128x1xf32> -> vector<128x1xf32>
    %c0_48 = arith.constant 0 : index
    %c0_49 = arith.constant 0 : index
    %206 = vector.load %arg6[%c0_48, %c0_49] : memref<1x1xf32, #tpu.memory_space<vmem>>, vector<1x1xf32>
    %207 = vector.broadcast %206 : vector<1x1xf32> to vector<128x1xf32>
    %208 = arith.addf %205, %207 : vector<128x1xf32>
    %209 = tpu.transpose %208, [1, 0] : vector<128x1xf32> -> vector<1x128xf32>
    %c0_50 = arith.constant 0 : index
    %c0_51 = arith.constant 0 : index
    %210 = vector.load %arg7[%c0_50, %c0_51] : memref<1x128xf32, #tpu.memory_space<vmem>>, vector<1x128xf32>
    tpu.vector_store %arg7[%c0_50, %c0_51], %209 {strides = array<i32>} : memref<1x128xf32, #tpu.memory_space<vmem>>, vector<1x128xf32>,
    return
  }
  func.func @transform_0(%arg0: i32) -> (i32, i32) {
    %c0_i32 = arith.constant 0 : i32
    %c0_i32_0 = arith.constant 0 : i32
    return %arg0, %c0_i32 : i32, i32
  }
  func.func @transform_1(%arg0: i32) -> (i32, i32) {
    %c0_i32 = arith.constant 0 : i32
    %c0_i32_0 = arith.constant 0 : i32
    %c0_i32_1 = arith.constant 0 : i32
    return %c0_i32, %c0_i32_0 : i32, i32
  }
  func.func @transform_2(%arg0: i32) -> (i32, i32) {
    %c0_i32 = arith.constant 0 : i32
    %c0_i32_0 = arith.constant 0 : i32
    %c0_i32_1 = arith.constant 0 : i32
    return %c0_i32, %c0_i32_0 : i32, i32
  }
  func.func @transform_3(%arg0: i32) -> (i32, i32) {
    %c0_i32 = arith.constant 0 : i32
    %c0_i32_0 = arith.constant 0 : i32
    %c0_i32_1 = arith.constant 0 : i32
    return %c0_i32, %c0_i32_0 : i32, i32
  }
  func.func @transform_4(%arg0: i32) -> (i32, i32) {
    %c0_i32 = arith.constant 0 : i32
    %c0_i32_0 = arith.constant 0 : i32
    %c0_i32_1 = arith.constant 0 : i32
    return %c0_i32, %c0_i32_0 : i32, i32
  }
  func.func @transform_5(%arg0: i32) -> (i32, i32) {
    %c0_i32 = arith.constant 0 : i32
    %c0_i32_0 = arith.constant 0 : i32
    %c0_i32_1 = arith.constant 0 : i32
    return %c0_i32, %c0_i32_0 : i32, i32
  }
  func.func @transform_6(%arg0: i32) -> (i32, i32) {
    %c0_i32 = arith.constant 0 : i32
    %c0_i32_0 = arith.constant 0 : i32
    return %c0_i32, %arg0 : i32, i32
  }
}

</mosaic_0001>

<llo_original>
// kernel: tpu_custom_call.1
$region0: #{tpu_custom_call.1}
  #allocation0 [shape = 'u32[]', space=smem, size = 0x4, offset = 0x4, fixed_abs, tag = 'smem constant byte address 0x4 - core index']
  #allocation1 [shape = 'u32[144,128]{1,0:T(1,128)}', space=vmem, size = 0x12000, scoped, tag = 'internal scratch']
  #allocation2 [shape = 'f32[1,1]{1,0:T(1,128)S(1)}', space=vmem, size = 0x200, scoped, tag = 'scoped memory for tpu_custom_call.1']
  %s0 = inlined_call_operand.vmem [shape: f32[256,8], index: 0, kind: input, shape index: {}]
  %s1 = inlined_call_operand.vmem [shape: f32[1,512], index: 1, kind: input, shape index: {}]
  %s2 = inlined_call_operand.hbm [shape: f32[128,512], index: 2, kind: input, shape index: {}]
  %s3 = inlined_call_operand.vmem [shape: f32[1,512], index: 3, kind: input, shape index: {}]
  %s4 = inlined_call_operand.vmem [shape: f32[128,1], index: 4, kind: input, shape index: {}]
  %s5 = inlined_call_operand.<no memory space> [shape: f32[1,1], index: 5, kind: input, shape index: {}]
  %s6 = inlined_call_operand.hbm [shape: f32[1,256], index: 6, kind: output, shape index: {}]
  %s7 = sld [smem:[#allocation0]]
  $region61: #{tpu_custom_call.1} parent=0
    _
  %s9 = ssub.s32 1, %s7
  %s10 = scalar_select 0, %s9, %s7
  %v11 = vstv %s5
  %12 = vst [vmem:[#allocation2] sm:$0x1] %v11
  $region1: #{tpu_custom_call.1} parent=0
    #allocation3 [shape = 'u8[262144]{0}', space=vmem, size = 0x40000, scoped, tag = 'input window, operand 2, single buffered']
    #allocation4 [shape = 's32[2]{0}', space=sflag, size = 0x8, scoped, tag = 'scoped memory for tpu_custom_call.1']
    #allocation5 [shape = 's32[2]{0}', space=sflag, size = 0x8, scoped, tag = 'scoped memory for tpu_custom_call.1']
    #allocation6 [shape = 'u8[1024]{0}', space=vmem, size = 0x400, scoped, tag = 'output window, operand 0']
    %13 = vsyncpa [#allocation4], 0
    %14 = vsyncpa [#allocation5], 0
    %s15 = scalar_lea.sflag [#allocation5], 1
    %16 = vsyncpa %s15, 0
    loop: start=0, step=1, limit=4
    $region2: #{tpu_custom_call.1} parent=1 // loop_pre_header
      _
    $region3: #{tpu_custom_call.1} parent=1 // loop_header
      %s18 = sphi 0, %s22
      %p19 = scmp.ge.s32.totalorder %s18, 4
      %s28 = sphi 0, %s30
      %s31 = sphi 0, %s28
      %s32 = sphi 0, %s31
      %s48 = sphi 0, %s32
      %s52 = sphi 0, %s52
      %s54 = sphi 0, %s52
      %s55 = sphi 0, %s54
      %s69 = sphi 0, %s55
      %s73 = sphi 0, %s73
      %s75 = sphi 0, %s73
      %s76 = sphi 0, %s75
      %s90 = sphi 0, %s76
      %s94 = sphi 0, %s94
      %s96 = sphi 0, %s94
      %s97 = sphi 0, %s96
      %s111 = sphi 0, %s97
      %s115 = sphi 0, %s115
      %s117 = sphi 0, %s115
      %s118 = sphi 0, %s117
      %s132 = sphi 0, %s118
      %s136 = sphi 0, %s136
      %s138 = sphi 0, %s136
      %s139 = sphi 0, %s138
      %s153 = sphi 0, %s139
      %s159 = sphi 0, %s161
      %s162 = sphi 0, %s159
      %s163 = sphi 0, %s162
      %s179 = sphi 0, %s163
    $region4: #{tpu_custom_call.1} parent=1 // loop_header_branch
      %21 = sbr.rel (%p19) target = $region8
    $region5: #{tpu_custom_call.1} parent=1 // loop_body
      %s23 = ssub.s32 %s18, 1
      %s24 = ssub.s32 %s18, 2
      %s25 = sadd.s32 %s18, 1
      %s26 = ssub.s32 %s18, %s25
      %p27 = scmp.eq.s32.totalorder %s26, 0
      %s29 = sadd.s32 %s28, 1
      %s30 = scalar_select %p27, %s28, %s29
      %p33 = pneg %p27
      %p34 = scmp.eq.s32.totalorder %s18, 1
      %p35 = por %p33, %p34
      %p36 = scmp.ne.s32.totalorder %s28, %s31
      %p37 = scmp.eq.s32.totalorder %s18, 0
      %p38 = por %p36, %p37
      %p39 = scmp.ne.s32.totalorder %s28, %s31
      %p40 = scmp.eq.s32.totalorder %s23, 1
      %p41 = por %p39, %p40
      %p42 = scmp.ne.s32.totalorder %s31, %s32
      %p43 = scmp.eq.s32.totalorder %s23, 0
      %p44 = por %p42, %p43
      %p45 = scmp.ne.s32.totalorder %s31, %s32
      %p46 = scmp.eq.s32.totalorder %s24, 1
      %p47 = por %p45, %p46
      %p49 = scmp.ne.s32.totalorder %s32, %s48
      %p50 = scmp.eq.s32.totalorder %s24, 0
      %p51 = por %p49, %p50
      %s53 = sadd.s32 %s52, 1
      %p56 = scmp.eq.s32.totalorder %s18, 1
      %p57 = scmp.ne.s32.totalorder %s52, %s54
      %p58 = scmp.eq.s32.totalorder %s18, 0
      %p59 = por %p57, %p58
      %p60 = scmp.ne.s32.totalorder %s52, %s54
      %p61 = scmp.eq.s32.totalorder %s23, 1
      %p62 = por %p60, %p61
      %p63 = scmp.ne.s32.totalorder %s54, %s55
      %p64 = scmp.eq.s32.totalorder %s23, 0
      %p65 = por %p63, %p64
      %p66 = scmp.ne.s32.totalorder %s54, %s55
      %p67 = scmp.eq.s32.totalorder %s24, 1
      %p68 = por %p66, %p67
      %p70 = scmp.ne.s32.totalorder %s55, %s69
      %p71 = scmp.eq.s32.totalorder %s24, 0
      %p72 = por %p70, %p71
      %s74 = sadd.s32 %s73, 1
      %p77 = scmp.eq.s32.totalorder %s18, 1
      %p78 = scmp.ne.s32.totalorder %s73, %s75
      %p79 = scmp.eq.s32.totalorder %s18, 0
      %p80 = por %p78, %p79
      %p81 = scmp.ne.s32.totalorder %s73, %s75
      %p82 = scmp.eq.s32.totalorder %s23, 1
      %p83 = por %p81, %p82
      %p84 = scmp.ne.s32.totalorder %s75, %s76
      %p85 = scmp.eq.s32.totalorder %s23, 0
      %p86 = por %p84, %p85
      %p87 = scmp.ne.s32.totalorder %s75, %s76
      %p88 = scmp.eq.s32.totalorder %s24, 1
      %p89 = por %p87, %p88
      %p91 = scmp.ne.s32.totalorder %s76, %s90
      %p92 = scmp.eq.s32.totalorder %s24, 0
      %p93 = por %p91, %p92
      %s95 = sadd.s32 %s94, 1
      %p98 = scmp.eq.s32.totalorder %s18, 1
      %p99 = scmp.ne.s32.totalorder %s94, %s96
      %p100 = scmp.eq.s32.totalorder %s18, 0
      %p101 = por %p99, %p100
      %p102 = scmp.ne.s32.totalorder %s94, %s96
      %p103 = scmp.eq.s32.totalorder %s23, 1
      %p104 = por %p102, %p103
      %p105 = scmp.ne.s32.totalorder %s96, %s97
      %p106 = scmp.eq.s32.totalorder %s23, 0
      %p107 = por %p105, %p106
      %p108 = scmp.ne.s32.totalorder %s96, %s97
      %p109 = scmp.eq.s32.totalorder %s24, 1
      %p110 = por %p108, %p109
      %p112 = scmp.ne.s32.totalorder %s97, %s111
      %p113 = scmp.eq.s32.totalorder %s24, 0
      %p114 = por %p112, %p113
      %s116 = sadd.s32 %s115, 1
      %p119 = scmp.eq.s32.totalorder %s18, 1
      %p120 = scmp.ne.s32.totalorder %s115, %s117
      %p121 = scmp.eq.s32.totalorder %s18, 0
      %p122 = por %p120, %p121
      %p123 = scmp.ne.s32.totalorder %s115, %s117
      %p124 = scmp.eq.s32.totalorder %s23, 1
      %p125 = por %p123, %p124
      %p126 = scmp.ne.s32.totalorder %s117, %s118
      %p127 = scmp.eq.s32.totalorder %s23, 0
      %p128 = por %p126, %p127
      %p129 = scmp.ne.s32.totalorder %s117, %s118
      %p130 = scmp.eq.s32.totalorder %s24, 1
      %p131 = por %p129, %p130
      %p133 = scmp.ne.s32.totalorder %s118, %s132
      %p134 = scmp.eq.s32.totalorder %s24, 0
      %p135 = por %p133, %p134
      %s137 = sadd.s32 %s136, 1
      %p140 = scmp.eq.s32.totalorder %s18, 1
      %p141 = scmp.ne.s32.totalorder %s136, %s138
      %p142 = scmp.eq.s32.totalorder %s18, 0
      %p143 = por %p141, %p142
      %p144 = scmp.ne.s32.totalorder %s136, %s138
      %p145 = scmp.eq.s32.totalorder %s23, 1
      %p146 = por %p144, %p145
      %p147 = scmp.ne.s32.totalorder %s138, %s139
      %p148 = scmp.eq.s32.totalorder %s23, 0
      %p149 = por %p147, %p148
      %p150 = scmp.ne.s32.totalorder %s138, %s139
      %p151 = scmp.eq.s32.totalorder %s24, 1
      %p152 = por %p150, %p151
      %p154 = scmp.ne.s32.totalorder %s139, %s153
      %p155 = scmp.eq.s32.totalorder %s24, 0
      %p156 = por %p154, %p155
      %s157 = ssub.s32 %s18, %s25
      %p158 = scmp.eq.s32.totalorder %s157, 0
      %s160 = sadd.s32 %s159, 1
      %s161 = scalar_select %p158, %s159, %s160
      %p164 = pneg %p158
      %p165 = scmp.eq.s32.totalorder %s18, 1
      %p166 = por %p164, %p165
      %p167 = scmp.ne.s32.totalorder %s159, %s162
      %p168 = scmp.eq.s32.totalorder %s18, 0
      %p169 = por %p167, %p168
      %p170 = scmp.ne.s32.totalorder %s159, %s162
      %p171 = scmp.eq.s32.totalorder %s23, 1
      %p172 = por %p170, %p171
      %p173 = scmp.ne.s32.totalorder %s162, %s163
      %p174 = scmp.eq.s32.totalorder %s23, 0
      %p175 = por %p173, %p174
      %p176 = scmp.ne.s32.totalorder %s162, %s163
      %p177 = scmp.eq.s32.totalorder %s24, 1
      %p178 = por %p176, %p177
      %p180 = scmp.ne.s32.totalorder %s163, %s179
      %p181 = scmp.eq.s32.totalorder %s24, 0
      %p182 = por %p180, %p181
      %p183 = scmp.le.s32.totalorder 1, %s18
      %p184 = scmp.lt.s32.totalorder %s18, 3
      %p185 = pnand %p183, %p184
      %p186 = pneg %p185
      // Predicated region
      $region9: #{tpu_custom_call.1} parent=5 // pred_check
        _
      $region10: #{tpu_custom_call.1} parent=5 // pred_check_branch
        %188 = sbr.rel (%p185) target = $region12
      $region11: #{tpu_custom_call.1} parent=5 // pred_region
        %s189 = ssub.s32 %s18, 1
        // Predicated region
        $region13: #{tpu_custom_call.1} parent=11 // pred_check
          %p190 = pneg %p65
        $region14: #{tpu_custom_call.1} parent=11 // pred_check_branch
          %192 = sbr.rel (%p190) target = $region16
        $region15: #{tpu_custom_call.1} parent=11 // pred_region
          _
        $region16: #{tpu_custom_call.1} parent=11 // pred_fallthru
          _
        // Predicated region
        $region17: #{tpu_custom_call.1} parent=11 // pred_check
          %p193 = pneg %p86
        $region18: #{tpu_custom_call.1} parent=11 // pred_check_branch
          %195 = sbr.rel (%p193) target = $region20
        $region19: #{tpu_custom_call.1} parent=11 // pred_region
          %s197 = ssub.s32 8192, 8192
          %198 = vsyncadd [#allocation4], %s197
          %s199 = sshll.u32 [#allocation3], 4
          %s200 = int_to_ptr.vmem [resolvable:$true] %s199
          %205 = dma.hbm_to_vmem [thread:$0]  %s2, 8192, %s200, [#allocation4], 512, 512, 32
        $region20: #{tpu_custom_call.1} parent=11 // pred_fallthru
          _
        // Predicated region
        $region21: #{tpu_custom_call.1} parent=11 // pred_check
          %p206 = pneg %p107
        $region22: #{tpu_custom_call.1} parent=11 // pred_check_branch
          %208 = sbr.rel (%p206) target = $region24
        $region23: #{tpu_custom_call.1} parent=11 // pred_region
          _
        $region24: #{tpu_custom_call.1} parent=11 // pred_fallthru
          _
        // Predicated region
        $region25: #{tpu_custom_call.1} parent=11 // pred_check
          %p209 = pneg %p128
        $region26: #{tpu_custom_call.1} parent=11 // pred_check_branch
          %211 = sbr.rel (%p209) target = $region28
        $region27: #{tpu_custom_call.1} parent=11 // pred_region
          _
        $region28: #{tpu_custom_call.1} parent=11 // pred_fallthru
          _
        // Predicated region
        $region29: #{tpu_custom_call.1} parent=11 // pred_check
          %p212 = pneg %p149
        $region30: #{tpu_custom_call.1} parent=11 // pred_check_branch
          %214 = sbr.rel (%p212) target = $region32
        $region31: #{tpu_custom_call.1} parent=11 // pred_region
          _
        $region32: #{tpu_custom_call.1} parent=11 // pred_fallthru
          _
      $region12: #{tpu_custom_call.1} parent=5 // pred_fallthru
        _
      %p215 = scmp.lt.s32.totalorder %s18, 2
      // Predicated region
      $region33: #{tpu_custom_call.1} parent=5 // pred_check
        %p216 = pneg %p215
      $region34: #{tpu_custom_call.1} parent=5 // pred_check_branch
        %218 = sbr.rel (%p216) target = $region36
      $region35: #{tpu_custom_call.1} parent=5 // pred_region
        // Predicated region
        $region37: #{tpu_custom_call.1} parent=35 // pred_check
          %p219 = pneg %p38
        $region38: #{tpu_custom_call.1} parent=35 // pred_check_branch
          %221 = sbr.rel (%p219) target = $region40
        $region39: #{tpu_custom_call.1} parent=35 // pred_region
          %s222 = smul.u32 16, %s18
          %p223 = scmp.lt.s32.totalorder %s222, 31
          %s224 = scalar_select %p223, %s222, 31
          %s225 = smul.addr %s224, 8
          %s226 = scalar_lea.vmem %s0, %s225
          %s227 = smul.u32 16, %s18
        $region40: #{tpu_custom_call.1} parent=35 // pred_fallthru
          _
      $region36: #{tpu_custom_call.1} parent=5 // pred_fallthru
        _
      %p228 = scmp.le.s32.totalorder 1, %s18
      %p229 = scmp.lt.s32.totalorder %s18, 3
      %p230 = pnand %p228, %p229
      %p231 = pneg %p230
      // Predicated region
      $region41: #{tpu_custom_call.1} parent=5 // pred_check
        _
      $region42: #{tpu_custom_call.1} parent=5 // pred_check_branch
        %233 = sbr.rel (%p230) target = $region44
      $region43: #{tpu_custom_call.1} parent=5 // pred_region
        %s234 = ssub.s32 %s18, 1
        // Predicated region
        $region45: #{tpu_custom_call.1} parent=43 // pred_check
          %p235 = pneg %p86
        $region46: #{tpu_custom_call.1} parent=43 // pred_check_branch
          %237 = sbr.rel (%p235) target = $region48
        $region47: #{tpu_custom_call.1} parent=43 // pred_region
          %238 = dma.done [#allocation4], 8192
        $region48: #{tpu_custom_call.1} parent=43 // pred_fallthru
          _
        %s239 = smul.u32 16, %s23
        %p240 = scmp.lt.s32.totalorder %s239, 31
        %s241 = scalar_select %p240, %s239, 31
        %s242 = smul.addr %s241, 8
        %s243 = scalar_lea.vmem %s0, %s242
        %p244 = pneg %p44
        %p245 = pneg %p41
        %p246 = pneg %p65
        %p247 = pneg %p62
        %p248 = pneg %p86
        %p249 = pneg %p83
        %p250 = pneg %p107
        %p251 = pneg %p104
        %p252 = pneg %p128
        %p253 = pneg %p125
        %p254 = pneg %p149
        %p255 = pneg %p146
        %p256 = pneg %p175
        %p257 = pneg %p172
        %s258 = sand.u32 %s162, 1
        %s259 = scalar_lea.sflag [#allocation5], %s258
        %s260 = sand.u32 %s162, 1
        %s261 = scalar_lea.vmem [#allocation6], %s260
        %s262 = smul.u32 16, %s23
        %p263 = scmp.lt.s32.totalorder %s262, 31
        %s264 = scalar_select %p263, %s262, 31
        %s265 = smul.addr %s264, 8
        %s266 = scalar_lea.vmem %s0, %s265
        %s267 = smul.u32 16, %s23
        %v268 = vld [vmem:[%s1] sm:$0xf]
        %v269 = vld [vmem:[%s3] sm:$0xf]
        %v270 = vld [vmem:[%s266] sm:$0xff]
        %v271 = vld [vmem:[%s266 + $0x8] sm:$0xff]
        %v272 = vld [vmem:[%s266 + $0x10] sm:$0xff]
        %v273 = vld [vmem:[%s266 + $0x18] sm:$0xff]
        %v274 = vld [vmem:[%s266 + $0x20] sm:$0xff]
        %v275 = vld [vmem:[%s266 + $0x28] sm:$0xff]
        %v276 = vld [vmem:[%s266 + $0x30] sm:$0xff]
        %v277 = vld [vmem:[%s266 + $0x38] sm:$0xff]
        %v278 = vld [vmem:[%s266 + $0x40] sm:$0xff]
        %v279 = vld [vmem:[%s266 + $0x48] sm:$0xff]
        %v280 = vld [vmem:[%s266 + $0x50] sm:$0xff]
        %v281 = vld [vmem:[%s266 + $0x58] sm:$0xff]
        %v282 = vld [vmem:[%s266 + $0x60] sm:$0xff]
        %v283 = vld [vmem:[%s266 + $0x68] sm:$0xff]
        %v284 = vld [vmem:[%s266 + $0x70] sm:$0xff]
        %v285 = vld [vmem:[%s266 + $0x78] sm:$0xff]
        %v286 = vld [vmem:[#allocation3] sm:$0xff]
        %v287 = vld [vmem:[#allocation3 + $0x8] sm:$0xff]
        %v288 = vld [vmem:[#allocation3 + $0x10] sm:$0xff]
        %v289 = vld [vmem:[#allocation3 + $0x18] sm:$0xff]
        %v290 = vld [vmem:[#allocation3 + $0x20] sm:$0xff]
        %v291 = vld [vmem:[#allocation3 + $0x28] sm:$0xff]
        %v292 = vld [vmem:[#allocation3 + $0x30] sm:$0xff]
        %v293 = vld [vmem:[#allocation3 + $0x38] sm:$0xff]
        %v294 = vld [vmem:[#allocation3 + $0x40] sm:$0xff]
        %v295 = vld [vmem:[#allocation3 + $0x48] sm:$0xff]
        %v296 = vld [vmem:[#allocation3 + $0x50] sm:$0xff]
        %v297 = vld [vmem:[#allocation3 + $0x58] sm:$0xff]
        %v298 = vld [vmem:[#allocation3 + $0x60] sm:$0xff]
        %v299 = vld [vmem:[#allocation3 + $0x68] sm:$0xff]
        %v300 = vld [vmem:[#allocation3 + $0x70] sm:$0xff]
        %v301 = vld [vmem:[#allocation3 + $0x78] sm:$0xff]
        %v302 = vld [vmem:[#allocation3 + $0x80] sm:$0xff]
        %v303 = vld [vmem:[#allocation3 + $0x88] sm:$0xff]
        %v304 = vld [vmem:[#allocation3 + $0x90] sm:$0xff]
        %v305 = vld [vmem:[#allocation3 + $0x98] sm:$0xff]
        %v306 = vld [vmem:[#allocation3 + $0xa0] sm:$0xff]
        %v307 = vld [vmem:[#allocation3 + $0xa8] sm:$0xff]
        %v308 = vld [vmem:[#allocation3 + $0xb0] sm:$0xff]
        %v309 = vld [vmem:[#allocation3 + $0xb8] sm:$0xff]
        %v310 = vld [vmem:[#allocation3 + $0xc0] sm:$0xff]
        %v311 = vld [vmem:[#allocation3 + $0xc8] sm:$0xff]
        %v312 = vld [vmem:[#allocation3 + $0xd0] sm:$0xff]
        %v313 = vld [vmem:[#allocation3 + $0xd8] sm:$0xff]
        %v314 = vld [vmem:[#allocation3 + $0xe0] sm:$0xff]
        %v315 = vld [vmem:[#allocation3 + $0xe8] sm:$0xff]
        %v316 = vld [vmem:[#allocation3 + $0xf0] sm:$0xff]
        %v317 = vld [vmem:[#allocation3 + $0xf8] sm:$0xff]
        %v318 = vld [vmem:[#allocation3 + $0x100] sm:$0xff]
        %v319 = vld [vmem:[#allocation3 + $0x108] sm:$0xff]
        %v320 = vld [vmem:[#allocation3 + $0x110] sm:$0xff]
        %v321 = vld [vmem:[#allocation3 + $0x118] sm:$0xff]
        %v322 = vld [vmem:[#allocation3 + $0x120] sm:$0xff]
        %v323 = vld [vmem:[#allocation3 + $0x128] sm:$0xff]
        %v324 = vld [vmem:[#allocation3 + $0x130] sm:$0xff]
        %v325 = vld [vmem:[#allocation3 + $0x138] sm:$0xff]
        %v326 = vld [vmem:[#allocation3 + $0x140] sm:$0xff]
        %v327 = vld [vmem:[#allocation3 + $0x148] sm:$0xff]
        %v328 = vld [vmem:[#allocation3 + $0x150] sm:$0xff]
        %v329 = vld [vmem:[#allocation3 + $0x158] sm:$0xff]
        %v330 = vld [vmem:[#allocation3 + $0x160] sm:$0xff]
        %v331 = vld [vmem:[#allocation3 + $0x168] sm:$0xff]
        %v332 = vld [vmem:[#allocation3 + $0x170] sm:$0xff]
        %v333 = vld [vmem:[#allocation3 + $0x178] sm:$0xff]
        %v334 = vld [vmem:[#allocation3 + $0x180] sm:$0xff]
        %v335 = vld [vmem:[#allocation3 + $0x188] sm:$0xff]
        %v336 = vld [vmem:[#allocation3 + $0x190] sm:$0xff]
        %v337 = vld [vmem:[#allocation3 + $0x198] sm:$0xff]
        %v338 = vld [vmem:[#allocation3 + $0x1a0] sm:$0xff]
        %v339 = vld [vmem:[#allocation3 + $0x1a8] sm:$0xff]
        %v340 = vld [vmem:[#allocation3 + $0x1b0] sm:$0xff]
        %v341 = vld [vmem:[#allocation3 + $0x1b8] sm:$0xff]
        %v342 = vld [vmem:[#allocation3 + $0x1c0] sm:$0xff]
        %v343 = vld [vmem:[#allocation3 + $0x1c8] sm:$0xff]
        %v344 = vld [vmem:[#allocation3 + $0x1d0] sm:$0xff]
        %v345 = vld [vmem:[#allocation3 + $0x1d8] sm:$0xff]
        %v346 = vld [vmem:[#allocation3 + $0x1e0] sm:$0xff]
        %v347 = vld [vmem:[#allocation3 + $0x1e8] sm:$0xff]
        %v348 = vld [vmem:[#allocation3 + $0x1f0] sm:$0xff]
        %v349 = vld [vmem:[#allocation3 + $0x1f8] sm:$0xff]
        %351 = vset.pattern.permute.xlu0 0
        %352 = vperm.xlu0 %351, %v270
        %v353 = vpop.permute.xlu0 %352
        %356 = vset.pattern.permute.xlu0 0
        %357 = vperm.xlu0 %356, %v271
        %v358 = vpop.permute.xlu0 %357
        %361 = vset.pattern.permute.xlu0 0
        %362 = vperm.xlu0 %361, %v272
        %v363 = vpop.permute.xlu0 %362
        %366 = vset.pattern.permute.xlu0 0
        %367 = vperm.xlu0 %366, %v273
        %v368 = vpop.permute.xlu0 %367
        %371 = vset.pattern.permute.xlu0 0
        %372 = vperm.xlu0 %371, %v274
        %v373 = vpop.permute.xlu0 %372
        %376 = vset.pattern.permute.xlu0 0
        %377 = vperm.xlu0 %376, %v275
        %v378 = vpop.permute.xlu0 %377
        %381 = vset.pattern.permute.xlu0 0
        %382 = vperm.xlu0 %381, %v276
        %v383 = vpop.permute.xlu0 %382
        %386 = vset.pattern.permute.xlu0 0
        %387 = vperm.xlu0 %386, %v277
        %v388 = vpop.permute.xlu0 %387
        %391 = vset.pattern.permute.xlu0 0
        %392 = vperm.xlu0 %391, %v278
        %v393 = vpop.permute.xlu0 %392
        %396 = vset.pattern.permute.xlu0 0
        %397 = vperm.xlu0 %396, %v279
        %v398 = vpop.permute.xlu0 %397
        %401 = vset.pattern.permute.xlu0 0
        %402 = vperm.xlu0 %401, %v280
        %v403 = vpop.permute.xlu0 %402
        %406 = vset.pattern.permute.xlu0 0
        %407 = vperm.xlu0 %406, %v281
        %v408 = vpop.permute.xlu0 %407
        %411 = vset.pattern.permute.xlu0 0
        %412 = vperm.xlu0 %411, %v282
        %v413 = vpop.permute.xlu0 %412
        %416 = vset.pattern.permute.xlu0 0
        %417 = vperm.xlu0 %416, %v283
        %v418 = vpop.permute.xlu0 %417
        %421 = vset.pattern.permute.xlu0 0
        %422 = vperm.xlu0 %421, %v284
        %v423 = vpop.permute.xlu0 %422
        %426 = vset.pattern.permute.xlu0 0
        %427 = vperm.xlu0 %426, %v285
        %v428 = vpop.permute.xlu0 %427
        %v431 = vlaneseq
        %v432 = vshrl.u32 %v431, 7
        %v433 = vsub.s32 0, %v432
        %v434 = vrot.slane %v268, %v433
        %v435 = vlaneseq
        %v436 = vshrl.u32 %v435, 7
        %v437 = vsub.s32 1, %v436
        %v438 = vrot.slane %v268, %v437
        %v439 = vlaneseq
        %v440 = vshrl.u32 %v439, 7
        %v441 = vsub.s32 2, %v440
        %v442 = vrot.slane %v268, %v441
        %v443 = vlaneseq
        %v444 = vshrl.u32 %v443, 7
        %v445 = vsub.s32 3, %v444
        %v446 = vrot.slane %v268, %v445
        %v451 = vmul.f32 %v353, %v434
        %v452 = vmul.f32 %v353, %v438
        %v453 = vmul.f32 %v353, %v442
        %v454 = vmul.f32 %v353, %v446
        %v455 = vmul.f32 %v358, %v434
        %v456 = vmul.f32 %v358, %v438
        %v457 = vmul.f32 %v358, %v442
        %v458 = vmul.f32 %v358, %v446
        %v459 = vmul.f32 %v363, %v434
        %v460 = vmul.f32 %v363, %v438
        %v461 = vmul.f32 %v363, %v442
        %v462 = vmul.f32 %v363, %v446
        %v463 = vmul.f32 %v368, %v434
        %v464 = vmul.f32 %v368, %v438
        %v465 = vmul.f32 %v368, %v442
        %v466 = vmul.f32 %v368, %v446
        %v467 = vmul.f32 %v373, %v434
        %v468 = vmul.f32 %v373, %v438
        %v469 = vmul.f32 %v373, %v442
        %v470 = vmul.f32 %v373, %v446
        %v471 = vmul.f32 %v378, %v434
        %v472 = vmul.f32 %v378, %v438
        %v473 = vmul.f32 %v378, %v442
        %v474 = vmul.f32 %v378, %v446
        %v475 = vmul.f32 %v383, %v434
        %v476 = vmul.f32 %v383, %v438
        %v477 = vmul.f32 %v383, %v442
        %v478 = vmul.f32 %v383, %v446
        %v479 = vmul.f32 %v388, %v434
        %v480 = vmul.f32 %v388, %v438
        %v481 = vmul.f32 %v388, %v442
        %v482 = vmul.f32 %v388, %v446
        %v483 = vmul.f32 %v393, %v434
        %v484 = vmul.f32 %v393, %v438
        %v485 = vmul.f32 %v393, %v442
        %v486 = vmul.f32 %v393, %v446
        %v487 = vmul.f32 %v398, %v434
        %v488 = vmul.f32 %v398, %v438
        %v489 = vmul.f32 %v398, %v442
        %v490 = vmul.f32 %v398, %v446
        %v491 = vmul.f32 %v403, %v434
        %v492 = vmul.f32 %v403, %v438
        %v493 = vmul.f32 %v403, %v442
        %v494 = vmul.f32 %v403, %v446
        %v495 = vmul.f32 %v408, %v434
        %v496 = vmul.f32 %v408, %v438
        %v497 = vmul.f32 %v408, %v442
        %v498 = vmul.f32 %v408, %v446
        %v499 = vmul.f32 %v413, %v434
        %v500 = vmul.f32 %v413, %v438
        %v501 = vmul.f32 %v413, %v442
        %v502 = vmul.f32 %v413, %v446
        %v503 = vmul.f32 %v418, %v434
        %v504 = vmul.f32 %v418, %v438
        %v505 = vmul.f32 %v418, %v442
        %v506 = vmul.f32 %v418, %v446
        %v507 = vmul.f32 %v423, %v434
        %v508 = vmul.f32 %v423, %v438
        %v509 = vmul.f32 %v423, %v442
        %v510 = vmul.f32 %v423, %v446
        %v511 = vmul.f32 %v428, %v434
        %v512 = vmul.f32 %v428, %v438
        %v513 = vmul.f32 %v428, %v442
        %v514 = vmul.f32 %v428, %v446
        %515 = vmatprep.subr.mxu0 %v287
        %516 = vmatpush1.msra.mxu0 %v286
        %517 = vmatprep.subr.mxu0 %v291
        %518 = vmatpush1.msra.mxu0 %v290
        %519 = vmatprep.subr.mxu0 %v295
        %520 = vmatpush1.msra.mxu0 %v294
        %521 = vmatprep.subr.mxu0 %v299
        %522 = vmatpush1.msra.mxu0 %v298
        %523 = vmatprep.subr.mxu0 %v303
        %524 = vmatpush1.msra.mxu0 %v302
        %525 = vmatprep.subr.mxu0 %v307
        %526 = vmatpush1.msra.mxu0 %v306
        %527 = vmatprep.subr.mxu0 %v311
        %528 = vmatpush1.msra.mxu0 %v310
        %529 = vmatprep.subr.mxu0 %v315
        %530 = vmatpush1.msra.mxu0 %v314
        %531 = vmatprep.subr.mxu0 %v319
        %532 = vmatpush1.msra.mxu0 %v318
        %533 = vmatprep.subr.mxu0 %v323
        %534 = vmatpush1.msra.mxu0 %v322
        %535 = vmatprep.subr.mxu0 %v327
        %536 = vmatpush1.msra.mxu0 %v326
        %537 = vmatprep.subr.mxu0 %v331
        %538 = vmatpush1.msra.mxu0 %v330
        %539 = vmatprep.subr.mxu0 %v335
        %540 = vmatpush1.msra.mxu0 %v334
        %541 = vmatprep.subr.mxu0 %v339
        %542 = vmatpush1.msra.mxu0 %v338
        %543 = vmatprep.subr.mxu0 %v343
        %544 = vmatpush1.msra.mxu0 %v342
        %545 = vmatprep.subr.mxu0 %v347
        %546 = vmatpush1.msra.mxu0 %v346
        %547 = vmatprep.subr.mxu0 0.0
        %548 = vmatpush1.msra.mxu0 0.0
        %549 = vmatprep.subr.mxu0 0.0
        %550 = vmatpush1.msra.mxu0 0.0
        %551 = vmatprep.subr.mxu0 0.0
        %552 = vmatpush1.msra.mxu0 0.0
        %553 = vmatprep.subr.mxu0 0.0
        %554 = vmatpush1.msra.mxu0 0.0
        %555 = vmatprep.subr.mxu0 0.0
        %556 = vmatpush1.msra.mxu0 0.0
        %557 = vmatprep.subr.mxu0 0.0
        %558 = vmatpush1.msra.mxu0 0.0
        %559 = vmatprep.subr.mxu0 0.0
        %560 = vmatpush1.msra.mxu0 0.0
        %561 = vmatprep.subr.mxu0 0.0
        %562 = vmatpush1.msra.mxu0 0.0
        %563 = vmatprep.subr.mxu0 0.0
        %564 = vmatpush1.msra.mxu0 0.0
        %565 = vmatprep.subr.mxu0 0.0
        %566 = vmatpush1.msra.mxu0 0.0
        %567 = vmatprep.subr.mxu0 0.0
        %568 = vmatpush1.msra.mxu0 0.0
        %569 = vmatprep.subr.mxu0 0.0
        %570 = vmatpush1.msra.mxu0 0.0
        %571 = vmatprep.subr.mxu0 0.0
        %572 = vmatpush1.msra.mxu0 0.0
        %573 = vmatprep.subr.mxu0 0.0
        %574 = vmatpush1.msra.mxu0 0.0
        %575 = vmatprep.subr.mxu0 0.0
        %576 = vmatpush1.msra.mxu0 0.0
        %577 = vmatprep.subr.mxu0 0.0
        %578 = vmatpush1.msra.mxu0 0.0
        %579 = vmatprep.mubr.f32.mxu0 0.0
        %580 = vmatmul.mubr.f32.gmra.mrb[0].mxu0 0.0
        %v581 = vpop.f32.mrb[0].mxu0
        %v582 = vadd.f32 %v451, %v581
        %v583 = vpop.f32.mrb[0].mxu0
        %v584 = vadd.f32 %v452, %v583
        %585 = vmatprep.mubr.f32.mxu0 0.0
        %586 = vmatmul.mubr.f32.gmra.mrb[0].mxu0 0.0
        %v587 = vpop.f32.mrb[0].mxu0
        %v588 = vadd.f32 %v455, %v587
        %v589 = vpop.f32.mrb[0].mxu0
        %v590 = vadd.f32 %v456, %v589
        %591 = vmatprep.mubr.f32.mxu0 0.0
        %592 = vmatmul.mubr.f32.gmra.mrb[0].mxu0 0.0
        %v593 = vpop.f32.mrb[0].mxu0
        %v594 = vadd.f32 %v459, %v593
        %v595 = vpop.f32.mrb[0].mxu0
        %v596 = vadd.f32 %v460, %v595
        %597 = vmatprep.mubr.f32.mxu0 0.0
        %598 = vmatmul.mubr.f32.gmra.mrb[0].mxu0 0.0
        %v599 = vpop.f32.mrb[0].mxu0
        %v600 = vadd.f32 %v463, %v599
        %v601 = vpop.f32.mrb[0].mxu0
        %v602 = vadd.f32 %v464, %v601
        %603 = vmatprep.mubr.f32.mxu0 0.0
        %604 = vmatmul.mubr.f32.gmra.mrb[0].mxu0 0.0
        %v605 = vpop.f32.mrb[0].mxu0
        %v606 = vadd.f32 %v467, %v605
        %v607 = vpop.f32.mrb[0].mxu0
        %v608 = vadd.f32 %v468, %v607
        %609 = vmatprep.mubr.f32.mxu0 0.0
        %610 = vmatmul.mubr.f32.gmra.mrb[0].mxu0 0.0
        %v611 = vpop.f32.mrb[0].mxu0
        %v612 = vadd.f32 %v471, %v611
        %v613 = vpop.f32.mrb[0].mxu0
        %v614 = vadd.f32 %v472, %v613
        %615 = vmatprep.mubr.f32.mxu0 0.0
        %616 = vmatmul.mubr.f32.gmra.mrb[0].mxu0 0.0
        %v617 = vpop.f32.mrb[0].mxu0
        %v618 = vadd.f32 %v475, %v617
        %v619 = vpop.f32.mrb[0].mxu0
        %v620 = vadd.f32 %v476, %v619
        %621 = vmatprep.mubr.f32.mxu0 0.0
        %622 = vmatmul.mubr.f32.gmra.mrb[0].mxu0 0.0
        %v623 = vpop.f32.mrb[0].mxu0
        %v624 = vadd.f32 %v479, %v623
        %v625 = vpop.f32.mrb[0].mxu0
        %v626 = vadd.f32 %v480, %v625
        %627 = vmatprep.mubr.f32.mxu0 0.0
        %628 = vmatmul.mubr.f32.gmra.mrb[0].mxu0 0.0
        %v629 = vpop.f32.mrb[0].mxu0
        %v630 = vadd.f32 %v483, %v629
        %v631 = vpop.f32.mrb[0].mxu0
        %v632 = vadd.f32 %v484, %v631
        %633 = vmatprep.mubr.f32.mxu0 0.0
        %634 = vmatmul.mubr.f32.gmra.mrb[0].mxu0 0.0
        %v635 = vpop.f32.mrb[0].mxu0
        %v636 = vadd.f32 %v487, %v635
        %v637 = vpop.f32.mrb[0].mxu0
        %v638 = vadd.f32 %v488, %v637
        %639 = vmatprep.mubr.f32.mxu0 0.0
        %640 = vmatmul.mubr.f32.gmra.mrb[0].mxu0 0.0
        %v641 = vpop.f32.mrb[0].mxu0
        %v642 = vadd.f32 %v491, %v641
        %v643 = vpop.f32.mrb[0].mxu0
        %v644 = vadd.f32 %v492, %v643
        %645 = vmatprep.mubr.f32.mxu0 0.0
        %646 = vmatmul.mubr.f32.gmra.mrb[0].mxu0 0.0
        %v647 = vpop.f32.mrb[0].mxu0
        %v648 = vadd.f32 %v495, %v647
        %v649 = vpop.f32.mrb[0].mxu0
        %v650 = vadd.f32 %v496, %v649
        %651 = vmatprep.mubr.f32.mxu0 0.0
        %652 = vmatmul.mubr.f32.gmra.mrb[0].mxu0 0.0
        %v653 = vpop.f32.mrb[0].mxu0
        %v654 = vadd.f32 %v499, %v653
        %v655 = vpop.f32.mrb[0].mxu0
        %v656 = vadd.f32 %v500, %v655
        %657 = vmatprep.mubr.f32.mxu0 0.0
        %658 = vmatmul.mubr.f32.gmra.mrb[0].mxu0 0.0
        %v659 = vpop.f32.mrb[0].mxu0
        %v660 = vadd.f32 %v503, %v659
        %v661 = vpop.f32.mrb[0].mxu0
        %v662 = vadd.f32 %v504, %v661
        %663 = vmatprep.mubr.f32.mxu0 0.0
        %664 = vmatmul.mubr.f32.gmra.mrb[0].mxu0 0.0
        %v665 = vpop.f32.mrb[0].mxu0
        %v666 = vadd.f32 %v507, %v665
        %v667 = vpop.f32.mrb[0].mxu0
        %v668 = vadd.f32 %v508, %v667
        %669 = vmatprep.mubr.f32.mxu0 0.0
        %670 = vmatmul.mubr.f32.gmra.mrb[0].mxu0 0.0
        %v671 = vpop.f32.mrb[0].mxu0
        %v672 = vadd.f32 %v511, %v671
        %v673 = vpop.f32.mrb[0].mxu0
        %v674 = vadd.f32 %v512, %v673
        %675 = vdwg.mxu0
        %676 = vmatprep.subr.mxu0 %v289
        %677 = vmatpush1.msra.mxu0 %v288
        %678 = vmatprep.subr.mxu0 %v293
        %679 = vmatpush1.msra.mxu0 %v292
        %680 = vmatprep.subr.mxu0 %v297
        %681 = vmatpush1.msra.mxu0 %v296
        %682 = vmatprep.subr.mxu0 %v301
        %683 = vmatpush1.msra.mxu0 %v300
        %684 = vmatprep.subr.mxu0 %v305
        %685 = vmatpush1.msra.mxu0 %v304
        %686 = vmatprep.subr.mxu0 %v309
        %687 = vmatpush1.msra.mxu0 %v308
        %688 = vmatprep.subr.mxu0 %v313
        %689 = vmatpush1.msra.mxu0 %v312
        %690 = vmatprep.subr.mxu0 %v317
        %691 = vmatpush1.msra.mxu0 %v316
        %692 = vmatprep.subr.mxu0 %v321
        %693 = vmatpush1.msra.mxu0 %v320
        %694 = vmatprep.subr.mxu0 %v325
        %695 = vmatpush1.msra.mxu0 %v324
        %696 = vmatprep.subr.mxu0 %v329
        %697 = vmatpush1.msra.mxu0 %v328
        %698 = vmatprep.subr.mxu0 %v333
        %699 = vmatpush1.msra.mxu0 %v332
        %700 = vmatprep.subr.mxu0 %v337
        %701 = vmatpush1.msra.mxu0 %v336
        %702 = vmatprep.subr.mxu0 %v341
        %703 = vmatpush1.msra.mxu0 %v340
        %704 = vmatprep.subr.mxu0 %v345
        %705 = vmatpush1.msra.mxu0 %v344
        %706 = vmatprep.subr.mxu0 %v349
        %707 = vmatpush1.msra.mxu0 %v348
        %708 = vmatprep.subr.mxu0 0.0
        %709 = vmatpush1.msra.mxu0 0.0
        %710 = vmatprep.subr.mxu0 0.0
        %711 = vmatpush1.msra.mxu0 0.0
        %712 = vmatprep.subr.mxu0 0.0
        %713 = vmatpush1.msra.mxu0 0.0
        %714 = vmatprep.subr.mxu0 0.0
        %715 = vmatpush1.msra.mxu0 0.0
        %716 = vmatprep.subr.mxu0 0.0
        %717 = vmatpush1.msra.mxu0 0.0
        %718 = vmatprep.subr.mxu0 0.0
        %719 = vmatpush1.msra.mxu0 0.0
        %720 = vmatprep.subr.mxu0 0.0
        %721 = vmatpush1.msra.mxu0 0.0
        %722 = vmatprep.subr.mxu0 0.0
        %723 = vmatpush1.msra.mxu0 0.0
        %724 = vmatprep.subr.mxu0 0.0
        %725 = vmatpush1.msra.mxu0 0.0
        %726 = vmatprep.subr.mxu0 0.0
        %727 = vmatpush1.msra.mxu0 0.0
        %728 = vmatprep.subr.mxu0 0.0
        %729 = vmatpush1.msra.mxu0 0.0
        %730 = vmatprep.subr.mxu0 0.0
        %731 = vmatpush1.msra.mxu0 0.0
        %732 = vmatprep.subr.mxu0 0.0
        %733 = vmatpush1.msra.mxu0 0.0
        %734 = vmatprep.subr.mxu0 0.0
        %735 = vmatpush1.msra.mxu0 0.0
        %736 = vmatprep.subr.mxu0 0.0
        %737 = vmatpush1.msra.mxu0 0.0
        %738 = vmatprep.subr.mxu0 0.0
        %739 = vmatpush1.msra.mxu0 0.0
        %740 = vmatprep.mubr.f32.mxu0 0.0
        %741 = vmatmul.mubr.f32.gmra.mrb[0].mxu0 0.0
        %v742 = vpop.f32.mrb[0].mxu0
        %v743 = vadd.f32 %v453, %v742
        %v744 = vpop.f32.mrb[0].mxu0
        %v745 = vadd.f32 %v454, %v744
        %746 = vmatprep.mubr.f32.mxu0 0.0
        %747 = vmatmul.mubr.f32.gmra.mrb[0].mxu0 0.0
        %v748 = vpop.f32.mrb[0].mxu0
        %v749 = vadd.f32 %v457, %v748
        %v750 = vpop.f32.mrb[0].mxu0
        %v751 = vadd.f32 %v458, %v750
        %752 = vmatprep.mubr.f32.mxu0 0.0
        %753 = vmatmul.mubr.f32.gmra.mrb[0].mxu0 0.0
        %v754 = vpop.f32.mrb[0].mxu0
        %v755 = vadd.f32 %v461, %v754
        %v756 = vpop.f32.mrb[0].mxu0
        %v757 = vadd.f32 %v462, %v756
        %758 = vmatprep.mubr.f32.mxu0 0.0
        %759 = vmatmul.mubr.f32.gmra.mrb[0].mxu0 0.0
        %v760 = vpop.f32.mrb[0].mxu0
        %v761 = vadd.f32 %v465, %v760
        %v762 = vpop.f32.mrb[0].mxu0
        %v763 = vadd.f32 %v466, %v762
        %764 = vmatprep.mubr.f32.mxu0 0.0
        %765 = vmatmul.mubr.f32.gmra.mrb[0].mxu0 0.0
        %v766 = vpop.f32.mrb[0].mxu0
        %v767 = vadd.f32 %v469, %v766
        %v768 = vpop.f32.mrb[0].mxu0
        %v769 = vadd.f32 %v470, %v768
        %770 = vmatprep.mubr.f32.mxu0 0.0
        %771 = vmatmul.mubr.f32.gmra.mrb[0].mxu0 0.0
        %v772 = vpop.f32.mrb[0].mxu0
        %v773 = vadd.f32 %v473, %v772
        %v774 = vpop.f32.mrb[0].mxu0
        %v775 = vadd.f32 %v474, %v774
        %776 = vmatprep.mubr.f32.mxu0 0.0
        %777 = vmatmul.mubr.f32.gmra.mrb[0].mxu0 0.0
        %v778 = vpop.f32.mrb[0].mxu0
        %v779 = vadd.f32 %v477, %v778
        %v780 = vpop.f32.mrb[0].mxu0
        %v781 = vadd.f32 %v478, %v780
        %782 = vmatprep.mubr.f32.mxu0 0.0
        %783 = vmatmul.mubr.f32.gmra.mrb[0].mxu0 0.0
        %v784 = vpop.f32.mrb[0].mxu0
        %v785 = vadd.f32 %v481, %v784
        %v786 = vpop.f32.mrb[0].mxu0
        %v787 = vadd.f32 %v482, %v786
        %788 = vmatprep.mubr.f32.mxu0 0.0
        %789 = vmatmul.mubr.f32.gmra.mrb[0].mxu0 0.0
        %v790 = vpop.f32.mrb[0].mxu0
        %v791 = vadd.f32 %v485, %v790
        %v792 = vpop.f32.mrb[0].mxu0
        %v793 = vadd.f32 %v486, %v792
        %794 = vmatprep.mubr.f32.mxu0 0.0
        %795 = vmatmul.mubr.f32.gmra.mrb[0].mxu0 0.0
        %v796 = vpop.f32.mrb[0].mxu0
        %v797 = vadd.f32 %v489, %v796
        %v798 = vpop.f32.mrb[0].mxu0
        %v799 = vadd.f32 %v490, %v798
        %800 = vmatprep.mubr.f32.mxu0 0.0
        %801 = vmatmul.mubr.f32.gmra.mrb[0].mxu0 0.0
        %v802 = vpop.f32.mrb[0].mxu0
        %v803 = vadd.f32 %v493, %v802
        %v804 = vpop.f32.mrb[0].mxu0
        %v805 = vadd.f32 %v494, %v804
        %806 = vmatprep.mubr.f32.mxu0 0.0
        %807 = vmatmul.mubr.f32.gmra.mrb[0].mxu0 0.0
        %v808 = vpop.f32.mrb[0].mxu0
        %v809 = vadd.f32 %v497, %v808
        %v810 = vpop.f32.mrb[0].mxu0
        %v811 = vadd.f32 %v498, %v810
        %812 = vmatprep.mubr.f32.mxu0 0.0
        %813 = vmatmul.mubr.f32.gmra.mrb[0].mxu0 0.0
        %v814 = vpop.f32.mrb[0].mxu0
        %v815 = vadd.f32 %v501, %v814
        %v816 = vpop.f32.mrb[0].mxu0
        %v817 = vadd.f32 %v502, %v816
        %818 = vmatprep.mubr.f32.mxu0 0.0
        %819 = vmatmul.mubr.f32.gmra.mrb[0].mxu0 0.0
        %v820 = vpop.f32.mrb[0].mxu0
        %v821 = vadd.f32 %v505, %v820
        %v822 = vpop.f32.mrb[0].mxu0
        %v823 = vadd.f32 %v506, %v822
        %824 = vmatprep.mubr.f32.mxu0 0.0
        %825 = vmatmul.mubr.f32.gmra.mrb[0].mxu0 0.0
        %v826 = vpop.f32.mrb[0].mxu0
        %v827 = vadd.f32 %v509, %v826
        %v828 = vpop.f32.mrb[0].mxu0
        %v829 = vadd.f32 %v510, %v828
        %830 = vmatprep.mubr.f32.mxu0 0.0
        %831 = vmatmul.mubr.f32.gmra.mrb[0].mxu0 0.0
        %v832 = vpop.f32.mrb[0].mxu0
        %v833 = vadd.f32 %v513, %v832
        %v834 = vpop.f32.mrb[0].mxu0
        %v835 = vadd.f32 %v514, %v834
        %836 = vdwg.mxu0
        %v838 = vlaneseq
        %v839 = vshrl.u32 %v838, 7
        %v840 = vsub.s32 0, %v839
        %v841 = vrot.slane %v269, %v840
        %v842 = vlaneseq
        %v843 = vshrl.u32 %v842, 7
        %v844 = vsub.s32 1, %v843
        %v845 = vrot.slane %v269, %v844
        %v846 = vlaneseq
        %v847 = vshrl.u32 %v846, 7
        %v848 = vsub.s32 2, %v847
        %v849 = vrot.slane %v269, %v848
        %v850 = vlaneseq
        %v851 = vshrl.u32 %v850, 7
        %v852 = vsub.s32 3, %v851
        %v853 = vrot.slane %v269, %v852
        %v858 = vadd.f32 %v582, %v841
        %v859 = vadd.f32 %v584, %v845
        %v860 = vadd.f32 %v743, %v849
        %v861 = vadd.f32 %v745, %v853
        %v862 = vadd.f32 %v588, %v841
        %v863 = vadd.f32 %v590, %v845
        %v864 = vadd.f32 %v749, %v849
        %v865 = vadd.f32 %v751, %v853
        %v866 = vadd.f32 %v594, %v841
        %v867 = vadd.f32 %v596, %v845
        %v868 = vadd.f32 %v755, %v849
        %v869 = vadd.f32 %v757, %v853
        %v870 = vadd.f32 %v600, %v841
        %v871 = vadd.f32 %v602, %v845
        %v872 = vadd.f32 %v761, %v849
        %v873 = vadd.f32 %v763, %v853
        %v874 = vadd.f32 %v606, %v841
        %v875 = vadd.f32 %v608, %v845
        %v876 = vadd.f32 %v767, %v849
        %v877 = vadd.f32 %v769, %v853
        %v878 = vadd.f32 %v612, %v841
        %v879 = vadd.f32 %v614, %v845
        %v880 = vadd.f32 %v773, %v849
        %v881 = vadd.f32 %v775, %v853
        %v882 = vadd.f32 %v618, %v841
        %v883 = vadd.f32 %v620, %v845
        %v884 = vadd.f32 %v779, %v849
        %v885 = vadd.f32 %v781, %v853
        %v886 = vadd.f32 %v624, %v841
        %v887 = vadd.f32 %v626, %v845
        %v888 = vadd.f32 %v785, %v849
        %v889 = vadd.f32 %v787, %v853
        %v890 = vadd.f32 %v630, %v841
        %v891 = vadd.f32 %v632, %v845
        %v892 = vadd.f32 %v791, %v849
        %v893 = vadd.f32 %v793, %v853
        %v894 = vadd.f32 %v636, %v841
        %v895 = vadd.f32 %v638, %v845
        %v896 = vadd.f32 %v797, %v849
        %v897 = vadd.f32 %v799, %v853
        %v898 = vadd.f32 %v642, %v841
        %v899 = vadd.f32 %v644, %v845
        %v900 = vadd.f32 %v803, %v849
        %v901 = vadd.f32 %v805, %v853
        %v902 = vadd.f32 %v648, %v841
        %v903 = vadd.f32 %v650, %v845
        %v904 = vadd.f32 %v809, %v849
        %v905 = vadd.f32 %v811, %v853
        %v906 = vadd.f32 %v654, %v841
        %v907 = vadd.f32 %v656, %v845
        %v908 = vadd.f32 %v815, %v849
        %v909 = vadd.f32 %v817, %v853
        %v910 = vadd.f32 %v660, %v841
        %v911 = vadd.f32 %v662, %v845
        %v912 = vadd.f32 %v821, %v849
        %v913 = vadd.f32 %v823, %v853
        %v914 = vadd.f32 %v666, %v841
        %v915 = vadd.f32 %v668, %v845
        %v916 = vadd.f32 %v827, %v849
        %v917 = vadd.f32 %v829, %v853
        %v918 = vadd.f32 %v672, %v841
        %v919 = vadd.f32 %v674, %v845
        %v920 = vadd.f32 %v833, %v849
        %v921 = vadd.f32 %v835, %v853
        %v922 = vxor.u32 %v858, 2147483648
        %v923 = vxor.u32 %v859, 2147483648
        %v924 = vxor.u32 %v860, 2147483648
        %v925 = vxor.u32 %v862, 2147483648
        %v926 = vxor.u32 %v863, 2147483648
        %v927 = vxor.u32 %v864, 2147483648
        %v928 = vxor.u32 %v866, 2147483648
        %v929 = vxor.u32 %v867, 2147483648
        %v930 = vxor.u32 %v868, 2147483648
        %v931 = vxor.u32 %v870, 2147483648
        %v932 = vxor.u32 %v871, 2147483648
        %v933 = vxor.u32 %v872, 2147483648
        %v934 = vxor.u32 %v874, 2147483648
        %v935 = vxor.u32 %v875, 2147483648
        %v936 = vxor.u32 %v876, 2147483648
        %v937 = vxor.u32 %v878, 2147483648
        %v938 = vxor.u32 %v879, 2147483648
        %v939 = vxor.u32 %v880, 2147483648
        %v940 = vxor.u32 %v882, 2147483648
        %v941 = vxor.u32 %v883, 2147483648
        %v942 = vxor.u32 %v884, 2147483648
        %v943 = vxor.u32 %v886, 2147483648
        %v944 = vxor.u32 %v887, 2147483648
        %v945 = vxor.u32 %v888, 2147483648
        %v946 = vxor.u32 %v890, 2147483648
        %v947 = vxor.u32 %v891, 2147483648
        %v948 = vxor.u32 %v892, 2147483648
        %v949 = vxor.u32 %v894, 2147483648
        %v950 = vxor.u32 %v895, 2147483648
        %v951 = vxor.u32 %v896, 2147483648
        %v952 = vxor.u32 %v898, 2147483648
        %v953 = vxor.u32 %v899, 2147483648
        %v954 = vxor.u32 %v900, 2147483648
        %v955 = vxor.u32 %v902, 2147483648
        %v956 = vxor.u32 %v903, 2147483648
        %v957 = vxor.u32 %v904, 2147483648
        %v958 = vxor.u32 %v906, 2147483648
        %v959 = vxor.u32 %v907, 2147483648
        %v960 = vxor.u32 %v908, 2147483648
        %v961 = vxor.u32 %v910, 2147483648
        %v962 = vxor.u32 %v911, 2147483648
        %v963 = vxor.u32 %v912, 2147483648
        %v964 = vxor.u32 %v914, 2147483648
        %v965 = vxor.u32 %v915, 2147483648
        %v966 = vxor.u32 %v916, 2147483648
        %v967 = vxor.u32 %v918, 2147483648
        %v968 = vxor.u32 %v919, 2147483648
        %v969 = vxor.u32 %v920, 2147483648
        %v970 = vmul.f32 %v922, 1.442695
        %v971 = vpow.pop %v970
        %v972 = vmul.f32 %v923, 1.442695
        %v973 = vpow.pop %v972
        %v974 = vmul.f32 %v924, 1.442695
        %v975 = vpow.pop %v974
        %v976 = vmul.f32 %v925, 1.442695
        %v977 = vpow.pop %v976
        %v978 = vmul.f32 %v926, 1.442695
        %v979 = vpow.pop %v978
        %v980 = vmul.f32 %v927, 1.442695
        %v981 = vpow.pop %v980
        %v982 = vmul.f32 %v928, 1.442695
        %v983 = vpow.pop %v982
        %v984 = vmul.f32 %v929, 1.442695
        %v985 = vpow.pop %v984
        %v986 = vmul.f32 %v930, 1.442695
        %v987 = vpow.pop %v986
        %v988 = vmul.f32 %v931, 1.442695
        %v989 = vpow.pop %v988
        %v990 = vmul.f32 %v932, 1.442695
        %v991 = vpow.pop %v990
        %v992 = vmul.f32 %v933, 1.442695
        %v993 = vpow.pop %v992
        %v994 = vmul.f32 %v934, 1.442695
        %v995 = vpow.pop %v994
        %v996 = vmul.f32 %v935, 1.442695
        %v997 = vpow.pop %v996
        %v998 = vmul.f32 %v936, 1.442695
        %v999 = vpow.pop %v998
        %v1000 = vmul.f32 %v937, 1.442695
        %v1001 = vpow.pop %v1000
        %v1002 = vmul.f32 %v938, 1.442695
        %v1003 = vpow.pop %v1002
        %v1004 = vmul.f32 %v939, 1.442695
        %v1005 = vpow.pop %v1004
        %v1006 = vmul.f32 %v940, 1.442695
        %v1007 = vpow.pop %v1006
        %v1008 = vmul.f32 %v941, 1.442695
        %v1009 = vpow.pop %v1008
        %v1010 = vmul.f32 %v942, 1.442695
        %v1011 = vpow.pop %v1010
        %v1012 = vmul.f32 %v943, 1.442695
        %v1013 = vpow.pop %v1012
        %v1014 = vmul.f32 %v944, 1.442695
        %v1015 = vpow.pop %v1014
        %v1016 = vmul.f32 %v945, 1.442695
        %v1017 = vpow.pop %v1016
        %v1018 = vmul.f32 %v946, 1.442695
        %v1019 = vpow.pop %v1018
        %v1020 = vmul.f32 %v947, 1.442695
        %v1021 = vpow.pop %v1020
        %v1022 = vmul.f32 %v948, 1.442695
        %v1023 = vpow.pop %v1022
        %v1024 = vmul.f32 %v949, 1.442695
        %v1025 = vpow.pop %v1024
        %v1026 = vmul.f32 %v950, 1.442695
        %v1027 = vpow.pop %v1026
        %v1028 = vmul.f32 %v951, 1.442695
        %v1029 = vpow.pop %v1028
        %v1030 = vmul.f32 %v952, 1.442695
        %v1031 = vpow.pop %v1030
        %v1032 = vmul.f32 %v953, 1.442695
        %v1033 = vpow.pop %v1032
        %v1034 = vmul.f32 %v954, 1.442695
        %v1035 = vpow.pop %v1034
        %v1036 = vmul.f32 %v955, 1.442695
        %v1037 = vpow.pop %v1036
        %v1038 = vmul.f32 %v956, 1.442695
        %v1039 = vpow.pop %v1038
        %v1040 = vmul.f32 %v957, 1.442695
        %v1041 = vpow.pop %v1040
        %v1042 = vmul.f32 %v958, 1.442695
        %v1043 = vpow.pop %v1042
        %v1044 = vmul.f32 %v959, 1.442695
        %v1045 = vpow.pop %v1044
        %v1046 = vmul.f32 %v960, 1.442695
        %v1047 = vpow.pop %v1046
        %v1048 = vmul.f32 %v961, 1.442695
        %v1049 = vpow.pop %v1048
        %v1050 = vmul.f32 %v962, 1.442695
        %v1051 = vpow.pop %v1050
        %v1052 = vmul.f32 %v963, 1.442695
        %v1053 = vpow.pop %v1052
        %v1054 = vmul.f32 %v964, 1.442695
        %v1055 = vpow.pop %v1054
        %v1056 = vmul.f32 %v965, 1.442695
        %v1057 = vpow.pop %v1056
        %v1058 = vmul.f32 %v966, 1.442695
        %v1059 = vpow.pop %v1058
        %v1060 = vmul.f32 %v967, 1.442695
        %v1061 = vpow.pop %v1060
        %v1062 = vmul.f32 %v968, 1.442695
        %v1063 = vpow.pop %v1062
        %v1064 = vmul.f32 %v969, 1.442695
        %v1065 = vpow.pop %v1064
        %v1066 = vadd.f32 %v971, 1.0
        %v1067 = vadd.f32 %v973, 1.0
        %v1068 = vadd.f32 %v975, 1.0
        %v1069 = vadd.f32 %v977, 1.0
        %v1070 = vadd.f32 %v979, 1.0
        %v1071 = vadd.f32 %v981, 1.0
        %v1072 = vadd.f32 %v983, 1.0
        %v1073 = vadd.f32 %v985, 1.0
        %v1074 = vadd.f32 %v987, 1.0
        %v1075 = vadd.f32 %v989, 1.0
        %v1076 = vadd.f32 %v991, 1.0
        %v1077 = vadd.f32 %v993, 1.0
        %v1078 = vadd.f32 %v995, 1.0
        %v1079 = vadd.f32 %v997, 1.0
        %v1080 = vadd.f32 %v999, 1.0
        %v1081 = vadd.f32 %v1001, 1.0
        %v1082 = vadd.f32 %v1003, 1.0
        %v1083 = vadd.f32 %v1005, 1.0
        %v1084 = vadd.f32 %v1007, 1.0
        %v1085 = vadd.f32 %v1009, 1.0
        %v1086 = vadd.f32 %v1011, 1.0
        %v1087 = vadd.f32 %v1013, 1.0
        %v1088 = vadd.f32 %v1015, 1.0
        %v1089 = vadd.f32 %v1017, 1.0
        %v1090 = vadd.f32 %v1019, 1.0
        %v1091 = vadd.f32 %v1021, 1.0
        %v1092 = vadd.f32 %v1023, 1.0
        %v1093 = vadd.f32 %v1025, 1.0
        %v1094 = vadd.f32 %v1027, 1.0
        %v1095 = vadd.f32 %v1029, 1.0
        %v1096 = vadd.f32 %v1031, 1.0
        %v1097 = vadd.f32 %v1033, 1.0
        %v1098 = vadd.f32 %v1035, 1.0
        %v1099 = vadd.f32 %v1037, 1.0
        %v1100 = vadd.f32 %v1039, 1.0
        %v1101 = vadd.f32 %v1041, 1.0
        %v1102 = vadd.f32 %v1043, 1.0
        %v1103 = vadd.f32 %v1045, 1.0
        %v1104 = vadd.f32 %v1047, 1.0
        %v1105 = vadd.f32 %v1049, 1.0
        %v1106 = vadd.f32 %v1051, 1.0
        %v1107 = vadd.f32 %v1053, 1.0
        %v1108 = vadd.f32 %v1055, 1.0
        %v1109 = vadd.f32 %v1057, 1.0
        %v1110 = vadd.f32 %v1059, 1.0
        %v1111 = vadd.f32 %v1061, 1.0
        %v1112 = vadd.f32 %v1063, 1.0
        %v1113 = vadd.f32 %v1065, 1.0
        %v1114 = vrcp.pop %v1066
        %v1115 = vmul.f32 1.0, %v1114
        %v1116 = vrcp.pop %v1067
        %v1117 = vmul.f32 1.0, %v1116
        %v1118 = vrcp.pop %v1068
        %v1119 = vmul.f32 1.0, %v1118
        %v1120 = vrcp.pop %v1069
        %v1121 = vmul.f32 1.0, %v1120
        %v1122 = vrcp.pop %v1070
        %v1123 = vmul.f32 1.0, %v1122
        %v1124 = vrcp.pop %v1071
        %v1125 = vmul.f32 1.0, %v1124
        %v1126 = vrcp.pop %v1072
        %v1127 = vmul.f32 1.0, %v1126
        %v1128 = vrcp.pop %v1073
        %v1129 = vmul.f32 1.0, %v1128
        %v1130 = vrcp.pop %v1074
        %v1131 = vmul.f32 1.0, %v1130
        %v1132 = vrcp.pop %v1075
        %v1133 = vmul.f32 1.0, %v1132
        %v1134 = vrcp.pop %v1076
        %v1135 = vmul.f32 1.0, %v1134
        %v1136 = vrcp.pop %v1077
        %v1137 = vmul.f32 1.0, %v1136
        %v1138 = vrcp.pop %v1078
        %v1139 = vmul.f32 1.0, %v1138
        %v1140 = vrcp.pop %v1079
        %v1141 = vmul.f32 1.0, %v1140
        %v1142 = vrcp.pop %v1080
        %v1143 = vmul.f32 1.0, %v1142
        %v1144 = vrcp.pop %v1081
        %v1145 = vmul.f32 1.0, %v1144
        %v1146 = vrcp.pop %v1082
        %v1147 = vmul.f32 1.0, %v1146
        %v1148 = vrcp.pop %v1083
        %v1149 = vmul.f32 1.0, %v1148
        %v1150 = vrcp.pop %v1084
        %v1151 = vmul.f32 1.0, %v1150
        %v1152 = vrcp.pop %v1085
        %v1153 = vmul.f32 1.0, %v1152
        %v1154 = vrcp.pop %v1086
        %v1155 = vmul.f32 1.0, %v1154
        %v1156 = vrcp.pop %v1087
        %v1157 = vmul.f32 1.0, %v1156
        %v1158 = vrcp.pop %v1088
        %v1159 = vmul.f32 1.0, %v1158
        %v1160 = vrcp.pop %v1089
        %v1161 = vmul.f32 1.0, %v1160
        %v1162 = vrcp.pop %v1090
        %v1163 = vmul.f32 1.0, %v1162
        %v1164 = vrcp.pop %v1091
        %v1165 = vmul.f32 1.0, %v1164
        %v1166 = vrcp.pop %v1092
        %v1167 = vmul.f32 1.0, %v1166
        %v1168 = vrcp.pop %v1093
        %v1169 = vmul.f32 1.0, %v1168
        %v1170 = vrcp.pop %v1094
        %v1171 = vmul.f32 1.0, %v1170
        %v1172 = vrcp.pop %v1095
        %v1173 = vmul.f32 1.0, %v1172
        %v1174 = vrcp.pop %v1096
        %v1175 = vmul.f32 1.0, %v1174
        %v1176 = vrcp.pop %v1097
        %v1177 = vmul.f32 1.0, %v1176
        %v1178 = vrcp.pop %v1098
        %v1179 = vmul.f32 1.0, %v1178
        %v1180 = vrcp.pop %v1099
        %v1181 = vmul.f32 1.0, %v1180
        %v1182 = vrcp.pop %v1100
        %v1183 = vmul.f32 1.0, %v1182
        %v1184 = vrcp.pop %v1101
        %v1185 = vmul.f32 1.0, %v1184
        %v1186 = vrcp.pop %v1102
        %v1187 = vmul.f32 1.0, %v1186
        %v1188 = vrcp.pop %v1103
        %v1189 = vmul.f32 1.0, %v1188
        %v1190 = vrcp.pop %v1104
        %v1191 = vmul.f32 1.0, %v1190
        %v1192 = vrcp.pop %v1105
        %v1193 = vmul.f32 1.0, %v1192
        %v1194 = vrcp.pop %v1106
        %v1195 = vmul.f32 1.0, %v1194
        %v1196 = vrcp.pop %v1107
        %v1197 = vmul.f32 1.0, %v1196
        %v1198 = vrcp.pop %v1108
        %v1199 = vmul.f32 1.0, %v1198
        %v1200 = vrcp.pop %v1109
        %v1201 = vmul.f32 1.0, %v1200
        %v1202 = vrcp.pop %v1110
        %v1203 = vmul.f32 1.0, %v1202
        %v1204 = vrcp.pop %v1111
        %v1205 = vmul.f32 1.0, %v1204
        %v1206 = vrcp.pop %v1112
        %v1207 = vmul.f32 1.0, %v1206
        %v1208 = vrcp.pop %v1113
        %v1209 = vmul.f32 1.0, %v1208
        %v1210 = vtanh.pop %v861
        %v1211 = vtanh.pop %v865
        %v1212 = vtanh.pop %v869
        %v1213 = vtanh.pop %v873
        %v1214 = vtanh.pop %v877
        %v1215 = vtanh.pop %v881
        %v1216 = vtanh.pop %v885
        %v1217 = vtanh.pop %v889
        %v1218 = vtanh.pop %v893
        %v1219 = vtanh.pop %v897
        %v1220 = vtanh.pop %v901
        %v1221 = vtanh.pop %v905
        %v1222 = vtanh.pop %v909
        %v1223 = vtanh.pop %v913
        %v1224 = vtanh.pop %v917
        %v1225 = vtanh.pop %v921
        %v1226 = vmul.f32 %v1117, 0.0
        %v1227 = vmul.f32 %v1123, 0.0
        %v1228 = vmul.f32 %v1129, 0.0
        %v1229 = vmul.f32 %v1135, 0.0
        %v1230 = vmul.f32 %v1141, 0.0
        %v1231 = vmul.f32 %v1147, 0.0
        %v1232 = vmul.f32 %v1153, 0.0
        %v1233 = vmul.f32 %v1159, 0.0
        %v1234 = vmul.f32 %v1165, 0.0
        %v1235 = vmul.f32 %v1171, 0.0
        %v1236 = vmul.f32 %v1177, 0.0
        %v1237 = vmul.f32 %v1183, 0.0
        %v1238 = vmul.f32 %v1189, 0.0
        %v1239 = vmul.f32 %v1195, 0.0
        %v1240 = vmul.f32 %v1201, 0.0
        %v1241 = vmul.f32 %v1207, 0.0
        %v1242 = vmul.f32 %v1115, %v1210
        %v1243 = vmul.f32 %v1121, %v1211
        %v1244 = vmul.f32 %v1127, %v1212
        %v1245 = vmul.f32 %v1133, %v1213
        %v1246 = vmul.f32 %v1139, %v1214
        %v1247 = vmul.f32 %v1145, %v1215
        %v1248 = vmul.f32 %v1151, %v1216
        %v1249 = vmul.f32 %v1157, %v1217
        %v1250 = vmul.f32 %v1163, %v1218
        %v1251 = vmul.f32 %v1169, %v1219
        %v1252 = vmul.f32 %v1175, %v1220
        %v1253 = vmul.f32 %v1181, %v1221
        %v1254 = vmul.f32 %v1187, %v1222
        %v1255 = vmul.f32 %v1193, %v1223
        %v1256 = vmul.f32 %v1199, %v1224
        %v1257 = vmul.f32 %v1205, %v1225
        %v1258 = vadd.f32 %v1226, %v1242
        %v1259 = vadd.f32 %v1227, %v1243
        %v1260 = vadd.f32 %v1228, %v1244
        %v1261 = vadd.f32 %v1229, %v1245
        %v1262 = vadd.f32 %v1230, %v1246
        %v1263 = vadd.f32 %v1231, %v1247
        %v1264 = vadd.f32 %v1232, %v1248
        %v1265 = vadd.f32 %v1233, %v1249
        %v1266 = vadd.f32 %v1234, %v1250
        %v1267 = vadd.f32 %v1235, %v1251
        %v1268 = vadd.f32 %v1236, %v1252
        %v1269 = vadd.f32 %v1237, %v1253
        %v1270 = vadd.f32 %v1238, %v1254
        %v1271 = vadd.f32 %v1239, %v1255
        %v1272 = vadd.f32 %v1240, %v1256
        %v1273 = vadd.f32 %v1241, %v1257
        %v1274 = vtanh.pop %v1258
        %v1275 = vtanh.pop %v1259
        %v1276 = vtanh.pop %v1260
        %v1277 = vtanh.pop %v1261
        %v1278 = vtanh.pop %v1262
        %v1279 = vtanh.pop %v1263
        %v1280 = vtanh.pop %v1264
        %v1281 = vtanh.pop %v1265
        %v1282 = vtanh.pop %v1266
        %v1283 = vtanh.pop %v1267
        %v1284 = vtanh.pop %v1268
        %v1285 = vtanh.pop %v1269
        %v1286 = vtanh.pop %v1270
        %v1287 = vtanh.pop %v1271
        %v1288 = vtanh.pop %v1272
        %v1289 = vtanh.pop %v1273
        %v1290 = vmul.f32 %v1119, %v1274
        %v1291 = vmul.f32 %v1125, %v1275
        %v1292 = vmul.f32 %v1131, %v1276
        %v1293 = vmul.f32 %v1137, %v1277
        %v1294 = vmul.f32 %v1143, %v1278
        %v1295 = vmul.f32 %v1149, %v1279
        %v1296 = vmul.f32 %v1155, %v1280
        %v1297 = vmul.f32 %v1161, %v1281
        %v1298 = vmul.f32 %v1167, %v1282
        %v1299 = vmul.f32 %v1173, %v1283
        %v1300 = vmul.f32 %v1179, %v1284
        %v1301 = vmul.f32 %v1185, %v1285
        %v1302 = vmul.f32 %v1191, %v1286
        %v1303 = vmul.f32 %v1197, %v1287
        %v1304 = vmul.f32 %v1203, %v1288
        %v1305 = vmul.f32 %v1209, %v1289
        %1306 = vset.pattern.permute.xlu0 1
        %1307 = vperm.xlu0 %1306, %v270
        %v1308 = vpop.permute.xlu0 %1307
        %1310 = vset.pattern.permute.xlu0 1
        %1311 = vperm.xlu0 %1310, %v271
        %v1312 = vpop.permute.xlu0 %1311
        %1314 = vset.pattern.permute.xlu0 1
        %1315 = vperm.xlu0 %1314, %v272
        %v1316 = vpop.permute.xlu0 %1315
        %1318 = vset.pattern.permute.xlu0 1
        %1319 = vperm.xlu0 %1318, %v273
        %v1320 = vpop.permute.xlu0 %1319
        %1322 = vset.pattern.permute.xlu0 1
        %1323 = vperm.xlu0 %1322, %v274
        %v1324 = vpop.permute.xlu0 %1323
        %1326 = vset.pattern.permute.xlu0 1
        %1327 = vperm.xlu0 %1326, %v275
        %v1328 = vpop.permute.xlu0 %1327
        %1330 = vset.pattern.permute.xlu0 1
        %1331 = vperm.xlu0 %1330, %v276
        %v1332 = vpop.permute.xlu0 %1331
        %1334 = vset.pattern.permute.xlu0 1
        %1335 = vperm.xlu0 %1334, %v277
        %v1336 = vpop.permute.xlu0 %1335
        %1338 = vset.pattern.permute.xlu0 1
        %1339 = vperm.xlu0 %1338, %v278
        %v1340 = vpop.permute.xlu0 %1339
        %1342 = vset.pattern.permute.xlu0 1
        %1343 = vperm.xlu0 %1342, %v279
        %v1344 = vpop.permute.xlu0 %1343
        %1346 = vset.pattern.permute.xlu0 1
        %1347 = vperm.xlu0 %1346, %v280
        %v1348 = vpop.permute.xlu0 %1347
        %1350 = vset.pattern.permute.xlu0 1
        %1351 = vperm.xlu0 %1350, %v281
        %v1352 = vpop.permute.xlu0 %1351
        %1354 = vset.pattern.permute.xlu0 1
        %1355 = vperm.xlu0 %1354, %v282
        %v1356 = vpop.permute.xlu0 %1355
        %1358 = vset.pattern.permute.xlu0 1
        %1359 = vperm.xlu0 %1358, %v283
        %v1360 = vpop.permute.xlu0 %1359
        %1362 = vset.pattern.permute.xlu0 1
        %1363 = vperm.xlu0 %1362, %v284
        %v1364 = vpop.permute.xlu0 %1363
        %1366 = vset.pattern.permute.xlu0 1
        %1367 = vperm.xlu0 %1366, %v285
        %v1368 = vpop.permute.xlu0 %1367
        %v1370 = vmul.f32 %v1308, %v434
        %v1371 = vmul.f32 %v1308, %v438
        %v1372 = vmul.f32 %v1308, %v442
        %v1373 = vmul.f32 %v1308, %v446
        %v1374 = vmul.f32 %v1312, %v434
        %v1375 = vmul.f32 %v1312, %v438
        %v1376 = vmul.f32 %v1312, %v442
        %v1377 = vmul.f32 %v1312, %v446
        %v1378 = vmul.f32 %v1316, %v434
        %v1379 = vmul.f32 %v1316, %v438
        %v1380 = vmul.f32 %v1316, %v442
        %v1381 = vmul.f32 %v1316, %v446
        %v1382 = vmul.f32 %v1320, %v434
        %v1383 = vmul.f32 %v1320, %v438
        %v1384 = vmul.f32 %v1320, %v442
        %v1385 = vmul.f32 %v1320, %v446
        %v1386 = vmul.f32 %v1324, %v434
        %v1387 = vmul.f32 %v1324, %v438
        %v1388 = vmul.f32 %v1324, %v442
        %v1389 = vmul.f32 %v1324, %v446
        %v1390 = vmul.f32 %v1328, %v434
        %v1391 = vmul.f32 %v1328, %v438
        %v1392 = vmul.f32 %v1328, %v442
        %v1393 = vmul.f32 %v1328, %v446
        %v1394 = vmul.f32 %v1332, %v434
        %v1395 = vmul.f32 %v1332, %v438
        %v1396 = vmul.f32 %v1332, %v442
        %v1397 = vmul.f32 %v1332, %v446
        %v1398 = vmul.f32 %v1336, %v434
        %v1399 = vmul.f32 %v1336, %v438
        %v1400 = vmul.f32 %v1336, %v442
        %v1401 = vmul.f32 %v1336, %v446
        %v1402 = vmul.f32 %v1340, %v434
        %v1403 = vmul.f32 %v1340, %v438
        %v1404 = vmul.f32 %v1340, %v442
        %v1405 = vmul.f32 %v1340, %v446
        %v1406 = vmul.f32 %v1344, %v434
        %v1407 = vmul.f32 %v1344, %v438
        %v1408 = vmul.f32 %v1344, %v442
        %v1409 = vmul.f32 %v1344, %v446
        %v1410 = vmul.f32 %v1348, %v434
        %v1411 = vmul.f32 %v1348, %v438
        %v1412 = vmul.f32 %v1348, %v442
        %v1413 = vmul.f32 %v1348, %v446
        %v1414 = vmul.f32 %v1352, %v434
        %v1415 = vmul.f32 %v1352, %v438
        %v1416 = vmul.f32 %v1352, %v442
        %v1417 = vmul.f32 %v1352, %v446
        %v1418 = vmul.f32 %v1356, %v434
        %v1419 = vmul.f32 %v1356, %v438
        %v1420 = vmul.f32 %v1356, %v442
        %v1421 = vmul.f32 %v1356, %v446
        %v1422 = vmul.f32 %v1360, %v434
        %v1423 = vmul.f32 %v1360, %v438
        %v1424 = vmul.f32 %v1360, %v442
        %v1425 = vmul.f32 %v1360, %v446
        %v1426 = vmul.f32 %v1364, %v434
        %v1427 = vmul.f32 %v1364, %v438
        %v1428 = vmul.f32 %v1364, %v442
        %v1429 = vmul.f32 %v1364, %v446
        %v1430 = vmul.f32 %v1368, %v434
        %v1431 = vmul.f32 %v1368, %v438
        %v1432 = vmul.f32 %v1368, %v442
        %v1433 = vmul.f32 %v1368, %v446
        %1434 = vmatprep.subr.mxu0 %v287
        %1435 = vmatpush1.msra.mxu0 %v286
        %1436 = vmatprep.subr.mxu0 %v291
        %1437 = vmatpush1.msra.mxu0 %v290
        %1438 = vmatprep.subr.mxu0 %v295
        %1439 = vmatpush1.msra.mxu0 %v294
        %1440 = vmatprep.subr.mxu0 %v299
        %1441 = vmatpush1.msra.mxu0 %v298
        %1442 = vmatprep.subr.mxu0 %v303
        %1443 = vmatpush1.msra.mxu0 %v302
        %1444 = vmatprep.subr.mxu0 %v307
        %1445 = vmatpush1.msra.mxu0 %v306
        %1446 = vmatprep.subr.mxu0 %v311
        %1447 = vmatpush1.msra.mxu0 %v310
        %1448 = vmatprep.subr.mxu0 %v315
        %1449 = vmatpush1.msra.mxu0 %v314
        %1450 = vmatprep.subr.mxu0 %v319
        %1451 = vmatpush1.msra.mxu0 %v318
        %1452 = vmatprep.subr.mxu0 %v323
        %1453 = vmatpush1.msra.mxu0 %v322
        %1454 = vmatprep.subr.mxu0 %v327
        %1455 = vmatpush1.msra.mxu0 %v326
        %1456 = vmatprep.subr.mxu0 %v331
        %1457 = vmatpush1.msra.mxu0 %v330
        %1458 = vmatprep.subr.mxu0 %v335
        %1459 = vmatpush1.msra.mxu0 %v334
        %1460 = vmatprep.subr.mxu0 %v339
        %1461 = vmatpush1.msra.mxu0 %v338
        %1462 = vmatprep.subr.mxu0 %v343
        %1463 = vmatpush1.msra.mxu0 %v342
        %1464 = vmatprep.subr.mxu0 %v347
        %1465 = vmatpush1.msra.mxu0 %v346
        %1466 = vmatprep.subr.mxu0 0.0
        %1467 = vmatpush1.msra.mxu0 0.0
        %1468 = vmatprep.subr.mxu0 0.0
        %1469 = vmatpush1.msra.mxu0 0.0
        %1470 = vmatprep.subr.mxu0 0.0
        %1471 = vmatpush1.msra.mxu0 0.0
        %1472 = vmatprep.subr.mxu0 0.0
        %1473 = vmatpush1.msra.mxu0 0.0
        %1474 = vmatprep.subr.mxu0 0.0
        %1475 = vmatpush1.msra.mxu0 0.0
        %1476 = vmatprep.subr.mxu0 0.0
        %1477 = vmatpush1.msra.mxu0 0.0
        %1478 = vmatprep.subr.mxu0 0.0
        %1479 = vmatpush1.msra.mxu0 0.0
        %1480 = vmatprep.subr.mxu0 0.0
        %1481 = vmatpush1.msra.mxu0 0.0
        %1482 = vmatprep.subr.mxu0 0.0
        %1483 = vmatpush1.msra.mxu0 0.0
        %1484 = vmatprep.subr.mxu0 0.0
        %1485 = vmatpush1.msra.mxu0 0.0
        %1486 = vmatprep.subr.mxu0 0.0
        %1487 = vmatpush1.msra.mxu0 0.0
        %1488 = vmatprep.subr.mxu0 0.0
        %1489 = vmatpush1.msra.mxu0 0.0
        %1490 = vmatprep.subr.mxu0 0.0
        %1491 = vmatpush1.msra.mxu0 0.0
        %1492 = vmatprep.subr.mxu0 0.0
        %1493 = vmatpush1.msra.mxu0 0.0
        %1494 = vmatprep.subr.mxu0 0.0
        %1495 = vmatpush1.msra.mxu0 0.0
        %1496 = vmatprep.subr.mxu0 0.0
        %1497 = vmatpush1.msra.mxu0 0.0
        %1498 = vmatprep.mubr.f32.mxu0 0.0
        %1499 = vmatmul.mubr.f32.gmra.mrb[0].mxu0 %v1290
        %v1500 = vpop.f32.mrb[0].mxu0
        %v1501 = vadd.f32 %v1370, %v1500
        %v1502 = vpop.f32.mrb[0].mxu0
        %v1503 = vadd.f32 %v1371, %v1502
        %1504 = vmatprep.mubr.f32.mxu0 0.0
        %1505 = vmatmul.mubr.f32.gmra.mrb[0].mxu0 %v1291
        %v1506 = vpop.f32.mrb[0].mxu0
        %v1507 = vadd.f32 %v1374, %v1506
        %v1508 = vpop.f32.mrb[0].mxu0
        %v1509 = vadd.f32 %v1375, %v1508
        %1510 = vmatprep.mubr.f32.mxu0 0.0
        %1511 = vmatmul.mubr.f32.gmra.mrb[0].mxu0 %v1292
        %v1512 = vpop.f32.mrb[0].mxu0
        %v1513 = vadd.f32 %v1378, %v1512
        %v1514 = vpop.f32.mrb[0].mxu0
        %v1515 = vadd.f32 %v1379, %v1514
        %1516 = vmatprep.mubr.f32.mxu0 0.0
        %1517 = vmatmul.mubr.f32.gmra.mrb[0].mxu0 %v1293
        %v1518 = vpop.f32.mrb[0].mxu0
        %v1519 = vadd.f32 %v1382, %v1518
        %v1520 = vpop.f32.mrb[0].mxu0
        %v1521 = vadd.f32 %v1383, %v1520
        %1522 = vmatprep.mubr.f32.mxu0 0.0
        %1523 = vmatmul.mubr.f32.gmra.mrb[0].mxu0 %v1294
        %v1524 = vpop.f32.mrb[0].mxu0
        %v1525 = vadd.f32 %v1386, %v1524
        %v1526 = vpop.f32.mrb[0].mxu0
        %v1527 = vadd.f32 %v1387, %v1526
        %1528 = vmatprep.mubr.f32.mxu0 0.0
        %1529 = vmatmul.mubr.f32.gmra.mrb[0].mxu0 %v1295
        %v1530 = vpop.f32.mrb[0].mxu0
        %v1531 = vadd.f32 %v1390, %v1530
        %v1532 = vpop.f32.mrb[0].mxu0
        %v1533 = vadd.f32 %v1391, %v1532
        %1534 = vmatprep.mubr.f32.mxu0 0.0
        %1535 = vmatmul.mubr.f32.gmra.mrb[0].mxu0 %v1296
        %v1536 = vpop.f32.mrb[0].mxu0
        %v1537 = vadd.f32 %v1394, %v1536
        %v1538 = vpop.f32.mrb[0].mxu0
        %v1539 = vadd.f32 %v1395, %v1538
        %1540 = vmatprep.mubr.f32.mxu0 0.0
        %1541 = vmatmul.mubr.f32.gmra.mrb[0].mxu0 %v1297
        %v1542 = vpop.f32.mrb[0].mxu0
        %v1543 = vadd.f32 %v1398, %v1542
        %v1544 = vpop.f32.mrb[0].mxu0
        %v1545 = vadd.f32 %v1399, %v1544
        %1546 = vmatprep.mubr.f32.mxu0 0.0
        %1547 = vmatmul.mubr.f32.gmra.mrb[0].mxu0 %v1298
        %v1548 = vpop.f32.mrb[0].mxu0
        %v1549 = vadd.f32 %v1402, %v1548
        %v1550 = vpop.f32.mrb[0].mxu0
        %v1551 = vadd.f32 %v1403, %v1550
        %1552 = vmatprep.mubr.f32.mxu0 0.0
        %1553 = vmatmul.mubr.f32.gmra.mrb[0].mxu0 %v1299
        %v1554 = vpop.f32.mrb[0].mxu0
        %v1555 = vadd.f32 %v1406, %v1554
        %v1556 = vpop.f32.mrb[0].mxu0
        %v1557 = vadd.f32 %v1407, %v1556
        %1558 = vmatprep.mubr.f32.mxu0 0.0
        %1559 = vmatmul.mubr.f32.gmra.mrb[0].mxu0 %v1300
        %v1560 = vpop.f32.mrb[0].mxu0
        %v1561 = vadd.f32 %v1410, %v1560
        %v1562 = vpop.f32.mrb[0].mxu0
        %v1563 = vadd.f32 %v1411, %v1562
        %1564 = vmatprep.mubr.f32.mxu0 0.0
        %1565 = vmatmul.mubr.f32.gmra.mrb[0].mxu0 %v1301
        %v1566 = vpop.f32.mrb[0].mxu0
        %v1567 = vadd.f32 %v1414, %v1566
        %v1568 = vpop.f32.mrb[0].mxu0
        %v1569 = vadd.f32 %v1415, %v1568
        %1570 = vmatprep.mubr.f32.mxu0 0.0
        %1571 = vmatmul.mubr.f32.gmra.mrb[0].mxu0 %v1302
        %v1572 = vpop.f32.mrb[0].mxu0
        %v1573 = vadd.f32 %v1418, %v1572
        %v1574 = vpop.f32.mrb[0].mxu0
        %v1575 = vadd.f32 %v1419, %v1574
        %1576 = vmatprep.mubr.f32.mxu0 0.0
        %1577 = vmatmul.mubr.f32.gmra.mrb[0].mxu0 %v1303
        %v1578 = vpop.f32.mrb[0].mxu0
        %v1579 = vadd.f32 %v1422, %v1578
        %v1580 = vpop.f32.mrb[0].mxu0
        %v1581 = vadd.f32 %v1423, %v1580
        %1582 = vmatprep.mubr.f32.mxu0 0.0
        %1583 = vmatmul.mubr.f32.gmra.mrb[0].mxu0 %v1304
        %v1584 = vpop.f32.mrb[0].mxu0
        %v1585 = vadd.f32 %v1426, %v1584
        %v1586 = vpop.f32.mrb[0].mxu0
        %v1587 = vadd.f32 %v1427, %v1586
        %1588 = vmatprep.mubr.f32.mxu0 0.0
        %1589 = vmatmul.mubr.f32.gmra.mrb[0].mxu0 %v1305
        %v1590 = vpop.f32.mrb[0].mxu0
        %v1591 = vadd.f32 %v1430, %v1590
        %v1592 = vpop.f32.mrb[0].mxu0
        %v1593 = vadd.f32 %v1431, %v1592
        %1594 = vdwg.mxu0
        %1595 = vmatprep.subr.mxu0 %v289
        %1596 = vmatpush1.msra.mxu0 %v288
        %1597 = vmatprep.subr.mxu0 %v293
        %1598 = vmatpush1.msra.mxu0 %v292
        %1599 = vmatprep.subr.mxu0 %v297
        %1600 = vmatpush1.msra.mxu0 %v296
        %1601 = vmatprep.subr.mxu0 %v301
        %1602 = vmatpush1.msra.mxu0 %v300
        %1603 = vmatprep.subr.mxu0 %v305
        %1604 = vmatpush1.msra.mxu0 %v304
        %1605 = vmatprep.subr.mxu0 %v309
        %1606 = vmatpush1.msra.mxu0 %v308
        %1607 = vmatprep.subr.mxu0 %v313
        %1608 = vmatpush1.msra.mxu0 %v312
        %1609 = vmatprep.subr.mxu0 %v317
        %1610 = vmatpush1.msra.mxu0 %v316
        %1611 = vmatprep.subr.mxu0 %v321
        %1612 = vmatpush1.msra.mxu0 %v320
        %1613 = vmatprep.subr.mxu0 %v325
        %1614 = vmatpush1.msra.mxu0 %v324
        %1615 = vmatprep.subr.mxu0 %v329
        %1616 = vmatpush1.msra.mxu0 %v328
        %1617 = vmatprep.subr.mxu0 %v333
        %1618 = vmatpush1.msra.mxu0 %v332
        %1619 = vmatprep.subr.mxu0 %v337
        %1620 = vmatpush1.msra.mxu0 %v336
        %1621 = vmatprep.subr.mxu0 %v341
        %1622 = vmatpush1.msra.mxu0 %v340
        %1623 = vmatprep.subr.mxu0 %v345
        %1624 = vmatpush1.msra.mxu0 %v344
        %1625 = vmatprep.subr.mxu0 %v349
        %1626 = vmatpush1.msra.mxu0 %v348
        %1627 = vmatprep.subr.mxu0 0.0
        %1628 = vmatpush1.msra.mxu0 0.0
        %1629 = vmatprep.subr.mxu0 0.0
        %1630 = vmatpush1.msra.mxu0 0.0
        %1631 = vmatprep.subr.mxu0 0.0
        %1632 = vmatpush1.msra.mxu0 0.0
        %1633 = vmatprep.subr.mxu0 0.0
        %1634 = vmatpush1.msra.mxu0 0.0
        %1635 = vmatprep.subr.mxu0 0.0
        %1636 = vmatpush1.msra.mxu0 0.0
        %1637 = vmatprep.subr.mxu0 0.0
        %1638 = vmatpush1.msra.mxu0 0.0
        %1639 = vmatprep.subr.mxu0 0.0
        %1640 = vmatpush1.msra.mxu0 0.0
        %1641 = vmatprep.subr.mxu0 0.0
        %1642 = vmatpush1.msra.mxu0 0.0
        %1643 = vmatprep.subr.mxu0 0.0
        %1644 = vmatpush1.msra.mxu0 0.0
        %1645 = vmatprep.subr.mxu0 0.0
        %1646 = vmatpush1.msra.mxu0 0.0
        %1647 = vmatprep.subr.mxu0 0.0
        %1648 = vmatpush1.msra.mxu0 0.0
        %1649 = vmatprep.subr.mxu0 0.0
        %1650 = vmatpush1.msra.mxu0 0.0
        %1651 = vmatprep.subr.mxu0 0.0
        %1652 = vmatpush1.msra.mxu0 0.0
        %1653 = vmatprep.subr.mxu0 0.0
        %1654 = vmatpush1.msra.mxu0 0.0
        %1655 = vmatprep.subr.mxu0 0.0
        %1656 = vmatpush1.msra.mxu0 0.0
        %1657 = vmatprep.subr.mxu0 0.0
        %1658 = vmatpush1.msra.mxu0 0.0
        %1659 = vmatprep.mubr.f32.mxu0 0.0
        %1660 = vmatmul.mubr.f32.gmra.mrb[0].mxu0 %v1290
        %v1661 = vpop.f32.mrb[0].mxu0
        %v1662 = vadd.f32 %v1372, %v1661
        %v1663 = vpop.f32.mrb[0].mxu0
        %v1664 = vadd.f32 %v1373, %v1663
        %1665 = vmatprep.mubr.f32.mxu0 0.0
        %1666 = vmatmul.mubr.f32.gmra.mrb[0].mxu0 %v1291
        %v1667 = vpop.f32.mrb[0].mxu0
        %v1668 = vadd.f32 %v1376, %v1667
        %v1669 = vpop.f32.mrb[0].mxu0
        %v1670 = vadd.f32 %v1377, %v1669
        %1671 = vmatprep.mubr.f32.mxu0 0.0
        %1672 = vmatmul.mubr.f32.gmra.mrb[0].mxu0 %v1292
        %v1673 = vpop.f32.mrb[0].mxu0
        %v1674 = vadd.f32 %v1380, %v1673
        %v1675 = vpop.f32.mrb[0].mxu0
        %v1676 = vadd.f32 %v1381, %v1675
        %1677 = vmatprep.mubr.f32.mxu0 0.0
        %1678 = vmatmul.mubr.f32.gmra.mrb[0].mxu0 %v1293
        %v1679 = vpop.f32.mrb[0].mxu0
        %v1680 = vadd.f32 %v1384, %v1679
        %v1681 = vpop.f32.mrb[0].mxu0
        %v1682 = vadd.f32 %v1385, %v1681
        %1683 = vmatprep.mubr.f32.mxu0 0.0
        %1684 = vmatmul.mubr.f32.gmra.mrb[0].mxu0 %v1294
        %v1685 = vpop.f32.mrb[0].mxu0
        %v1686 = vadd.f32 %v1388, %v1685
        %v1687 = vpop.f32.mrb[0].mxu0
        %v1688 = vadd.f32 %v1389, %v1687
        %1689 = vmatprep.mubr.f32.mxu0 0.0
        %1690 = vmatmul.mubr.f32.gmra.mrb[0].mxu0 %v1295
        %v1691 = vpop.f32.mrb[0].mxu0
        %v1692 = vadd.f32 %v1392, %v1691
        %v1693 = vpop.f32.mrb[0].mxu0
        %v1694 = vadd.f32 %v1393, %v1693
        %1695 = vmatprep.mubr.f32.mxu0 0.0
        %1696 = vmatmul.mubr.f32.gmra.mrb[0].mxu0 %v1296
        %v1697 = vpop.f32.mrb[0].mxu0
        %v1698 = vadd.f32 %v1396, %v1697
        %v1699 = vpop.f32.mrb[0].mxu0
        %v1700 = vadd.f32 %v1397, %v1699
        %1701 = vmatprep.mubr.f32.mxu0 0.0
        %1702 = vmatmul.mubr.f32.gmra.mrb[0].mxu0 %v1297
        %v1703 = vpop.f32.mrb[0].mxu0
        %v1704 = vadd.f32 %v1400, %v1703
        %v1705 = vpop.f32.mrb[0].mxu0
        %v1706 = vadd.f32 %v1401, %v1705
        %1707 = vmatprep.mubr.f32.mxu0 0.0
        %1708 = vmatmul.mubr.f32.gmra.mrb[0].mxu0 %v1298
        %v1709 = vpop.f32.mrb[0].mxu0
        %v1710 = vadd.f32 %v1404, %v1709
        %v1711 = vpop.f32.mrb[0].mxu0
        %v1712 = vadd.f32 %v1405, %v1711
        %1713 = vmatprep.mubr.f32.mxu0 0.0
        %1714 = vmatmul.mubr.f32.gmra.mrb[0].mxu0 %v1299
        %v1715 = vpop.f32.mrb[0].mxu0
        %v1716 = vadd.f32 %v1408, %v1715
        %v1717 = vpop.f32.mrb[0].mxu0
        %v1718 = vadd.f32 %v1409, %v1717
        %1719 = vmatprep.mubr.f32.mxu0 0.0
        %1720 = vmatmul.mubr.f32.gmra.mrb[0].mxu0 %v1300
        %v1721 = vpop.f32.mrb[0].mxu0
        %v1722 = vadd.f32 %v1412, %v1721
        %v1723 = vpop.f32.mrb[0].mxu0
        %v1724 = vadd.f32 %v1413, %v1723
        %1725 = vmatprep.mubr.f32.mxu0 0.0
        %1726 = vmatmul.mubr.f32.gmra.mrb[0].mxu0 %v1301
        %v1727 = vpop.f32.mrb[0].mxu0
        %v1728 = vadd.f32 %v1416, %v1727
        %v1729 = vpop.f32.mrb[0].mxu0
        %v1730 = vadd.f32 %v1417, %v1729
        %1731 = vmatprep.mubr.f32.mxu0 0.0
        %1732 = vmatmul.mubr.f32.gmra.mrb[0].mxu0 %v1302
        %v1733 = vpop.f32.mrb[0].mxu0
        %v1734 = vadd.f32 %v1420, %v1733
        %v1735 = vpop.f32.mrb[0].mxu0
        %v1736 = vadd.f32 %v1421, %v1735
        %1737 = vmatprep.mubr.f32.mxu0 0.0
        %1738 = vmatmul.mubr.f32.gmra.mrb[0].mxu0 %v1303
        %v1739 = vpop.f32.mrb[0].mxu0
        %v1740 = vadd.f32 %v1424, %v1739
        %v1741 = vpop.f32.mrb[0].mxu0
        %v1742 = vadd.f32 %v1425, %v1741
        %1743 = vmatprep.mubr.f32.mxu0 0.0
        %1744 = vmatmul.mubr.f32.gmra.mrb[0].mxu0 %v1304
        %v1745 = vpop.f32.mrb[0].mxu0
        %v1746 = vadd.f32 %v1428, %v1745
        %v1747 = vpop.f32.mrb[0].mxu0
        %v1748 = vadd.f32 %v1429, %v1747
        %1749 = vmatprep.mubr.f32.mxu0 0.0
        %1750 = vmatmul.mubr.f32.gmra.mrb[0].mxu0 %v1305
        %v1751 = vpop.f32.mrb[0].mxu0
        %v1752 = vadd.f32 %v1432, %v1751
        %v1753 = vpop.f32.mrb[0].mxu0
        %v1754 = vadd.f32 %v1433, %v1753
        %1755 = vdwg.mxu0
        %v1756 = vadd.f32 %v1501, %v841
        %v1757 = vadd.f32 %v1503, %v845
        %v1758 = vadd.f32 %v1662, %v849
        %v1759 = vadd.f32 %v1664, %v853
        %v1760 = vadd.f32 %v1507, %v841
        %v1761 = vadd.f32 %v1509, %v845
        %v1762 = vadd.f32 %v1668, %v849
        %v1763 = vadd.f32 %v1670, %v853
        %v1764 = vadd.f32 %v1513, %v841
        %v1765 = vadd.f32 %v1515, %v845
        %v1766 = vadd.f32 %v1674, %v849
        %v1767 = vadd.f32 %v1676, %v853
        %v1768 = vadd.f32 %v1519, %v841
        %v1769 = vadd.f32 %v1521, %v845
        %v1770 = vadd.f32 %v1680, %v849
        %v1771 = vadd.f32 %v1682, %v853
        %v1772 = vadd.f32 %v1525, %v841
        %v1773 = vadd.f32 %v1527, %v845
        %v1774 = vadd.f32 %v1686, %v849
        %v1775 = vadd.f32 %v1688, %v853
        %v1776 = vadd.f32 %v1531, %v841
        %v1777 = vadd.f32 %v1533, %v845
        %v1778 = vadd.f32 %v1692, %v849
        %v1779 = vadd.f32 %v1694, %v853
        %v1780 = vadd.f32 %v1537, %v841
        %v1781 = vadd.f32 %v1539, %v845
        %v1782 = vadd.f32 %v1698, %v849
        %v1783 = vadd.f32 %v1700, %v853
        %v1784 = vadd.f32 %v1543, %v841
        %v1785 = vadd.f32 %v1545, %v845
        %v1786 = vadd.f32 %v1704, %v849
        %v1787 = vadd.f32 %v1706, %v853
        %v1788 = vadd.f32 %v1549, %v841
        %v1789 = vadd.f32 %v1551, %v845
        %v1790 = vadd.f32 %v1710, %v849
        %v1791 = vadd.f32 %v1712, %v853
        %v1792 = vadd.f32 %v1555, %v841
        %v1793 = vadd.f32 %v1557, %v845
        %v1794 = vadd.f32 %v1716, %v849
        %v1795 = vadd.f32 %v1718, %v853
        %v1796 = vadd.f32 %v1561, %v841
        %v1797 = vadd.f32 %v1563, %v845
        %v1798 = vadd.f32 %v1722, %v849
        %v1799 = vadd.f32 %v1724, %v853
        %v1800 = vadd.f32 %v1567, %v841
        %v1801 = vadd.f32 %v1569, %v845
        %v1802 = vadd.f32 %v1728, %v849
        %v1803 = vadd.f32 %v1730, %v853
        %v1804 = vadd.f32 %v1573, %v841
        %v1805 = vadd.f32 %v1575, %v845
        %v1806 = vadd.f32 %v1734, %v849
        %v1807 = vadd.f32 %v1736, %v853
        %v1808 = vadd.f32 %v1579, %v841
        %v1809 = vadd.f32 %v1581, %v845
        %v1810 = vadd.f32 %v1740, %v849
        %v1811 = vadd.f32 %v1742, %v853
        %v1812 = vadd.f32 %v1585, %v841
        %v1813 = vadd.f32 %v1587, %v845
        %v1814 = vadd.f32 %v1746, %v849
        %v1815 = vadd.f32 %v1748, %v853
        %v1816 = vadd.f32 %v1591, %v841
        %v1817 = vadd.f32 %v1593, %v845
        %v1818 = vadd.f32 %v1752, %v849
        %v1819 = vadd.f32 %v1754, %v853
        %v1820 = vxor.u32 %v1756, 2147483648
        %v1821 = vxor.u32 %v1757, 2147483648
        %v1822 = vxor.u32 %v1758, 2147483648
        %v1823 = vxor.u32 %v1760, 2147483648
        %v1824 = vxor.u32 %v1761, 2147483648
        %v1825 = vxor.u32 %v1762, 2147483648
        %v1826 = vxor.u32 %v1764, 2147483648
        %v1827 = vxor.u32 %v1765, 2147483648
        %v1828 = vxor.u32 %v1766, 2147483648
        %v1829 = vxor.u32 %v1768, 2147483648
        %v1830 = vxor.u32 %v1769, 2147483648
        %v1831 = vxor.u32 %v1770, 2147483648
        %v1832 = vxor.u32 %v1772, 2147483648
        %v1833 = vxor.u32 %v1773, 2147483648
        %v1834 = vxor.u32 %v1774, 2147483648
        %v1835 = vxor.u32 %v1776, 2147483648
        %v1836 = vxor.u32 %v1777, 2147483648
        %v1837 = vxor.u32 %v1778, 2147483648
        %v1838 = vxor.u32 %v1780, 2147483648
        %v1839 = vxor.u32 %v1781, 2147483648
        %v1840 = vxor.u32 %v1782, 2147483648
        %v1841 = vxor.u32 %v1784, 2147483648
        %v1842 = vxor.u32 %v1785, 2147483648
        %v1843 = vxor.u32 %v1786, 2147483648
        %v1844 = vxor.u32 %v1788, 2147483648
        %v1845 = vxor.u32 %v1789, 2147483648
        %v1846 = vxor.u32 %v1790, 2147483648
        %v1847 = vxor.u32 %v1792, 2147483648
        %v1848 = vxor.u32 %v1793, 2147483648
        %v1849 = vxor.u32 %v1794, 2147483648
        %v1850 = vxor.u32 %v1796, 2147483648
        %v1851 = vxor.u32 %v1797, 2147483648
        %v1852 = vxor.u32 %v1798, 2147483648
        %v1853 = vxor.u32 %v1800, 2147483648
        %v1854 = vxor.u32 %v1801, 2147483648
        %v1855 = vxor.u32 %v1802, 2147483648
        %v1856 = vxor.u32 %v1804, 2147483648
        %v1857 = vxor.u32 %v1805, 2147483648
        %v1858 = vxor.u32 %v1806, 2147483648
        %v1859 = vxor.u32 %v1808, 2147483648
        %v1860 = vxor.u32 %v1809, 2147483648
        %v1861 = vxor.u32 %v1810, 2147483648
        %v1862 = vxor.u32 %v1812, 2147483648
        %v1863 = vxor.u32 %v1813, 2147483648
        %v1864 = vxor.u32 %v1814, 2147483648
        %v1865 = vxor.u32 %v1816, 2147483648
        %v1866 = vxor.u32 %v1817, 2147483648
        %v1867 = vxor.u32 %v1818, 2147483648
        %v1868 = vmul.f32 %v1820, 1.442695
        %v1869 = vpow.pop %v1868
        %v1870 = vmul.f32 %v1821, 1.442695
        %v1871 = vpow.pop %v1870
        %v1872 = vmul.f32 %v1822, 1.442695
        %v1873 = vpow.pop %v1872
        %v1874 = vmul.f32 %v1823, 1.442695
        %v1875 = vpow.pop %v1874
        %v1876 = vmul.f32 %v1824, 1.442695
        %v1877 = vpow.pop %v1876
        %v1878 = vmul.f32 %v1825, 1.442695
        %v1879 = vpow.pop %v1878
        %v1880 = vmul.f32 %v1826, 1.442695
        %v1881 = vpow.pop %v1880
        %v1882 = vmul.f32 %v1827, 1.442695
        %v1883 = vpow.pop %v1882
        %v1884 = vmul.f32 %v1828, 1.442695
        %v1885 = vpow.pop %v1884
        %v1886 = vmul.f32 %v1829, 1.442695
        %v1887 = vpow.pop %v1886
        %v1888 = vmul.f32 %v1830, 1.442695
        %v1889 = vpow.pop %v1888
        %v1890 = vmul.f32 %v1831, 1.442695
        %v1891 = vpow.pop %v1890
        %v1892 = vmul.f32 %v1832, 1.442695
        %v1893 = vpow.pop %v1892
        %v1894 = vmul.f32 %v1833, 1.442695
        %v1895 = vpow.pop %v1894
        %v1896 = vmul.f32 %v1834, 1.442695
        %v1897 = vpow.pop %v1896
        %v1898 = vmul.f32 %v1835, 1.442695
        %v1899 = vpow.pop %v1898
        %v1900 = vmul.f32 %v1836, 1.442695
        %v1901 = vpow.pop %v1900
        %v1902 = vmul.f32 %v1837, 1.442695
        %v1903 = vpow.pop %v1902
        %v1904 = vmul.f32 %v1838, 1.442695
        %v1905 = vpow.pop %v1904
        %v1906 = vmul.f32 %v1839, 1.442695
        %v1907 = vpow.pop %v1906
        %v1908 = vmul.f32 %v1840, 1.442695
        %v1909 = vpow.pop %v1908
        %v1910 = vmul.f32 %v1841, 1.442695
        %v1911 = vpow.pop %v1910
        %v1912 = vmul.f32 %v1842, 1.442695
        %v1913 = vpow.pop %v1912
        %v1914 = vmul.f32 %v1843, 1.442695
        %v1915 = vpow.pop %v1914
        %v1916 = vmul.f32 %v1844, 1.442695
        %v1917 = vpow.pop %v1916
        %v1918 = vmul.f32 %v1845, 1.442695
        %v1919 = vpow.pop %v1918
        %v1920 = vmul.f32 %v1846, 1.442695
        %v1921 = vpow.pop %v1920
        %v1922 = vmul.f32 %v1847, 1.442695
        %v1923 = vpow.pop %v1922
        %v1924 = vmul.f32 %v1848, 1.442695
        %v1925 = vpow.pop %v1924
        %v1926 = vmul.f32 %v1849, 1.442695
        %v1927 = vpow.pop %v1926
        %v1928 = vmul.f32 %v1850, 1.442695
        %v1929 = vpow.pop %v1928
        %v1930 = vmul.f32 %v1851, 1.442695
        %v1931 = vpow.pop %v1930
        %v1932 = vmul.f32 %v1852, 1.442695
        %v1933 = vpow.pop %v1932
        %v1934 = vmul.f32 %v1853, 1.442695
        %v1935 = vpow.pop %v1934
        %v1936 = vmul.f32 %v1854, 1.442695
        %v1937 = vpow.pop %v1936
        %v1938 = vmul.f32 %v1855, 1.442695
        %v1939 = vpow.pop %v1938
        %v1940 = vmul.f32 %v1856, 1.442695
        %v1941 = vpow.pop %v1940
        %v1942 = vmul.f32 %v1857, 1.442695
        %v1943 = vpow.pop %v1942
        %v1944 = vmul.f32 %v1858, 1.442695
        %v1945 = vpow.pop %v1944
        %v1946 = vmul.f32 %v1859, 1.442695
        %v1947 = vpow.pop %v1946
        %v1948 = vmul.f32 %v1860, 1.442695
        %v1949 = vpow.pop %v1948
        %v1950 = vmul.f32 %v1861, 1.442695
        %v1951 = vpow.pop %v1950
        %v1952 = vmul.f32 %v1862, 1.442695
        %v1953 = vpow.pop %v1952
        %v1954 = vmul.f32 %v1863, 1.442695
        %v1955 = vpow.pop %v1954
        %v1956 = vmul.f32 %v1864, 1.442695
        %v1957 = vpow.pop %v1956
        %v1958 = vmul.f32 %v1865, 1.442695
        %v1959 = vpow.pop %v1958
        %v1960 = vmul.f32 %v1866, 1.442695
        %v1961 = vpow.pop %v1960
        %v1962 = vmul.f32 %v1867, 1.442695
        %v1963 = vpow.pop %v1962
        %v1964 = vadd.f32 %v1869, 1.0
        %v1965 = vadd.f32 %v1871, 1.0
        %v1966 = vadd.f32 %v1873, 1.0
        %v1967 = vadd.f32 %v1875, 1.0
        %v1968 = vadd.f32 %v1877, 1.0
        %v1969 = vadd.f32 %v1879, 1.0
        %v1970 = vadd.f32 %v1881, 1.0
        %v1971 = vadd.f32 %v1883, 1.0
        %v1972 = vadd.f32 %v1885, 1.0
        %v1973 = vadd.f32 %v1887, 1.0
        %v1974 = vadd.f32 %v1889, 1.0
        %v1975 = vadd.f32 %v1891, 1.0
        %v1976 = vadd.f32 %v1893, 1.0
        %v1977 = vadd.f32 %v1895, 1.0
        %v1978 = vadd.f32 %v1897, 1.0
        %v1979 = vadd.f32 %v1899, 1.0
        %v1980 = vadd.f32 %v1901, 1.0
        %v1981 = vadd.f32 %v1903, 1.0
        %v1982 = vadd.f32 %v1905, 1.0
        %v1983 = vadd.f32 %v1907, 1.0
        %v1984 = vadd.f32 %v1909, 1.0
        %v1985 = vadd.f32 %v1911, 1.0
        %v1986 = vadd.f32 %v1913, 1.0
        %v1987 = vadd.f32 %v1915, 1.0
        %v1988 = vadd.f32 %v1917, 1.0
        %v1989 = vadd.f32 %v1919, 1.0
        %v1990 = vadd.f32 %v1921, 1.0
        %v1991 = vadd.f32 %v1923, 1.0
        %v1992 = vadd.f32 %v1925, 1.0
        %v1993 = vadd.f32 %v1927, 1.0
        %v1994 = vadd.f32 %v1929, 1.0
        %v1995 = vadd.f32 %v1931, 1.0
        %v1996 = vadd.f32 %v1933, 1.0
        %v1997 = vadd.f32 %v1935, 1.0
        %v1998 = vadd.f32 %v1937, 1.0
        %v1999 = vadd.f32 %v1939, 1.0
        %v2000 = vadd.f32 %v1941, 1.0
        %v2001 = vadd.f32 %v1943, 1.0
        %v2002 = vadd.f32 %v1945, 1.0
        %v2003 = vadd.f32 %v1947, 1.0
        %v2004 = vadd.f32 %v1949, 1.0
        %v2005 = vadd.f32 %v1951, 1.0
        %v2006 = vadd.f32 %v1953, 1.0
        %v2007 = vadd.f32 %v1955, 1.0
        %v2008 = vadd.f32 %v1957, 1.0
        %v2009 = vadd.f32 %v1959, 1.0
        %v2010 = vadd.f32 %v1961, 1.0
        %v2011 = vadd.f32 %v1963, 1.0
        %v2012 = vrcp.pop %v1964
        %v2013 = vmul.f32 1.0, %v2012
        %v2014 = vrcp.pop %v1965
        %v2015 = vmul.f32 1.0, %v2014
        %v2016 = vrcp.pop %v1966
        %v2017 = vmul.f32 1.0, %v2016
        %v2018 = vrcp.pop %v1967
        %v2019 = vmul.f32 1.0, %v2018
        %v2020 = vrcp.pop %v1968
        %v2021 = vmul.f32 1.0, %v2020
        %v2022 = vrcp.pop %v1969
        %v2023 = vmul.f32 1.0, %v2022
        %v2024 = vrcp.pop %v1970
        %v2025 = vmul.f32 1.0, %v2024
        %v2026 = vrcp.pop %v1971
        %v2027 = vmul.f32 1.0, %v2026
        %v2028 = vrcp.pop %v1972
        %v2029 = vmul.f32 1.0, %v2028
        %v2030 = vrcp.pop %v1973
        %v2031 = vmul.f32 1.0, %v2030
        %v2032 = vrcp.pop %v1974
        %v2033 = vmul.f32 1.0, %v2032
        %v2034 = vrcp.pop %v1975
        %v2035 = vmul.f32 1.0, %v2034
        %v2036 = vrcp.pop %v1976
        %v2037 = vmul.f32 1.0, %v2036
        %v2038 = vrcp.pop %v1977
        %v2039 = vmul.f32 1.0, %v2038
        %v2040 = vrcp.pop %v1978
        %v2041 = vmul.f32 1.0, %v2040
        %v2042 = vrcp.pop %v1979
        %v2043 = vmul.f32 1.0, %v2042
        %v2044 = vrcp.pop %v1980
        %v2045 = vmul.f32 1.0, %v2044
        %v2046 = vrcp.pop %v1981
        %v2047 = vmul.f32 1.0, %v2046
        %v2048 = vrcp.pop %v1982
        %v2049 = vmul.f32 1.0, %v2048
        %v2050 = vrcp.pop %v1983
        %v2051 = vmul.f32 1.0, %v2050
        %v2052 = vrcp.pop %v1984
        %v2053 = vmul.f32 1.0, %v2052
        %v2054 = vrcp.pop %v1985
        %v2055 = vmul.f32 1.0, %v2054
        %v2056 = vrcp.pop %v1986
        %v2057 = vmul.f32 1.0, %v2056
        %v2058 = vrcp.pop %v1987
        %v2059 = vmul.f32 1.0, %v2058
        %v2060 = vrcp.pop %v1988
        %v2061 = vmul.f32 1.0, %v2060
        %v2062 = vrcp.pop %v1989
        %v2063 = vmul.f32 1.0, %v2062
        %v2064 = vrcp.pop %v1990
        %v2065 = vmul.f32 1.0, %v2064
        %v2066 = vrcp.pop %v1991
        %v2067 = vmul.f32 1.0, %v2066
        %v2068 = vrcp.pop %v1992
        %v2069 = vmul.f32 1.0, %v2068
        %v2070 = vrcp.pop %v1993
        %v2071 = vmul.f32 1.0, %v2070
        %v2072 = vrcp.pop %v1994
        %v2073 = vmul.f32 1.0, %v2072
        %v2074 = vrcp.pop %v1995
        %v2075 = vmul.f32 1.0, %v2074
        %v2076 = vrcp.pop %v1996
        %v2077 = vmul.f32 1.0, %v2076
        %v2078 = vrcp.pop %v1997
        %v2079 = vmul.f32 1.0, %v2078
        %v2080 = vrcp.pop %v1998
        %v2081 = vmul.f32 1.0, %v2080
        %v2082 = vrcp.pop %v1999
        %v2083 = vmul.f32 1.0, %v2082
        %v2084 = vrcp.pop %v2000
        %v2085 = vmul.f32 1.0, %v2084
        %v2086 = vrcp.pop %v2001
        %v2087 = vmul.f32 1.0, %v2086
        %v2088 = vrcp.pop %v2002
        %v2089 = vmul.f32 1.0, %v2088
        %v2090 = vrcp.pop %v2003
        %v2091 = vmul.f32 1.0, %v2090
        %v2092 = vrcp.pop %v2004
        %v2093 = vmul.f32 1.0, %v2092
        %v2094 = vrcp.pop %v2005
        %v2095 = vmul.f32 1.0, %v2094
        %v2096 = vrcp.pop %v2006
        %v2097 = vmul.f32 1.0, %v2096
        %v2098 = vrcp.pop %v2007
        %v2099 = vmul.f32 1.0, %v2098
        %v2100 = vrcp.pop %v2008
        %v2101 = vmul.f32 1.0, %v2100
        %v2102 = vrcp.pop %v2009
        %v2103 = vmul.f32 1.0, %v2102
        %v2104 = vrcp.pop %v2010
        %v2105 = vmul.f32 1.0, %v2104
        %v2106 = vrcp.pop %v2011
        %v2107 = vmul.f32 1.0, %v2106
        %v2108 = vtanh.pop %v1759
        %v2109 = vtanh.pop %v1763
        %v2110 = vtanh.pop %v1767
        %v2111 = vtanh.pop %v1771
        %v2112 = vtanh.pop %v1775
        %v2113 = vtanh.pop %v1779
        %v2114 = vtanh.pop %v1783
        %v2115 = vtanh.pop %v1787
        %v2116 = vtanh.pop %v1791
        %v2117 = vtanh.pop %v1795
        %v2118 = vtanh.pop %v1799
        %v2119 = vtanh.pop %v1803
        %v2120 = vtanh.pop %v1807
        %v2121 = vtanh.pop %v1811
        %v2122 = vtanh.pop %v1815
        %v2123 = vtanh.pop %v1819
        %v2124 = vmul.f32 %v2015, %v1258
        %v2125 = vmul.f32 %v2021, %v1259
        %v2126 = vmul.f32 %v2027, %v1260
        %v2127 = vmul.f32 %v2033, %v1261
        %v2128 = vmul.f32 %v2039, %v1262
        %v2129 = vmul.f32 %v2045, %v1263
        %v2130 = vmul.f32 %v2051, %v1264
        %v2131 = vmul.f32 %v2057, %v1265
        %v2132 = vmul.f32 %v2063, %v1266
        %v2133 = vmul.f32 %v2069, %v1267
        %v2134 = vmul.f32 %v2075, %v1268
        %v2135 = vmul.f32 %v2081, %v1269
        %v2136 = vmul.f32 %v2087, %v1270
        %v2137 = vmul.f32 %v2093, %v1271
        %v2138 = vmul.f32 %v2099, %v1272
        %v2139 = vmul.f32 %v2105, %v1273
        %v2140 = vmul.f32 %v2013, %v2108
        %v2141 = vmul.f32 %v2019, %v2109
        %v2142 = vmul.f32 %v2025, %v2110
        %v2143 = vmul.f32 %v2031, %v2111
        %v2144 = vmul.f32 %v2037, %v2112
        %v2145 = vmul.f32 %v2043, %v2113
        %v2146 = vmul.f32 %v2049, %v2114
        %v2147 = vmul.f32 %v2055, %v2115
        %v2148 = vmul.f32 %v2061, %v2116
        %v2149 = vmul.f32 %v2067, %v2117
        %v2150 = vmul.f32 %v2073, %v2118
        %v2151 = vmul.f32 %v2079, %v2119
        %v2152 = vmul.f32 %v2085, %v2120
        %v2153 = vmul.f32 %v2091, %v2121
        %v2154 = vmul.f32 %v2097, %v2122
        %v2155 = vmul.f32 %v2103, %v2123
        %v2156 = vadd.f32 %v2124, %v2140
        %v2157 = vadd.f32 %v2125, %v2141
        %v2158 = vadd.f32 %v2126, %v2142
        %v2159 = vadd.f32 %v2127, %v2143
        %v2160 = vadd.f32 %v2128, %v2144
        %v2161 = vadd.f32 %v2129, %v2145
        %v2162 = vadd.f32 %v2130, %v2146
        %v2163 = vadd.f32 %v2131, %v2147
        %v2164 = vadd.f32 %v2132, %v2148
        %v2165 = vadd.f32 %v2133, %v2149
        %v2166 = vadd.f32 %v2134, %v2150
        %v2167 = vadd.f32 %v2135, %v2151
        %v2168 = vadd.f32 %v2136, %v2152
        %v2169 = vadd.f32 %v2137, %v2153
        %v2170 = vadd.f32 %v2138, %v2154
        %v2171 = vadd.f32 %v2139, %v2155
        %v2172 = vtanh.pop %v2156
        %v2173 = vtanh.pop %v2157
        %v2174 = vtanh.pop %v2158
        %v2175 = vtanh.pop %v2159
        %v2176 = vtanh.pop %v2160
        %v2177 = vtanh.pop %v2161
        %v2178 = vtanh.pop %v2162
        %v2179 = vtanh.pop %v2163
        %v2180 = vtanh.pop %v2164
        %v2181 = vtanh.pop %v2165
        %v2182 = vtanh.pop %v2166
        %v2183 = vtanh.pop %v2167
        %v2184 = vtanh.pop %v2168
        %v2185 = vtanh.pop %v2169
        %v2186 = vtanh.pop %v2170
        %v2187 = vtanh.pop %v2171
        %v2188 = vmul.f32 %v2017, %v2172
        %v2189 = vmul.f32 %v2023, %v2173
        %v2190 = vmul.f32 %v2029, %v2174
        %v2191 = vmul.f32 %v2035, %v2175
        %v2192 = vmul.f32 %v2041, %v2176
        %v2193 = vmul.f32 %v2047, %v2177
        %v2194 = vmul.f32 %v2053, %v2178
        %v2195 = vmul.f32 %v2059, %v2179
        %v2196 = vmul.f32 %v2065, %v2180
        %v2197 = vmul.f32 %v2071, %v2181
        %v2198 = vmul.f32 %v2077, %v2182
        %v2199 = vmul.f32 %v2083, %v2183
        %v2200 = vmul.f32 %v2089, %v2184
        %v2201 = vmul.f32 %v2095, %v2185
        %v2202 = vmul.f32 %v2101, %v2186
        %v2203 = vmul.f32 %v2107, %v2187
        %2204 = vset.pattern.permute.xlu0 2
        %2205 = vperm.xlu0 %2204, %v270
        %v2206 = vpop.permute.xlu0 %2205
        %2208 = vset.pattern.permute.xlu0 2
        %2209 = vperm.xlu0 %2208, %v271
        %v2210 = vpop.permute.xlu0 %2209
        %2212 = vset.pattern.permute.xlu0 2
        %2213 = vperm.xlu0 %2212, %v272
        %v2214 = vpop.permute.xlu0 %2213
        %2216 = vset.pattern.permute.xlu0 2
        %2217 = vperm.xlu0 %2216, %v273
        %v2218 = vpop.permute.xlu0 %2217
        %2220 = vset.pattern.permute.xlu0 2
        %2221 = vperm.xlu0 %2220, %v274
        %v2222 = vpop.permute.xlu0 %2221
        %2224 = vset.pattern.permute.xlu0 2
        %2225 = vperm.xlu0 %2224, %v275
        %v2226 = vpop.permute.xlu0 %2225
        %2228 = vset.pattern.permute.xlu0 2
        %2229 = vperm.xlu0 %2228, %v276
        %v2230 = vpop.permute.xlu0 %2229
        %2232 = vset.pattern.permute.xlu0 2
        %2233 = vperm.xlu0 %2232, %v277
        %v2234 = vpop.permute.xlu0 %2233
        %2236 = vset.pattern.permute.xlu0 2
        %2237 = vperm.xlu0 %2236, %v278
        %v2238 = vpop.permute.xlu0 %2237
        %2240 = vset.pattern.permute.xlu0 2
        %2241 = vperm.xlu0 %2240, %v279
        %v2242 = vpop.permute.xlu0 %2241
        %2244 = vset.pattern.permute.xlu0 2
        %2245 = vperm.xlu0 %2244, %v280
        %v2246 = vpop.permute.xlu0 %2245
        %2248 = vset.pattern.permute.xlu0 2
        %2249 = vperm.xlu0 %2248, %v281
        %v2250 = vpop.permute.xlu0 %2249
        %2252 = vset.pattern.permute.xlu0 2
        %2253 = vperm.xlu0 %2252, %v282
        %v2254 = vpop.permute.xlu0 %2253
        %2256 = vset.pattern.permute.xlu0 2
        %2257 = vperm.xlu0 %2256, %v283
        %v2258 = vpop.permute.xlu0 %2257
        %2260 = vset.pattern.permute.xlu0 2
        %2261 = vperm.xlu0 %2260, %v284
        %v2262 = vpop.permute.xlu0 %2261
        %2264 = vset.pattern.permute.xlu0 2
        %2265 = vperm.xlu0 %2264, %v285
        %v2266 = vpop.permute.xlu0 %2265
        %v2268 = vmul.f32 %v2206, %v434
        %v2269 = vmul.f32 %v2206, %v438
        %v2270 = vmul.f32 %v2206, %v442
        %v2271 = vmul.f32 %v2206, %v446
        %v2272 = vmul.f32 %v2210, %v434
        %v2273 = vmul.f32 %v2210, %v438
        %v2274 = vmul.f32 %v2210, %v442
        %v2275 = vmul.f32 %v2210, %v446
        %v2276 = vmul.f32 %v2214, %v434
        %v2277 = vmul.f32 %v2214, %v438
        %v2278 = vmul.f32 %v2214, %v442
        %v2279 = vmul.f32 %v2214, %v446
        %v2280 = vmul.f32 %v2218, %v434
        %v2281 = vmul.f32 %v2218, %v438
        %v2282 = vmul.f32 %v2218, %v442
        %v2283 = vmul.f32 %v2218, %v446
        %v2284 = vmul.f32 %v2222, %v434
        %v2285 = vmul.f32 %v2222, %v438
        %v2286 = vmul.f32 %v2222, %v442
        %v2287 = vmul.f32 %v2222, %v446
        %v2288 = vmul.f32 %v2226, %v434
        %v2289 = vmul.f32 %v2226, %v438
        %v2290 = vmul.f32 %v2226, %v442
        %v2291 = vmul.f32 %v2226, %v446
        %v2292 = vmul.f32 %v2230, %v434
        %v2293 = vmul.f32 %v2230, %v438
        %v2294 = vmul.f32 %v2230, %v442
        %v2295 = vmul.f32 %v2230, %v446
        %v2296 = vmul.f32 %v2234, %v434
        %v2297 = vmul.f32 %v2234, %v438
        %v2298 = vmul.f32 %v2234, %v442
        %v2299 = vmul.f32 %v2234, %v446
        %v2300 = vmul.f32 %v2238, %v434
        %v2301 = vmul.f32 %v2238, %v438
        %v2302 = vmul.f32 %v2238, %v442
        %v2303 = vmul.f32 %v2238, %v446
        %v2304 = vmul.f32 %v2242, %v434
        %v2305 = vmul.f32 %v2242, %v438
        %v2306 = vmul.f32 %v2242, %v442
        %v2307 = vmul.f32 %v2242, %v446
        %v2308 = vmul.f32 %v2246, %v434
        %v2309 = vmul.f32 %v2246, %v438
        %v2310 = vmul.f32 %v2246, %v442
        %v2311 = vmul.f32 %v2246, %v446
        %v2312 = vmul.f32 %v2250, %v434
        %v2313 = vmul.f32 %v2250, %v438
        %v2314 = vmul.f32 %v2250, %v442
        %v2315 = vmul.f32 %v2250, %v446
        %v2316 = vmul.f32 %v2254, %v434
        %v2317 = vmul.f32 %v2254, %v438
        %v2318 = vmul.f32 %v2254, %v442
        %v2319 = vmul.f32 %v2254, %v446
        %v2320 = vmul.f32 %v2258, %v434
        %v2321 = vmul.f32 %v2258, %v438
        %v2322 = vmul.f32 %v2258, %v442
        %v2323 = vmul.f32 %v2258, %v446
        %v2324 = vmul.f32 %v2262, %v434
        %v2325 = vmul.f32 %v2262, %v438
        %v2326 = vmul.f32 %v2262, %v442
        %v2327 = vmul.f32 %v2262, %v446
        %v2328 = vmul.f32 %v2266, %v434
        %v2329 = vmul.f32 %v2266, %v438
        %v2330 = vmul.f32 %v2266, %v442
        %v2331 = vmul.f32 %v2266, %v446
        %2332 = vmatprep.subr.mxu0 %v287
        %2333 = vmatpush1.msra.mxu0 %v286
        %2334 = vmatprep.subr.mxu0 %v291
        %2335 = vmatpush1.msra.mxu0 %v290
        %2336 = vmatprep.subr.mxu0 %v295
        %2337 = vmatpush1.msra.mxu0 %v294
        %2338 = vmatprep.subr.mxu0 %v299
        %2339 = vmatpush1.msra.mxu0 %v298
        %2340 = vmatprep.subr.mxu0 %v303
        %2341 = vmatpush1.msra.mxu0 %v302
        %2342 = vmatprep.subr.mxu0 %v307
        %2343 = vmatpush1.msra.mxu0 %v306
        %2344 = vmatprep.subr.mxu0 %v311
        %2345 = vmatpush1.msra.mxu0 %v310
        %2346 = vmatprep.subr.mxu0 %v315
        %2347 = vmatpush1.msra.mxu0 %v314
        %2348 = vmatprep.subr.mxu0 %v319
        %2349 = vmatpush1.msra.mxu0 %v318
        %2350 = vmatprep.subr.mxu0 %v323
        %2351 = vmatpush1.msra.mxu0 %v322
        %2352 = vmatprep.subr.mxu0 %v327
        %2353 = vmatpush1.msra.mxu0 %v326
        %2354 = vmatprep.subr.mxu0 %v331
        %2355 = vmatpush1.msra.mxu0 %v330
        %2356 = vmatprep.subr.mxu0 %v335
        %2357 = vmatpush1.msra.mxu0 %v334
        %2358 = vmatprep.subr.mxu0 %v339
        %2359 = vmatpush1.msra.mxu0 %v338
        %2360 = vmatprep.subr.mxu0 %v343
        %2361 = vmatpush1.msra.mxu0 %v342
        %2362 = vmatprep.subr.mxu0 %v347
        %2363 = vmatpush1.msra.mxu0 %v346
        %2364 = vmatprep.subr.mxu0 0.0
        %2365 = vmatpush1.msra.mxu0 0.0
        %2366 = vmatprep.subr.mxu0 0.0
        %2367 = vmatpush1.msra.mxu0 0.0
        %2368 = vmatprep.subr.mxu0 0.0
        %2369 = vmatpush1.msra.mxu0 0.0
        %2370 = vmatprep.subr.mxu0 0.0
        %2371 = vmatpush1.msra.mxu0 0.0
        %2372 = vmatprep.subr.mxu0 0.0
        %2373 = vmatpush1.msra.mxu0 0.0
        %2374 = vmatprep.subr.mxu0 0.0
        %2375 = vmatpush1.msra.mxu0 0.0
        %2376 = vmatprep.subr.mxu0 0.0
        %2377 = vmatpush1.msra.mxu0 0.0
        %2378 = vmatprep.subr.mxu0 0.0
        %2379 = vmatpush1.msra.mxu0 0.0
        %2380 = vmatprep.subr.mxu0 0.0
        %2381 = vmatpush1.msra.mxu0 0.0
        %2382 = vmatprep.subr.mxu0 0.0
        %2383 = vmatpush1.msra.mxu0 0.0
        %2384 = vmatprep.subr.mxu0 0.0
        %2385 = vmatpush1.msra.mxu0 0.0
        %2386 = vmatprep.subr.mxu0 0.0
        %2387 = vmatpush1.msra.mxu0 0.0
        %2388 = vmatprep.subr.mxu0 0.0
        %2389 = vmatpush1.msra.mxu0 0.0
        %2390 = vmatprep.subr.mxu0 0.0
        %2391 = vmatpush1.msra.mxu0 0.0
        %2392 = vmatprep.subr.mxu0 0.0
        %2393 = vmatpush1.msra.mxu0 0.0
        %2394 = vmatprep.subr.mxu0 0.0
        %2395 = vmatpush1.msra.mxu0 0.0
        %2396 = vmatprep.mubr.f32.mxu0 0.0
        %2397 = vmatmul.mubr.f32.gmra.mrb[0].mxu0 %v2188
        %v2398 = vpop.f32.mrb[0].mxu0
        %v2399 = vadd.f32 %v2268, %v2398
        %v2400 = vpop.f32.mrb[0].mxu0
        %v2401 = vadd.f32 %v2269, %v2400
        %2402 = vmatprep.mubr.f32.mxu0 0.0
        %2403 = vmatmul.mubr.f32.gmra.mrb[0].mxu0 %v2189
        %v2404 = vpop.f32.mrb[0].mxu0
        %v2405 = vadd.f32 %v2272, %v2404
        %v2406 = vpop.f32.mrb[0].mxu0
        %v2407 = vadd.f32 %v2273, %v2406
        %2408 = vmatprep.mubr.f32.mxu0 0.0
        %2409 = vmatmul.mubr.f32.gmra.mrb[0].mxu0 %v2190
        %v2410 = vpop.f32.mrb[0].mxu0
        %v2411 = vadd.f32 %v2276, %v2410
        %v2412 = vpop.f32.mrb[0].mxu0
        %v2413 = vadd.f32 %v2277, %v2412
        %2414 = vmatprep.mubr.f32.mxu0 0.0
        %2415 = vmatmul.mubr.f32.gmra.mrb[0].mxu0 %v2191
        %v2416 = vpop.f32.mrb[0].mxu0
        %v2417 = vadd.f32 %v2280, %v2416
        %v2418 = vpop.f32.mrb[0].mxu0
        %v2419 = vadd.f32 %v2281, %v2418
        %2420 = vmatprep.mubr.f32.mxu0 0.0
        %2421 = vmatmul.mubr.f32.gmra.mrb[0].mxu0 %v2192
        %v2422 = vpop.f32.mrb[0].mxu0
        %v2423 = vadd.f32 %v2284, %v2422
        %v2424 = vpop.f32.mrb[0].mxu0
        %v2425 = vadd.f32 %v2285, %v2424
        %2426 = vmatprep.mubr.f32.mxu0 0.0
        %2427 = vmatmul.mubr.f32.gmra.mrb[0].mxu0 %v2193
        %v2428 = vpop.f32.mrb[0].mxu0
        %v2429 = vadd.f32 %v2288, %v2428
        %v2430 = vpop.f32.mrb[0].mxu0
        %v2431 = vadd.f32 %v2289, %v2430
        %2432 = vmatprep.mubr.f32.mxu0 0.0
        %2433 = vmatmul.mubr.f32.gmra.mrb[0].mxu0 %v2194
        %v2434 = vpop.f32.mrb[0].mxu0
        %v2435 = vadd.f32 %v2292, %v2434
        %v2436 = vpop.f32.mrb[0].mxu0
        %v2437 = vadd.f32 %v2293, %v2436
        %2438 = vmatprep.mubr.f32.mxu0 0.0
        %2439 = vmatmul.mubr.f32.gmra.mrb[0].mxu0 %v2195
        %v2440 = vpop.f32.mrb[0].mxu0
        %v2441 = vadd.f32 %v2296, %v2440
        %v2442 = vpop.f32.mrb[0].mxu0
        %v2443 = vadd.f32 %v2297, %v2442
        %2444 = vmatprep.mubr.f32.mxu0 0.0
        %2445 = vmatmul.mubr.f32.gmra.mrb[0].mxu0 %v2196
        %v2446 = vpop.f32.mrb[0].mxu0
        %v2447 = vadd.f32 %v2300, %v2446
        %v2448 = vpop.f32.mrb[0].mxu0
        %v2449 = vadd.f32 %v2301, %v2448
        %2450 = vmatprep.mubr.f32.mxu0 0.0
        %2451 = vmatmul.mubr.f32.gmra.mrb[0].mxu0 %v2197
        %v2452 = vpop.f32.mrb[0].mxu0
        %v2453 = vadd.f32 %v2304, %v2452
        %v2454 = vpop.f32.mrb[0].mxu0
        %v2455 = vadd.f32 %v2305, %v2454
        %2456 = vmatprep.mubr.f32.mxu0 0.0
        %2457 = vmatmul.mubr.f32.gmra.mrb[0].mxu0 %v2198
        %v2458 = vpop.f32.mrb[0].mxu0
        %v2459 = vadd.f32 %v2308, %v2458
        %v2460 = vpop.f32.mrb[0].mxu0
        %v2461 = vadd.f32 %v2309, %v2460
        %2462 = vmatprep.mubr.f32.mxu0 0.0
        %2463 = vmatmul.mubr.f32.gmra.mrb[0].mxu0 %v2199
        %v2464 = vpop.f32.mrb[0].mxu0
        %v2465 = vadd.f32 %v2312, %v2464
        %v2466 = vpop.f32.mrb[0].mxu0
        %v2467 = vadd.f32 %v2313, %v2466
        %2468 = vmatprep.mubr.f32.mxu0 0.0
        %2469 = vmatmul.mubr.f32.gmra.mrb[0].mxu0 %v2200
        %v2470 = vpop.f32.mrb[0].mxu0
        %v2471 = vadd.f32 %v2316, %v2470
        %v2472 = vpop.f32.mrb[0].mxu0
        %v2473 = vadd.f32 %v2317, %v2472
        %2474 = vmatprep.mubr.f32.mxu0 0.0
        %2475 = vmatmul.mubr.f32.gmra.mrb[0].mxu0 %v2201
        %v2476 = vpop.f32.mrb[0].mxu0
        %v2477 = vadd.f32 %v2320, %v2476
        %v2478 = vpop.f32.mrb[0].mxu0
        %v2479 = vadd.f32 %v2321, %v2478
        %2480 = vmatprep.mubr.f32.mxu0 0.0
        %2481 = vmatmul.mubr.f32.gmra.mrb[0].mxu0 %v2202
        %v2482 = vpop.f32.mrb[0].mxu0
        %v2483 = vadd.f32 %v2324, %v2482
        %v2484 = vpop.f32.mrb[0].mxu0
        %v2485 = vadd.f32 %v2325, %v2484
        %2486 = vmatprep.mubr.f32.mxu0 0.0
        %2487 = vmatmul.mubr.f32.gmra.mrb[0].mxu0 %v2203
        %v2488 = vpop.f32.mrb[0].mxu0
        %v2489 = vadd.f32 %v2328, %v2488
        %v2490 = vpop.f32.mrb[0].mxu0
        %v2491 = vadd.f32 %v2329, %v2490
        %2492 = vdwg.mxu0
        %2493 = vmatprep.subr.mxu0 %v289
        %2494 = vmatpush1.msra.mxu0 %v288
        %2495 = vmatprep.subr.mxu0 %v293
        %2496 = vmatpush1.msra.mxu0 %v292
        %2497 = vmatprep.subr.mxu0 %v297
        %2498 = vmatpush1.msra.mxu0 %v296
        %2499 = vmatprep.subr.mxu0 %v301
        %2500 = vmatpush1.msra.mxu0 %v300
        %2501 = vmatprep.subr.mxu0 %v305
        %2502 = vmatpush1.msra.mxu0 %v304
        %2503 = vmatprep.subr.mxu0 %v309
        %2504 = vmatpush1.msra.mxu0 %v308
        %2505 = vmatprep.subr.mxu0 %v313
        %2506 = vmatpush1.msra.mxu0 %v312
        %2507 = vmatprep.subr.mxu0 %v317
        %2508 = vmatpush1.msra.mxu0 %v316
        %2509 = vmatprep.subr.mxu0 %v321
        %2510 = vmatpush1.msra.mxu0 %v320
        %2511 = vmatprep.subr.mxu0 %v325
        %2512 = vmatpush1.msra.mxu0 %v324
        %2513 = vmatprep.subr.mxu0 %v329
        %2514 = vmatpush1.msra.mxu0 %v328
        %2515 = vmatprep.subr.mxu0 %v333
        %2516 = vmatpush1.msra.mxu0 %v332
        %2517 = vmatprep.subr.mxu0 %v337
        %2518 = vmatpush1.msra.mxu0 %v336
        %2519 = vmatprep.subr.mxu0 %v341
        %2520 = vmatpush1.msra.mxu0 %v340
        %2521 = vmatprep.subr.mxu0 %v345
        %2522 = vmatpush1.msra.mxu0 %v344
        %2523 = vmatprep.subr.mxu0 %v349
        %2524 = vmatpush1.msra.mxu0 %v348
        %2525 = vmatprep.subr.mxu0 0.0
        %2526 = vmatpush1.msra.mxu0 0.0
        %2527 = vmatprep.subr.mxu0 0.0
        %2528 = vmatpush1.msra.mxu0 0.0
        %2529 = vmatprep.subr.mxu0 0.0
        %2530 = vmatpush1.msra.mxu0 0.0
        %2531 = vmatprep.subr.mxu0 0.0
        %2532 = vmatpush1.msra.mxu0 0.0
        %2533 = vmatprep.subr.mxu0 0.0
        %2534 = vmatpush1.msra.mxu0 0.0
        %2535 = vmatprep.subr.mxu0 0.0
        %2536 = vmatpush1.msra.mxu0 0.0
        %2537 = vmatprep.subr.mxu0 0.0
        %2538 = vmatpush1.msra.mxu0 0.0
        %2539 = vmatprep.subr.mxu0 0.0
        %2540 = vmatpush1.msra.mxu0 0.0
        %2541 = vmatprep.subr.mxu0 0.0
        %2542 = vmatpush1.msra.mxu0 0.0
        %2543 = vmatprep.subr.mxu0 0.0
        %2544 = vmatpush1.msra.mxu0 0.0
        %2545 = vmatprep.subr.mxu0 0.0
        %2546 = vmatpush1.msra.mxu0 0.0
        %2547 = vmatprep.subr.mxu0 0.0
        %2548 = vmatpush1.msra.mxu0 0.0
        %2549 = vmatprep.subr.mxu0 0.0
        %2550 = vmatpush1.msra.mxu0 0.0
        %2551 = vmatprep.subr.mxu0 0.0
        %2552 = vmatpush1.msra.mxu0 0.0
        %2553 = vmatprep.subr.mxu0 0.0
        %2554 = vmatpush1.msra.mxu0 0.0
        %2555 = vmatprep.subr.mxu0 0.0
        %2556 = vmatpush1.msra.mxu0 0.0
        %2557 = vmatprep.mubr.f32.mxu0 0.0
        %2558 = vmatmul.mubr.f32.gmra.mrb[0].mxu0 %v2188
        %v2559 = vpop.f32.mrb[0].mxu0
        %v2560 = vadd.f32 %v2270, %v2559
        %v2561 = vpop.f32.mrb[0].mxu0
        %v2562 = vadd.f32 %v2271, %v2561
        %2563 = vmatprep.mubr.f32.mxu0 0.0
        %2564 = vmatmul.mubr.f32.gmra.mrb[0].mxu0 %v2189
        %v2565 = vpop.f32.mrb[0].mxu0
        %v2566 = vadd.f32 %v2274, %v2565
        %v2567 = vpop.f32.mrb[0].mxu0
        %v2568 = vadd.f32 %v2275, %v2567
        %2569 = vmatprep.mubr.f32.mxu0 0.0
        %2570 = vmatmul.mubr.f32.gmra.mrb[0].mxu0 %v2190
        %v2571 = vpop.f32.mrb[0].mxu0
        %v2572 = vadd.f32 %v2278, %v2571
        %v2573 = vpop.f32.mrb[0].mxu0
        %v2574 = vadd.f32 %v2279, %v2573
        %2575 = vmatprep.mubr.f32.mxu0 0.0
        %2576 = vmatmul.mubr.f32.gmra.mrb[0].mxu0 %v2191
        %v2577 = vpop.f32.mrb[0].mxu0
        %v2578 = vadd.f32 %v2282, %v2577
        %v2579 = vpop.f32.mrb[0].mxu0
        %v2580 = vadd.f32 %v2283, %v2579
        %2581 = vmatprep.mubr.f32.mxu0 0.0
        %2582 = vmatmul.mubr.f32.gmra.mrb[0].mxu0 %v2192
        %v2583 = vpop.f32.mrb[0].mxu0
        %v2584 = vadd.f32 %v2286, %v2583
        %v2585 = vpop.f32.mrb[0].mxu0
        %v2586 = vadd.f32 %v2287, %v2585
        %2587 = vmatprep.mubr.f32.mxu0 0.0
        %2588 = vmatmul.mubr.f32.gmra.mrb[0].mxu0 %v2193
        %v2589 = vpop.f32.mrb[0].mxu0
        %v2590 = vadd.f32 %v2290, %v2589
        %v2591 = vpop.f32.mrb[0].mxu0
        %v2592 = vadd.f32 %v2291, %v2591
        %2593 = vmatprep.mubr.f32.mxu0 0.0
        %2594 = vmatmul.mubr.f32.gmra.mrb[0].mxu0 %v2194
        %v2595 = vpop.f32.mrb[0].mxu0
        %v2596 = vadd.f32 %v2294, %v2595
        %v2597 = vpop.f32.mrb[0].mxu0
        %v2598 = vadd.f32 %v2295, %v2597
        %2599 = vmatprep.mubr.f32.mxu0 0.0
        %2600 = vmatmul.mubr.f32.gmra.mrb[0].mxu0 %v2195
        %v2601 = vpop.f32.mrb[0].mxu0
        %v2602 = vadd.f32 %v2298, %v2601
        %v2603 = vpop.f32.mrb[0].mxu0
        %v2604 = vadd.f32 %v2299, %v2603
        %2605 = vmatprep.mubr.f32.mxu0 0.0
        %2606 = vmatmul.mubr.f32.gmra.mrb[0].mxu0 %v2196
        %v2607 = vpop.f32.mrb[0].mxu0
        %v2608 = vadd.f32 %v2302, %v2607
        %v2609 = vpop.f32.mrb[0].mxu0
        %v2610 = vadd.f32 %v2303, %v2609
        %2611 = vmatprep.mubr.f32.mxu0 0.0
        %2612 = vmatmul.mubr.f32.gmra.mrb[0].mxu0 %v2197
        %v2613 = vpop.f32.mrb[0].mxu0
        %v2614 = vadd.f32 %v2306, %v2613
        %v2615 = vpop.f32.mrb[0].mxu0
        %v2616 = vadd.f32 %v2307, %v2615
        %2617 = vmatprep.mubr.f32.mxu0 0.0
        %2618 = vmatmul.mubr.f32.gmra.mrb[0].mxu0 %v2198
        %v2619 = vpop.f32.mrb[0].mxu0
        %v2620 = vadd.f32 %v2310, %v2619
        %v2621 = vpop.f32.mrb[0].mxu0
        %v2622 = vadd.f32 %v2311, %v2621
        %2623 = vmatprep.mubr.f32.mxu0 0.0
        %2624 = vmatmul.mubr.f32.gmra.mrb[0].mxu0 %v2199
        %v2625 = vpop.f32.mrb[0].mxu0
        %v2626 = vadd.f32 %v2314, %v2625
        %v2627 = vpop.f32.mrb[0].mxu0
        %v2628 = vadd.f32 %v2315, %v2627
        %2629 = vmatprep.mubr.f32.mxu0 0.0
        %2630 = vmatmul.mubr.f32.gmra.mrb[0].mxu0 %v2200
        %v2631 = vpop.f32.mrb[0].mxu0
        %v2632 = vadd.f32 %v2318, %v2631
        %v2633 = vpop.f32.mrb[0].mxu0
        %v2634 = vadd.f32 %v2319, %v2633
        %2635 = vmatprep.mubr.f32.mxu0 0.0
        %2636 = vmatmul.mubr.f32.gmra.mrb[0].mxu0 %v2201
        %v2637 = vpop.f32.mrb[0].mxu0
        %v2638 = vadd.f32 %v2322, %v2637
        %v2639 = vpop.f32.mrb[0].mxu0
        %v2640 = vadd.f32 %v2323, %v2639
        %2641 = vmatprep.mubr.f32.mxu0 0.0
        %2642 = vmatmul.mubr.f32.gmra.mrb[0].mxu0 %v2202
        %v2643 = vpop.f32.mrb[0].mxu0
        %v2644 = vadd.f32 %v2326, %v2643
        %v2645 = vpop.f32.mrb[0].mxu0
        %v2646 = vadd.f32 %v2327, %v2645
        %2647 = vmatprep.mubr.f32.mxu0 0.0
        %2648 = vmatmul.mubr.f32.gmra.mrb[0].mxu0 %v2203
        %v2649 = vpop.f32.mrb[0].mxu0
        %v2650 = vadd.f32 %v2330, %v2649
        %v2651 = vpop.f32.mrb[0].mxu0
        %v2652 = vadd.f32 %v2331, %v2651
        %2653 = vdwg.mxu0
        %v2654 = vadd.f32 %v2399, %v841
        %v2655 = vadd.f32 %v2401, %v845
        %v2656 = vadd.f32 %v2560, %v849
        %v2657 = vadd.f32 %v2562, %v853
        %v2658 = vadd.f32 %v2405, %v841
        %v2659 = vadd.f32 %v2407, %v845
        %v2660 = vadd.f32 %v2566, %v849
        %v2661 = vadd.f32 %v2568, %v853
        %v2662 = vadd.f32 %v2411, %v841
        %v2663 = vadd.f32 %v2413, %v845
        %v2664 = vadd.f32 %v2572, %v849
        %v2665 = vadd.f32 %v2574, %v853
        %v2666 = vadd.f32 %v2417, %v841
        %v2667 = vadd.f32 %v2419, %v845
        %v2668 = vadd.f32 %v2578, %v849
        %v2669 = vadd.f32 %v2580, %v853
        %v2670 = vadd.f32 %v2423, %v841
        %v2671 = vadd.f32 %v2425, %v845
        %v2672 = vadd.f32 %v2584, %v849
        %v2673 = vadd.f32 %v2586, %v853
        %v2674 = vadd.f32 %v2429, %v841
        %v2675 = vadd.f32 %v2431, %v845
        %v2676 = vadd.f32 %v2590, %v849
        %v2677 = vadd.f32 %v2592, %v853
        %v2678 = vadd.f32 %v2435, %v841
        %v2679 = vadd.f32 %v2437, %v845
        %v2680 = vadd.f32 %v2596, %v849
        %v2681 = vadd.f32 %v2598, %v853
        %v2682 = vadd.f32 %v2441, %v841
        %v2683 = vadd.f32 %v2443, %v845
        %v2684 = vadd.f32 %v2602, %v849
        %v2685 = vadd.f32 %v2604, %v853
        %v2686 = vadd.f32 %v2447, %v841
        %v2687 = vadd.f32 %v2449, %v845
        %v2688 = vadd.f32 %v2608, %v849
        %v2689 = vadd.f32 %v2610, %v853
        %v2690 = vadd.f32 %v2453, %v841
        %v2691 = vadd.f32 %v2455, %v845
        %v2692 = vadd.f32 %v2614, %v849
        %v2693 = vadd.f32 %v2616, %v853
        %v2694 = vadd.f32 %v2459, %v841
        %v2695 = vadd.f32 %v2461, %v845
        %v2696 = vadd.f32 %v2620, %v849
        %v2697 = vadd.f32 %v2622, %v853
        %v2698 = vadd.f32 %v2465, %v841
        %v2699 = vadd.f32 %v2467, %v845
        %v2700 = vadd.f32 %v2626, %v849
        %v2701 = vadd.f32 %v2628, %v853
        %v2702 = vadd.f32 %v2471, %v841
        %v2703 = vadd.f32 %v2473, %v845
        %v2704 = vadd.f32 %v2632, %v849
        %v2705 = vadd.f32 %v2634, %v853
        %v2706 = vadd.f32 %v2477, %v841
        %v2707 = vadd.f32 %v2479, %v845
        %v2708 = vadd.f32 %v2638, %v849
        %v2709 = vadd.f32 %v2640, %v853
        %v2710 = vadd.f32 %v2483, %v841
        %v2711 = vadd.f32 %v2485, %v845
        %v2712 = vadd.f32 %v2644, %v849
        %v2713 = vadd.f32 %v2646, %v853
        %v2714 = vadd.f32 %v2489, %v841
        %v2715 = vadd.f32 %v2491, %v845
        %v2716 = vadd.f32 %v2650, %v849
        %v2717 = vadd.f32 %v2652, %v853
        %v2718 = vxor.u32 %v2654, 2147483648
        %v2719 = vxor.u32 %v2655, 2147483648
        %v2720 = vxor.u32 %v2656, 2147483648
        %v2721 = vxor.u32 %v2658, 2147483648
        %v2722 = vxor.u32 %v2659, 2147483648
        %v2723 = vxor.u32 %v2660, 2147483648
        %v2724 = vxor.u32 %v2662, 2147483648
        %v2725 = vxor.u32 %v2663, 2147483648
        %v2726 = vxor.u32 %v2664, 2147483648
        %v2727 = vxor.u32 %v2666, 2147483648
        %v2728 = vxor.u32 %v2667, 2147483648
        %v2729 = vxor.u32 %v2668, 2147483648
        %v2730 = vxor.u32 %v2670, 2147483648
        %v2731 = vxor.u32 %v2671, 2147483648
        %v2732 = vxor.u32 %v2672, 2147483648
        %v2733 = vxor.u32 %v2674, 2147483648
        %v2734 = vxor.u32 %v2675, 2147483648
        %v2735 = vxor.u32 %v2676, 2147483648
        %v2736 = vxor.u32 %v2678, 2147483648
        %v2737 = vxor.u32 %v2679, 2147483648
        %v2738 = vxor.u32 %v2680, 2147483648
        %v2739 = vxor.u32 %v2682, 2147483648
        %v2740 = vxor.u32 %v2683, 2147483648
        %v2741 = vxor.u32 %v2684, 2147483648
        %v2742 = vxor.u32 %v2686, 2147483648
        %v2743 = vxor.u32 %v2687, 2147483648
        %v2744 = vxor.u32 %v2688, 2147483648
        %v2745 = vxor.u32 %v2690, 2147483648
        %v2746 = vxor.u32 %v2691, 2147483648
        %v2747 = vxor.u32 %v2692, 2147483648
        %v2748 = vxor.u32 %v2694, 2147483648
        %v2749 = vxor.u32 %v2695, 2147483648
        %v2750 = vxor.u32 %v2696, 2147483648
        %v2751 = vxor.u32 %v2698, 2147483648
        %v2752 = vxor.u32 %v2699, 2147483648
        %v2753 = vxor.u32 %v2700, 2147483648
        %v2754 = vxor.u32 %v2702, 2147483648
        %v2755 = vxor.u32 %v2703, 2147483648
        %v2756 = vxor.u32 %v2704, 2147483648
        %v2757 = vxor.u32 %v2706, 2147483648
        %v2758 = vxor.u32 %v2707, 2147483648
        %v2759 = vxor.u32 %v2708, 2147483648
        %v2760 = vxor.u32 %v2710, 2147483648
        %v2761 = vxor.u32 %v2711, 2147483648
        %v2762 = vxor.u32 %v2712, 2147483648
        %v2763 = vxor.u32 %v2714, 2147483648
        %v2764 = vxor.u32 %v2715, 2147483648
        %v2765 = vxor.u32 %v2716, 2147483648
        %v2766 = vmul.f32 %v2718, 1.442695
        %v2767 = vpow.pop %v2766
        %v2768 = vmul.f32 %v2719, 1.442695
        %v2769 = vpow.pop %v2768
        %v2770 = vmul.f32 %v2720, 1.442695
        %v2771 = vpow.pop %v2770
        %v2772 = vmul.f32 %v2721, 1.442695
        %v2773 = vpow.pop %v2772
        %v2774 = vmul.f32 %v2722, 1.442695
        %v2775 = vpow.pop %v2774
        %v2776 = vmul.f32 %v2723, 1.442695
        %v2777 = vpow.pop %v2776
        %v2778 = vmul.f32 %v2724, 1.442695
        %v2779 = vpow.pop %v2778
        %v2780 = vmul.f32 %v2725, 1.442695
        %v2781 = vpow.pop %v2780
        %v2782 = vmul.f32 %v2726, 1.442695
        %v2783 = vpow.pop %v2782
        %v2784 = vmul.f32 %v2727, 1.442695
        %v2785 = vpow.pop %v2784
        %v2786 = vmul.f32 %v2728, 1.442695
        %v2787 = vpow.pop %v2786
        %v2788 = vmul.f32 %v2729, 1.442695
        %v2789 = vpow.pop %v2788
        %v2790 = vmul.f32 %v2730, 1.442695
        %v2791 = vpow.pop %v2790
        %v2792 = vmul.f32 %v2731, 1.442695
        %v2793 = vpow.pop %v2792
        %v2794 = vmul.f32 %v2732, 1.442695
        %v2795 = vpow.pop %v2794
        %v2796 = vmul.f32 %v2733, 1.442695
        %v2797 = vpow.pop %v2796
        %v2798 = vmul.f32 %v2734, 1.442695
        %v2799 = vpow.pop %v2798
        %v2800 = vmul.f32 %v2735, 1.442695
        %v2801 = vpow.pop %v2800
        %v2802 = vmul.f32 %v2736, 1.442695
        %v2803 = vpow.pop %v2802
        %v2804 = vmul.f32 %v2737, 1.442695
        %v2805 = vpow.pop %v2804
        %v2806 = vmul.f32 %v2738, 1.442695
        %v2807 = vpow.pop %v2806
        %v2808 = vmul.f32 %v2739, 1.442695
        %v2809 = vpow.pop %v2808
        %v2810 = vmul.f32 %v2740, 1.442695
        %v2811 = vpow.pop %v2810
        %v2812 = vmul.f32 %v2741, 1.442695
        %v2813 = vpow.pop %v2812
        %v2814 = vmul.f32 %v2742, 1.442695
        %v2815 = vpow.pop %v2814
        %v2816 = vmul.f32 %v2743, 1.442695
        %v2817 = vpow.pop %v2816
        %v2818 = vmul.f32 %v2744, 1.442695
        %v2819 = vpow.pop %v2818
        %v2820 = vmul.f32 %v2745, 1.442695
        %v2821 = vpow.pop %v2820
        %v2822 = vmul.f32 %v2746, 1.442695
        %v2823 = vpow.pop %v2822
        %v2824 = vmul.f32 %v2747, 1.442695
        %v2825 = vpow.pop %v2824
        %v2826 = vmul.f32 %v2748, 1.442695
        %v2827 = vpow.pop %v2826
        %v2828 = vmul.f32 %v2749, 1.442695
        %v2829 = vpow.pop %v2828
        %v2830 = vmul.f32 %v2750, 1.442695
        %v2831 = vpow.pop %v2830
        %v2832 = vmul.f32 %v2751, 1.442695
        %v2833 = vpow.pop %v2832
        %v2834 = vmul.f32 %v2752, 1.442695
        %v2835 = vpow.pop %v2834
        %v2836 = vmul.f32 %v2753, 1.442695
        %v2837 = vpow.pop %v2836
        %v2838 = vmul.f32 %v2754, 1.442695
        %v2839 = vpow.pop %v2838
        %v2840 = vmul.f32 %v2755, 1.442695
        %v2841 = vpow.pop %v2840
        %v2842 = vmul.f32 %v2756, 1.442695
        %v2843 = vpow.pop %v2842
        %v2844 = vmul.f32 %v2757, 1.442695
        %v2845 = vpow.pop %v2844
        %v2846 = vmul.f32 %v2758, 1.442695
        %v2847 = vpow.pop %v2846
        %v2848 = vmul.f32 %v2759, 1.442695
        %v2849 = vpow.pop %v2848
        %v2850 = vmul.f32 %v2760, 1.442695
        %v2851 = vpow.pop %v2850
        %v2852 = vmul.f32 %v2761, 1.442695
        %v2853 = vpow.pop %v2852
        %v2854 = vmul.f32 %v2762, 1.442695
        %v2855 = vpow.pop %v2854
        %v2856 = vmul.f32 %v2763, 1.442695
        %v2857 = vpow.pop %v2856
        %v2858 = vmul.f32 %v2764, 1.442695
        %v2859 = vpow.pop %v2858
        %v2860 = vmul.f32 %v2765, 1.442695
        %v2861 = vpow.pop %v2860
        %v2862 = vadd.f32 %v2767, 1.0
        %v2863 = vadd.f32 %v2769, 1.0
        %v2864 = vadd.f32 %v2771, 1.0
        %v2865 = vadd.f32 %v2773, 1.0
        %v2866 = vadd.f32 %v2775, 1.0
        %v2867 = vadd.f32 %v2777, 1.0
        %v2868 = vadd.f32 %v2779, 1.0
        %v2869 = vadd.f32 %v2781, 1.0
        %v2870 = vadd.f32 %v2783, 1.0
        %v2871 = vadd.f32 %v2785, 1.0
        %v2872 = vadd.f32 %v2787, 1.0
        %v2873 = vadd.f32 %v2789, 1.0
        %v2874 = vadd.f32 %v2791, 1.0
        %v2875 = vadd.f32 %v2793, 1.0
        %v2876 = vadd.f32 %v2795, 1.0
        %v2877 = vadd.f32 %v2797, 1.0
        %v2878 = vadd.f32 %v2799, 1.0
        %v2879 = vadd.f32 %v2801, 1.0
        %v2880 = vadd.f32 %v2803, 1.0
        %v2881 = vadd.f32 %v2805, 1.0
        %v2882 = vadd.f32 %v2807, 1.0
        %v2883 = vadd.f32 %v2809, 1.0
        %v2884 = vadd.f32 %v2811, 1.0
        %v2885 = vadd.f32 %v2813, 1.0
        %v2886 = vadd.f32 %v2815, 1.0
        %v2887 = vadd.f32 %v2817, 1.0
        %v2888 = vadd.f32 %v2819, 1.0
        %v2889 = vadd.f32 %v2821, 1.0
        %v2890 = vadd.f32 %v2823, 1.0
        %v2891 = vadd.f32 %v2825, 1.0
        %v2892 = vadd.f32 %v2827, 1.0
        %v2893 = vadd.f32 %v2829, 1.0
        %v2894 = vadd.f32 %v2831, 1.0
        %v2895 = vadd.f32 %v2833, 1.0
        %v2896 = vadd.f32 %v2835, 1.0
        %v2897 = vadd.f32 %v2837, 1.0
        %v2898 = vadd.f32 %v2839, 1.0
        %v2899 = vadd.f32 %v2841, 1.0
        %v2900 = vadd.f32 %v2843, 1.0
        %v2901 = vadd.f32 %v2845, 1.0
        %v2902 = vadd.f32 %v2847, 1.0
        %v2903 = vadd.f32 %v2849, 1.0
        %v2904 = vadd.f32 %v2851, 1.0
        %v2905 = vadd.f32 %v2853, 1.0
        %v2906 = vadd.f32 %v2855, 1.0
        %v2907 = vadd.f32 %v2857, 1.0
        %v2908 = vadd.f32 %v2859, 1.0
        %v2909 = vadd.f32 %v2861, 1.0
        %v2910 = vrcp.pop %v2862
        %v2911 = vmul.f32 1.0, %v2910
        %v2912 = vrcp.pop %v2863
        %v2913 = vmul.f32 1.0, %v2912
        %v2914 = vrcp.pop %v2864
        %v2915 = vmul.f32 1.0, %v2914
        %v2916 = vrcp.pop %v2865
        %v2917 = vmul.f32 1.0, %v2916
        %v2918 = vrcp.pop %v2866
        %v2919 = vmul.f32 1.0, %v2918
        %v2920 = vrcp.pop %v2867
        %v2921 = vmul.f32 1.0, %v2920
        %v2922 = vrcp.pop %v2868
        %v2923 = vmul.f32 1.0, %v2922
        %v2924 = vrcp.pop %v2869
        %v2925 = vmul.f32 1.0, %v2924
        %v2926 = vrcp.pop %v2870
        %v2927 = vmul.f32 1.0, %v2926
        %v2928 = vrcp.pop %v2871
        %v2929 = vmul.f32 1.0, %v2928
        %v2930 = vrcp.pop %v2872
        %v2931 = vmul.f32 1.0, %v2930
        %v2932 = vrcp.pop %v2873
        %v2933 = vmul.f32 1.0, %v2932
        %v2934 = vrcp.pop %v2874
        %v2935 = vmul.f32 1.0, %v2934
        %v2936 = vrcp.pop %v2875
        %v2937 = vmul.f32 1.0, %v2936
        %v2938 = vrcp.pop %v2876
        %v2939 = vmul.f32 1.0, %v2938
        %v2940 = vrcp.pop %v2877
        %v2941 = vmul.f32 1.0, %v2940
        %v2942 = vrcp.pop %v2878
        %v2943 = vmul.f32 1.0, %v2942
        %v2944 = vrcp.pop %v2879
        %v2945 = vmul.f32 1.0, %v2944
        %v2946 = vrcp.pop %v2880
        %v2947 = vmul.f32 1.0, %v2946
        %v2948 = vrcp.pop %v2881
        %v2949 = vmul.f32 1.0, %v2948
        %v2950 = vrcp.pop %v2882
        %v2951 = vmul.f32 1.0, %v2950
        %v2952 = vrcp.pop %v2883
        %v2953 = vmul.f32 1.0, %v2952
        %v2954 = vrcp.pop %v2884
        %v2955 = vmul.f32 1.0, %v2954
        %v2956 = vrcp.pop %v2885
        %v2957 = vmul.f32 1.0, %v2956
        %v2958 = vrcp.pop %v2886
        %v2959 = vmul.f32 1.0, %v2958
        %v2960 = vrcp.pop %v2887
        %v2961 = vmul.f32 1.0, %v2960
        %v2962 = vrcp.pop %v2888
        %v2963 = vmul.f32 1.0, %v2962
        %v2964 = vrcp.pop %v2889
        %v2965 = vmul.f32 1.0, %v2964
        %v2966 = vrcp.pop %v2890
        %v2967 = vmul.f32 1.0, %v2966
        %v2968 = vrcp.pop %v2891
        %v2969 = vmul.f32 1.0, %v2968
        %v2970 = vrcp.pop %v2892
        %v2971 = vmul.f32 1.0, %v2970
        %v2972 = vrcp.pop %v2893
        %v2973 = vmul.f32 1.0, %v2972
        %v2974 = vrcp.pop %v2894
        %v2975 = vmul.f32 1.0, %v2974
        %v2976 = vrcp.pop %v2895
        %v2977 = vmul.f32 1.0, %v2976
        %v2978 = vrcp.pop %v2896
        %v2979 = vmul.f32 1.0, %v2978
        %v2980 = vrcp.pop %v2897
        %v2981 = vmul.f32 1.0, %v2980
        %v2982 = vrcp.pop %v2898
        %v2983 = vmul.f32 1.0, %v2982
        %v2984 = vrcp.pop %v2899
        %v2985 = vmul.f32 1.0, %v2984
        %v2986 = vrcp.pop %v2900
        %v2987 = vmul.f32 1.0, %v2986
        %v2988 = vrcp.pop %v2901
        %v2989 = vmul.f32 1.0, %v2988
        %v2990 = vrcp.pop %v2902
        %v2991 = vmul.f32 1.0, %v2990
        %v2992 = vrcp.pop %v2903
        %v2993 = vmul.f32 1.0, %v2992
        %v2994 = vrcp.pop %v2904
        %v2995 = vmul.f32 1.0, %v2994
        %v2996 = vrcp.pop %v2905
        %v2997 = vmul.f32 1.0, %v2996
        %v2998 = vrcp.pop %v2906
        %v2999 = vmul.f32 1.0, %v2998
        %v3000 = vrcp.pop %v2907
        %v3001 = vmul.f32 1.0, %v3000
        %v3002 = vrcp.pop %v2908
        %v3003 = vmul.f32 1.0, %v3002
        %v3004 = vrcp.pop %v2909
        %v3005 = vmul.f32 1.0, %v3004
        %v3006 = vtanh.pop %v2657
        %v3007 = vtanh.pop %v2661
        %v3008 = vtanh.pop %v2665
        %v3009 = vtanh.pop %v2669
        %v3010 = vtanh.pop %v2673
        %v3011 = vtanh.pop %v2677
        %v3012 = vtanh.pop %v2681
        %v3013 = vtanh.pop %v2685
        %v3014 = vtanh.pop %v2689
        %v3015 = vtanh.pop %v2693
        %v3016 = vtanh.pop %v2697
        %v3017 = vtanh.pop %v2701
        %v3018 = vtanh.pop %v2705
        %v3019 = vtanh.pop %v2709
        %v3020 = vtanh.pop %v2713
        %v3021 = vtanh.pop %v2717
        %v3022 = vmul.f32 %v2913, %v2156
        %v3023 = vmul.f32 %v2919, %v2157
        %v3024 = vmul.f32 %v2925, %v2158
        %v3025 = vmul.f32 %v2931, %v2159
        %v3026 = vmul.f32 %v2937, %v2160
        %v3027 = vmul.f32 %v2943, %v2161
        %v3028 = vmul.f32 %v2949, %v2162
        %v3029 = vmul.f32 %v2955, %v2163
        %v3030 = vmul.f32 %v2961, %v2164
        %v3031 = vmul.f32 %v2967, %v2165
        %v3032 = vmul.f32 %v2973, %v2166
        %v3033 = vmul.f32 %v2979, %v2167
        %v3034 = vmul.f32 %v2985, %v2168
        %v3035 = vmul.f32 %v2991, %v2169
        %v3036 = vmul.f32 %v2997, %v2170
        %v3037 = vmul.f32 %v3003, %v2171
        %v3038 = vmul.f32 %v2911, %v3006
        %v3039 = vmul.f32 %v2917, %v3007
        %v3040 = vmul.f32 %v2923, %v3008
        %v3041 = vmul.f32 %v2929, %v3009
        %v3042 = vmul.f32 %v2935, %v3010
        %v3043 = vmul.f32 %v2941, %v3011
        %v3044 = vmul.f32 %v2947, %v3012
        %v3045 = vmul.f32 %v2953, %v3013
        %v3046 = vmul.f32 %v2959, %v3014
        %v3047 = vmul.f32 %v2965, %v3015
        %v3048 = vmul.f32 %v2971, %v3016
        %v3049 = vmul.f32 %v2977, %v3017
        %v3050 = vmul.f32 %v2983, %v3018
        %v3051 = vmul.f32 %v2989, %v3019
        %v3052 = vmul.f32 %v2995, %v3020
        %v3053 = vmul.f32 %v3001, %v3021
        %v3054 = vadd.f32 %v3022, %v3038
        %v3055 = vadd.f32 %v3023, %v3039
        %v3056 = vadd.f32 %v3024, %v3040
        %v3057 = vadd.f32 %v3025, %v3041
        %v3058 = vadd.f32 %v3026, %v3042
        %v3059 = vadd.f32 %v3027, %v3043
        %v3060 = vadd.f32 %v3028, %v3044
        %v3061 = vadd.f32 %v3029, %v3045
        %v3062 = vadd.f32 %v3030, %v3046
        %v3063 = vadd.f32 %v3031, %v3047
        %v3064 = vadd.f32 %v3032, %v3048
        %v3065 = vadd.f32 %v3033, %v3049
        %v3066 = vadd.f32 %v3034, %v3050
        %v3067 = vadd.f32 %v3035, %v3051
        %v3068 = vadd.f32 %v3036, %v3052
        %v3069 = vadd.f32 %v3037, %v3053
        %v3070 = vtanh.pop %v3054
        %v3071 = vtanh.pop %v3055
        %v3072 = vtanh.pop %v3056
        %v3073 = vtanh.pop %v3057
        %v3074 = vtanh.pop %v3058
        %v3075 = vtanh.pop %v3059
        %v3076 = vtanh.pop %v3060
        %v3077 = vtanh.pop %v3061
        %v3078 = vtanh.pop %v3062
        %v3079 = vtanh.pop %v3063
        %v3080 = vtanh.pop %v3064
        %v3081 = vtanh.pop %v3065
        %v3082 = vtanh.pop %v3066
        %v3083 = vtanh.pop %v3067
        %v3084 = vtanh.pop %v3068
        %v3085 = vtanh.pop %v3069
        %v3086 = vmul.f32 %v2915, %v3070
        %v3087 = vmul.f32 %v2921, %v3071
        %v3088 = vmul.f32 %v2927, %v3072
        %v3089 = vmul.f32 %v2933, %v3073
        %v3090 = vmul.f32 %v2939, %v3074
        %v3091 = vmul.f32 %v2945, %v3075
        %v3092 = vmul.f32 %v2951, %v3076
        %v3093 = vmul.f32 %v2957, %v3077
        %v3094 = vmul.f32 %v2963, %v3078
        %v3095 = vmul.f32 %v2969, %v3079
        %v3096 = vmul.f32 %v2975, %v3080
        %v3097 = vmul.f32 %v2981, %v3081
        %v3098 = vmul.f32 %v2987, %v3082
        %v3099 = vmul.f32 %v2993, %v3083
        %v3100 = vmul.f32 %v2999, %v3084
        %v3101 = vmul.f32 %v3005, %v3085
        %3102 = vset.pattern.permute.xlu0 3
        %3103 = vperm.xlu0 %3102, %v270
        %v3104 = vpop.permute.xlu0 %3103
        %3106 = vset.pattern.permute.xlu0 3
        %3107 = vperm.xlu0 %3106, %v271
        %v3108 = vpop.permute.xlu0 %3107
        %3110 = vset.pattern.permute.xlu0 3
        %3111 = vperm.xlu0 %3110, %v272
        %v3112 = vpop.permute.xlu0 %3111
        %3114 = vset.pattern.permute.xlu0 3
        %3115 = vperm.xlu0 %3114, %v273
        %v3116 = vpop.permute.xlu0 %3115
        %3118 = vset.pattern.permute.xlu0 3
        %3119 = vperm.xlu0 %3118, %v274
        %v3120 = vpop.permute.xlu0 %3119
        %3122 = vset.pattern.permute.xlu0 3
        %3123 = vperm.xlu0 %3122, %v275
        %v3124 = vpop.permute.xlu0 %3123
        %3126 = vset.pattern.permute.xlu0 3
        %3127 = vperm.xlu0 %3126, %v276
        %v3128 = vpop.permute.xlu0 %3127
        %3130 = vset.pattern.permute.xlu0 3
        %3131 = vperm.xlu0 %3130, %v277
        %v3132 = vpop.permute.xlu0 %3131
        %3134 = vset.pattern.permute.xlu0 3
        %3135 = vperm.xlu0 %3134, %v278
        %v3136 = vpop.permute.xlu0 %3135
        %3138 = vset.pattern.permute.xlu0 3
        %3139 = vperm.xlu0 %3138, %v279
        %v3140 = vpop.permute.xlu0 %3139
        %3142 = vset.pattern.permute.xlu0 3
        %3143 = vperm.xlu0 %3142, %v280
        %v3144 = vpop.permute.xlu0 %3143
        %3146 = vset.pattern.permute.xlu0 3
        %3147 = vperm.xlu0 %3146, %v281
        %v3148 = vpop.permute.xlu0 %3147
        %3150 = vset.pattern.permute.xlu0 3
        %3151 = vperm.xlu0 %3150, %v282
        %v3152 = vpop.permute.xlu0 %3151
        %3154 = vset.pattern.permute.xlu0 3
        %3155 = vperm.xlu0 %3154, %v283
        %v3156 = vpop.permute.xlu0 %3155
        %3158 = vset.pattern.permute.xlu0 3
        %3159 = vperm.xlu0 %3158, %v284
        %v3160 = vpop.permute.xlu0 %3159
        %3162 = vset.pattern.permute.xlu0 3
        %3163 = vperm.xlu0 %3162, %v285
        %v3164 = vpop.permute.xlu0 %3163
        %v3166 = vmul.f32 %v3104, %v434
        %v3167 = vmul.f32 %v3104, %v438
        %v3168 = vmul.f32 %v3104, %v442
        %v3169 = vmul.f32 %v3104, %v446
        %v3170 = vmul.f32 %v3108, %v434
        %v3171 = vmul.f32 %v3108, %v438
        %v3172 = vmul.f32 %v3108, %v442
        %v3173 = vmul.f32 %v3108, %v446
        %v3174 = vmul.f32 %v3112, %v434
        %v3175 = vmul.f32 %v3112, %v438
        %v3176 = vmul.f32 %v3112, %v442
        %v3177 = vmul.f32 %v3112, %v446
        %v3178 = vmul.f32 %v3116, %v434
        %v3179 = vmul.f32 %v3116, %v438
        %v3180 = vmul.f32 %v3116, %v442
        %v3181 = vmul.f32 %v3116, %v446
        %v3182 = vmul.f32 %v3120, %v434
        %v3183 = vmul.f32 %v3120, %v438
        %v3184 = vmul.f32 %v3120, %v442
        %v3185 = vmul.f32 %v3120, %v446
        %v3186 = vmul.f32 %v3124, %v434
        %v3187 = vmul.f32 %v3124, %v438
        %v3188 = vmul.f32 %v3124, %v442
        %v3189 = vmul.f32 %v3124, %v446
        %v3190 = vmul.f32 %v3128, %v434
        %v3191 = vmul.f32 %v3128, %v438
        %v3192 = vmul.f32 %v3128, %v442
        %v3193 = vmul.f32 %v3128, %v446
        %v3194 = vmul.f32 %v3132, %v434
        %v3195 = vmul.f32 %v3132, %v438
        %v3196 = vmul.f32 %v3132, %v442
        %v3197 = vmul.f32 %v3132, %v446
        %v3198 = vmul.f32 %v3136, %v434
        %v3199 = vmul.f32 %v3136, %v438
        %v3200 = vmul.f32 %v3136, %v442
        %v3201 = vmul.f32 %v3136, %v446
        %v3202 = vmul.f32 %v3140, %v434
        %v3203 = vmul.f32 %v3140, %v438
        %v3204 = vmul.f32 %v3140, %v442
        %v3205 = vmul.f32 %v3140, %v446
        %v3206 = vmul.f32 %v3144, %v434
        %v3207 = vmul.f32 %v3144, %v438
        %v3208 = vmul.f32 %v3144, %v442
        %v3209 = vmul.f32 %v3144, %v446
        %v3210 = vmul.f32 %v3148, %v434
        %v3211 = vmul.f32 %v3148, %v438
        %v3212 = vmul.f32 %v3148, %v442
        %v3213 = vmul.f32 %v3148, %v446
        %v3214 = vmul.f32 %v3152, %v434
        %v3215 = vmul.f32 %v3152, %v438
        %v3216 = vmul.f32 %v3152, %v442
        %v3217 = vmul.f32 %v3152, %v446
        %v3218 = vmul.f32 %v3156, %v434
        %v3219 = vmul.f32 %v3156, %v438
        %v3220 = vmul.f32 %v3156, %v442
        %v3221 = vmul.f32 %v3156, %v446
        %v3222 = vmul.f32 %v3160, %v434
        %v3223 = vmul.f32 %v3160, %v438
        %v3224 = vmul.f32 %v3160, %v442
        %v3225 = vmul.f32 %v3160, %v446
        %v3226 = vmul.f32 %v3164, %v434
        %v3227 = vmul.f32 %v3164, %v438
        %v3228 = vmul.f32 %v3164, %v442
        %v3229 = vmul.f32 %v3164, %v446
        %3230 = vmatprep.subr.mxu0 %v287
        %3231 = vmatpush1.msra.mxu0 %v286
        %3232 = vmatprep.subr.mxu0 %v291
        %3233 = vmatpush1.msra.mxu0 %v290
        %3234 = vmatprep.subr.mxu0 %v295
        %3235 = vmatpush1.msra.mxu0 %v294
        %3236 = vmatprep.subr.mxu0 %v299
        %3237 = vmatpush1.msra.mxu0 %v298
        %3238 = vmatprep.subr.mxu0 %v303
        %3239 = vmatpush1.msra.mxu0 %v302
        %3240 = vmatprep.subr.mxu0 %v307
        %3241 = vmatpush1.msra.mxu0 %v306
        %3242 = vmatprep.subr.mxu0 %v311
        %3243 = vmatpush1.msra.mxu0 %v310
        %3244 = vmatprep.subr.mxu0 %v315
        %3245 = vmatpush1.msra.mxu0 %v314
        %3246 = vmatprep.subr.mxu0 %v319
        %3247 = vmatpush1.msra.mxu0 %v318
        %3248 = vmatprep.subr.mxu0 %v323
        %3249 = vmatpush1.msra.mxu0 %v322
        %3250 = vmatprep.subr.mxu0 %v327
        %3251 = vmatpush1.msra.mxu0 %v326
        %3252 = vmatprep.subr.mxu0 %v331
        %3253 = vmatpush1.msra.mxu0 %v330
        %3254 = vmatprep.subr.mxu0 %v335
        %3255 = vmatpush1.msra.mxu0 %v334
        %3256 = vmatprep.subr.mxu0 %v339
        %3257 = vmatpush1.msra.mxu0 %v338
        %3258 = vmatprep.subr.mxu0 %v343
        %3259 = vmatpush1.msra.mxu0 %v342
        %3260 = vmatprep.subr.mxu0 %v347
        %3261 = vmatpush1.msra.mxu0 %v346
        %3262 = vmatprep.subr.mxu0 0.0
        %3263 = vmatpush1.msra.mxu0 0.0
        %3264 = vmatprep.subr.mxu0 0.0
        %3265 = vmatpush1.msra.mxu0 0.0
        %3266 = vmatprep.subr.mxu0 0.0
        %3267 = vmatpush1.msra.mxu0 0.0
        %3268 = vmatprep.subr.mxu0 0.0
        %3269 = vmatpush1.msra.mxu0 0.0
        %3270 = vmatprep.subr.mxu0 0.0
        %3271 = vmatpush1.msra.mxu0 0.0
        %3272 = vmatprep.subr.mxu0 0.0
        %3273 = vmatpush1.msra.mxu0 0.0
        %3274 = vmatprep.subr.mxu0 0.0
        %3275 = vmatpush1.msra.mxu0 0.0
        %3276 = vmatprep.subr.mxu0 0.0
        %3277 = vmatpush1.msra.mxu0 0.0
        %3278 = vmatprep.subr.mxu0 0.0
        %3279 = vmatpush1.msra.mxu0 0.0
        %3280 = vmatprep.subr.mxu0 0.0
        %3281 = vmatpush1.msra.mxu0 0.0
        %3282 = vmatprep.subr.mxu0 0.0
        %3283 = vmatpush1.msra.mxu0 0.0
        %3284 = vmatprep.subr.mxu0 0.0
        %3285 = vmatpush1.msra.mxu0 0.0
        %3286 = vmatprep.subr.mxu0 0.0
        %3287 = vmatpush1.msra.mxu0 0.0
        %3288 = vmatprep.subr.mxu0 0.0
        %3289 = vmatpush1.msra.mxu0 0.0
        %3290 = vmatprep.subr.mxu0 0.0
        %3291 = vmatpush1.msra.mxu0 0.0
        %3292 = vmatprep.subr.mxu0 0.0
        %3293 = vmatpush1.msra.mxu0 0.0
        %3294 = vmatprep.mubr.f32.mxu0 0.0
        %3295 = vmatmul.mubr.f32.gmra.mrb[0].mxu0 %v3086
        %v3296 = vpop.f32.mrb[0].mxu0
        %v3297 = vadd.f32 %v3166, %v3296
        %v3298 = vpop.f32.mrb[0].mxu0
        %v3299 = vadd.f32 %v3167, %v3298
        %3300 = vmatprep.mubr.f32.mxu0 0.0
        %3301 = vmatmul.mubr.f32.gmra.mrb[0].mxu0 %v3087
        %v3302 = vpop.f32.mrb[0].mxu0
        %v3303 = vadd.f32 %v3170, %v3302
        %v3304 = vpop.f32.mrb[0].mxu0
        %v3305 = vadd.f32 %v3171, %v3304
        %3306 = vmatprep.mubr.f32.mxu0 0.0
        %3307 = vmatmul.mubr.f32.gmra.mrb[0].mxu0 %v3088
        %v3308 = vpop.f32.mrb[0].mxu0
        %v3309 = vadd.f32 %v3174, %v3308
        %v3310 = vpop.f32.mrb[0].mxu0
        %v3311 = vadd.f32 %v3175, %v3310
        %3312 = vmatprep.mubr.f32.mxu0 0.0
        %3313 = vmatmul.mubr.f32.gmra.mrb[0].mxu0 %v3089
        %v3314 = vpop.f32.mrb[0].mxu0
        %v3315 = vadd.f32 %v3178, %v3314
        %v3316 = vpop.f32.mrb[0].mxu0
        %v3317 = vadd.f32 %v3179, %v3316
        %3318 = vmatprep.mubr.f32.mxu0 0.0
        %3319 = vmatmul.mubr.f32.gmra.mrb[0].mxu0 %v3090
        %v3320 = vpop.f32.mrb[0].mxu0
        %v3321 = vadd.f32 %v3182, %v3320
        %v3322 = vpop.f32.mrb[0].mxu0
        %v3323 = vadd.f32 %v3183, %v3322
        %3324 = vmatprep.mubr.f32.mxu0 0.0
        %3325 = vmatmul.mubr.f32.gmra.mrb[0].mxu0 %v3091
        %v3326 = vpop.f32.mrb[0].mxu0
        %v3327 = vadd.f32 %v3186, %v3326
        %v3328 = vpop.f32.mrb[0].mxu0
        %v3329 = vadd.f32 %v3187, %v3328
        %3330 = vmatprep.mubr.f32.mxu0 0.0
        %3331 = vmatmul.mubr.f32.gmra.mrb[0].mxu0 %v3092
        %v3332 = vpop.f32.mrb[0].mxu0
        %v3333 = vadd.f32 %v3190, %v3332
        %v3334 = vpop.f32.mrb[0].mxu0
        %v3335 = vadd.f32 %v3191, %v3334
        %3336 = vmatprep.mubr.f32.mxu0 0.0
        %3337 = vmatmul.mubr.f32.gmra.mrb[0].mxu0 %v3093
        %v3338 = vpop.f32.mrb[0].mxu0
        %v3339 = vadd.f32 %v3194, %v3338
        %v3340 = vpop.f32.mrb[0].mxu0
        %v3341 = vadd.f32 %v3195, %v3340
        %3342 = vmatprep.mubr.f32.mxu0 0.0
        %3343 = vmatmul.mubr.f32.gmra.mrb[0].mxu0 %v3094
        %v3344 = vpop.f32.mrb[0].mxu0
        %v3345 = vadd.f32 %v3198, %v3344
        %v3346 = vpop.f32.mrb[0].mxu0
        %v3347 = vadd.f32 %v3199, %v3346
        %3348 = vmatprep.mubr.f32.mxu0 0.0
        %3349 = vmatmul.mubr.f32.gmra.mrb[0].mxu0 %v3095
        %v3350 = vpop.f32.mrb[0].mxu0
        %v3351 = vadd.f32 %v3202, %v3350
        %v3352 = vpop.f32.mrb[0].mxu0
        %v3353 = vadd.f32 %v3203, %v3352
        %3354 = vmatprep.mubr.f32.mxu0 0.0
        %3355 = vmatmul.mubr.f32.gmra.mrb[0].mxu0 %v3096
        %v3356 = vpop.f32.mrb[0].mxu0
        %v3357 = vadd.f32 %v3206, %v3356
        %v3358 = vpop.f32.mrb[0].mxu0
        %v3359 = vadd.f32 %v3207, %v3358
        %3360 = vmatprep.mubr.f32.mxu0 0.0
        %3361 = vmatmul.mubr.f32.gmra.mrb[0].mxu0 %v3097
        %v3362 = vpop.f32.mrb[0].mxu0
        %v3363 = vadd.f32 %v3210, %v3362
        %v3364 = vpop.f32.mrb[0].mxu0
        %v3365 = vadd.f32 %v3211, %v3364
        %3366 = vmatprep.mubr.f32.mxu0 0.0
        %3367 = vmatmul.mubr.f32.gmra.mrb[0].mxu0 %v3098
        %v3368 = vpop.f32.mrb[0].mxu0
        %v3369 = vadd.f32 %v3214, %v3368
        %v3370 = vpop.f32.mrb[0].mxu0
        %v3371 = vadd.f32 %v3215, %v3370
        %3372 = vmatprep.mubr.f32.mxu0 0.0
        %3373 = vmatmul.mubr.f32.gmra.mrb[0].mxu0 %v3099
        %v3374 = vpop.f32.mrb[0].mxu0
        %v3375 = vadd.f32 %v3218, %v3374
        %v3376 = vpop.f32.mrb[0].mxu0
        %v3377 = vadd.f32 %v3219, %v3376
        %3378 = vmatprep.mubr.f32.mxu0 0.0
        %3379 = vmatmul.mubr.f32.gmra.mrb[0].mxu0 %v3100
        %v3380 = vpop.f32.mrb[0].mxu0
        %v3381 = vadd.f32 %v3222, %v3380
        %v3382 = vpop.f32.mrb[0].mxu0
        %v3383 = vadd.f32 %v3223, %v3382
        %3384 = vmatprep.mubr.f32.mxu0 0.0
        %3385 = vmatmul.mubr.f32.gmra.mrb[0].mxu0 %v3101
        %v3386 = vpop.f32.mrb[0].mxu0
        %v3387 = vadd.f32 %v3226, %v3386
        %v3388 = vpop.f32.mrb[0].mxu0
        %v3389 = vadd.f32 %v3227, %v3388
        %3390 = vdwg.mxu0
        %3391 = vmatprep.subr.mxu0 %v289
        %3392 = vmatpush1.msra.mxu0 %v288
        %3393 = vmatprep.subr.mxu0 %v293
        %3394 = vmatpush1.msra.mxu0 %v292
        %3395 = vmatprep.subr.mxu0 %v297
        %3396 = vmatpush1.msra.mxu0 %v296
        %3397 = vmatprep.subr.mxu0 %v301
        %3398 = vmatpush1.msra.mxu0 %v300
        %3399 = vmatprep.subr.mxu0 %v305
        %3400 = vmatpush1.msra.mxu0 %v304
        %3401 = vmatprep.subr.mxu0 %v309
        %3402 = vmatpush1.msra.mxu0 %v308
        %3403 = vmatprep.subr.mxu0 %v313
        %3404 = vmatpush1.msra.mxu0 %v312
        %3405 = vmatprep.subr.mxu0 %v317
        %3406 = vmatpush1.msra.mxu0 %v316
        %3407 = vmatprep.subr.mxu0 %v321
        %3408 = vmatpush1.msra.mxu0 %v320
        %3409 = vmatprep.subr.mxu0 %v325
        %3410 = vmatpush1.msra.mxu0 %v324
        %3411 = vmatprep.subr.mxu0 %v329
        %3412 = vmatpush1.msra.mxu0 %v328
        %3413 = vmatprep.subr.mxu0 %v333
        %3414 = vmatpush1.msra.mxu0 %v332
        %3415 = vmatprep.subr.mxu0 %v337
        %3416 = vmatpush1.msra.mxu0 %v336
        %3417 = vmatprep.subr.mxu0 %v341
        %3418 = vmatpush1.msra.mxu0 %v340
        %3419 = vmatprep.subr.mxu0 %v345
        %3420 = vmatpush1.msra.mxu0 %v344
        %3421 = vmatprep.subr.mxu0 %v349
        %3422 = vmatpush1.msra.mxu0 %v348
        %3423 = vmatprep.subr.mxu0 0.0
        %3424 = vmatpush1.msra.mxu0 0.0
        %3425 = vmatprep.subr.mxu0 0.0
        %3426 = vmatpush1.msra.mxu0 0.0
        %3427 = vmatprep.subr.mxu0 0.0
        %3428 = vmatpush1.msra.mxu0 0.0
        %3429 = vmatprep.subr.mxu0 0.0
        %3430 = vmatpush1.msra.mxu0 0.0
        %3431 = vmatprep.subr.mxu0 0.0
        %3432 = vmatpush1.msra.mxu0 0.0
        %3433 = vmatprep.subr.mxu0 0.0
        %3434 = vmatpush1.msra.mxu0 0.0
        %3435 = vmatprep.subr.mxu0 0.0
        %3436 = vmatpush1.msra.mxu0 0.0
        %3437 = vmatprep.subr.mxu0 0.0
        %3438 = vmatpush1.msra.mxu0 0.0
        %3439 = vmatprep.subr.mxu0 0.0
        %3440 = vmatpush1.msra.mxu0 0.0
        %3441 = vmatprep.subr.mxu0 0.0
        %3442 = vmatpush1.msra.mxu0 0.0
        %3443 = vmatprep.subr.mxu0 0.0
        %3444 = vmatpush1.msra.mxu0 0.0
        %3445 = vmatprep.subr.mxu0 0.0
        %3446 = vmatpush1.msra.mxu0 0.0
        %3447 = vmatprep.subr.mxu0 0.0
        %3448 = vmatpush1.msra.mxu0 0.0
        %3449 = vmatprep.subr.mxu0 0.0
        %3450 = vmatpush1.msra.mxu0 0.0
        %3451 = vmatprep.subr.mxu0 0.0
        %3452 = vmatpush1.msra.mxu0 0.0
        %3453 = vmatprep.subr.mxu0 0.0
        %3454 = vmatpush1.msra.mxu0 0.0
        %3455 = vmatprep.mubr.f32.mxu0 0.0
        %3456 = vmatmul.mubr.f32.gmra.mrb[0].mxu0 %v3086
        %v3457 = vpop.f32.mrb[0].mxu0
        %v3458 = vadd.f32 %v3168, %v3457
        %v3459 = vpop.f32.mrb[0].mxu0
        %v3460 = vadd.f32 %v3169, %v3459
        %3461 = vmatprep.mubr.f32.mxu0 0.0
        %3462 = vmatmul.mubr.f32.gmra.mrb[0].mxu0 %v3087
        %v3463 = vpop.f32.mrb[0].mxu0
        %v3464 = vadd.f32 %v3172, %v3463
        %v3465 = vpop.f32.mrb[0].mxu0
        %v3466 = vadd.f32 %v3173, %v3465
        %3467 = vmatprep.mubr.f32.mxu0 0.0
        %3468 = vmatmul.mubr.f32.gmra.mrb[0].mxu0 %v3088
        %v3469 = vpop.f32.mrb[0].mxu0
        %v3470 = vadd.f32 %v3176, %v3469
        %v3471 = vpop.f32.mrb[0].mxu0
        %v3472 = vadd.f32 %v3177, %v3471
        %3473 = vmatprep.mubr.f32.mxu0 0.0
        %3474 = vmatmul.mubr.f32.gmra.mrb[0].mxu0 %v3089
        %v3475 = vpop.f32.mrb[0].mxu0
        %v3476 = vadd.f32 %v3180, %v3475
        %v3477 = vpop.f32.mrb[0].mxu0
        %v3478 = vadd.f32 %v3181, %v3477
        %3479 = vmatprep.mubr.f32.mxu0 0.0
        %3480 = vmatmul.mubr.f32.gmra.mrb[0].mxu0 %v3090
        %v3481 = vpop.f32.mrb[0].mxu0
        %v3482 = vadd.f32 %v3184, %v3481
        %v3483 = vpop.f32.mrb[0].mxu0
        %v3484 = vadd.f32 %v3185, %v3483
        %3485 = vmatprep.mubr.f32.mxu0 0.0
        %3486 = vmatmul.mubr.f32.gmra.mrb[0].mxu0 %v3091
        %v3487 = vpop.f32.mrb[0].mxu0
        %v3488 = vadd.f32 %v3188, %v3487
        %v3489 = vpop.f32.mrb[0].mxu0
        %v3490 = vadd.f32 %v3189, %v3489
        %3491 = vmatprep.mubr.f32.mxu0 0.0
        %3492 = vmatmul.mubr.f32.gmra.mrb[0].mxu0 %v3092
        %v3493 = vpop.f32.mrb[0].mxu0
        %v3494 = vadd.f32 %v3192, %v3493
        %v3495 = vpop.f32.mrb[0].mxu0
        %v3496 = vadd.f32 %v3193, %v3495
        %3497 = vmatprep.mubr.f32.mxu0 0.0
        %3498 = vmatmul.mubr.f32.gmra.mrb[0].mxu0 %v3093
        %v3499 = vpop.f32.mrb[0].mxu0
        %v3500 = vadd.f32 %v3196, %v3499
        %v3501 = vpop.f32.mrb[0].mxu0
        %v3502 = vadd.f32 %v3197, %v3501
        %3503 = vmatprep.mubr.f32.mxu0 0.0
        %3504 = vmatmul.mubr.f32.gmra.mrb[0].mxu0 %v3094
        %v3505 = vpop.f32.mrb[0].mxu0
        %v3506 = vadd.f32 %v3200, %v3505
        %v3507 = vpop.f32.mrb[0].mxu0
        %v3508 = vadd.f32 %v3201, %v3507
        %3509 = vmatprep.mubr.f32.mxu0 0.0
        %3510 = vmatmul.mubr.f32.gmra.mrb[0].mxu0 %v3095
        %v3511 = vpop.f32.mrb[0].mxu0
        %v3512 = vadd.f32 %v3204, %v3511
        %v3513 = vpop.f32.mrb[0].mxu0
        %v3514 = vadd.f32 %v3205, %v3513
        %3515 = vmatprep.mubr.f32.mxu0 0.0
        %3516 = vmatmul.mubr.f32.gmra.mrb[0].mxu0 %v3096
        %v3517 = vpop.f32.mrb[0].mxu0
        %v3518 = vadd.f32 %v3208, %v3517
        %v3519 = vpop.f32.mrb[0].mxu0
        %v3520 = vadd.f32 %v3209, %v3519
        %3521 = vmatprep.mubr.f32.mxu0 0.0
        %3522 = vmatmul.mubr.f32.gmra.mrb[0].mxu0 %v3097
        %v3523 = vpop.f32.mrb[0].mxu0
        %v3524 = vadd.f32 %v3212, %v3523
        %v3525 = vpop.f32.mrb[0].mxu0
        %v3526 = vadd.f32 %v3213, %v3525
        %3527 = vmatprep.mubr.f32.mxu0 0.0
        %3528 = vmatmul.mubr.f32.gmra.mrb[0].mxu0 %v3098
        %v3529 = vpop.f32.mrb[0].mxu0
        %v3530 = vadd.f32 %v3216, %v3529
        %v3531 = vpop.f32.mrb[0].mxu0
        %v3532 = vadd.f32 %v3217, %v3531
        %3533 = vmatprep.mubr.f32.mxu0 0.0
        %3534 = vmatmul.mubr.f32.gmra.mrb[0].mxu0 %v3099
        %v3535 = vpop.f32.mrb[0].mxu0
        %v3536 = vadd.f32 %v3220, %v3535
        %v3537 = vpop.f32.mrb[0].mxu0
        %v3538 = vadd.f32 %v3221, %v3537
        %3539 = vmatprep.mubr.f32.mxu0 0.0
        %3540 = vmatmul.mubr.f32.gmra.mrb[0].mxu0 %v3100
        %v3541 = vpop.f32.mrb[0].mxu0
        %v3542 = vadd.f32 %v3224, %v3541
        %v3543 = vpop.f32.mrb[0].mxu0
        %v3544 = vadd.f32 %v3225, %v3543
        %3545 = vmatprep.mubr.f32.mxu0 0.0
        %3546 = vmatmul.mubr.f32.gmra.mrb[0].mxu0 %v3101
        %v3547 = vpop.f32.mrb[0].mxu0
        %v3548 = vadd.f32 %v3228, %v3547
        %v3549 = vpop.f32.mrb[0].mxu0
        %v3550 = vadd.f32 %v3229, %v3549
        %3551 = vdwg.mxu0
        %v3552 = vadd.f32 %v3297, %v841
        %v3553 = vadd.f32 %v3299, %v845
        %v3554 = vadd.f32 %v3458, %v849
        %v3555 = vadd.f32 %v3460, %v853
        %v3556 = vadd.f32 %v3303, %v841
        %v3557 = vadd.f32 %v3305, %v845
        %v3558 = vadd.f32 %v3464, %v849
        %v3559 = vadd.f32 %v3466, %v853
        %v3560 = vadd.f32 %v3309, %v841
        %v3561 = vadd.f32 %v3311, %v845
        %v3562 = vadd.f32 %v3470, %v849
        %v3563 = vadd.f32 %v3472, %v853
        %v3564 = vadd.f32 %v3315, %v841
        %v3565 = vadd.f32 %v3317, %v845
        %v3566 = vadd.f32 %v3476, %v849
        %v3567 = vadd.f32 %v3478, %v853
        %v3568 = vadd.f32 %v3321, %v841
        %v3569 = vadd.f32 %v3323, %v845
        %v3570 = vadd.f32 %v3482, %v849
        %v3571 = vadd.f32 %v3484, %v853
        %v3572 = vadd.f32 %v3327, %v841
        %v3573 = vadd.f32 %v3329, %v845
        %v3574 = vadd.f32 %v3488, %v849
        %v3575 = vadd.f32 %v3490, %v853
        %v3576 = vadd.f32 %v3333, %v841
        %v3577 = vadd.f32 %v3335, %v845
        %v3578 = vadd.f32 %v3494, %v849
        %v3579 = vadd.f32 %v3496, %v853
        %v3580 = vadd.f32 %v3339, %v841
        %v3581 = vadd.f32 %v3341, %v845
        %v3582 = vadd.f32 %v3500, %v849
        %v3583 = vadd.f32 %v3502, %v853
        %v3584 = vadd.f32 %v3345, %v841
        %v3585 = vadd.f32 %v3347, %v845
        %v3586 = vadd.f32 %v3506, %v849
        %v3587 = vadd.f32 %v3508, %v853
        %v3588 = vadd.f32 %v3351, %v841
        %v3589 = vadd.f32 %v3353, %v845
        %v3590 = vadd.f32 %v3512, %v849
        %v3591 = vadd.f32 %v3514, %v853
        %v3592 = vadd.f32 %v3357, %v841
        %v3593 = vadd.f32 %v3359, %v845
        %v3594 = vadd.f32 %v3518, %v849
        %v3595 = vadd.f32 %v3520, %v853
        %v3596 = vadd.f32 %v3363, %v841
        %v3597 = vadd.f32 %v3365, %v845
        %v3598 = vadd.f32 %v3524, %v849
        %v3599 = vadd.f32 %v3526, %v853
        %v3600 = vadd.f32 %v3369, %v841
        %v3601 = vadd.f32 %v3371, %v845
        %v3602 = vadd.f32 %v3530, %v849
        %v3603 = vadd.f32 %v3532, %v853
        %v3604 = vadd.f32 %v3375, %v841
        %v3605 = vadd.f32 %v3377, %v845
        %v3606 = vadd.f32 %v3536, %v849
        %v3607 = vadd.f32 %v3538, %v853
        %v3608 = vadd.f32 %v3381, %v841
        %v3609 = vadd.f32 %v3383, %v845
        %v3610 = vadd.f32 %v3542, %v849
        %v3611 = vadd.f32 %v3544, %v853
        %v3612 = vadd.f32 %v3387, %v841
        %v3613 = vadd.f32 %v3389, %v845
        %v3614 = vadd.f32 %v3548, %v849
        %v3615 = vadd.f32 %v3550, %v853
        %v3616 = vxor.u32 %v3552, 2147483648
        %v3617 = vxor.u32 %v3553, 2147483648
        %v3618 = vxor.u32 %v3554, 2147483648
        %v3619 = vxor.u32 %v3556, 2147483648
        %v3620 = vxor.u32 %v3557, 2147483648
        %v3621 = vxor.u32 %v3558, 2147483648
        %v3622 = vxor.u32 %v3560, 2147483648
        %v3623 = vxor.u32 %v3561, 2147483648
        %v3624 = vxor.u32 %v3562, 2147483648
        %v3625 = vxor.u32 %v3564, 2147483648
        %v3626 = vxor.u32 %v3565, 2147483648
        %v3627 = vxor.u32 %v3566, 2147483648
        %v3628 = vxor.u32 %v3568, 2147483648
        %v3629 = vxor.u32 %v3569, 2147483648
        %v3630 = vxor.u32 %v3570, 2147483648
        %v3631 = vxor.u32 %v3572, 2147483648
        %v3632 = vxor.u32 %v3573, 2147483648
        %v3633 = vxor.u32 %v3574, 2147483648
        %v3634 = vxor.u32 %v3576, 2147483648
        %v3635 = vxor.u32 %v3577, 2147483648
        %v3636 = vxor.u32 %v3578, 2147483648
        %v3637 = vxor.u32 %v3580, 2147483648
        %v3638 = vxor.u32 %v3581, 2147483648
        %v3639 = vxor.u32 %v3582, 2147483648
        %v3640 = vxor.u32 %v3584, 2147483648
        %v3641 = vxor.u32 %v3585, 2147483648
        %v3642 = vxor.u32 %v3586, 2147483648
        %v3643 = vxor.u32 %v3588, 2147483648
        %v3644 = vxor.u32 %v3589, 2147483648
        %v3645 = vxor.u32 %v3590, 2147483648
        %v3646 = vxor.u32 %v3592, 2147483648
        %v3647 = vxor.u32 %v3593, 2147483648
        %v3648 = vxor.u32 %v3594, 2147483648
        %v3649 = vxor.u32 %v3596, 2147483648
        %v3650 = vxor.u32 %v3597, 2147483648
        %v3651 = vxor.u32 %v3598, 2147483648
        %v3652 = vxor.u32 %v3600, 2147483648
        %v3653 = vxor.u32 %v3601, 2147483648
        %v3654 = vxor.u32 %v3602, 2147483648
        %v3655 = vxor.u32 %v3604, 2147483648
        %v3656 = vxor.u32 %v3605, 2147483648
        %v3657 = vxor.u32 %v3606, 2147483648
        %v3658 = vxor.u32 %v3608, 2147483648
        %v3659 = vxor.u32 %v3609, 2147483648
        %v3660 = vxor.u32 %v3610, 2147483648
        %v3661 = vxor.u32 %v3612, 2147483648
        %v3662 = vxor.u32 %v3613, 2147483648
        %v3663 = vxor.u32 %v3614, 2147483648
        %v3664 = vmul.f32 %v3616, 1.442695
        %v3665 = vpow.pop %v3664
        %v3666 = vmul.f32 %v3617, 1.442695
        %v3667 = vpow.pop %v3666
        %v3668 = vmul.f32 %v3618, 1.442695
        %v3669 = vpow.pop %v3668
        %v3670 = vmul.f32 %v3619, 1.442695
        %v3671 = vpow.pop %v3670
        %v3672 = vmul.f32 %v3620, 1.442695
        %v3673 = vpow.pop %v3672
        %v3674 = vmul.f32 %v3621, 1.442695
        %v3675 = vpow.pop %v3674
        %v3676 = vmul.f32 %v3622, 1.442695
        %v3677 = vpow.pop %v3676
        %v3678 = vmul.f32 %v3623, 1.442695
        %v3679 = vpow.pop %v3678
        %v3680 = vmul.f32 %v3624, 1.442695
        %v3681 = vpow.pop %v3680
        %v3682 = vmul.f32 %v3625, 1.442695
        %v3683 = vpow.pop %v3682
        %v3684 = vmul.f32 %v3626, 1.442695
        %v3685 = vpow.pop %v3684
        %v3686 = vmul.f32 %v3627, 1.442695
        %v3687 = vpow.pop %v3686
        %v3688 = vmul.f32 %v3628, 1.442695
        %v3689 = vpow.pop %v3688
        %v3690 = vmul.f32 %v3629, 1.442695
        %v3691 = vpow.pop %v3690
        %v3692 = vmul.f32 %v3630, 1.442695
        %v3693 = vpow.pop %v3692
        %v3694 = vmul.f32 %v3631, 1.442695
        %v3695 = vpow.pop %v3694
        %v3696 = vmul.f32 %v3632, 1.442695
        %v3697 = vpow.pop %v3696
        %v3698 = vmul.f32 %v3633, 1.442695
        %v3699 = vpow.pop %v3698
        %v3700 = vmul.f32 %v3634, 1.442695
        %v3701 = vpow.pop %v3700
        %v3702 = vmul.f32 %v3635, 1.442695
        %v3703 = vpow.pop %v3702
        %v3704 = vmul.f32 %v3636, 1.442695
        %v3705 = vpow.pop %v3704
        %v3706 = vmul.f32 %v3637, 1.442695
        %v3707 = vpow.pop %v3706
        %v3708 = vmul.f32 %v3638, 1.442695
        %v3709 = vpow.pop %v3708
        %v3710 = vmul.f32 %v3639, 1.442695
        %v3711 = vpow.pop %v3710
        %v3712 = vmul.f32 %v3640, 1.442695
        %v3713 = vpow.pop %v3712
        %v3714 = vmul.f32 %v3641, 1.442695
        %v3715 = vpow.pop %v3714
        %v3716 = vmul.f32 %v3642, 1.442695
        %v3717 = vpow.pop %v3716
        %v3718 = vmul.f32 %v3643, 1.442695
        %v3719 = vpow.pop %v3718
        %v3720 = vmul.f32 %v3644, 1.442695
        %v3721 = vpow.pop %v3720
        %v3722 = vmul.f32 %v3645, 1.442695
        %v3723 = vpow.pop %v3722
        %v3724 = vmul.f32 %v3646, 1.442695
        %v3725 = vpow.pop %v3724
        %v3726 = vmul.f32 %v3647, 1.442695
        %v3727 = vpow.pop %v3726
        %v3728 = vmul.f32 %v3648, 1.442695
        %v3729 = vpow.pop %v3728
        %v3730 = vmul.f32 %v3649, 1.442695
        %v3731 = vpow.pop %v3730
        %v3732 = vmul.f32 %v3650, 1.442695
        %v3733 = vpow.pop %v3732
        %v3734 = vmul.f32 %v3651, 1.442695
        %v3735 = vpow.pop %v3734
        %v3736 = vmul.f32 %v3652, 1.442695
        %v3737 = vpow.pop %v3736
        %v3738 = vmul.f32 %v3653, 1.442695
        %v3739 = vpow.pop %v3738
        %v3740 = vmul.f32 %v3654, 1.442695
        %v3741 = vpow.pop %v3740
        %v3742 = vmul.f32 %v3655, 1.442695
        %v3743 = vpow.pop %v3742
        %v3744 = vmul.f32 %v3656, 1.442695
        %v3745 = vpow.pop %v3744
        %v3746 = vmul.f32 %v3657, 1.442695
        %v3747 = vpow.pop %v3746
        %v3748 = vmul.f32 %v3658, 1.442695
        %v3749 = vpow.pop %v3748
        %v3750 = vmul.f32 %v3659, 1.442695
        %v3751 = vpow.pop %v3750
        %v3752 = vmul.f32 %v3660, 1.442695
        %v3753 = vpow.pop %v3752
        %v3754 = vmul.f32 %v3661, 1.442695
        %v3755 = vpow.pop %v3754
        %v3756 = vmul.f32 %v3662, 1.442695
        %v3757 = vpow.pop %v3756
        %v3758 = vmul.f32 %v3663, 1.442695
        %v3759 = vpow.pop %v3758
        %v3760 = vadd.f32 %v3665, 1.0
        %v3761 = vadd.f32 %v3667, 1.0
        %v3762 = vadd.f32 %v3669, 1.0
        %v3763 = vadd.f32 %v3671, 1.0
        %v3764 = vadd.f32 %v3673, 1.0
        %v3765 = vadd.f32 %v3675, 1.0
        %v3766 = vadd.f32 %v3677, 1.0
        %v3767 = vadd.f32 %v3679, 1.0
        %v3768 = vadd.f32 %v3681, 1.0
        %v3769 = vadd.f32 %v3683, 1.0
        %v3770 = vadd.f32 %v3685, 1.0
        %v3771 = vadd.f32 %v3687, 1.0
        %v3772 = vadd.f32 %v3689, 1.0
        %v3773 = vadd.f32 %v3691, 1.0
        %v3774 = vadd.f32 %v3693, 1.0
        %v3775 = vadd.f32 %v3695, 1.0
        %v3776 = vadd.f32 %v3697, 1.0
        %v3777 = vadd.f32 %v3699, 1.0
        %v3778 = vadd.f32 %v3701, 1.0
        %v3779 = vadd.f32 %v3703, 1.0
        %v3780 = vadd.f32 %v3705, 1.0
        %v3781 = vadd.f32 %v3707, 1.0
        %v3782 = vadd.f32 %v3709, 1.0
        %v3783 = vadd.f32 %v3711, 1.0
        %v3784 = vadd.f32 %v3713, 1.0
        %v3785 = vadd.f32 %v3715, 1.0
        %v3786 = vadd.f32 %v3717, 1.0
        %v3787 = vadd.f32 %v3719, 1.0
        %v3788 = vadd.f32 %v3721, 1.0
        %v3789 = vadd.f32 %v3723, 1.0
        %v3790 = vadd.f32 %v3725, 1.0
        %v3791 = vadd.f32 %v3727, 1.0
        %v3792 = vadd.f32 %v3729, 1.0
        %v3793 = vadd.f32 %v3731, 1.0
        %v3794 = vadd.f32 %v3733, 1.0
        %v3795 = vadd.f32 %v3735, 1.0
        %v3796 = vadd.f32 %v3737, 1.0
        %v3797 = vadd.f32 %v3739, 1.0
        %v3798 = vadd.f32 %v3741, 1.0
        %v3799 = vadd.f32 %v3743, 1.0
        %v3800 = vadd.f32 %v3745, 1.0
        %v3801 = vadd.f32 %v3747, 1.0
        %v3802 = vadd.f32 %v3749, 1.0
        %v3803 = vadd.f32 %v3751, 1.0
        %v3804 = vadd.f32 %v3753, 1.0
        %v3805 = vadd.f32 %v3755, 1.0
        %v3806 = vadd.f32 %v3757, 1.0
        %v3807 = vadd.f32 %v3759, 1.0
        %v3808 = vrcp.pop %v3760
        %v3809 = vmul.f32 1.0, %v3808
        %v3810 = vrcp.pop %v3761
        %v3811 = vmul.f32 1.0, %v3810
        %v3812 = vrcp.pop %v3762
        %v3813 = vmul.f32 1.0, %v3812
        %v3814 = vrcp.pop %v3763
        %v3815 = vmul.f32 1.0, %v3814
        %v3816 = vrcp.pop %v3764
        %v3817 = vmul.f32 1.0, %v3816
        %v3818 = vrcp.pop %v3765
        %v3819 = vmul.f32 1.0, %v3818
        %v3820 = vrcp.pop %v3766
        %v3821 = vmul.f32 1.0, %v3820
        %v3822 = vrcp.pop %v3767
        %v3823 = vmul.f32 1.0, %v3822
        %v3824 = vrcp.pop %v3768
        %v3825 = vmul.f32 1.0, %v3824
        %v3826 = vrcp.pop %v3769
        %v3827 = vmul.f32 1.0, %v3826
        %v3828 = vrcp.pop %v3770
        %v3829 = vmul.f32 1.0, %v3828
        %v3830 = vrcp.pop %v3771
        %v3831 = vmul.f32 1.0, %v3830
        %v3832 = vrcp.pop %v3772
        %v3833 = vmul.f32 1.0, %v3832
        %v3834 = vrcp.pop %v3773
        %v3835 = vmul.f32 1.0, %v3834
        %v3836 = vrcp.pop %v3774
        %v3837 = vmul.f32 1.0, %v3836
        %v3838 = vrcp.pop %v3775
        %v3839 = vmul.f32 1.0, %v3838
        %v3840 = vrcp.pop %v3776
        %v3841 = vmul.f32 1.0, %v3840
        %v3842 = vrcp.pop %v3777
        %v3843 = vmul.f32 1.0, %v3842
        %v3844 = vrcp.pop %v3778
        %v3845 = vmul.f32 1.0, %v3844
        %v3846 = vrcp.pop %v3779
        %v3847 = vmul.f32 1.0, %v3846
        %v3848 = vrcp.pop %v3780
        %v3849 = vmul.f32 1.0, %v3848
        %v3850 = vrcp.pop %v3781
        %v3851 = vmul.f32 1.0, %v3850
        %v3852 = vrcp.pop %v3782
        %v3853 = vmul.f32 1.0, %v3852
        %v3854 = vrcp.pop %v3783
        %v3855 = vmul.f32 1.0, %v3854
        %v3856 = vrcp.pop %v3784
        %v3857 = vmul.f32 1.0, %v3856
        %v3858 = vrcp.pop %v3785
        %v3859 = vmul.f32 1.0, %v3858
        %v3860 = vrcp.pop %v3786
        %v3861 = vmul.f32 1.0, %v3860
        %v3862 = vrcp.pop %v3787
        %v3863 = vmul.f32 1.0, %v3862
        %v3864 = vrcp.pop %v3788
        %v3865 = vmul.f32 1.0, %v3864
        %v3866 = vrcp.pop %v3789
        %v3867 = vmul.f32 1.0, %v3866
        %v3868 = vrcp.pop %v3790
        %v3869 = vmul.f32 1.0, %v3868
        %v3870 = vrcp.pop %v3791
        %v3871 = vmul.f32 1.0, %v3870
        %v3872 = vrcp.pop %v3792
        %v3873 = vmul.f32 1.0, %v3872
        %v3874 = vrcp.pop %v3793
        %v3875 = vmul.f32 1.0, %v3874
        %v3876 = vrcp.pop %v3794
        %v3877 = vmul.f32 1.0, %v3876
        %v3878 = vrcp.pop %v3795
        %v3879 = vmul.f32 1.0, %v3878
        %v3880 = vrcp.pop %v3796
        %v3881 = vmul.f32 1.0, %v3880
        %v3882 = vrcp.pop %v3797
        %v3883 = vmul.f32 1.0, %v3882
        %v3884 = vrcp.pop %v3798
        %v3885 = vmul.f32 1.0, %v3884
        %v3886 = vrcp.pop %v3799
        %v3887 = vmul.f32 1.0, %v3886
        %v3888 = vrcp.pop %v3800
        %v3889 = vmul.f32 1.0, %v3888
        %v3890 = vrcp.pop %v3801
        %v3891 = vmul.f32 1.0, %v3890
        %v3892 = vrcp.pop %v3802
        %v3893 = vmul.f32 1.0, %v3892
        %v3894 = vrcp.pop %v3803
        %v3895 = vmul.f32 1.0, %v3894
        %v3896 = vrcp.pop %v3804
        %v3897 = vmul.f32 1.0, %v3896
        %v3898 = vrcp.pop %v3805
        %v3899 = vmul.f32 1.0, %v3898
        %v3900 = vrcp.pop %v3806
        %v3901 = vmul.f32 1.0, %v3900
        %v3902 = vrcp.pop %v3807
        %v3903 = vmul.f32 1.0, %v3902
        %v3904 = vtanh.pop %v3555
        %v3905 = vtanh.pop %v3559
        %v3906 = vtanh.pop %v3563
        %v3907 = vtanh.pop %v3567
        %v3908 = vtanh.pop %v3571
        %v3909 = vtanh.pop %v3575
        %v3910 = vtanh.pop %v3579
        %v3911 = vtanh.pop %v3583
        %v3912 = vtanh.pop %v3587
        %v3913 = vtanh.pop %v3591
        %v3914 = vtanh.pop %v3595
        %v3915 = vtanh.pop %v3599
        %v3916 = vtanh.pop %v3603
        %v3917 = vtanh.pop %v3607
        %v3918 = vtanh.pop %v3611
        %v3919 = vtanh.pop %v3615
        %v3920 = vmul.f32 %v3811, %v3054
        %v3921 = vmul.f32 %v3817, %v3055
        %v3922 = vmul.f32 %v3823, %v3056
        %v3923 = vmul.f32 %v3829, %v3057
        %v3924 = vmul.f32 %v3835, %v3058
        %v3925 = vmul.f32 %v3841, %v3059
        %v3926 = vmul.f32 %v3847, %v3060
        %v3927 = vmul.f32 %v3853, %v3061
        %v3928 = vmul.f32 %v3859, %v3062
        %v3929 = vmul.f32 %v3865, %v3063
        %v3930 = vmul.f32 %v3871, %v3064
        %v3931 = vmul.f32 %v3877, %v3065
        %v3932 = vmul.f32 %v3883, %v3066
        %v3933 = vmul.f32 %v3889, %v3067
        %v3934 = vmul.f32 %v3895, %v3068
        %v3935 = vmul.f32 %v3901, %v3069
        %v3936 = vmul.f32 %v3809, %v3904
        %v3937 = vmul.f32 %v3815, %v3905
        %v3938 = vmul.f32 %v3821, %v3906
        %v3939 = vmul.f32 %v3827, %v3907
        %v3940 = vmul.f32 %v3833, %v3908
        %v3941 = vmul.f32 %v3839, %v3909
        %v3942 = vmul.f32 %v3845, %v3910
        %v3943 = vmul.f32 %v3851, %v3911
        %v3944 = vmul.f32 %v3857, %v3912
        %v3945 = vmul.f32 %v3863, %v3913
        %v3946 = vmul.f32 %v3869, %v3914
        %v3947 = vmul.f32 %v3875, %v3915
        %v3948 = vmul.f32 %v3881, %v3916
        %v3949 = vmul.f32 %v3887, %v3917
        %v3950 = vmul.f32 %v3893, %v3918
        %v3951 = vmul.f32 %v3899, %v3919
        %v3952 = vadd.f32 %v3920, %v3936
        %v3953 = vadd.f32 %v3921, %v3937
        %v3954 = vadd.f32 %v3922, %v3938
        %v3955 = vadd.f32 %v3923, %v3939
        %v3956 = vadd.f32 %v3924, %v3940
        %v3957 = vadd.f32 %v3925, %v3941
        %v3958 = vadd.f32 %v3926, %v3942
        %v3959 = vadd.f32 %v3927, %v3943
        %v3960 = vadd.f32 %v3928, %v3944
        %v3961 = vadd.f32 %v3929, %v3945
        %v3962 = vadd.f32 %v3930, %v3946
        %v3963 = vadd.f32 %v3931, %v3947
        %v3964 = vadd.f32 %v3932, %v3948
        %v3965 = vadd.f32 %v3933, %v3949
        %v3966 = vadd.f32 %v3934, %v3950
        %v3967 = vadd.f32 %v3935, %v3951
        %v3968 = vtanh.pop %v3952
        %v3969 = vtanh.pop %v3953
        %v3970 = vtanh.pop %v3954
        %v3971 = vtanh.pop %v3955
        %v3972 = vtanh.pop %v3956
        %v3973 = vtanh.pop %v3957
        %v3974 = vtanh.pop %v3958
        %v3975 = vtanh.pop %v3959
        %v3976 = vtanh.pop %v3960
        %v3977 = vtanh.pop %v3961
        %v3978 = vtanh.pop %v3962
        %v3979 = vtanh.pop %v3963
        %v3980 = vtanh.pop %v3964
        %v3981 = vtanh.pop %v3965
        %v3982 = vtanh.pop %v3966
        %v3983 = vtanh.pop %v3967
        %v3984 = vmul.f32 %v3813, %v3968
        %v3985 = vmul.f32 %v3819, %v3969
        %v3986 = vmul.f32 %v3825, %v3970
        %v3987 = vmul.f32 %v3831, %v3971
        %v3988 = vmul.f32 %v3837, %v3972
        %v3989 = vmul.f32 %v3843, %v3973
        %v3990 = vmul.f32 %v3849, %v3974
        %v3991 = vmul.f32 %v3855, %v3975
        %v3992 = vmul.f32 %v3861, %v3976
        %v3993 = vmul.f32 %v3867, %v3977
        %v3994 = vmul.f32 %v3873, %v3978
        %v3995 = vmul.f32 %v3879, %v3979
        %v3996 = vmul.f32 %v3885, %v3980
        %v3997 = vmul.f32 %v3891, %v3981
        %v3998 = vmul.f32 %v3897, %v3982
        %v3999 = vmul.f32 %v3903, %v3983
        %4000 = vset.pattern.permute.xlu0 4
        %4001 = vperm.xlu0 %4000, %v270
        %v4002 = vpop.permute.xlu0 %4001
        %4004 = vset.pattern.permute.xlu0 4
        %4005 = vperm.xlu0 %4004, %v271
        %v4006 = vpop.permute.xlu0 %4005
        %4008 = vset.pattern.permute.xlu0 4
        %4009 = vperm.xlu0 %4008, %v272
        %v4010 = vpop.permute.xlu0 %4009
        %4012 = vset.pattern.permute.xlu0 4
        %4013 = vperm.xlu0 %4012, %v273
        %v4014 = vpop.permute.xlu0 %4013
        %4016 = vset.pattern.permute.xlu0 4
        %4017 = vperm.xlu0 %4016, %v274
        %v4018 = vpop.permute.xlu0 %4017
        %4020 = vset.pattern.permute.xlu0 4
        %4021 = vperm.xlu0 %4020, %v275
        %v4022 = vpop.permute.xlu0 %4021
        %4024 = vset.pattern.permute.xlu0 4
        %4025 = vperm.xlu0 %4024, %v276
        %v4026 = vpop.permute.xlu0 %4025
        %4028 = vset.pattern.permute.xlu0 4
        %4029 = vperm.xlu0 %4028, %v277
        %v4030 = vpop.permute.xlu0 %4029
        %4032 = vset.pattern.permute.xlu0 4
        %4033 = vperm.xlu0 %4032, %v278
        %v4034 = vpop.permute.xlu0 %4033
        %4036 = vset.pattern.permute.xlu0 4
        %4037 = vperm.xlu0 %4036, %v279
        %v4038 = vpop.permute.xlu0 %4037
        %4040 = vset.pattern.permute.xlu0 4
        %4041 = vperm.xlu0 %4040, %v280
        %v4042 = vpop.permute.xlu0 %4041
        %4044 = vset.pattern.permute.xlu0 4
        %4045 = vperm.xlu0 %4044, %v281
        %v4046 = vpop.permute.xlu0 %4045
        %4048 = vset.pattern.permute.xlu0 4
        %4049 = vperm.xlu0 %4048, %v282
        %v4050 = vpop.permute.xlu0 %4049
        %4052 = vset.pattern.permute.xlu0 4
        %4053 = vperm.xlu0 %4052, %v283
        %v4054 = vpop.permute.xlu0 %4053
        %4056 = vset.pattern.permute.xlu0 4
        %4057 = vperm.xlu0 %4056, %v284
        %v4058 = vpop.permute.xlu0 %4057
        %4060 = vset.pattern.permute.xlu0 4
        %4061 = vperm.xlu0 %4060, %v285
        %v4062 = vpop.permute.xlu0 %4061
        %v4064 = vmul.f32 %v4002, %v434
        %v4065 = vmul.f32 %v4002, %v438
        %v4066 = vmul.f32 %v4002, %v442
        %v4067 = vmul.f32 %v4002, %v446
        %v4068 = vmul.f32 %v4006, %v434
        %v4069 = vmul.f32 %v4006, %v438
        %v4070 = vmul.f32 %v4006, %v442
        %v4071 = vmul.f32 %v4006, %v446
        %v4072 = vmul.f32 %v4010, %v434
        %v4073 = vmul.f32 %v4010, %v438
        %v4074 = vmul.f32 %v4010, %v442
        %v4075 = vmul.f32 %v4010, %v446
        %v4076 = vmul.f32 %v4014, %v434
        %v4077 = vmul.f32 %v4014, %v438
        %v4078 = vmul.f32 %v4014, %v442
        %v4079 = vmul.f32 %v4014, %v446
        %v4080 = vmul.f32 %v4018, %v434
        %v4081 = vmul.f32 %v4018, %v438
        %v4082 = vmul.f32 %v4018, %v442
        %v4083 = vmul.f32 %v4018, %v446
        %v4084 = vmul.f32 %v4022, %v434
        %v4085 = vmul.f32 %v4022, %v438
        %v4086 = vmul.f32 %v4022, %v442
        %v4087 = vmul.f32 %v4022, %v446
        %v4088 = vmul.f32 %v4026, %v434
        %v4089 = vmul.f32 %v4026, %v438
        %v4090 = vmul.f32 %v4026, %v442
        %v4091 = vmul.f32 %v4026, %v446
        %v4092 = vmul.f32 %v4030, %v434
        %v4093 = vmul.f32 %v4030, %v438
        %v4094 = vmul.f32 %v4030, %v442
        %v4095 = vmul.f32 %v4030, %v446
        %v4096 = vmul.f32 %v4034, %v434
        %v4097 = vmul.f32 %v4034, %v438
        %v4098 = vmul.f32 %v4034, %v442
        %v4099 = vmul.f32 %v4034, %v446
        %v4100 = vmul.f32 %v4038, %v434
        %v4101 = vmul.f32 %v4038, %v438
        %v4102 = vmul.f32 %v4038, %v442
        %v4103 = vmul.f32 %v4038, %v446
        %v4104 = vmul.f32 %v4042, %v434
        %v4105 = vmul.f32 %v4042, %v438
        %v4106 = vmul.f32 %v4042, %v442
        %v4107 = vmul.f32 %v4042, %v446
        %v4108 = vmul.f32 %v4046, %v434
        %v4109 = vmul.f32 %v4046, %v438
        %v4110 = vmul.f32 %v4046, %v442
        %v4111 = vmul.f32 %v4046, %v446
        %v4112 = vmul.f32 %v4050, %v434
        %v4113 = vmul.f32 %v4050, %v438
        %v4114 = vmul.f32 %v4050, %v442
        %v4115 = vmul.f32 %v4050, %v446
        %v4116 = vmul.f32 %v4054, %v434
        %v4117 = vmul.f32 %v4054, %v438
        %v4118 = vmul.f32 %v4054, %v442
        %v4119 = vmul.f32 %v4054, %v446
        %v4120 = vmul.f32 %v4058, %v434
        %v4121 = vmul.f32 %v4058, %v438
        %v4122 = vmul.f32 %v4058, %v442
        %v4123 = vmul.f32 %v4058, %v446
        %v4124 = vmul.f32 %v4062, %v434
        %v4125 = vmul.f32 %v4062, %v438
        %v4126 = vmul.f32 %v4062, %v442
        %v4127 = vmul.f32 %v4062, %v446
        %4128 = vmatprep.subr.mxu0 %v287
        %4129 = vmatpush1.msra.mxu0 %v286
        %4130 = vmatprep.subr.mxu0 %v291
        %4131 = vmatpush1.msra.mxu0 %v290
        %4132 = vmatprep.subr.mxu0 %v295
        %4133 = vmatpush1.msra.mxu0 %v294
        %4134 = vmatprep.subr.mxu0 %v299
        %4135 = vmatpush1.msra.mxu0 %v298
        %4136 = vmatprep.subr.mxu0 %v303
        %4137 = vmatpush1.msra.mxu0 %v302
        %4138 = vmatprep.subr.mxu0 %v307
        %4139 = vmatpush1.msra.mxu0 %v306
        %4140 = vmatprep.subr.mxu0 %v311
        %4141 = vmatpush1.msra.mxu0 %v310
        %4142 = vmatprep.subr.mxu0 %v315
        %4143 = vmatpush1.msra.mxu0 %v314
        %4144 = vmatprep.subr.mxu0 %v319
        %4145 = vmatpush1.msra.mxu0 %v318
        %4146 = vmatprep.subr.mxu0 %v323
        %4147 = vmatpush1.msra.mxu0 %v322
        %4148 = vmatprep.subr.mxu0 %v327
        %4149 = vmatpush1.msra.mxu0 %v326
        %4150 = vmatprep.subr.mxu0 %v331
        %4151 = vmatpush1.msra.mxu0 %v330
        %4152 = vmatprep.subr.mxu0 %v335
        %4153 = vmatpush1.msra.mxu0 %v334
        %4154 = vmatprep.subr.mxu0 %v339
        %4155 = vmatpush1.msra.mxu0 %v338
        %4156 = vmatprep.subr.mxu0 %v343
        %4157 = vmatpush1.msra.mxu0 %v342
        %4158 = vmatprep.subr.mxu0 %v347
        %4159 = vmatpush1.msra.mxu0 %v346
        %4160 = vmatprep.subr.mxu0 0.0
        %4161 = vmatpush1.msra.mxu0 0.0
        %4162 = vmatprep.subr.mxu0 0.0
        %4163 = vmatpush1.msra.mxu0 0.0
        %4164 = vmatprep.subr.mxu0 0.0
        %4165 = vmatpush1.msra.mxu0 0.0
        %4166 = vmatprep.subr.mxu0 0.0
        %4167 = vmatpush1.msra.mxu0 0.0
        %4168 = vmatprep.subr.mxu0 0.0
        %4169 = vmatpush1.msra.mxu0 0.0
        %4170 = vmatprep.subr.mxu0 0.0
        %4171 = vmatpush1.msra.mxu0 0.0
        %4172 = vmatprep.subr.mxu0 0.0
        %4173 = vmatpush1.msra.mxu0 0.0
        %4174 = vmatprep.subr.mxu0 0.0
        %4175 = vmatpush1.msra.mxu0 0.0
        %4176 = vmatprep.subr.mxu0 0.0
        %4177 = vmatpush1.msra.mxu0 0.0
        %4178 = vmatprep.subr.mxu0 0.0
        %4179 = vmatpush1.msra.mxu0 0.0
        %4180 = vmatprep.subr.mxu0 0.0
        %4181 = vmatpush1.msra.mxu0 0.0
        %4182 = vmatprep.subr.mxu0 0.0
        %4183 = vmatpush1.msra.mxu0 0.0
        %4184 = vmatprep.subr.mxu0 0.0
        %4185 = vmatpush1.msra.mxu0 0.0
        %4186 = vmatprep.subr.mxu0 0.0
        %4187 = vmatpush1.msra.mxu0 0.0
        %4188 = vmatprep.subr.mxu0 0.0
        %4189 = vmatpush1.msra.mxu0 0.0
        %4190 = vmatprep.subr.mxu0 0.0
        %4191 = vmatpush1.msra.mxu0 0.0
        %4192 = vmatprep.mubr.f32.mxu0 0.0
        %4193 = vmatmul.mubr.f32.gmra.mrb[0].mxu0 %v3984
        %v4194 = vpop.f32.mrb[0].mxu0
        %v4195 = vadd.f32 %v4064, %v4194
        %v4196 = vpop.f32.mrb[0].mxu0
        %v4197 = vadd.f32 %v4065, %v4196
        %4198 = vmatprep.mubr.f32.mxu0 0.0
        %4199 = vmatmul.mubr.f32.gmra.mrb[0].mxu0 %v3985
        %v4200 = vpop.f32.mrb[0].mxu0
        %v4201 = vadd.f32 %v4068, %v4200
        %v4202 = vpop.f32.mrb[0].mxu0
        %v4203 = vadd.f32 %v4069, %v4202
        %4204 = vmatprep.mubr.f32.mxu0 0.0
        %4205 = vmatmul.mubr.f32.gmra.mrb[0].mxu0 %v3986
        %v4206 = vpop.f32.mrb[0].mxu0
        %v4207 = vadd.f32 %v4072, %v4206
        %v4208 = vpop.f32.mrb[0].mxu0
        %v4209 = vadd.f32 %v4073, %v4208
        %4210 = vmatprep.mubr.f32.mxu0 0.0
        %4211 = vmatmul.mubr.f32.gmra.mrb[0].mxu0 %v3987
        %v4212 = vpop.f32.mrb[0].mxu0
        %v4213 = vadd.f32 %v4076, %v4212
        %v4214 = vpop.f32.mrb[0].mxu0
        %v4215 = vadd.f32 %v4077, %v4214
        %4216 = vmatprep.mubr.f32.mxu0 0.0
        %4217 = vmatmul.mubr.f32.gmra.mrb[0].mxu0 %v3988
        %v4218 = vpop.f32.mrb[0].mxu0
        %v4219 = vadd.f32 %v4080, %v4218
        %v4220 = vpop.f32.mrb[0].mxu0
        %v4221 = vadd.f32 %v4081, %v4220
        %4222 = vmatprep.mubr.f32.mxu0 0.0
        %4223 = vmatmul.mubr.f32.gmra.mrb[0].mxu0 %v3989
        %v4224 = vpop.f32.mrb[0].mxu0
        %v4225 = vadd.f32 %v4084, %v4224
        %v4226 = vpop.f32.mrb[0].mxu0
        %v4227 = vadd.f32 %v4085, %v4226
        %4228 = vmatprep.mubr.f32.mxu0 0.0
        %4229 = vmatmul.mubr.f32.gmra.mrb[0].mxu0 %v3990
        %v4230 = vpop.f32.mrb[0].mxu0
        %v4231 = vadd.f32 %v4088, %v4230
        %v4232 = vpop.f32.mrb[0].mxu0
        %v4233 = vadd.f32 %v4089, %v4232
        %4234 = vmatprep.mubr.f32.mxu0 0.0
        %4235 = vmatmul.mubr.f32.gmra.mrb[0].mxu0 %v3991
        %v4236 = vpop.f32.mrb[0].mxu0
        %v4237 = vadd.f32 %v4092, %v4236
        %v4238 = vpop.f32.mrb[0].mxu0
        %v4239 = vadd.f32 %v4093, %v4238
        %4240 = vmatprep.mubr.f32.mxu0 0.0
        %4241 = vmatmul.mubr.f32.gmra.mrb[0].mxu0 %v3992
        %v4242 = vpop.f32.mrb[0].mxu0
        %v4243 = vadd.f32 %v4096, %v4242
        %v4244 = vpop.f32.mrb[0].mxu0
        %v4245 = vadd.f32 %v4097, %v4244
        %4246 = vmatprep.mubr.f32.mxu0 0.0
        %4247 = vmatmul.mubr.f32.gmra.mrb[0].mxu0 %v3993
        %v4248 = vpop.f32.mrb[0].mxu0
        %v4249 = vadd.f32 %v4100, %v4248
        %v4250 = vpop.f32.mrb[0].mxu0
        %v4251 = vadd.f32 %v4101, %v4250
        %4252 = vmatprep.mubr.f32.mxu0 0.0
        %4253 = vmatmul.mubr.f32.gmra.mrb[0].mxu0 %v3994
        %v4254 = vpop.f32.mrb[0].mxu0
        %v4255 = vadd.f32 %v4104, %v4254
        %v4256 = vpop.f32.mrb[0].mxu0
        %v4257 = vadd.f32 %v4105, %v4256
        %4258 = vmatprep.mubr.f32.mxu0 0.0
        %4259 = vmatmul.mubr.f32.gmra.mrb[0].mxu0 %v3995
        %v4260 = vpop.f32.mrb[0].mxu0
        %v4261 = vadd.f32 %v4108, %v4260
        %v4262 = vpop.f32.mrb[0].mxu0
        %v4263 = vadd.f32 %v4109, %v4262
        %4264 = vmatprep.mubr.f32.mxu0 0.0
        %4265 = vmatmul.mubr.f32.gmra.mrb[0].mxu0 %v3996
        %v4266 = vpop.f32.mrb[0].mxu0
        %v4267 = vadd.f32 %v4112, %v4266
        %v4268 = vpop.f32.mrb[0].mxu0
        %v4269 = vadd.f32 %v4113, %v4268
        %4270 = vmatprep.mubr.f32.mxu0 0.0
        %4271 = vmatmul.mubr.f32.gmra.mrb[0].mxu0 %v3997
        %v4272 = vpop.f32.mrb[0].mxu0
        %v4273 = vadd.f32 %v4116, %v4272
        %v4274 = vpop.f32.mrb[0].mxu0
        %v4275 = vadd.f32 %v4117, %v4274
        %4276 = vmatprep.mubr.f32.mxu0 0.0
        %4277 = vmatmul.mubr.f32.gmra.mrb[0].mxu0 %v3998
        %v4278 = vpop.f32.mrb[0].mxu0
        %v4279 = vadd.f32 %v4120, %v4278
        %v4280 = vpop.f32.mrb[0].mxu0
        %v4281 = vadd.f32 %v4121, %v4280
        %4282 = vmatprep.mubr.f32.mxu0 0.0
        %4283 = vmatmul.mubr.f32.gmra.mrb[0].mxu0 %v3999
        %v4284 = vpop.f32.mrb[0].mxu0
        %v4285 = vadd.f32 %v4124, %v4284
        %v4286 = vpop.f32.mrb[0].mxu0
        %v4287 = vadd.f32 %v4125, %v4286
        %4288 = vdwg.mxu0
        %4289 = vmatprep.subr.mxu0 %v289
        %4290 = vmatpush1.msra.mxu0 %v288
        %4291 = vmatprep.subr.mxu0 %v293
        %4292 = vmatpush1.msra.mxu0 %v292
        %4293 = vmatprep.subr.mxu0 %v297
        %4294 = vmatpush1.msra.mxu0 %v296
        %4295 = vmatprep.subr.mxu0 %v301
        %4296 = vmatpush1.msra.mxu0 %v300
        %4297 = vmatprep.subr.mxu0 %v305
        %4298 = vmatpush1.msra.mxu0 %v304
        %4299 = vmatprep.subr.mxu0 %v309
        %4300 = vmatpush1.msra.mxu0 %v308
        %4301 = vmatprep.subr.mxu0 %v313
        %4302 = vmatpush1.msra.mxu0 %v312
        %4303 = vmatprep.subr.mxu0 %v317
        %4304 = vmatpush1.msra.mxu0 %v316
        %4305 = vmatprep.subr.mxu0 %v321
        %4306 = vmatpush1.msra.mxu0 %v320
        %4307 = vmatprep.subr.mxu0 %v325
        %4308 = vmatpush1.msra.mxu0 %v324
        %4309 = vmatprep.subr.mxu0 %v329
        %4310 = vmatpush1.msra.mxu0 %v328
        %4311 = vmatprep.subr.mxu0 %v333
        %4312 = vmatpush1.msra.mxu0 %v332
        %4313 = vmatprep.subr.mxu0 %v337
        %4314 = vmatpush1.msra.mxu0 %v336
        %4315 = vmatprep.subr.mxu0 %v341
        %4316 = vmatpush1.msra.mxu0 %v340
        %4317 = vmatprep.subr.mxu0 %v345
        %4318 = vmatpush1.msra.mxu0 %v344
        %4319 = vmatprep.subr.mxu0 %v349
        %4320 = vmatpush1.msra.mxu0 %v348
        %4321 = vmatprep.subr.mxu0 0.0
        %4322 = vmatpush1.msra.mxu0 0.0
        %4323 = vmatprep.subr.mxu0 0.0
        %4324 = vmatpush1.msra.mxu0 0.0
        %4325 = vmatprep.subr.mxu0 0.0
        %4326 = vmatpush1.msra.mxu0 0.0
        %4327 = vmatprep.subr.mxu0 0.0
        %4328 = vmatpush1.msra.mxu0 0.0
        %4329 = vmatprep.subr.mxu0 0.0
        %4330 = vmatpush1.msra.mxu0 0.0
        %4331 = vmatprep.subr.mxu0 0.0
        %4332 = vmatpush1.msra.mxu0 0.0
        %4333 = vmatprep.subr.mxu0 0.0
        %4334 = vmatpush1.msra.mxu0 0.0
        %4335 = vmatprep.subr.mxu0 0.0
        %4336 = vmatpush1.msra.mxu0 0.0
        %4337 = vmatprep.subr.mxu0 0.0
        %4338 = vmatpush1.msra.mxu0 0.0
        %4339 = vmatprep.subr.mxu0 0.0
        %4340 = vmatpush1.msra.mxu0 0.0
        %4341 = vmatprep.subr.mxu0 0.0
        %4342 = vmatpush1.msra.mxu0 0.0
        %4343 = vmatprep.subr.mxu0 0.0
        %4344 = vmatpush1.msra.mxu0 0.0
        %4345 = vmatprep.subr.mxu0 0.0
        %4346 = vmatpush1.msra.mxu0 0.0
        %4347 = vmatprep.subr.mxu0 0.0
        %4348 = vmatpush1.msra.mxu0 0.0
        %4349 = vmatprep.subr.mxu0 0.0
        %4350 = vmatpush1.msra.mxu0 0.0
        %4351 = vmatprep.subr.mxu0 0.0
        %4352 = vmatpush1.msra.mxu0 0.0
        %4353 = vmatprep.mubr.f32.mxu0 0.0
        %4354 = vmatmul.mubr.f32.gmra.mrb[0].mxu0 %v3984
        %v4355 = vpop.f32.mrb[0].mxu0
        %v4356 = vadd.f32 %v4066, %v4355
        %v4357 = vpop.f32.mrb[0].mxu0
        %v4358 = vadd.f32 %v4067, %v4357
        %4359 = vmatprep.mubr.f32.mxu0 0.0
        %4360 = vmatmul.mubr.f32.gmra.mrb[0].mxu0 %v3985
        %v4361 = vpop.f32.mrb[0].mxu0
        %v4362 = vadd.f32 %v4070, %v4361
        %v4363 = vpop.f32.mrb[0].mxu0
        %v4364 = vadd.f32 %v4071, %v4363
        %4365 = vmatprep.mubr.f32.mxu0 0.0
        %4366 = vmatmul.mubr.f32.gmra.mrb[0].mxu0 %v3986
        %v4367 = vpop.f32.mrb[0].mxu0
        %v4368 = vadd.f32 %v4074, %v4367
        %v4369 = vpop.f32.mrb[0].mxu0
        %v4370 = vadd.f32 %v4075, %v4369
        %4371 = vmatprep.mubr.f32.mxu0 0.0
        %4372 = vmatmul.mubr.f32.gmra.mrb[0].mxu0 %v3987
        %v4373 = vpop.f32.mrb[0].mxu0
        %v4374 = vadd.f32 %v4078, %v4373
        %v4375 = vpop.f32.mrb[0].mxu0
        %v4376 = vadd.f32 %v4079, %v4375
        %4377 = vmatprep.mubr.f32.mxu0 0.0
        %4378 = vmatmul.mubr.f32.gmra.mrb[0].mxu0 %v3988
        %v4379 = vpop.f32.mrb[0].mxu0
        %v4380 = vadd.f32 %v4082, %v4379
        %v4381 = vpop.f32.mrb[0].mxu0
        %v4382 = vadd.f32 %v4083, %v4381
        %4383 = vmatprep.mubr.f32.mxu0 0.0
        %4384 = vmatmul.mubr.f32.gmra.mrb[0].mxu0 %v3989
        %v4385 = vpop.f32.mrb[0].mxu0
        %v4386 = vadd.f32 %v4086, %v4385
        %v4387 = vpop.f32.mrb[0].mxu0
        %v4388 = vadd.f32 %v4087, %v4387
        %4389 = vmatprep.mubr.f32.mxu0 0.0
        %4390 = vmatmul.mubr.f32.gmra.mrb[0].mxu0 %v3990
        %v4391 = vpop.f32.mrb[0].mxu0
        %v4392 = vadd.f32 %v4090, %v4391
        %v4393 = vpop.f32.mrb[0].mxu0
        %v4394 = vadd.f32 %v4091, %v4393
        %4395 = vmatprep.mubr.f32.mxu0 0.0
        %4396 = vmatmul.mubr.f32.gmra.mrb[0].mxu0 %v3991
        %v4397 = vpop.f32.mrb[0].mxu0
        %v4398 = vadd.f32 %v4094, %v4397
        %v4399 = vpop.f32.mrb[0].mxu0
        %v4400 = vadd.f32 %v4095, %v4399
        %4401 = vmatprep.mubr.f32.mxu0 0.0
        %4402 = vmatmul.mubr.f32.gmra.mrb[0].mxu0 %v3992
        %v4403 = vpop.f32.mrb[0].mxu0
        %v4404 = vadd.f32 %v4098, %v4403
        %v4405 = vpop.f32.mrb[0].mxu0
        %v4406 = vadd.f32 %v4099, %v4405
        %4407 = vmatprep.mubr.f32.mxu0 0.0
        %4408 = vmatmul.mubr.f32.gmra.mrb[0].mxu0 %v3993
        %v4409 = vpop.f32.mrb[0].mxu0
        %v4410 = vadd.f32 %v4102, %v4409
        %v4411 = vpop.f32.mrb[0].mxu0
        %v4412 = vadd.f32 %v4103, %v4411
        %4413 = vmatprep.mubr.f32.mxu0 0.0
        %4414 = vmatmul.mubr.f32.gmra.mrb[0].mxu0 %v3994
        %v4415 = vpop.f32.mrb[0].mxu0
        %v4416 = vadd.f32 %v4106, %v4415
        %v4417 = vpop.f32.mrb[0].mxu0
        %v4418 = vadd.f32 %v4107, %v4417
        %4419 = vmatprep.mubr.f32.mxu0 0.0
        %4420 = vmatmul.mubr.f32.gmra.mrb[0].mxu0 %v3995
        %v4421 = vpop.f32.mrb[0].mxu0
        %v4422 = vadd.f32 %v4110, %v4421
        %v4423 = vpop.f32.mrb[0].mxu0
        %v4424 = vadd.f32 %v4111, %v4423
        %4425 = vmatprep.mubr.f32.mxu0 0.0
        %4426 = vmatmul.mubr.f32.gmra.mrb[0].mxu0 %v3996
        %v4427 = vpop.f32.mrb[0].mxu0
        %v4428 = vadd.f32 %v4114, %v4427
        %v4429 = vpop.f32.mrb[0].mxu0
        %v4430 = vadd.f32 %v4115, %v4429
        %4431 = vmatprep.mubr.f32.mxu0 0.0
        %4432 = vmatmul.mubr.f32.gmra.mrb[0].mxu0 %v3997
        %v4433 = vpop.f32.mrb[0].mxu0
        %v4434 = vadd.f32 %v4118, %v4433
        %v4435 = vpop.f32.mrb[0].mxu0
        %v4436 = vadd.f32 %v4119, %v4435
        %4437 = vmatprep.mubr.f32.mxu0 0.0
        %4438 = vmatmul.mubr.f32.gmra.mrb[0].mxu0 %v3998
        %v4439 = vpop.f32.mrb[0].mxu0
        %v4440 = vadd.f32 %v4122, %v4439
        %v4441 = vpop.f32.mrb[0].mxu0
        %v4442 = vadd.f32 %v4123, %v4441
        %4443 = vmatprep.mubr.f32.mxu0 0.0
        %4444 = vmatmul.mubr.f32.gmra.mrb[0].mxu0 %v3999
        %v4445 = vpop.f32.mrb[0].mxu0
        %v4446 = vadd.f32 %v4126, %v4445
        %v4447 = vpop.f32.mrb[0].mxu0
        %v4448 = vadd.f32 %v4127, %v4447
        %4449 = vdwg.mxu0
        %v4450 = vadd.f32 %v4195, %v841
        %v4451 = vadd.f32 %v4197, %v845
        %v4452 = vadd.f32 %v4356, %v849
        %v4453 = vadd.f32 %v4358, %v853
        %v4454 = vadd.f32 %v4201, %v841
        %v4455 = vadd.f32 %v4203, %v845
        %v4456 = vadd.f32 %v4362, %v849
        %v4457 = vadd.f32 %v4364, %v853
        %v4458 = vadd.f32 %v4207, %v841
        %v4459 = vadd.f32 %v4209, %v845
        %v4460 = vadd.f32 %v4368, %v849
        %v4461 = vadd.f32 %v4370, %v853
        %v4462 = vadd.f32 %v4213, %v841
        %v4463 = vadd.f32 %v4215, %v845
        %v4464 = vadd.f32 %v4374, %v849
        %v4465 = vadd.f32 %v4376, %v853
        %v4466 = vadd.f32 %v4219, %v841
        %v4467 = vadd.f32 %v4221, %v845
        %v4468 = vadd.f32 %v4380, %v849
        %v4469 = vadd.f32 %v4382, %v853
        %v4470 = vadd.f32 %v4225, %v841
        %v4471 = vadd.f32 %v4227, %v845
        %v4472 = vadd.f32 %v4386, %v849
        %v4473 = vadd.f32 %v4388, %v853
        %v4474 = vadd.f32 %v4231, %v841
        %v4475 = vadd.f32 %v4233, %v845
        %v4476 = vadd.f32 %v4392, %v849
        %v4477 = vadd.f32 %v4394, %v853
        %v4478 = vadd.f32 %v4237, %v841
        %v4479 = vadd.f32 %v4239, %v845
        %v4480 = vadd.f32 %v4398, %v849
        %v4481 = vadd.f32 %v4400, %v853
        %v4482 = vadd.f32 %v4243, %v841
        %v4483 = vadd.f32 %v4245, %v845
        %v4484 = vadd.f32 %v4404, %v849
        %v4485 = vadd.f32 %v4406, %v853
        %v4486 = vadd.f32 %v4249, %v841
        %v4487 = vadd.f32 %v4251, %v845
        %v4488 = vadd.f32 %v4410, %v849
        %v4489 = vadd.f32 %v4412, %v853
        %v4490 = vadd.f32 %v4255, %v841
        %v4491 = vadd.f32 %v4257, %v845
        %v4492 = vadd.f32 %v4416, %v849
        %v4493 = vadd.f32 %v4418, %v853
        %v4494 = vadd.f32 %v4261, %v841
        %v4495 = vadd.f32 %v4263, %v845
        %v4496 = vadd.f32 %v4422, %v849
        %v4497 = vadd.f32 %v4424, %v853
        %v4498 = vadd.f32 %v4267, %v841
        %v4499 = vadd.f32 %v4269, %v845
        %v4500 = vadd.f32 %v4428, %v849
        %v4501 = vadd.f32 %v4430, %v853
        %v4502 = vadd.f32 %v4273, %v841
        %v4503 = vadd.f32 %v4275, %v845
        %v4504 = vadd.f32 %v4434, %v849
        %v4505 = vadd.f32 %v4436, %v853
        %v4506 = vadd.f32 %v4279, %v841
        %v4507 = vadd.f32 %v4281, %v845
        %v4508 = vadd.f32 %v4440, %v849
        %v4509 = vadd.f32 %v4442, %v853
        %v4510 = vadd.f32 %v4285, %v841
        %v4511 = vadd.f32 %v4287, %v845
        %v4512 = vadd.f32 %v4446, %v849
        %v4513 = vadd.f32 %v4448, %v853
        %v4514 = vxor.u32 %v4450, 2147483648
        %v4515 = vxor.u32 %v4451, 2147483648
        %v4516 = vxor.u32 %v4452, 2147483648
        %v4517 = vxor.u32 %v4454, 2147483648
        %v4518 = vxor.u32 %v4455, 2147483648
        %v4519 = vxor.u32 %v4456, 2147483648
        %v4520 = vxor.u32 %v4458, 2147483648
        %v4521 = vxor.u32 %v4459, 2147483648
        %v4522 = vxor.u32 %v4460, 2147483648
        %v4523 = vxor.u32 %v4462, 2147483648
        %v4524 = vxor.u32 %v4463, 2147483648
        %v4525 = vxor.u32 %v4464, 2147483648
        %v4526 = vxor.u32 %v4466, 2147483648
        %v4527 = vxor.u32 %v4467, 2147483648
        %v4528 = vxor.u32 %v4468, 2147483648
        %v4529 = vxor.u32 %v4470, 2147483648
        %v4530 = vxor.u32 %v4471, 2147483648
        %v4531 = vxor.u32 %v4472, 2147483648
        %v4532 = vxor.u32 %v4474, 2147483648
        %v4533 = vxor.u32 %v4475, 2147483648
        %v4534 = vxor.u32 %v4476, 2147483648
        %v4535 = vxor.u32 %v4478, 2147483648
        %v4536 = vxor.u32 %v4479, 2147483648
        %v4537 = vxor.u32 %v4480, 2147483648
        %v4538 = vxor.u32 %v4482, 2147483648
        %v4539 = vxor.u32 %v4483, 2147483648
        %v4540 = vxor.u32 %v4484, 2147483648
        %v4541 = vxor.u32 %v4486, 2147483648
        %v4542 = vxor.u32 %v4487, 2147483648
        %v4543 = vxor.u32 %v4488, 2147483648
        %v4544 = vxor.u32 %v4490, 2147483648
        %v4545 = vxor.u32 %v4491, 2147483648
        %v4546 = vxor.u32 %v4492, 2147483648
        %v4547 = vxor.u32 %v4494, 2147483648
        %v4548 = vxor.u32 %v4495, 2147483648
        %v4549 = vxor.u32 %v4496, 2147483648
        %v4550 = vxor.u32 %v4498, 2147483648
        %v4551 = vxor.u32 %v4499, 2147483648
        %v4552 = vxor.u32 %v4500, 2147483648
        %v4553 = vxor.u32 %v4502, 2147483648
        %v4554 = vxor.u32 %v4503, 2147483648
        %v4555 = vxor.u32 %v4504, 2147483648
        %v4556 = vxor.u32 %v4506, 2147483648
        %v4557 = vxor.u32 %v4507, 2147483648
        %v4558 = vxor.u32 %v4508, 2147483648
        %v4559 = vxor.u32 %v4510, 2147483648
        %v4560 = vxor.u32 %v4511, 2147483648
        %v4561 = vxor.u32 %v4512, 2147483648
        %v4562 = vmul.f32 %v4514, 1.442695
        %v4563 = vpow.pop %v4562
        %v4564 = vmul.f32 %v4515, 1.442695
        %v4565 = vpow.pop %v4564
        %v4566 = vmul.f32 %v4516, 1.442695
        %v4567 = vpow.pop %v4566
        %v4568 = vmul.f32 %v4517, 1.442695
        %v4569 = vpow.pop %v4568
        %v4570 = vmul.f32 %v4518, 1.442695
        %v4571 = vpow.pop %v4570
        %v4572 = vmul.f32 %v4519, 1.442695
        %v4573 = vpow.pop %v4572
        %v4574 = vmul.f32 %v4520, 1.442695
        %v4575 = vpow.pop %v4574
        %v4576 = vmul.f32 %v4521, 1.442695
        %v4577 = vpow.pop %v4576
        %v4578 = vmul.f32 %v4522, 1.442695
        %v4579 = vpow.pop %v4578
        %v4580 = vmul.f32 %v4523, 1.442695
        %v4581 = vpow.pop %v4580
        %v4582 = vmul.f32 %v4524, 1.442695
        %v4583 = vpow.pop %v4582
        %v4584 = vmul.f32 %v4525, 1.442695
        %v4585 = vpow.pop %v4584
        %v4586 = vmul.f32 %v4526, 1.442695
        %v4587 = vpow.pop %v4586
        %v4588 = vmul.f32 %v4527, 1.442695
        %v4589 = vpow.pop %v4588
        %v4590 = vmul.f32 %v4528, 1.442695
        %v4591 = vpow.pop %v4590
        %v4592 = vmul.f32 %v4529, 1.442695
        %v4593 = vpow.pop %v4592
        %v4594 = vmul.f32 %v4530, 1.442695
        %v4595 = vpow.pop %v4594
        %v4596 = vmul.f32 %v4531, 1.442695
        %v4597 = vpow.pop %v4596
        %v4598 = vmul.f32 %v4532, 1.442695
        %v4599 = vpow.pop %v4598
        %v4600 = vmul.f32 %v4533, 1.442695
        %v4601 = vpow.pop %v4600
        %v4602 = vmul.f32 %v4534, 1.442695
        %v4603 = vpow.pop %v4602
        %v4604 = vmul.f32 %v4535, 1.442695
        %v4605 = vpow.pop %v4604
        %v4606 = vmul.f32 %v4536, 1.442695
        %v4607 = vpow.pop %v4606
        %v4608 = vmul.f32 %v4537, 1.442695
        %v4609 = vpow.pop %v4608
        %v4610 = vmul.f32 %v4538, 1.442695
        %v4611 = vpow.pop %v4610
        %v4612 = vmul.f32 %v4539, 1.442695
        %v4613 = vpow.pop %v4612
        %v4614 = vmul.f32 %v4540, 1.442695
        %v4615 = vpow.pop %v4614
        %v4616 = vmul.f32 %v4541, 1.442695
        %v4617 = vpow.pop %v4616
        %v4618 = vmul.f32 %v4542, 1.442695
        %v4619 = vpow.pop %v4618
        %v4620 = vmul.f32 %v4543, 1.442695
        %v4621 = vpow.pop %v4620
        %v4622 = vmul.f32 %v4544, 1.442695
        %v4623 = vpow.pop %v4622
        %v4624 = vmul.f32 %v4545, 1.442695
        %v4625 = vpow.pop %v4624
        %v4626 = vmul.f32 %v4546, 1.442695
        %v4627 = vpow.pop %v4626
        %v4628 = vmul.f32 %v4547, 1.442695
        %v4629 = vpow.pop %v4628
        %v4630 = vmul.f32 %v4548, 1.442695
        %v4631 = vpow.pop %v4630
        %v4632 = vmul.f32 %v4549, 1.442695
        %v4633 = vpow.pop %v4632
        %v4634 = vmul.f32 %v4550, 1.442695
        %v4635 = vpow.pop %v4634
        %v4636 = vmul.f32 %v4551, 1.442695
        %v4637 = vpow.pop %v4636
        %v4638 = vmul.f32 %v4552, 1.442695
        %v4639 = vpow.pop %v4638
        %v4640 = vmul.f32 %v4553, 1.442695
        %v4641 = vpow.pop %v4640
        %v4642 = vmul.f32 %v4554, 1.442695
        %v4643 = vpow.pop %v4642
        %v4644 = vmul.f32 %v4555, 1.442695
        %v4645 = vpow.pop %v4644
        %v4646 = vmul.f32 %v4556, 1.442695
        %v4647 = vpow.pop %v4646
        %v4648 = vmul.f32 %v4557, 1.442695
        %v4649 = vpow.pop %v4648
        %v4650 = vmul.f32 %v4558, 1.442695
        %v4651 = vpow.pop %v4650
        %v4652 = vmul.f32 %v4559, 1.442695
        %v4653 = vpow.pop %v4652
        %v4654 = vmul.f32 %v4560, 1.442695
        %v4655 = vpow.pop %v4654
        %v4656 = vmul.f32 %v4561, 1.442695
        %v4657 = vpow.pop %v4656
        %v4658 = vadd.f32 %v4563, 1.0
        %v4659 = vadd.f32 %v4565, 1.0
        %v4660 = vadd.f32 %v4567, 1.0
        %v4661 = vadd.f32 %v4569, 1.0
        %v4662 = vadd.f32 %v4571, 1.0
        %v4663 = vadd.f32 %v4573, 1.0
        %v4664 = vadd.f32 %v4575, 1.0
        %v4665 = vadd.f32 %v4577, 1.0
        %v4666 = vadd.f32 %v4579, 1.0
        %v4667 = vadd.f32 %v4581, 1.0
        %v4668 = vadd.f32 %v4583, 1.0
        %v4669 = vadd.f32 %v4585, 1.0
        %v4670 = vadd.f32 %v4587, 1.0
        %v4671 = vadd.f32 %v4589, 1.0
        %v4672 = vadd.f32 %v4591, 1.0
        %v4673 = vadd.f32 %v4593, 1.0
        %v4674 = vadd.f32 %v4595, 1.0
        %v4675 = vadd.f32 %v4597, 1.0
        %v4676 = vadd.f32 %v4599, 1.0
        %v4677 = vadd.f32 %v4601, 1.0
        %v4678 = vadd.f32 %v4603, 1.0
        %v4679 = vadd.f32 %v4605, 1.0
        %v4680 = vadd.f32 %v4607, 1.0
        %v4681 = vadd.f32 %v4609, 1.0
        %v4682 = vadd.f32 %v4611, 1.0
        %v4683 = vadd.f32 %v4613, 1.0
        %v4684 = vadd.f32 %v4615, 1.0
        %v4685 = vadd.f32 %v4617, 1.0
        %v4686 = vadd.f32 %v4619, 1.0
        %v4687 = vadd.f32 %v4621, 1.0
        %v4688 = vadd.f32 %v4623, 1.0
        %v4689 = vadd.f32 %v4625, 1.0
        %v4690 = vadd.f32 %v4627, 1.0
        %v4691 = vadd.f32 %v4629, 1.0
        %v4692 = vadd.f32 %v4631, 1.0
        %v4693 = vadd.f32 %v4633, 1.0
        %v4694 = vadd.f32 %v4635, 1.0
        %v4695 = vadd.f32 %v4637, 1.0
        %v4696 = vadd.f32 %v4639, 1.0
        %v4697 = vadd.f32 %v4641, 1.0
        %v4698 = vadd.f32 %v4643, 1.0
        %v4699 = vadd.f32 %v4645, 1.0
        %v4700 = vadd.f32 %v4647, 1.0
        %v4701 = vadd.f32 %v4649, 1.0
        %v4702 = vadd.f32 %v4651, 1.0
        %v4703 = vadd.f32 %v4653, 1.0
        %v4704 = vadd.f32 %v4655, 1.0
        %v4705 = vadd.f32 %v4657, 1.0
        %v4706 = vrcp.pop %v4658
        %v4707 = vmul.f32 1.0, %v4706
        %v4708 = vrcp.pop %v4659
        %v4709 = vmul.f32 1.0, %v4708
        %v4710 = vrcp.pop %v4660
        %v4711 = vmul.f32 1.0, %v4710
        %v4712 = vrcp.pop %v4661
        %v4713 = vmul.f32 1.0, %v4712
        %v4714 = vrcp.pop %v4662
        %v4715 = vmul.f32 1.0, %v4714
        %v4716 = vrcp.pop %v4663
        %v4717 = vmul.f32 1.0, %v4716
        %v4718 = vrcp.pop %v4664
        %v4719 = vmul.f32 1.0, %v4718
        %v4720 = vrcp.pop %v4665
        %v4721 = vmul.f32 1.0, %v4720
        %v4722 = vrcp.pop %v4666
        %v4723 = vmul.f32 1.0, %v4722
        %v4724 = vrcp.pop %v4667
        %v4725 = vmul.f32 1.0, %v4724
        %v4726 = vrcp.pop %v4668
        %v4727 = vmul.f32 1.0, %v4726
        %v4728 = vrcp.pop %v4669
        %v4729 = vmul.f32 1.0, %v4728
        %v4730 = vrcp.pop %v4670
        %v4731 = vmul.f32 1.0, %v4730
        %v4732 = vrcp.pop %v4671
        %v4733 = vmul.f32 1.0, %v4732
        %v4734 = vrcp.pop %v4672
        %v4735 = vmul.f32 1.0, %v4734
        %v4736 = vrcp.pop %v4673
        %v4737 = vmul.f32 1.0, %v4736
        %v4738 = vrcp.pop %v4674
        %v4739 = vmul.f32 1.0, %v4738
        %v4740 = vrcp.pop %v4675
        %v4741 = vmul.f32 1.0, %v4740
        %v4742 = vrcp.pop %v4676
        %v4743 = vmul.f32 1.0, %v4742
        %v4744 = vrcp.pop %v4677
        %v4745 = vmul.f32 1.0, %v4744
        %v4746 = vrcp.pop %v4678
        %v4747 = vmul.f32 1.0, %v4746
        %v4748 = vrcp.pop %v4679
        %v4749 = vmul.f32 1.0, %v4748
        %v4750 = vrcp.pop %v4680
        %v4751 = vmul.f32 1.0, %v4750
        %v4752 = vrcp.pop %v4681
        %v4753 = vmul.f32 1.0, %v4752
        %v4754 = vrcp.pop %v4682
        %v4755 = vmul.f32 1.0, %v4754
        %v4756 = vrcp.pop %v4683
        %v4757 = vmul.f32 1.0, %v4756
        %v4758 = vrcp.pop %v4684
        %v4759 = vmul.f32 1.0, %v4758
        %v4760 = vrcp.pop %v4685
        %v4761 = vmul.f32 1.0, %v4760
        %v4762 = vrcp.pop %v4686
        %v4763 = vmul.f32 1.0, %v4762
        %v4764 = vrcp.pop %v4687
        %v4765 = vmul.f32 1.0, %v4764
        %v4766 = vrcp.pop %v4688
        %v4767 = vmul.f32 1.0, %v4766
        %v4768 = vrcp.pop %v4689
        %v4769 = vmul.f32 1.0, %v4768
        %v4770 = vrcp.pop %v4690
        %v4771 = vmul.f32 1.0, %v4770
        %v4772 = vrcp.pop %v4691
        %v4773 = vmul.f32 1.0, %v4772
        %v4774 = vrcp.pop %v4692
        %v4775 = vmul.f32 1.0, %v4774
        %v4776 = vrcp.pop %v4693
        %v4777 = vmul.f32 1.0, %v4776
        %v4778 = vrcp.pop %v4694
        %v4779 = vmul.f32 1.0, %v4778
        %v4780 = vrcp.pop %v4695
        %v4781 = vmul.f32 1.0, %v4780
        %v4782 = vrcp.pop %v4696
        %v4783 = vmul.f32 1.0, %v4782
        %v4784 = vrcp.pop %v4697
        %v4785 = vmul.f32 1.0, %v4784
        %v4786 = vrcp.pop %v4698
        %v4787 = vmul.f32 1.0, %v4786
        %v4788 = vrcp.pop %v4699
        %v4789 = vmul.f32 1.0, %v4788
        %v4790 = vrcp.pop %v4700
        %v4791 = vmul.f32 1.0, %v4790
        %v4792 = vrcp.pop %v4701
        %v4793 = vmul.f32 1.0, %v4792
        %v4794 = vrcp.pop %v4702
        %v4795 = vmul.f32 1.0, %v4794
        %v4796 = vrcp.pop %v4703
        %v4797 = vmul.f32 1.0, %v4796
        %v4798 = vrcp.pop %v4704
        %v4799 = vmul.f32 1.0, %v4798
        %v4800 = vrcp.pop %v4705
        %v4801 = vmul.f32 1.0, %v4800
        %v4802 = vtanh.pop %v4453
        %v4803 = vtanh.pop %v4457
        %v4804 = vtanh.pop %v4461
        %v4805 = vtanh.pop %v4465
        %v4806 = vtanh.pop %v4469
        %v4807 = vtanh.pop %v4473
        %v4808 = vtanh.pop %v4477
        %v4809 = vtanh.pop %v4481
        %v4810 = vtanh.pop %v4485
        %v4811 = vtanh.pop %v4489
        %v4812 = vtanh.pop %v4493
        %v4813 = vtanh.pop %v4497
        %v4814 = vtanh.pop %v4501
        %v4815 = vtanh.pop %v4505
        %v4816 = vtanh.pop %v4509
        %v4817 = vtanh.pop %v4513
        %v4818 = vmul.f32 %v4709, %v3952
        %v4819 = vmul.f32 %v4715, %v3953
        %v4820 = vmul.f32 %v4721, %v3954
        %v4821 = vmul.f32 %v4727, %v3955
        %v4822 = vmul.f32 %v4733, %v3956
        %v4823 = vmul.f32 %v4739, %v3957
        %v4824 = vmul.f32 %v4745, %v3958
        %v4825 = vmul.f32 %v4751, %v3959
        %v4826 = vmul.f32 %v4757, %v3960
        %v4827 = vmul.f32 %v4763, %v3961
        %v4828 = vmul.f32 %v4769, %v3962
        %v4829 = vmul.f32 %v4775, %v3963
        %v4830 = vmul.f32 %v4781, %v3964
        %v4831 = vmul.f32 %v4787, %v3965
        %v4832 = vmul.f32 %v4793, %v3966
        %v4833 = vmul.f32 %v4799, %v3967
        %v4834 = vmul.f32 %v4707, %v4802
        %v4835 = vmul.f32 %v4713, %v4803
        %v4836 = vmul.f32 %v4719, %v4804
        %v4837 = vmul.f32 %v4725, %v4805
        %v4838 = vmul.f32 %v4731, %v4806
        %v4839 = vmul.f32 %v4737, %v4807
        %v4840 = vmul.f32 %v4743, %v4808
        %v4841 = vmul.f32 %v4749, %v4809
        %v4842 = vmul.f32 %v4755, %v4810
        %v4843 = vmul.f32 %v4761, %v4811
        %v4844 = vmul.f32 %v4767, %v4812
        %v4845 = vmul.f32 %v4773, %v4813
        %v4846 = vmul.f32 %v4779, %v4814
        %v4847 = vmul.f32 %v4785, %v4815
        %v4848 = vmul.f32 %v4791, %v4816
        %v4849 = vmul.f32 %v4797, %v4817
        %v4850 = vadd.f32 %v4818, %v4834
        %v4851 = vadd.f32 %v4819, %v4835
        %v4852 = vadd.f32 %v4820, %v4836
        %v4853 = vadd.f32 %v4821, %v4837
        %v4854 = vadd.f32 %v4822, %v4838
        %v4855 = vadd.f32 %v4823, %v4839
        %v4856 = vadd.f32 %v4824, %v4840
        %v4857 = vadd.f32 %v4825, %v4841
        %v4858 = vadd.f32 %v4826, %v4842
        %v4859 = vadd.f32 %v4827, %v4843
        %v4860 = vadd.f32 %v4828, %v4844
        %v4861 = vadd.f32 %v4829, %v4845
        %v4862 = vadd.f32 %v4830, %v4846
        %v4863 = vadd.f32 %v4831, %v4847
        %v4864 = vadd.f32 %v4832, %v4848
        %v4865 = vadd.f32 %v4833, %v4849
        %v4866 = vtanh.pop %v4850
        %v4867 = vtanh.pop %v4851
        %v4868 = vtanh.pop %v4852
        %v4869 = vtanh.pop %v4853
        %v4870 = vtanh.pop %v4854
        %v4871 = vtanh.pop %v4855
        %v4872 = vtanh.pop %v4856
        %v4873 = vtanh.pop %v4857
        %v4874 = vtanh.pop %v4858
        %v4875 = vtanh.pop %v4859
        %v4876 = vtanh.pop %v4860
        %v4877 = vtanh.pop %v4861
        %v4878 = vtanh.pop %v4862
        %v4879 = vtanh.pop %v4863
        %v4880 = vtanh.pop %v4864
        %v4881 = vtanh.pop %v4865
        %v4882 = vmul.f32 %v4711, %v4866
        %v4883 = vmul.f32 %v4717, %v4867
        %v4884 = vmul.f32 %v4723, %v4868
        %v4885 = vmul.f32 %v4729, %v4869
        %v4886 = vmul.f32 %v4735, %v4870
        %v4887 = vmul.f32 %v4741, %v4871
        %v4888 = vmul.f32 %v4747, %v4872
        %v4889 = vmul.f32 %v4753, %v4873
        %v4890 = vmul.f32 %v4759, %v4874
        %v4891 = vmul.f32 %v4765, %v4875
        %v4892 = vmul.f32 %v4771, %v4876
        %v4893 = vmul.f32 %v4777, %v4877
        %v4894 = vmul.f32 %v4783, %v4878
        %v4895 = vmul.f32 %v4789, %v4879
        %v4896 = vmul.f32 %v4795, %v4880
        %v4897 = vmul.f32 %v4801, %v4881
        %4898 = vset.pattern.permute.xlu0 5
        %4899 = vperm.xlu0 %4898, %v270
        %v4900 = vpop.permute.xlu0 %4899
        %4902 = vset.pattern.permute.xlu0 5
        %4903 = vperm.xlu0 %4902, %v271
        %v4904 = vpop.permute.xlu0 %4903
        %4906 = vset.pattern.permute.xlu0 5
        %4907 = vperm.xlu0 %4906, %v272
        %v4908 = vpop.permute.xlu0 %4907
        %4910 = vset.pattern.permute.xlu0 5
        %4911 = vperm.xlu0 %4910, %v273
        %v4912 = vpop.permute.xlu0 %4911
        %4914 = vset.pattern.permute.xlu0 5
        %4915 = vperm.xlu0 %4914, %v274
        %v4916 = vpop.permute.xlu0 %4915
        %4918 = vset.pattern.permute.xlu0 5
        %4919 = vperm.xlu0 %4918, %v275
        %v4920 = vpop.permute.xlu0 %4919
        %4922 = vset.pattern.permute.xlu0 5
        %4923 = vperm.xlu0 %4922, %v276
        %v4924 = vpop.permute.xlu0 %4923
        %4926 = vset.pattern.permute.xlu0 5
        %4927 = vperm.xlu0 %4926, %v277
        %v4928 = vpop.permute.xlu0 %4927
        %4930 = vset.pattern.permute.xlu0 5
        %4931 = vperm.xlu0 %4930, %v278
        %v4932 = vpop.permute.xlu0 %4931
        %4934 = vset.pattern.permute.xlu0 5
        %4935 = vperm.xlu0 %4934, %v279
        %v4936 = vpop.permute.xlu0 %4935
        %4938 = vset.pattern.permute.xlu0 5
        %4939 = vperm.xlu0 %4938, %v280
        %v4940 = vpop.permute.xlu0 %4939
        %4942 = vset.pattern.permute.xlu0 5
        %4943 = vperm.xlu0 %4942, %v281
        %v4944 = vpop.permute.xlu0 %4943
        %4946 = vset.pattern.permute.xlu0 5
        %4947 = vperm.xlu0 %4946, %v282
        %v4948 = vpop.permute.xlu0 %4947
        %4950 = vset.pattern.permute.xlu0 5
        %4951 = vperm.xlu0 %4950, %v283
        %v4952 = vpop.permute.xlu0 %4951
        %4954 = vset.pattern.permute.xlu0 5
        %4955 = vperm.xlu0 %4954, %v284
        %v4956 = vpop.permute.xlu0 %4955
        %4958 = vset.pattern.permute.xlu0 5
        %4959 = vperm.xlu0 %4958, %v285
        %v4960 = vpop.permute.xlu0 %4959
        %v4962 = vmul.f32 %v4900, %v434
        %v4963 = vmul.f32 %v4900, %v438
        %v4964 = vmul.f32 %v4900, %v442
        %v4965 = vmul.f32 %v4900, %v446
        %v4966 = vmul.f32 %v4904, %v434
        %v4967 = vmul.f32 %v4904, %v438
        %v4968 = vmul.f32 %v4904, %v442
        %v4969 = vmul.f32 %v4904, %v446
        %v4970 = vmul.f32 %v4908, %v434
        %v4971 = vmul.f32 %v4908, %v438
        %v4972 = vmul.f32 %v4908, %v442
        %v4973 = vmul.f32 %v4908, %v446
        %v4974 = vmul.f32 %v4912, %v434
        %v4975 = vmul.f32 %v4912, %v438
        %v4976 = vmul.f32 %v4912, %v442
        %v4977 = vmul.f32 %v4912, %v446
        %v4978 = vmul.f32 %v4916, %v434
        %v4979 = vmul.f32 %v4916, %v438
        %v4980 = vmul.f32 %v4916, %v442
        %v4981 = vmul.f32 %v4916, %v446
        %v4982 = vmul.f32 %v4920, %v434
        %v4983 = vmul.f32 %v4920, %v438
        %v4984 = vmul.f32 %v4920, %v442
        %v4985 = vmul.f32 %v4920, %v446
        %v4986 = vmul.f32 %v4924, %v434
        %v4987 = vmul.f32 %v4924, %v438
        %v4988 = vmul.f32 %v4924, %v442
        %v4989 = vmul.f32 %v4924, %v446
        %v4990 = vmul.f32 %v4928, %v434
        %v4991 = vmul.f32 %v4928, %v438
        %v4992 = vmul.f32 %v4928, %v442
        %v4993 = vmul.f32 %v4928, %v446
        %v4994 = vmul.f32 %v4932, %v434
        %v4995 = vmul.f32 %v4932, %v438
        %v4996 = vmul.f32 %v4932, %v442
        %v4997 = vmul.f32 %v4932, %v446
        %v4998 = vmul.f32 %v4936, %v434
        %v4999 = vmul.f32 %v4936, %v438
        %v5000 = vmul.f32 %v4936, %v442
        %v5001 = vmul.f32 %v4936, %v446
        %v5002 = vmul.f32 %v4940, %v434
        %v5003 = vmul.f32 %v4940, %v438
        %v5004 = vmul.f32 %v4940, %v442
        %v5005 = vmul.f32 %v4940, %v446
        %v5006 = vmul.f32 %v4944, %v434
        %v5007 = vmul.f32 %v4944, %v438
        %v5008 = vmul.f32 %v4944, %v442
        %v5009 = vmul.f32 %v4944, %v446
        %v5010 = vmul.f32 %v4948, %v434
        %v5011 = vmul.f32 %v4948, %v438
        %v5012 = vmul.f32 %v4948, %v442
        %v5013 = vmul.f32 %v4948, %v446
        %v5014 = vmul.f32 %v4952, %v434
        %v5015 = vmul.f32 %v4952, %v438
        %v5016 = vmul.f32 %v4952, %v442
        %v5017 = vmul.f32 %v4952, %v446
        %v5018 = vmul.f32 %v4956, %v434
        %v5019 = vmul.f32 %v4956, %v438
        %v5020 = vmul.f32 %v4956, %v442
        %v5021 = vmul.f32 %v4956, %v446
        %v5022 = vmul.f32 %v4960, %v434
        %v5023 = vmul.f32 %v4960, %v438
        %v5024 = vmul.f32 %v4960, %v442
        %v5025 = vmul.f32 %v4960, %v446
        %5026 = vmatprep.subr.mxu0 %v287
        %5027 = vmatpush1.msra.mxu0 %v286
        %5028 = vmatprep.subr.mxu0 %v291
        %5029 = vmatpush1.msra.mxu0 %v290
        %5030 = vmatprep.subr.mxu0 %v295
        %5031 = vmatpush1.msra.mxu0 %v294
        %5032 = vmatprep.subr.mxu0 %v299
        %5033 = vmatpush1.msra.mxu0 %v298
        %5034 = vmatprep.subr.mxu0 %v303
        %5035 = vmatpush1.msra.mxu0 %v302
        %5036 = vmatprep.subr.mxu0 %v307
        %5037 = vmatpush1.msra.mxu0 %v306
        %5038 = vmatprep.subr.mxu0 %v311
        %5039 = vmatpush1.msra.mxu0 %v310
        %5040 = vmatprep.subr.mxu0 %v315
        %5041 = vmatpush1.msra.mxu0 %v314
        %5042 = vmatprep.subr.mxu0 %v319
        %5043 = vmatpush1.msra.mxu0 %v318
        %5044 = vmatprep.subr.mxu0 %v323
        %5045 = vmatpush1.msra.mxu0 %v322
        %5046 = vmatprep.subr.mxu0 %v327
        %5047 = vmatpush1.msra.mxu0 %v326
        %5048 = vmatprep.subr.mxu0 %v331
        %5049 = vmatpush1.msra.mxu0 %v330
        %5050 = vmatprep.subr.mxu0 %v335
        %5051 = vmatpush1.msra.mxu0 %v334
        %5052 = vmatprep.subr.mxu0 %v339
        %5053 = vmatpush1.msra.mxu0 %v338
        %5054 = vmatprep.subr.mxu0 %v343
        %5055 = vmatpush1.msra.mxu0 %v342
        %5056 = vmatprep.subr.mxu0 %v347
        %5057 = vmatpush1.msra.mxu0 %v346
        %5058 = vmatprep.subr.mxu0 0.0
        %5059 = vmatpush1.msra.mxu0 0.0
        %5060 = vmatprep.subr.mxu0 0.0
        %5061 = vmatpush1.msra.mxu0 0.0
        %5062 = vmatprep.subr.mxu0 0.0
        %5063 = vmatpush1.msra.mxu0 0.0
        %5064 = vmatprep.subr.mxu0 0.0
        %5065 = vmatpush1.msra.mxu0 0.0
        %5066 = vmatprep.subr.mxu0 0.0
        %5067 = vmatpush1.msra.mxu0 0.0
        %5068 = vmatprep.subr.mxu0 0.0
        %5069 = vmatpush1.msra.mxu0 0.0
        %5070 = vmatprep.subr.mxu0 0.0
        %5071 = vmatpush1.msra.mxu0 0.0
        %5072 = vmatprep.subr.mxu0 0.0
        %5073 = vmatpush1.msra.mxu0 0.0
        %5074 = vmatprep.subr.mxu0 0.0
        %5075 = vmatpush1.msra.mxu0 0.0
        %5076 = vmatprep.subr.mxu0 0.0
        %5077 = vmatpush1.msra.mxu0 0.0
        %5078 = vmatprep.subr.mxu0 0.0
        %5079 = vmatpush1.msra.mxu0 0.0
        %5080 = vmatprep.subr.mxu0 0.0
        %5081 = vmatpush1.msra.mxu0 0.0
        %5082 = vmatprep.subr.mxu0 0.0
        %5083 = vmatpush1.msra.mxu0 0.0
        %5084 = vmatprep.subr.mxu0 0.0
        %5085 = vmatpush1.msra.mxu0 0.0
        %5086 = vmatprep.subr.mxu0 0.0
        %5087 = vmatpush1.msra.mxu0 0.0
        %5088 = vmatprep.subr.mxu0 0.0
        %5089 = vmatpush1.msra.mxu0 0.0
        %5090 = vmatprep.mubr.f32.mxu0 0.0
        %5091 = vmatmul.mubr.f32.gmra.mrb[0].mxu0 %v4882
        %v5092 = vpop.f32.mrb[0].mxu0
        %v5093 = vadd.f32 %v4962, %v5092
        %v5094 = vpop.f32.mrb[0].mxu0
        %v5095 = vadd.f32 %v4963, %v5094
        %5096 = vmatprep.mubr.f32.mxu0 0.0
        %5097 = vmatmul.mubr.f32.gmra.mrb[0].mxu0 %v4883
        %v5098 = vpop.f32.mrb[0].mxu0
        %v5099 = vadd.f32 %v4966, %v5098
        %v5100 = vpop.f32.mrb[0].mxu0
        %v5101 = vadd.f32 %v4967, %v5100
        %5102 = vmatprep.mubr.f32.mxu0 0.0
        %5103 = vmatmul.mubr.f32.gmra.mrb[0].mxu0 %v4884
        %v5104 = vpop.f32.mrb[0].mxu0
        %v5105 = vadd.f32 %v4970, %v5104
        %v5106 = vpop.f32.mrb[0].mxu0
        %v5107 = vadd.f32 %v4971, %v5106
        %5108 = vmatprep.mubr.f32.mxu0 0.0
        %5109 = vmatmul.mubr.f32.gmra.mrb[0].mxu0 %v4885
        %v5110 = vpop.f32.mrb[0].mxu0
        %v5111 = vadd.f32 %v4974, %v5110
        %v5112 = vpop.f32.mrb[0].mxu0
        %v5113 = vadd.f32 %v4975, %v5112
        %5114 = vmatprep.mubr.f32.mxu0 0.0
        %5115 = vmatmul.mubr.f32.gmra.mrb[0].mxu0 %v4886
        %v5116 = vpop.f32.mrb[0].mxu0
        %v5117 = vadd.f32 %v4978, %v5116
        %v5118 = vpop.f32.mrb[0].mxu0
        %v5119 = vadd.f32 %v4979, %v5118
        %5120 = vmatprep.mubr.f32.mxu0 0.0
        %5121 = vmatmul.mubr.f32.gmra.mrb[0].mxu0 %v4887
        %v5122 = vpop.f32.mrb[0].mxu0
        %v5123 = vadd.f32 %v4982, %v5122
        %v5124 = vpop.f32.mrb[0].mxu0
        %v5125 = vadd.f32 %v4983, %v5124
        %5126 = vmatprep.mubr.f32.mxu0 0.0
        %5127 = vmatmul.mubr.f32.gmra.mrb[0].mxu0 %v4888
        %v5128 = vpop.f32.mrb[0].mxu0
        %v5129 = vadd.f32 %v4986, %v5128
        %v5130 = vpop.f32.mrb[0].mxu0
        %v5131 = vadd.f32 %v4987, %v5130
        %5132 = vmatprep.mubr.f32.mxu0 0.0
        %5133 = vmatmul.mubr.f32.gmra.mrb[0].mxu0 %v4889
        %v5134 = vpop.f32.mrb[0].mxu0
        %v5135 = vadd.f32 %v4990, %v5134
        %v5136 = vpop.f32.mrb[0].mxu0
        %v5137 = vadd.f32 %v4991, %v5136
        %5138 = vmatprep.mubr.f32.mxu0 0.0
        %5139 = vmatmul.mubr.f32.gmra.mrb[0].mxu0 %v4890
        %v5140 = vpop.f32.mrb[0].mxu0
        %v5141 = vadd.f32 %v4994, %v5140
        %v5142 = vpop.f32.mrb[0].mxu0
        %v5143 = vadd.f32 %v4995, %v5142
        %5144 = vmatprep.mubr.f32.mxu0 0.0
        %5145 = vmatmul.mubr.f32.gmra.mrb[0].mxu0 %v4891
        %v5146 = vpop.f32.mrb[0].mxu0
        %v5147 = vadd.f32 %v4998, %v5146
        %v5148 = vpop.f32.mrb[0].mxu0
        %v5149 = vadd.f32 %v4999, %v5148
        %5150 = vmatprep.mubr.f32.mxu0 0.0
        %5151 = vmatmul.mubr.f32.gmra.mrb[0].mxu0 %v4892
        %v5152 = vpop.f32.mrb[0].mxu0
        %v5153 = vadd.f32 %v5002, %v5152
        %v5154 = vpop.f32.mrb[0].mxu0
        %v5155 = vadd.f32 %v5003, %v5154
        %5156 = vmatprep.mubr.f32.mxu0 0.0
        %5157 = vmatmul.mubr.f32.gmra.mrb[0].mxu0 %v4893
        %v5158 = vpop.f32.mrb[0].mxu0
        %v5159 = vadd.f32 %v5006, %v5158
        %v5160 = vpop.f32.mrb[0].mxu0
        %v5161 = vadd.f32 %v5007, %v5160
        %5162 = vmatprep.mubr.f32.mxu0 0.0
        %5163 = vmatmul.mubr.f32.gmra.mrb[0].mxu0 %v4894
        %v5164 = vpop.f32.mrb[0].mxu0
        %v5165 = vadd.f32 %v5010, %v5164
        %v5166 = vpop.f32.mrb[0].mxu0
        %v5167 = vadd.f32 %v5011, %v5166
        %5168 = vmatprep.mubr.f32.mxu0 0.0
        %5169 = vmatmul.mubr.f32.gmra.mrb[0].mxu0 %v4895
        %v5170 = vpop.f32.mrb[0].mxu0
        %v5171 = vadd.f32 %v5014, %v5170
        %v5172 = vpop.f32.mrb[0].mxu0
        %v5173 = vadd.f32 %v5015, %v5172
        %5174 = vmatprep.mubr.f32.mxu0 0.0
        %5175 = vmatmul.mubr.f32.gmra.mrb[0].mxu0 %v4896
        %v5176 = vpop.f32.mrb[0].mxu0
        %v5177 = vadd.f32 %v5018, %v5176
        %v5178 = vpop.f32.mrb[0].mxu0
        %v5179 = vadd.f32 %v5019, %v5178
        %5180 = vmatprep.mubr.f32.mxu0 0.0
        %5181 = vmatmul.mubr.f32.gmra.mrb[0].mxu0 %v4897
        %v5182 = vpop.f32.mrb[0].mxu0
        %v5183 = vadd.f32 %v5022, %v5182
        %v5184 = vpop.f32.mrb[0].mxu0
        %v5185 = vadd.f32 %v5023, %v5184
        %5186 = vdwg.mxu0
        %5187 = vmatprep.subr.mxu0 %v289
        %5188 = vmatpush1.msra.mxu0 %v288
        %5189 = vmatprep.subr.mxu0 %v293
        %5190 = vmatpush1.msra.mxu0 %v292
        %5191 = vmatprep.subr.mxu0 %v297
        %5192 = vmatpush1.msra.mxu0 %v296
        %5193 = vmatprep.subr.mxu0 %v301
        %5194 = vmatpush1.msra.mxu0 %v300
        %5195 = vmatprep.subr.mxu0 %v305
        %5196 = vmatpush1.msra.mxu0 %v304
        %5197 = vmatprep.subr.mxu0 %v309
        %5198 = vmatpush1.msra.mxu0 %v308
        %5199 = vmatprep.subr.mxu0 %v313
        %5200 = vmatpush1.msra.mxu0 %v312
        %5201 = vmatprep.subr.mxu0 %v317
        %5202 = vmatpush1.msra.mxu0 %v316
        %5203 = vmatprep.subr.mxu0 %v321
        %5204 = vmatpush1.msra.mxu0 %v320
        %5205 = vmatprep.subr.mxu0 %v325
        %5206 = vmatpush1.msra.mxu0 %v324
        %5207 = vmatprep.subr.mxu0 %v329
        %5208 = vmatpush1.msra.mxu0 %v328
        %5209 = vmatprep.subr.mxu0 %v333
        %5210 = vmatpush1.msra.mxu0 %v332
        %5211 = vmatprep.subr.mxu0 %v337
        %5212 = vmatpush1.msra.mxu0 %v336
        %5213 = vmatprep.subr.mxu0 %v341
        %5214 = vmatpush1.msra.mxu0 %v340
        %5215 = vmatprep.subr.mxu0 %v345
        %5216 = vmatpush1.msra.mxu0 %v344
        %5217 = vmatprep.subr.mxu0 %v349
        %5218 = vmatpush1.msra.mxu0 %v348
        %5219 = vmatprep.subr.mxu0 0.0
        %5220 = vmatpush1.msra.mxu0 0.0
        %5221 = vmatprep.subr.mxu0 0.0
        %5222 = vmatpush1.msra.mxu0 0.0
        %5223 = vmatprep.subr.mxu0 0.0
        %5224 = vmatpush1.msra.mxu0 0.0
        %5225 = vmatprep.subr.mxu0 0.0
        %5226 = vmatpush1.msra.mxu0 0.0
        %5227 = vmatprep.subr.mxu0 0.0
        %5228 = vmatpush1.msra.mxu0 0.0
        %5229 = vmatprep.subr.mxu0 0.0
        %5230 = vmatpush1.msra.mxu0 0.0
        %5231 = vmatprep.subr.mxu0 0.0
        %5232 = vmatpush1.msra.mxu0 0.0
        %5233 = vmatprep.subr.mxu0 0.0
        %5234 = vmatpush1.msra.mxu0 0.0
        %5235 = vmatprep.subr.mxu0 0.0
        %5236 = vmatpush1.msra.mxu0 0.0
        %5237 = vmatprep.subr.mxu0 0.0
        %5238 = vmatpush1.msra.mxu0 0.0
        %5239 = vmatprep.subr.mxu0 0.0
        %5240 = vmatpush1.msra.mxu0 0.0
        %5241 = vmatprep.subr.mxu0 0.0
        %5242 = vmatpush1.msra.mxu0 0.0
        %5243 = vmatprep.subr.mxu0 0.0
        %5244 = vmatpush1.msra.mxu0 0.0
        %5245 = vmatprep.subr.mxu0 0.0
        %5246 = vmatpush1.msra.mxu0 0.0
        %5247 = vmatprep.subr.mxu0 0.0
        %5248 = vmatpush1.msra.mxu0 0.0
        %5249 = vmatprep.subr.mxu0 0.0
        %5250 = vmatpush1.msra.mxu0 0.0
        %5251 = vmatprep.mubr.f32.mxu0 0.0
        %5252 = vmatmul.mubr.f32.gmra.mrb[0].mxu0 %v4882
        %v5253 = vpop.f32.mrb[0].mxu0
        %v5254 = vadd.f32 %v4964, %v5253
        %v5255 = vpop.f32.mrb[0].mxu0
        %v5256 = vadd.f32 %v4965, %v5255
        %5257 = vmatprep.mubr.f32.mxu0 0.0
        %5258 = vmatmul.mubr.f32.gmra.mrb[0].mxu0 %v4883
        %v5259 = vpop.f32.mrb[0].mxu0
        %v5260 = vadd.f32 %v4968, %v5259
        %v5261 = vpop.f32.mrb[0].mxu0
        %v5262 = vadd.f32 %v4969, %v5261
        %5263 = vmatprep.mubr.f32.mxu0 0.0
        %5264 = vmatmul.mubr.f32.gmra.mrb[0].mxu0 %v4884
        %v5265 = vpop.f32.mrb[0].mxu0
        %v5266 = vadd.f32 %v4972, %v5265
        %v5267 = vpop.f32.mrb[0].mxu0
        %v5268 = vadd.f32 %v4973, %v5267
        %5269 = vmatprep.mubr.f32.mxu0 0.0
        %5270 = vmatmul.mubr.f32.gmra.mrb[0].mxu0 %v4885
        %v5271 = vpop.f32.mrb[0].mxu0
        %v5272 = vadd.f32 %v4976, %v5271
        %v5273 = vpop.f32.mrb[0].mxu0
        %v5274 = vadd.f32 %v4977, %v5273
        %5275 = vmatprep.mubr.f32.mxu0 0.0
        %5276 = vmatmul.mubr.f32.gmra.mrb[0].mxu0 %v4886
        %v5277 = vpop.f32.mrb[0].mxu0
        %v5278 = vadd.f32 %v4980, %v5277
        %v5279 = vpop.f32.mrb[0].mxu0
        %v5280 = vadd.f32 %v4981, %v5279
        %5281 = vmatprep.mubr.f32.mxu0 0.0
        %5282 = vmatmul.mubr.f32.gmra.mrb[0].mxu0 %v4887
        %v5283 = vpop.f32.mrb[0].mxu0
        %v5284 = vadd.f32 %v4984, %v5283
        %v5285 = vpop.f32.mrb[0].mxu0
        %v5286 = vadd.f32 %v4985, %v5285
        %5287 = vmatprep.mubr.f32.mxu0 0.0
        %5288 = vmatmul.mubr.f32.gmra.mrb[0].mxu0 %v4888
        %v5289 = vpop.f32.mrb[0].mxu0
        %v5290 = vadd.f32 %v4988, %v5289
        %v5291 = vpop.f32.mrb[0].mxu0
        %v5292 = vadd.f32 %v4989, %v5291
        %5293 = vmatprep.mubr.f32.mxu0 0.0
        %5294 = vmatmul.mubr.f32.gmra.mrb[0].mxu0 %v4889
        %v5295 = vpop.f32.mrb[0].mxu0
        %v5296 = vadd.f32 %v4992, %v5295
        %v5297 = vpop.f32.mrb[0].mxu0
        %v5298 = vadd.f32 %v4993, %v5297
        %5299 = vmatprep.mubr.f32.mxu0 0.0
        %5300 = vmatmul.mubr.f32.gmra.mrb[0].mxu0 %v4890
        %v5301 = vpop.f32.mrb[0].mxu0
        %v5302 = vadd.f32 %v4996, %v5301
        %v5303 = vpop.f32.mrb[0].mxu0
        %v5304 = vadd.f32 %v4997, %v5303
        %5305 = vmatprep.mubr.f32.mxu0 0.0
        %5306 = vmatmul.mubr.f32.gmra.mrb[0].mxu0 %v4891
        %v5307 = vpop.f32.mrb[0].mxu0
        %v5308 = vadd.f32 %v5000, %v5307
        %v5309 = vpop.f32.mrb[0].mxu0
        %v5310 = vadd.f32 %v5001, %v5309
        %5311 = vmatprep.mubr.f32.mxu0 0.0
        %5312 = vmatmul.mubr.f32.gmra.mrb[0].mxu0 %v4892
        %v5313 = vpop.f32.mrb[0].mxu0
        %v5314 = vadd.f32 %v5004, %v5313
        %v5315 = vpop.f32.mrb[0].mxu0
        %v5316 = vadd.f32 %v5005, %v5315
        %5317 = vmatprep.mubr.f32.mxu0 0.0
        %5318 = vmatmul.mubr.f32.gmra.mrb[0].mxu0 %v4893
        %v5319 = vpop.f32.mrb[0].mxu0
        %v5320 = vadd.f32 %v5008, %v5319
        %v5321 = vpop.f32.mrb[0].mxu0
        %v5322 = vadd.f32 %v5009, %v5321
        %5323 = vmatprep.mubr.f32.mxu0 0.0
        %5324 = vmatmul.mubr.f32.gmra.mrb[0].mxu0 %v4894
        %v5325 = vpop.f32.mrb[0].mxu0
        %v5326 = vadd.f32 %v5012, %v5325
        %v5327 = vpop.f32.mrb[0].mxu0
        %v5328 = vadd.f32 %v5013, %v5327
        %5329 = vmatprep.mubr.f32.mxu0 0.0
        %5330 = vmatmul.mubr.f32.gmra.mrb[0].mxu0 %v4895
        %v5331 = vpop.f32.mrb[0].mxu0
        %v5332 = vadd.f32 %v5016, %v5331
        %v5333 = vpop.f32.mrb[0].mxu0
        %v5334 = vadd.f32 %v5017, %v5333
        %5335 = vmatprep.mubr.f32.mxu0 0.0
        %5336 = vmatmul.mubr.f32.gmra.mrb[0].mxu0 %v4896
        %v5337 = vpop.f32.mrb[0].mxu0
        %v5338 = vadd.f32 %v5020, %v5337
        %v5339 = vpop.f32.mrb[0].mxu0
        %v5340 = vadd.f32 %v5021, %v5339
        %5341 = vmatprep.mubr.f32.mxu0 0.0
        %5342 = vmatmul.mubr.f32.gmra.mrb[0].mxu0 %v4897
        %v5343 = vpop.f32.mrb[0].mxu0
        %v5344 = vadd.f32 %v5024, %v5343
        %v5345 = vpop.f32.mrb[0].mxu0
        %v5346 = vadd.f32 %v5025, %v5345
        %5347 = vdwg.mxu0
        %v5348 = vadd.f32 %v5093, %v841
        %v5349 = vadd.f32 %v5095, %v845
        %v5350 = vadd.f32 %v5254, %v849
        %v5351 = vadd.f32 %v5256, %v853
        %v5352 = vadd.f32 %v5099, %v841
        %v5353 = vadd.f32 %v5101, %v845
        %v5354 = vadd.f32 %v5260, %v849
        %v5355 = vadd.f32 %v5262, %v853
        %v5356 = vadd.f32 %v5105, %v841
        %v5357 = vadd.f32 %v5107, %v845
        %v5358 = vadd.f32 %v5266, %v849
        %v5359 = vadd.f32 %v5268, %v853
        %v5360 = vadd.f32 %v5111, %v841
        %v5361 = vadd.f32 %v5113, %v845
        %v5362 = vadd.f32 %v5272, %v849
        %v5363 = vadd.f32 %v5274, %v853
        %v5364 = vadd.f32 %v5117, %v841
        %v5365 = vadd.f32 %v5119, %v845
        %v5366 = vadd.f32 %v5278, %v849
        %v5367 = vadd.f32 %v5280, %v853
        %v5368 = vadd.f32 %v5123, %v841
        %v5369 = vadd.f32 %v5125, %v845
        %v5370 = vadd.f32 %v5284, %v849
        %v5371 = vadd.f32 %v5286, %v853
        %v5372 = vadd.f32 %v5129, %v841
        %v5373 = vadd.f32 %v5131, %v845
        %v5374 = vadd.f32 %v5290, %v849
        %v5375 = vadd.f32 %v5292, %v853
        %v5376 = vadd.f32 %v5135, %v841
        %v5377 = vadd.f32 %v5137, %v845
        %v5378 = vadd.f32 %v5296, %v849
        %v5379 = vadd.f32 %v5298, %v853
        %v5380 = vadd.f32 %v5141, %v841
        %v5381 = vadd.f32 %v5143, %v845
        %v5382 = vadd.f32 %v5302, %v849
        %v5383 = vadd.f32 %v5304, %v853
        %v5384 = vadd.f32 %v5147, %v841
        %v5385 = vadd.f32 %v5149, %v845
        %v5386 = vadd.f32 %v5308, %v849
        %v5387 = vadd.f32 %v5310, %v853
        %v5388 = vadd.f32 %v5153, %v841
        %v5389 = vadd.f32 %v5155, %v845
        %v5390 = vadd.f32 %v5314, %v849
        %v5391 = vadd.f32 %v5316, %v853
        %v5392 = vadd.f32 %v5159, %v841
        %v5393 = vadd.f32 %v5161, %v845
        %v5394 = vadd.f32 %v5320, %v849
        %v5395 = vadd.f32 %v5322, %v853
        %v5396 = vadd.f32 %v5165, %v841
        %v5397 = vadd.f32 %v5167, %v845
        %v5398 = vadd.f32 %v5326, %v849
        %v5399 = vadd.f32 %v5328, %v853
        %v5400 = vadd.f32 %v5171, %v841
        %v5401 = vadd.f32 %v5173, %v845
        %v5402 = vadd.f32 %v5332, %v849
        %v5403 = vadd.f32 %v5334, %v853
        %v5404 = vadd.f32 %v5177, %v841
        %v5405 = vadd.f32 %v5179, %v845
        %v5406 = vadd.f32 %v5338, %v849
        %v5407 = vadd.f32 %v5340, %v853
        %v5408 = vadd.f32 %v5183, %v841
        %v5409 = vadd.f32 %v5185, %v845
        %v5410 = vadd.f32 %v5344, %v849
        %v5411 = vadd.f32 %v5346, %v853
        %v5412 = vxor.u32 %v5348, 2147483648
        %v5413 = vxor.u32 %v5349, 2147483648
        %v5414 = vxor.u32 %v5350, 2147483648
        %v5415 = vxor.u32 %v5352, 2147483648
        %v5416 = vxor.u32 %v5353, 2147483648
        %v5417 = vxor.u32 %v5354, 2147483648
        %v5418 = vxor.u32 %v5356, 2147483648
        %v5419 = vxor.u32 %v5357, 2147483648
        %v5420 = vxor.u32 %v5358, 2147483648
        %v5421 = vxor.u32 %v5360, 2147483648
        %v5422 = vxor.u32 %v5361, 2147483648
        %v5423 = vxor.u32 %v5362, 2147483648
        %v5424 = vxor.u32 %v5364, 2147483648
        %v5425 = vxor.u32 %v5365, 2147483648
        %v5426 = vxor.u32 %v5366, 2147483648
        %v5427 = vxor.u32 %v5368, 2147483648
        %v5428 = vxor.u32 %v5369, 2147483648
        %v5429 = vxor.u32 %v5370, 2147483648
        %v5430 = vxor.u32 %v5372, 2147483648
        %v5431 = vxor.u32 %v5373, 2147483648
        %v5432 = vxor.u32 %v5374, 2147483648
        %v5433 = vxor.u32 %v5376, 2147483648
        %v5434 = vxor.u32 %v5377, 2147483648
        %v5435 = vxor.u32 %v5378, 2147483648
        %v5436 = vxor.u32 %v5380, 2147483648
        %v5437 = vxor.u32 %v5381, 2147483648
        %v5438 = vxor.u32 %v5382, 2147483648
        %v5439 = vxor.u32 %v5384, 2147483648
        %v5440 = vxor.u32 %v5385, 2147483648
        %v5441 = vxor.u32 %v5386, 2147483648
        %v5442 = vxor.u32 %v5388, 2147483648
        %v5443 = vxor.u32 %v5389, 2147483648
        %v5444 = vxor.u32 %v5390, 2147483648
        %v5445 = vxor.u32 %v5392, 2147483648
        %v5446 = vxor.u32 %v5393, 2147483648
        %v5447 = vxor.u32 %v5394, 2147483648
        %v5448 = vxor.u32 %v5396, 2147483648
        %v5449 = vxor.u32 %v5397, 2147483648
        %v5450 = vxor.u32 %v5398, 2147483648
        %v5451 = vxor.u32 %v5400, 2147483648
        %v5452 = vxor.u32 %v5401, 2147483648
        %v5453 = vxor.u32 %v5402, 2147483648
        %v5454 = vxor.u32 %v5404, 2147483648
        %v5455 = vxor.u32 %v5405, 2147483648
        %v5456 = vxor.u32 %v5406, 2147483648
        %v5457 = vxor.u32 %v5408, 2147483648
        %v5458 = vxor.u32 %v5409, 2147483648
        %v5459 = vxor.u32 %v5410, 2147483648
        %v5460 = vmul.f32 %v5412, 1.442695
        %v5461 = vpow.pop %v5460
        %v5462 = vmul.f32 %v5413, 1.442695
        %v5463 = vpow.pop %v5462
        %v5464 = vmul.f32 %v5414, 1.442695
        %v5465 = vpow.pop %v5464
        %v5466 = vmul.f32 %v5415, 1.442695
        %v5467 = vpow.pop %v5466
        %v5468 = vmul.f32 %v5416, 1.442695
        %v5469 = vpow.pop %v5468
        %v5470 = vmul.f32 %v5417, 1.442695
        %v5471 = vpow.pop %v5470
        %v5472 = vmul.f32 %v5418, 1.442695
        %v5473 = vpow.pop %v5472
        %v5474 = vmul.f32 %v5419, 1.442695
        %v5475 = vpow.pop %v5474
        %v5476 = vmul.f32 %v5420, 1.442695
        %v5477 = vpow.pop %v5476
        %v5478 = vmul.f32 %v5421, 1.442695
        %v5479 = vpow.pop %v5478
        %v5480 = vmul.f32 %v5422, 1.442695
        %v5481 = vpow.pop %v5480
        %v5482 = vmul.f32 %v5423, 1.442695
        %v5483 = vpow.pop %v5482
        %v5484 = vmul.f32 %v5424, 1.442695
        %v5485 = vpow.pop %v5484
        %v5486 = vmul.f32 %v5425, 1.442695
        %v5487 = vpow.pop %v5486
        %v5488 = vmul.f32 %v5426, 1.442695
        %v5489 = vpow.pop %v5488
        %v5490 = vmul.f32 %v5427, 1.442695
        %v5491 = vpow.pop %v5490
        %v5492 = vmul.f32 %v5428, 1.442695
        %v5493 = vpow.pop %v5492
        %v5494 = vmul.f32 %v5429, 1.442695
        %v5495 = vpow.pop %v5494
        %v5496 = vmul.f32 %v5430, 1.442695
        %v5497 = vpow.pop %v5496
        %v5498 = vmul.f32 %v5431, 1.442695
        %v5499 = vpow.pop %v5498
        %v5500 = vmul.f32 %v5432, 1.442695
        %v5501 = vpow.pop %v5500
        %v5502 = vmul.f32 %v5433, 1.442695
        %v5503 = vpow.pop %v5502
        %v5504 = vmul.f32 %v5434, 1.442695
        %v5505 = vpow.pop %v5504
        %v5506 = vmul.f32 %v5435, 1.442695
        %v5507 = vpow.pop %v5506
        %v5508 = vmul.f32 %v5436, 1.442695
        %v5509 = vpow.pop %v5508
        %v5510 = vmul.f32 %v5437, 1.442695
        %v5511 = vpow.pop %v5510
        %v5512 = vmul.f32 %v5438, 1.442695
        %v5513 = vpow.pop %v5512
        %v5514 = vmul.f32 %v5439, 1.442695
        %v5515 = vpow.pop %v5514
        %v5516 = vmul.f32 %v5440, 1.442695
        %v5517 = vpow.pop %v5516
        %v5518 = vmul.f32 %v5441, 1.442695
        %v5519 = vpow.pop %v5518
        %v5520 = vmul.f32 %v5442, 1.442695
        %v5521 = vpow.pop %v5520
        %v5522 = vmul.f32 %v5443, 1.442695
        %v5523 = vpow.pop %v5522
        %v5524 = vmul.f32 %v5444, 1.442695
        %v5525 = vpow.pop %v5524
        %v5526 = vmul.f32 %v5445, 1.442695
        %v5527 = vpow.pop %v5526
        %v5528 = vmul.f32 %v5446, 1.442695
        %v5529 = vpow.pop %v5528
        %v5530 = vmul.f32 %v5447, 1.442695
        %v5531 = vpow.pop %v5530
        %v5532 = vmul.f32 %v5448, 1.442695
        %v5533 = vpow.pop %v5532
        %v5534 = vmul.f32 %v5449, 1.442695
        %v5535 = vpow.pop %v5534
        %v5536 = vmul.f32 %v5450, 1.442695
        %v5537 = vpow.pop %v5536
        %v5538 = vmul.f32 %v5451, 1.442695
        %v5539 = vpow.pop %v5538
        %v5540 = vmul.f32 %v5452, 1.442695
        %v5541 = vpow.pop %v5540
        %v5542 = vmul.f32 %v5453, 1.442695
        %v5543 = vpow.pop %v5542
        %v5544 = vmul.f32 %v5454, 1.442695
        %v5545 = vpow.pop %v5544
        %v5546 = vmul.f32 %v5455, 1.442695
        %v5547 = vpow.pop %v5546
        %v5548 = vmul.f32 %v5456, 1.442695
        %v5549 = vpow.pop %v5548
        %v5550 = vmul.f32 %v5457, 1.442695
        %v5551 = vpow.pop %v5550
        %v5552 = vmul.f32 %v5458, 1.442695
        %v5553 = vpow.pop %v5552
        %v5554 = vmul.f32 %v5459, 1.442695
        %v5555 = vpow.pop %v5554
        %v5556 = vadd.f32 %v5461, 1.0
        %v5557 = vadd.f32 %v5463, 1.0
        %v5558 = vadd.f32 %v5465, 1.0
        %v5559 = vadd.f32 %v5467, 1.0
        %v5560 = vadd.f32 %v5469, 1.0
        %v5561 = vadd.f32 %v5471, 1.0
        %v5562 = vadd.f32 %v5473, 1.0
        %v5563 = vadd.f32 %v5475, 1.0
        %v5564 = vadd.f32 %v5477, 1.0
        %v5565 = vadd.f32 %v5479, 1.0
        %v5566 = vadd.f32 %v5481, 1.0
        %v5567 = vadd.f32 %v5483, 1.0
        %v5568 = vadd.f32 %v5485, 1.0
        %v5569 = vadd.f32 %v5487, 1.0
        %v5570 = vadd.f32 %v5489, 1.0
        %v5571 = vadd.f32 %v5491, 1.0
        %v5572 = vadd.f32 %v5493, 1.0
        %v5573 = vadd.f32 %v5495, 1.0
        %v5574 = vadd.f32 %v5497, 1.0
        %v5575 = vadd.f32 %v5499, 1.0
        %v5576 = vadd.f32 %v5501, 1.0
        %v5577 = vadd.f32 %v5503, 1.0
        %v5578 = vadd.f32 %v5505, 1.0
        %v5579 = vadd.f32 %v5507, 1.0
        %v5580 = vadd.f32 %v5509, 1.0
        %v5581 = vadd.f32 %v5511, 1.0
        %v5582 = vadd.f32 %v5513, 1.0
        %v5583 = vadd.f32 %v5515, 1.0
        %v5584 = vadd.f32 %v5517, 1.0
        %v5585 = vadd.f32 %v5519, 1.0
        %v5586 = vadd.f32 %v5521, 1.0
        %v5587 = vadd.f32 %v5523, 1.0
        %v5588 = vadd.f32 %v5525, 1.0
        %v5589 = vadd.f32 %v5527, 1.0
        %v5590 = vadd.f32 %v5529, 1.0
        %v5591 = vadd.f32 %v5531, 1.0
        %v5592 = vadd.f32 %v5533, 1.0
        %v5593 = vadd.f32 %v5535, 1.0
        %v5594 = vadd.f32 %v5537, 1.0
        %v5595 = vadd.f32 %v5539, 1.0
        %v5596 = vadd.f32 %v5541, 1.0
        %v5597 = vadd.f32 %v5543, 1.0
        %v5598 = vadd.f32 %v5545, 1.0
        %v5599 = vadd.f32 %v5547, 1.0
        %v5600 = vadd.f32 %v5549, 1.0
        %v5601 = vadd.f32 %v5551, 1.0
        %v5602 = vadd.f32 %v5553, 1.0
        %v5603 = vadd.f32 %v5555, 1.0
        %v5604 = vrcp.pop %v5556
        %v5605 = vmul.f32 1.0, %v5604
        %v5606 = vrcp.pop %v5557
        %v5607 = vmul.f32 1.0, %v5606
        %v5608 = vrcp.pop %v5558
        %v5609 = vmul.f32 1.0, %v5608
        %v5610 = vrcp.pop %v5559
        %v5611 = vmul.f32 1.0, %v5610
        %v5612 = vrcp.pop %v5560
        %v5613 = vmul.f32 1.0, %v5612
        %v5614 = vrcp.pop %v5561
        %v5615 = vmul.f32 1.0, %v5614
        %v5616 = vrcp.pop %v5562
        %v5617 = vmul.f32 1.0, %v5616
        %v5618 = vrcp.pop %v5563
        %v5619 = vmul.f32 1.0, %v5618
        %v5620 = vrcp.pop %v5564
        %v5621 = vmul.f32 1.0, %v5620
        %v5622 = vrcp.pop %v5565
        %v5623 = vmul.f32 1.0, %v5622
        %v5624 = vrcp.pop %v5566
        %v5625 = vmul.f32 1.0, %v5624
        %v5626 = vrcp.pop %v5567
        %v5627 = vmul.f32 1.0, %v5626
        %v5628 = vrcp.pop %v5568
        %v5629 = vmul.f32 1.0, %v5628
        %v5630 = vrcp.pop %v5569
        %v5631 = vmul.f32 1.0, %v5630
        %v5632 = vrcp.pop %v5570
        %v5633 = vmul.f32 1.0, %v5632
        %v5634 = vrcp.pop %v5571
        %v5635 = vmul.f32 1.0, %v5634
        %v5636 = vrcp.pop %v5572
        %v5637 = vmul.f32 1.0, %v5636
        %v5638 = vrcp.pop %v5573
        %v5639 = vmul.f32 1.0, %v5638
        %v5640 = vrcp.pop %v5574
        %v5641 = vmul.f32 1.0, %v5640
        %v5642 = vrcp.pop %v5575
        %v5643 = vmul.f32 1.0, %v5642
        %v5644 = vrcp.pop %v5576
        %v5645 = vmul.f32 1.0, %v5644
        %v5646 = vrcp.pop %v5577
        %v5647 = vmul.f32 1.0, %v5646
        %v5648 = vrcp.pop %v5578
        %v5649 = vmul.f32 1.0, %v5648
        %v5650 = vrcp.pop %v5579
        %v5651 = vmul.f32 1.0, %v5650
        %v5652 = vrcp.pop %v5580
        %v5653 = vmul.f32 1.0, %v5652
        %v5654 = vrcp.pop %v5581
        %v5655 = vmul.f32 1.0, %v5654
        %v5656 = vrcp.pop %v5582
        %v5657 = vmul.f32 1.0, %v5656
        %v5658 = vrcp.pop %v5583
        %v5659 = vmul.f32 1.0, %v5658
        %v5660 = vrcp.pop %v5584
        %v5661 = vmul.f32 1.0, %v5660
        %v5662 = vrcp.pop %v5585
        %v5663 = vmul.f32 1.0, %v5662
        %v5664 = vrcp.pop %v5586
        %v5665 = vmul.f32 1.0, %v5664
        %v5666 = vrcp.pop %v5587
        %v5667 = vmul.f32 1.0, %v5666
        %v5668 = vrcp.pop %v5588
        %v5669 = vmul.f32 1.0, %v5668
        %v5670 = vrcp.pop %v5589
        %v5671 = vmul.f32 1.0, %v5670
        %v5672 = vrcp.pop %v5590
        %v5673 = vmul.f32 1.0, %v5672
        %v5674 = vrcp.pop %v5591
        %v5675 = vmul.f32 1.0, %v5674
        %v5676 = vrcp.pop %v5592
        %v5677 = vmul.f32 1.0, %v5676
        %v5678 = vrcp.pop %v5593
        %v5679 = vmul.f32 1.0, %v5678
        %v5680 = vrcp.pop %v5594
        %v5681 = vmul.f32 1.0, %v5680
        %v5682 = vrcp.pop %v5595
        %v5683 = vmul.f32 1.0, %v5682
        %v5684 = vrcp.pop %v5596
        %v5685 = vmul.f32 1.0, %v5684
        %v5686 = vrcp.pop %v5597
        %v5687 = vmul.f32 1.0, %v5686
        %v5688 = vrcp.pop %v5598
        %v5689 = vmul.f32 1.0, %v5688
        %v5690 = vrcp.pop %v5599
        %v5691 = vmul.f32 1.0, %v5690
        %v5692 = vrcp.pop %v5600
        %v5693 = vmul.f32 1.0, %v5692
        %v5694 = vrcp.pop %v5601
        %v5695 = vmul.f32 1.0, %v5694
        %v5696 = vrcp.pop %v5602
        %v5697 = vmul.f32 1.0, %v5696
        %v5698 = vrcp.pop %v5603
        %v5699 = vmul.f32 1.0, %v5698
        %v5700 = vtanh.pop %v5351
        %v5701 = vtanh.pop %v5355
        %v5702 = vtanh.pop %v5359
        %v5703 = vtanh.pop %v5363
        %v5704 = vtanh.pop %v5367
        %v5705 = vtanh.pop %v5371
        %v5706 = vtanh.pop %v5375
        %v5707 = vtanh.pop %v5379
        %v5708 = vtanh.pop %v5383
        %v5709 = vtanh.pop %v5387
        %v5710 = vtanh.pop %v5391
        %v5711 = vtanh.pop %v5395
        %v5712 = vtanh.pop %v5399
        %v5713 = vtanh.pop %v5403
        %v5714 = vtanh.pop %v5407
        %v5715 = vtanh.pop %v5411
        %v5716 = vmul.f32 %v5607, %v4850
        %v5717 = vmul.f32 %v5613, %v4851
        %v5718 = vmul.f32 %v5619, %v4852
        %v5719 = vmul.f32 %v5625, %v4853
        %v5720 = vmul.f32 %v5631, %v4854
        %v5721 = vmul.f32 %v5637, %v4855
        %v5722 = vmul.f32 %v5643, %v4856
        %v5723 = vmul.f32 %v5649, %v4857
        %v5724 = vmul.f32 %v5655, %v4858
        %v5725 = vmul.f32 %v5661, %v4859
        %v5726 = vmul.f32 %v5667, %v4860
        %v5727 = vmul.f32 %v5673, %v4861
        %v5728 = vmul.f32 %v5679, %v4862
        %v5729 = vmul.f32 %v5685, %v4863
        %v5730 = vmul.f32 %v5691, %v4864
        %v5731 = vmul.f32 %v5697, %v4865
        %v5732 = vmul.f32 %v5605, %v5700
        %v5733 = vmul.f32 %v5611, %v5701
        %v5734 = vmul.f32 %v5617, %v5702
        %v5735 = vmul.f32 %v5623, %v5703
        %v5736 = vmul.f32 %v5629, %v5704
        %v5737 = vmul.f32 %v5635, %v5705
        %v5738 = vmul.f32 %v5641, %v5706
        %v5739 = vmul.f32 %v5647, %v5707
        %v5740 = vmul.f32 %v5653, %v5708
        %v5741 = vmul.f32 %v5659, %v5709
        %v5742 = vmul.f32 %v5665, %v5710
        %v5743 = vmul.f32 %v5671, %v5711
        %v5744 = vmul.f32 %v5677, %v5712
        %v5745 = vmul.f32 %v5683, %v5713
        %v5746 = vmul.f32 %v5689, %v5714
        %v5747 = vmul.f32 %v5695, %v5715
        %v5748 = vadd.f32 %v5716, %v5732
        %v5749 = vadd.f32 %v5717, %v5733
        %v5750 = vadd.f32 %v5718, %v5734
        %v5751 = vadd.f32 %v5719, %v5735
        %v5752 = vadd.f32 %v5720, %v5736
        %v5753 = vadd.f32 %v5721, %v5737
        %v5754 = vadd.f32 %v5722, %v5738
        %v5755 = vadd.f32 %v5723, %v5739
        %v5756 = vadd.f32 %v5724, %v5740
        %v5757 = vadd.f32 %v5725, %v5741
        %v5758 = vadd.f32 %v5726, %v5742
        %v5759 = vadd.f32 %v5727, %v5743
        %v5760 = vadd.f32 %v5728, %v5744
        %v5761 = vadd.f32 %v5729, %v5745
        %v5762 = vadd.f32 %v5730, %v5746
        %v5763 = vadd.f32 %v5731, %v5747
        %v5764 = vtanh.pop %v5748
        %v5765 = vtanh.pop %v5749
        %v5766 = vtanh.pop %v5750
        %v5767 = vtanh.pop %v5751
        %v5768 = vtanh.pop %v5752
        %v5769 = vtanh.pop %v5753
        %v5770 = vtanh.pop %v5754
        %v5771 = vtanh.pop %v5755
        %v5772 = vtanh.pop %v5756
        %v5773 = vtanh.pop %v5757
        %v5774 = vtanh.pop %v5758
        %v5775 = vtanh.pop %v5759
        %v5776 = vtanh.pop %v5760
        %v5777 = vtanh.pop %v5761
        %v5778 = vtanh.pop %v5762
        %v5779 = vtanh.pop %v5763
        %v5780 = vmul.f32 %v5609, %v5764
        %v5781 = vmul.f32 %v5615, %v5765
        %v5782 = vmul.f32 %v5621, %v5766
        %v5783 = vmul.f32 %v5627, %v5767
        %v5784 = vmul.f32 %v5633, %v5768
        %v5785 = vmul.f32 %v5639, %v5769
        %v5786 = vmul.f32 %v5645, %v5770
        %v5787 = vmul.f32 %v5651, %v5771
        %v5788 = vmul.f32 %v5657, %v5772
        %v5789 = vmul.f32 %v5663, %v5773
        %v5790 = vmul.f32 %v5669, %v5774
        %v5791 = vmul.f32 %v5675, %v5775
        %v5792 = vmul.f32 %v5681, %v5776
        %v5793 = vmul.f32 %v5687, %v5777
        %v5794 = vmul.f32 %v5693, %v5778
        %v5795 = vmul.f32 %v5699, %v5779
        %5796 = vset.pattern.permute.xlu0 6
        %5797 = vperm.xlu0 %5796, %v270
        %v5798 = vpop.permute.xlu0 %5797
        %5800 = vset.pattern.permute.xlu0 6
        %5801 = vperm.xlu0 %5800, %v271
        %v5802 = vpop.permute.xlu0 %5801
        %5804 = vset.pattern.permute.xlu0 6
        %5805 = vperm.xlu0 %5804, %v272
        %v5806 = vpop.permute.xlu0 %5805
        %5808 = vset.pattern.permute.xlu0 6
        %5809 = vperm.xlu0 %5808, %v273
        %v5810 = vpop.permute.xlu0 %5809
        %5812 = vset.pattern.permute.xlu0 6
        %5813 = vperm.xlu0 %5812, %v274
        %v5814 = vpop.permute.xlu0 %5813
        %5816 = vset.pattern.permute.xlu0 6
        %5817 = vperm.xlu0 %5816, %v275
        %v5818 = vpop.permute.xlu0 %5817
        %5820 = vset.pattern.permute.xlu0 6
        %5821 = vperm.xlu0 %5820, %v276
        %v5822 = vpop.permute.xlu0 %5821
        %5824 = vset.pattern.permute.xlu0 6
        %5825 = vperm.xlu0 %5824, %v277
        %v5826 = vpop.permute.xlu0 %5825
        %5828 = vset.pattern.permute.xlu0 6
        %5829 = vperm.xlu0 %5828, %v278
        %v5830 = vpop.permute.xlu0 %5829
        %5832 = vset.pattern.permute.xlu0 6
        %5833 = vperm.xlu0 %5832, %v279
        %v5834 = vpop.permute.xlu0 %5833
        %5836 = vset.pattern.permute.xlu0 6
        %5837 = vperm.xlu0 %5836, %v280
        %v5838 = vpop.permute.xlu0 %5837
        %5840 = vset.pattern.permute.xlu0 6
        %5841 = vperm.xlu0 %5840, %v281
        %v5842 = vpop.permute.xlu0 %5841
        %5844 = vset.pattern.permute.xlu0 6
        %5845 = vperm.xlu0 %5844, %v282
        %v5846 = vpop.permute.xlu0 %5845
        %5848 = vset.pattern.permute.xlu0 6
        %5849 = vperm.xlu0 %5848, %v283
        %v5850 = vpop.permute.xlu0 %5849
        %5852 = vset.pattern.permute.xlu0 6
        %5853 = vperm.xlu0 %5852, %v284
        %v5854 = vpop.permute.xlu0 %5853
        %5856 = vset.pattern.permute.xlu0 6
        %5857 = vperm.xlu0 %5856, %v285
        %v5858 = vpop.permute.xlu0 %5857
        %v5860 = vmul.f32 %v5798, %v434
        %v5861 = vmul.f32 %v5798, %v438
        %v5862 = vmul.f32 %v5798, %v442
        %v5863 = vmul.f32 %v5798, %v446
        %v5864 = vmul.f32 %v5802, %v434
        %v5865 = vmul.f32 %v5802, %v438
        %v5866 = vmul.f32 %v5802, %v442
        %v5867 = vmul.f32 %v5802, %v446
        %v5868 = vmul.f32 %v5806, %v434
        %v5869 = vmul.f32 %v5806, %v438
        %v5870 = vmul.f32 %v5806, %v442
        %v5871 = vmul.f32 %v5806, %v446
        %v5872 = vmul.f32 %v5810, %v434
        %v5873 = vmul.f32 %v5810, %v438
        %v5874 = vmul.f32 %v5810, %v442
        %v5875 = vmul.f32 %v5810, %v446
        %v5876 = vmul.f32 %v5814, %v434
        %v5877 = vmul.f32 %v5814, %v438
        %v5878 = vmul.f32 %v5814, %v442
        %v5879 = vmul.f32 %v5814, %v446
        %v5880 = vmul.f32 %v5818, %v434
        %v5881 = vmul.f32 %v5818, %v438
        %v5882 = vmul.f32 %v5818, %v442
        %v5883 = vmul.f32 %v5818, %v446
        %v5884 = vmul.f32 %v5822, %v434
        %v5885 = vmul.f32 %v5822, %v438
        %v5886 = vmul.f32 %v5822, %v442
        %v5887 = vmul.f32 %v5822, %v446
        %v5888 = vmul.f32 %v5826, %v434
        %v5889 = vmul.f32 %v5826, %v438
        %v5890 = vmul.f32 %v5826, %v442
        %v5891 = vmul.f32 %v5826, %v446
        %v5892 = vmul.f32 %v5830, %v434
        %v5893 = vmul.f32 %v5830, %v438
        %v5894 = vmul.f32 %v5830, %v442
        %v5895 = vmul.f32 %v5830, %v446
        %v5896 = vmul.f32 %v5834, %v434
        %v5897 = vmul.f32 %v5834, %v438
        %v5898 = vmul.f32 %v5834, %v442
        %v5899 = vmul.f32 %v5834, %v446
        %v5900 = vmul.f32 %v5838, %v434
        %v5901 = vmul.f32 %v5838, %v438
        %v5902 = vmul.f32 %v5838, %v442
        %v5903 = vmul.f32 %v5838, %v446
        %v5904 = vmul.f32 %v5842, %v434
        %v5905 = vmul.f32 %v5842, %v438
        %v5906 = vmul.f32 %v5842, %v442
        %v5907 = vmul.f32 %v5842, %v446
        %v5908 = vmul.f32 %v5846, %v434
        %v5909 = vmul.f32 %v5846, %v438
        %v5910 = vmul.f32 %v5846, %v442
        %v5911 = vmul.f32 %v5846, %v446
        %v5912 = vmul.f32 %v5850, %v434
        %v5913 = vmul.f32 %v5850, %v438
        %v5914 = vmul.f32 %v5850, %v442
        %v5915 = vmul.f32 %v5850, %v446
        %v5916 = vmul.f32 %v5854, %v434
        %v5917 = vmul.f32 %v5854, %v438
        %v5918 = vmul.f32 %v5854, %v442
        %v5919 = vmul.f32 %v5854, %v446
        %v5920 = vmul.f32 %v5858, %v434
        %v5921 = vmul.f32 %v5858, %v438
        %v5922 = vmul.f32 %v5858, %v442
        %v5923 = vmul.f32 %v5858, %v446
        %5924 = vmatprep.subr.mxu0 %v287
        %5925 = vmatpush1.msra.mxu0 %v286
        %5926 = vmatprep.subr.mxu0 %v291
        %5927 = vmatpush1.msra.mxu0 %v290
        %5928 = vmatprep.subr.mxu0 %v295
        %5929 = vmatpush1.msra.mxu0 %v294
        %5930 = vmatprep.subr.mxu0 %v299
        %5931 = vmatpush1.msra.mxu0 %v298
        %5932 = vmatprep.subr.mxu0 %v303
        %5933 = vmatpush1.msra.mxu0 %v302
        %5934 = vmatprep.subr.mxu0 %v307
        %5935 = vmatpush1.msra.mxu0 %v306
        %5936 = vmatprep.subr.mxu0 %v311
        %5937 = vmatpush1.msra.mxu0 %v310
        %5938 = vmatprep.subr.mxu0 %v315
        %5939 = vmatpush1.msra.mxu0 %v314
        %5940 = vmatprep.subr.mxu0 %v319
        %5941 = vmatpush1.msra.mxu0 %v318
        %5942 = vmatprep.subr.mxu0 %v323
        %5943 = vmatpush1.msra.mxu0 %v322
        %5944 = vmatprep.subr.mxu0 %v327
        %5945 = vmatpush1.msra.mxu0 %v326
        %5946 = vmatprep.subr.mxu0 %v331
        %5947 = vmatpush1.msra.mxu0 %v330
        %5948 = vmatprep.subr.mxu0 %v335
        %5949 = vmatpush1.msra.mxu0 %v334
        %5950 = vmatprep.subr.mxu0 %v339
        %5951 = vmatpush1.msra.mxu0 %v338
        %5952 = vmatprep.subr.mxu0 %v343
        %5953 = vmatpush1.msra.mxu0 %v342
        %5954 = vmatprep.subr.mxu0 %v347
        %5955 = vmatpush1.msra.mxu0 %v346
        %5956 = vmatprep.subr.mxu0 0.0
        %5957 = vmatpush1.msra.mxu0 0.0
        %5958 = vmatprep.subr.mxu0 0.0
        %5959 = vmatpush1.msra.mxu0 0.0
        %5960 = vmatprep.subr.mxu0 0.0
        %5961 = vmatpush1.msra.mxu0 0.0
        %5962 = vmatprep.subr.mxu0 0.0
        %5963 = vmatpush1.msra.mxu0 0.0
        %5964 = vmatprep.subr.mxu0 0.0
        %5965 = vmatpush1.msra.mxu0 0.0
        %5966 = vmatprep.subr.mxu0 0.0
        %5967 = vmatpush1.msra.mxu0 0.0
        %5968 = vmatprep.subr.mxu0 0.0
        %5969 = vmatpush1.msra.mxu0 0.0
        %5970 = vmatprep.subr.mxu0 0.0
        %5971 = vmatpush1.msra.mxu0 0.0
        %5972 = vmatprep.subr.mxu0 0.0
        %5973 = vmatpush1.msra.mxu0 0.0
        %5974 = vmatprep.subr.mxu0 0.0
        %5975 = vmatpush1.msra.mxu0 0.0
        %5976 = vmatprep.subr.mxu0 0.0
        %5977 = vmatpush1.msra.mxu0 0.0
        %5978 = vmatprep.subr.mxu0 0.0
        %5979 = vmatpush1.msra.mxu0 0.0
        %5980 = vmatprep.subr.mxu0 0.0
        %5981 = vmatpush1.msra.mxu0 0.0
        %5982 = vmatprep.subr.mxu0 0.0
        %5983 = vmatpush1.msra.mxu0 0.0
        %5984 = vmatprep.subr.mxu0 0.0
        %5985 = vmatpush1.msra.mxu0 0.0
        %5986 = vmatprep.subr.mxu0 0.0
        %5987 = vmatpush1.msra.mxu0 0.0
        %5988 = vmatprep.mubr.f32.mxu0 0.0
        %5989 = vmatmul.mubr.f32.gmra.mrb[0].mxu0 %v5780
        %v5990 = vpop.f32.mrb[0].mxu0
        %v5991 = vadd.f32 %v5860, %v5990
        %v5992 = vpop.f32.mrb[0].mxu0
        %v5993 = vadd.f32 %v5861, %v5992
        %5994 = vmatprep.mubr.f32.mxu0 0.0
        %5995 = vmatmul.mubr.f32.gmra.mrb[0].mxu0 %v5781
        %v5996 = vpop.f32.mrb[0].mxu0
        %v5997 = vadd.f32 %v5864, %v5996
        %v5998 = vpop.f32.mrb[0].mxu0
        %v5999 = vadd.f32 %v5865, %v5998
        %6000 = vmatprep.mubr.f32.mxu0 0.0
        %6001 = vmatmul.mubr.f32.gmra.mrb[0].mxu0 %v5782
        %v6002 = vpop.f32.mrb[0].mxu0
        %v6003 = vadd.f32 %v5868, %v6002
        %v6004 = vpop.f32.mrb[0].mxu0
        %v6005 = vadd.f32 %v5869, %v6004
        %6006 = vmatprep.mubr.f32.mxu0 0.0
        %6007 = vmatmul.mubr.f32.gmra.mrb[0].mxu0 %v5783
        %v6008 = vpop.f32.mrb[0].mxu0
        %v6009 = vadd.f32 %v5872, %v6008
        %v6010 = vpop.f32.mrb[0].mxu0
        %v6011 = vadd.f32 %v5873, %v6010
        %6012 = vmatprep.mubr.f32.mxu0 0.0
        %6013 = vmatmul.mubr.f32.gmra.mrb[0].mxu0 %v5784
        %v6014 = vpop.f32.mrb[0].mxu0
        %v6015 = vadd.f32 %v5876, %v6014
        %v6016 = vpop.f32.mrb[0].mxu0
        %v6017 = vadd.f32 %v5877, %v6016
        %6018 = vmatprep.mubr.f32.mxu0 0.0
        %6019 = vmatmul.mubr.f32.gmra.mrb[0].mxu0 %v5785
        %v6020 = vpop.f32.mrb[0].mxu0
        %v6021 = vadd.f32 %v5880, %v6020
        %v6022 = vpop.f32.mrb[0].mxu0
        %v6023 = vadd.f32 %v5881, %v6022
        %6024 = vmatprep.mubr.f32.mxu0 0.0
        %6025 = vmatmul.mubr.f32.gmra.mrb[0].mxu0 %v5786
        %v6026 = vpop.f32.mrb[0].mxu0
        %v6027 = vadd.f32 %v5884, %v6026
        %v6028 = vpop.f32.mrb[0].mxu0
        %v6029 = vadd.f32 %v5885, %v6028
        %6030 = vmatprep.mubr.f32.mxu0 0.0
        %6031 = vmatmul.mubr.f32.gmra.mrb[0].mxu0 %v5787
        %v6032 = vpop.f32.mrb[0].mxu0
        %v6033 = vadd.f32 %v5888, %v6032
        %v6034 = vpop.f32.mrb[0].mxu0
        %v6035 = vadd.f32 %v5889, %v6034
        %6036 = vmatprep.mubr.f32.mxu0 0.0
        %6037 = vmatmul.mubr.f32.gmra.mrb[0].mxu0 %v5788
        %v6038 = vpop.f32.mrb[0].mxu0
        %v6039 = vadd.f32 %v5892, %v6038
        %v6040 = vpop.f32.mrb[0].mxu0
        %v6041 = vadd.f32 %v5893, %v6040
        %6042 = vmatprep.mubr.f32.mxu0 0.0
        %6043 = vmatmul.mubr.f32.gmra.mrb[0].mxu0 %v5789
        %v6044 = vpop.f32.mrb[0].mxu0
        %v6045 = vadd.f32 %v5896, %v6044
        %v6046 = vpop.f32.mrb[0].mxu0
        %v6047 = vadd.f32 %v5897, %v6046
        %6048 = vmatprep.mubr.f32.mxu0 0.0
        %6049 = vmatmul.mubr.f32.gmra.mrb[0].mxu0 %v5790
        %v6050 = vpop.f32.mrb[0].mxu0
        %v6051 = vadd.f32 %v5900, %v6050
        %v6052 = vpop.f32.mrb[0].mxu0
        %v6053 = vadd.f32 %v5901, %v6052
        %6054 = vmatprep.mubr.f32.mxu0 0.0
        %6055 = vmatmul.mubr.f32.gmra.mrb[0].mxu0 %v5791
        %v6056 = vpop.f32.mrb[0].mxu0
        %v6057 = vadd.f32 %v5904, %v6056
        %v6058 = vpop.f32.mrb[0].mxu0
        %v6059 = vadd.f32 %v5905, %v6058
        %6060 = vmatprep.mubr.f32.mxu0 0.0
        %6061 = vmatmul.mubr.f32.gmra.mrb[0].mxu0 %v5792
        %v6062 = vpop.f32.mrb[0].mxu0
        %v6063 = vadd.f32 %v5908, %v6062
        %v6064 = vpop.f32.mrb[0].mxu0
        %v6065 = vadd.f32 %v5909, %v6064
        %6066 = vmatprep.mubr.f32.mxu0 0.0
        %6067 = vmatmul.mubr.f32.gmra.mrb[0].mxu0 %v5793
        %v6068 = vpop.f32.mrb[0].mxu0
        %v6069 = vadd.f32 %v5912, %v6068
        %v6070 = vpop.f32.mrb[0].mxu0
        %v6071 = vadd.f32 %v5913, %v6070
        %6072 = vmatprep.mubr.f32.mxu0 0.0
        %6073 = vmatmul.mubr.f32.gmra.mrb[0].mxu0 %v5794
        %v6074 = vpop.f32.mrb[0].mxu0
        %v6075 = vadd.f32 %v5916, %v6074
        %v6076 = vpop.f32.mrb[0].mxu0
        %v6077 = vadd.f32 %v5917, %v6076
        %6078 = vmatprep.mubr.f32.mxu0 0.0
        %6079 = vmatmul.mubr.f32.gmra.mrb[0].mxu0 %v5795
        %v6080 = vpop.f32.mrb[0].mxu0
        %v6081 = vadd.f32 %v5920, %v6080
        %v6082 = vpop.f32.mrb[0].mxu0
        %v6083 = vadd.f32 %v5921, %v6082
        %6084 = vdwg.mxu0
        %6085 = vmatprep.subr.mxu0 %v289
        %6086 = vmatpush1.msra.mxu0 %v288
        %6087 = vmatprep.subr.mxu0 %v293
        %6088 = vmatpush1.msra.mxu0 %v292
        %6089 = vmatprep.subr.mxu0 %v297
        %6090 = vmatpush1.msra.mxu0 %v296
        %6091 = vmatprep.subr.mxu0 %v301
        %6092 = vmatpush1.msra.mxu0 %v300
        %6093 = vmatprep.subr.mxu0 %v305
        %6094 = vmatpush1.msra.mxu0 %v304
        %6095 = vmatprep.subr.mxu0 %v309
        %6096 = vmatpush1.msra.mxu0 %v308
        %6097 = vmatprep.subr.mxu0 %v313
        %6098 = vmatpush1.msra.mxu0 %v312
        %6099 = vmatprep.subr.mxu0 %v317
        %6100 = vmatpush1.msra.mxu0 %v316
        %6101 = vmatprep.subr.mxu0 %v321
        %6102 = vmatpush1.msra.mxu0 %v320
        %6103 = vmatprep.subr.mxu0 %v325
        %6104 = vmatpush1.msra.mxu0 %v324
        %6105 = vmatprep.subr.mxu0 %v329
        %6106 = vmatpush1.msra.mxu0 %v328
        %6107 = vmatprep.subr.mxu0 %v333
        %6108 = vmatpush1.msra.mxu0 %v332
        %6109 = vmatprep.subr.mxu0 %v337
        %6110 = vmatpush1.msra.mxu0 %v336
        %6111 = vmatprep.subr.mxu0 %v341
        %6112 = vmatpush1.msra.mxu0 %v340
        %6113 = vmatprep.subr.mxu0 %v345
        %6114 = vmatpush1.msra.mxu0 %v344
        %6115 = vmatprep.subr.mxu0 %v349
        %6116 = vmatpush1.msra.mxu0 %v348
        %6117 = vmatprep.subr.mxu0 0.0
        %6118 = vmatpush1.msra.mxu0 0.0
        %6119 = vmatprep.subr.mxu0 0.0
        %6120 = vmatpush1.msra.mxu0 0.0
        %6121 = vmatprep.subr.mxu0 0.0
        %6122 = vmatpush1.msra.mxu0 0.0
        %6123 = vmatprep.subr.mxu0 0.0
        %6124 = vmatpush1.msra.mxu0 0.0
        %6125 = vmatprep.subr.mxu0 0.0
        %6126 = vmatpush1.msra.mxu0 0.0
        %6127 = vmatprep.subr.mxu0 0.0
        %6128 = vmatpush1.msra.mxu0 0.0
        %6129 = vmatprep.subr.mxu0 0.0
        %6130 = vmatpush1.msra.mxu0 0.0
        %6131 = vmatprep.subr.mxu0 0.0
        %6132 = vmatpush1.msra.mxu0 0.0
        %6133 = vmatprep.subr.mxu0 0.0
        %6134 = vmatpush1.msra.mxu0 0.0
        %6135 = vmatprep.subr.mxu0 0.0
        %6136 = vmatpush1.msra.mxu0 0.0
        %6137 = vmatprep.subr.mxu0 0.0
        %6138 = vmatpush1.msra.mxu0 0.0
        %6139 = vmatprep.subr.mxu0 0.0
        %6140 = vmatpush1.msra.mxu0 0.0
        %6141 = vmatprep.subr.mxu0 0.0
        %6142 = vmatpush1.msra.mxu0 0.0
        %6143 = vmatprep.subr.mxu0 0.0
        %6144 = vmatpush1.msra.mxu0 0.0
        %6145 = vmatprep.subr.mxu0 0.0
        %6146 = vmatpush1.msra.mxu0 0.0
        %6147 = vmatprep.subr.mxu0 0.0
        %6148 = vmatpush1.msra.mxu0 0.0
        %6149 = vmatprep.mubr.f32.mxu0 0.0
        %6150 = vmatmul.mubr.f32.gmra.mrb[0].mxu0 %v5780
        %v6151 = vpop.f32.mrb[0].mxu0
        %v6152 = vadd.f32 %v5862, %v6151
        %v6153 = vpop.f32.mrb[0].mxu0
        %v6154 = vadd.f32 %v5863, %v6153
        %6155 = vmatprep.mubr.f32.mxu0 0.0
        %6156 = vmatmul.mubr.f32.gmra.mrb[0].mxu0 %v5781
        %v6157 = vpop.f32.mrb[0].mxu0
        %v6158 = vadd.f32 %v5866, %v6157
        %v6159 = vpop.f32.mrb[0].mxu0
        %v6160 = vadd.f32 %v5867, %v6159
        %6161 = vmatprep.mubr.f32.mxu0 0.0
        %6162 = vmatmul.mubr.f32.gmra.mrb[0].mxu0 %v5782
        %v6163 = vpop.f32.mrb[0].mxu0
        %v6164 = vadd.f32 %v5870, %v6163
        %v6165 = vpop.f32.mrb[0].mxu0
        %v6166 = vadd.f32 %v5871, %v6165
        %6167 = vmatprep.mubr.f32.mxu0 0.0
        %6168 = vmatmul.mubr.f32.gmra.mrb[0].mxu0 %v5783
        %v6169 = vpop.f32.mrb[0].mxu0
        %v6170 = vadd.f32 %v5874, %v6169
        %v6171 = vpop.f32.mrb[0].mxu0
        %v6172 = vadd.f32 %v5875, %v6171
        %6173 = vmatprep.mubr.f32.mxu0 0.0
        %6174 = vmatmul.mubr.f32.gmra.mrb[0].mxu0 %v5784
        %v6175 = vpop.f32.mrb[0].mxu0
        %v6176 = vadd.f32 %v5878, %v6175
        %v6177 = vpop.f32.mrb[0].mxu0
        %v6178 = vadd.f32 %v5879, %v6177
        %6179 = vmatprep.mubr.f32.mxu0 0.0
        %6180 = vmatmul.mubr.f32.gmra.mrb[0].mxu0 %v5785
        %v6181 = vpop.f32.mrb[0].mxu0
        %v6182 = vadd.f32 %v5882, %v6181
        %v6183 = vpop.f32.mrb[0].mxu0
        %v6184 = vadd.f32 %v5883, %v6183
        %6185 = vmatprep.mubr.f32.mxu0 0.0
        %6186 = vmatmul.mubr.f32.gmra.mrb[0].mxu0 %v5786
        %v6187 = vpop.f32.mrb[0].mxu0
        %v6188 = vadd.f32 %v5886, %v6187
        %v6189 = vpop.f32.mrb[0].mxu0
        %v6190 = vadd.f32 %v5887, %v6189
        %6191 = vmatprep.mubr.f32.mxu0 0.0
        %6192 = vmatmul.mubr.f32.gmra.mrb[0].mxu0 %v5787
        %v6193 = vpop.f32.mrb[0].mxu0
        %v6194 = vadd.f32 %v5890, %v6193
        %v6195 = vpop.f32.mrb[0].mxu0
        %v6196 = vadd.f32 %v5891, %v6195
        %6197 = vmatprep.mubr.f32.mxu0 0.0
        %6198 = vmatmul.mubr.f32.gmra.mrb[0].mxu0 %v5788
        %v6199 = vpop.f32.mrb[0].mxu0
        %v6200 = vadd.f32 %v5894, %v6199
        %v6201 = vpop.f32.mrb[0].mxu0
        %v6202 = vadd.f32 %v5895, %v6201
        %6203 = vmatprep.mubr.f32.mxu0 0.0
        %6204 = vmatmul.mubr.f32.gmra.mrb[0].mxu0 %v5789
        %v6205 = vpop.f32.mrb[0].mxu0
        %v6206 = vadd.f32 %v5898, %v6205
        %v6207 = vpop.f32.mrb[0].mxu0
        %v6208 = vadd.f32 %v5899, %v6207
        %6209 = vmatprep.mubr.f32.mxu0 0.0
        %6210 = vmatmul.mubr.f32.gmra.mrb[0].mxu0 %v5790
        %v6211 = vpop.f32.mrb[0].mxu0
        %v6212 = vadd.f32 %v5902, %v6211
        %v6213 = vpop.f32.mrb[0].mxu0
        %v6214 = vadd.f32 %v5903, %v6213
        %6215 = vmatprep.mubr.f32.mxu0 0.0
        %6216 = vmatmul.mubr.f32.gmra.mrb[0].mxu0 %v5791
        %v6217 = vpop.f32.mrb[0].mxu0
        %v6218 = vadd.f32 %v5906, %v6217
        %v6219 = vpop.f32.mrb[0].mxu0
        %v6220 = vadd.f32 %v5907, %v6219
        %6221 = vmatprep.mubr.f32.mxu0 0.0
        %6222 = vmatmul.mubr.f32.gmra.mrb[0].mxu0 %v5792
        %v6223 = vpop.f32.mrb[0].mxu0
        %v6224 = vadd.f32 %v5910, %v6223
        %v6225 = vpop.f32.mrb[0].mxu0
        %v6226 = vadd.f32 %v5911, %v6225
        %6227 = vmatprep.mubr.f32.mxu0 0.0
        %6228 = vmatmul.mubr.f32.gmra.mrb[0].mxu0 %v5793
        %v6229 = vpop.f32.mrb[0].mxu0
        %v6230 = vadd.f32 %v5914, %v6229
        %v6231 = vpop.f32.mrb[0].mxu0
        %v6232 = vadd.f32 %v5915, %v6231
        %6233 = vmatprep.mubr.f32.mxu0 0.0
        %6234 = vmatmul.mubr.f32.gmra.mrb[0].mxu0 %v5794
        %v6235 = vpop.f32.mrb[0].mxu0
        %v6236 = vadd.f32 %v5918, %v6235
        %v6237 = vpop.f32.mrb[0].mxu0
        %v6238 = vadd.f32 %v5919, %v6237
        %6239 = vmatprep.mubr.f32.mxu0 0.0
        %6240 = vmatmul.mubr.f32.gmra.mrb[0].mxu0 %v5795
        %v6241 = vpop.f32.mrb[0].mxu0
        %v6242 = vadd.f32 %v5922, %v6241
        %v6243 = vpop.f32.mrb[0].mxu0
        %v6244 = vadd.f32 %v5923, %v6243
        %6245 = vdwg.mxu0
        %v6246 = vadd.f32 %v5991, %v841
        %v6247 = vadd.f32 %v5993, %v845
        %v6248 = vadd.f32 %v6152, %v849
        %v6249 = vadd.f32 %v6154, %v853
        %v6250 = vadd.f32 %v5997, %v841
        %v6251 = vadd.f32 %v5999, %v845
        %v6252 = vadd.f32 %v6158, %v849
        %v6253 = vadd.f32 %v6160, %v853
        %v6254 = vadd.f32 %v6003, %v841
        %v6255 = vadd.f32 %v6005, %v845
        %v6256 = vadd.f32 %v6164, %v849
        %v6257 = vadd.f32 %v6166, %v853
        %v6258 = vadd.f32 %v6009, %v841
        %v6259 = vadd.f32 %v6011, %v845
        %v6260 = vadd.f32 %v6170, %v849
        %v6261 = vadd.f32 %v6172, %v853
        %v6262 = vadd.f32 %v6015, %v841
        %v6263 = vadd.f32 %v6017, %v845
        %v6264 = vadd.f32 %v6176, %v849
        %v6265 = vadd.f32 %v6178, %v853
        %v6266 = vadd.f32 %v6021, %v841
        %v6267 = vadd.f32 %v6023, %v845
        %v6268 = vadd.f32 %v6182, %v849
        %v6269 = vadd.f32 %v6184, %v853
        %v6270 = vadd.f32 %v6027, %v841
        %v6271 = vadd.f32 %v6029, %v845
        %v6272 = vadd.f32 %v6188, %v849
        %v6273 = vadd.f32 %v6190, %v853
        %v6274 = vadd.f32 %v6033, %v841
        %v6275 = vadd.f32 %v6035, %v845
        %v6276 = vadd.f32 %v6194, %v849
        %v6277 = vadd.f32 %v6196, %v853
        %v6278 = vadd.f32 %v6039, %v841
        %v6279 = vadd.f32 %v6041, %v845
        %v6280 = vadd.f32 %v6200, %v849
        %v6281 = vadd.f32 %v6202, %v853
        %v6282 = vadd.f32 %v6045, %v841
        %v6283 = vadd.f32 %v6047, %v845
        %v6284 = vadd.f32 %v6206, %v849
        %v6285 = vadd.f32 %v6208, %v853
        %v6286 = vadd.f32 %v6051, %v841
        %v6287 = vadd.f32 %v6053, %v845
        %v6288 = vadd.f32 %v6212, %v849
        %v6289 = vadd.f32 %v6214, %v853
        %v6290 = vadd.f32 %v6057, %v841
        %v6291 = vadd.f32 %v6059, %v845
        %v6292 = vadd.f32 %v6218, %v849
        %v6293 = vadd.f32 %v6220, %v853
        %v6294 = vadd.f32 %v6063, %v841
        %v6295 = vadd.f32 %v6065, %v845
        %v6296 = vadd.f32 %v6224, %v849
        %v6297 = vadd.f32 %v6226, %v853
        %v6298 = vadd.f32 %v6069, %v841
        %v6299 = vadd.f32 %v6071, %v845
        %v6300 = vadd.f32 %v6230, %v849
        %v6301 = vadd.f32 %v6232, %v853
        %v6302 = vadd.f32 %v6075, %v841
        %v6303 = vadd.f32 %v6077, %v845
        %v6304 = vadd.f32 %v6236, %v849
        %v6305 = vadd.f32 %v6238, %v853
        %v6306 = vadd.f32 %v6081, %v841
        %v6307 = vadd.f32 %v6083, %v845
        %v6308 = vadd.f32 %v6242, %v849
        %v6309 = vadd.f32 %v6244, %v853
        %v6310 = vxor.u32 %v6246, 2147483648
        %v6311 = vxor.u32 %v6247, 2147483648
        %v6312 = vxor.u32 %v6248, 2147483648
        %v6313 = vxor.u32 %v6250, 2147483648
        %v6314 = vxor.u32 %v6251, 2147483648
        %v6315 = vxor.u32 %v6252, 2147483648
        %v6316 = vxor.u32 %v6254, 2147483648
        %v6317 = vxor.u32 %v6255, 2147483648
        %v6318 = vxor.u32 %v6256, 2147483648
        %v6319 = vxor.u32 %v6258, 2147483648
        %v6320 = vxor.u32 %v6259, 2147483648
        %v6321 = vxor.u32 %v6260, 2147483648
        %v6322 = vxor.u32 %v6262, 2147483648
        %v6323 = vxor.u32 %v6263, 2147483648
        %v6324 = vxor.u32 %v6264, 2147483648
        %v6325 = vxor.u32 %v6266, 2147483648
        %v6326 = vxor.u32 %v6267, 2147483648
        %v6327 = vxor.u32 %v6268, 2147483648
        %v6328 = vxor.u32 %v6270, 2147483648
        %v6329 = vxor.u32 %v6271, 2147483648
        %v6330 = vxor.u32 %v6272, 2147483648
        %v6331 = vxor.u32 %v6274, 2147483648
        %v6332 = vxor.u32 %v6275, 2147483648
        %v6333 = vxor.u32 %v6276, 2147483648
        %v6334 = vxor.u32 %v6278, 2147483648
        %v6335 = vxor.u32 %v6279, 2147483648
        %v6336 = vxor.u32 %v6280, 2147483648
        %v6337 = vxor.u32 %v6282, 2147483648
        %v6338 = vxor.u32 %v6283, 2147483648
        %v6339 = vxor.u32 %v6284, 2147483648
        %v6340 = vxor.u32 %v6286, 2147483648
        %v6341 = vxor.u32 %v6287, 2147483648
        %v6342 = vxor.u32 %v6288, 2147483648
        %v6343 = vxor.u32 %v6290, 2147483648
        %v6344 = vxor.u32 %v6291, 2147483648
        %v6345 = vxor.u32 %v6292, 2147483648
        %v6346 = vxor.u32 %v6294, 2147483648
        %v6347 = vxor.u32 %v6295, 2147483648
        %v6348 = vxor.u32 %v6296, 2147483648
        %v6349 = vxor.u32 %v6298, 2147483648
        %v6350 = vxor.u32 %v6299, 2147483648
        %v6351 = vxor.u32 %v6300, 2147483648
        %v6352 = vxor.u32 %v6302, 2147483648
        %v6353 = vxor.u32 %v6303, 2147483648
        %v6354 = vxor.u32 %v6304, 2147483648
        %v6355 = vxor.u32 %v6306, 2147483648
        %v6356 = vxor.u32 %v6307, 2147483648
        %v6357 = vxor.u32 %v6308, 2147483648
        %v6358 = vmul.f32 %v6310, 1.442695
        %v6359 = vpow.pop %v6358
        %v6360 = vmul.f32 %v6311, 1.442695
        %v6361 = vpow.pop %v6360
        %v6362 = vmul.f32 %v6312, 1.442695
        %v6363 = vpow.pop %v6362
        %v6364 = vmul.f32 %v6313, 1.442695
        %v6365 = vpow.pop %v6364
        %v6366 = vmul.f32 %v6314, 1.442695
        %v6367 = vpow.pop %v6366
        %v6368 = vmul.f32 %v6315, 1.442695
        %v6369 = vpow.pop %v6368
        %v6370 = vmul.f32 %v6316, 1.442695
        %v6371 = vpow.pop %v6370
        %v6372 = vmul.f32 %v6317, 1.442695
        %v6373 = vpow.pop %v6372
        %v6374 = vmul.f32 %v6318, 1.442695
        %v6375 = vpow.pop %v6374
        %v6376 = vmul.f32 %v6319, 1.442695
        %v6377 = vpow.pop %v6376
        %v6378 = vmul.f32 %v6320, 1.442695
        %v6379 = vpow.pop %v6378
        %v6380 = vmul.f32 %v6321, 1.442695
        %v6381 = vpow.pop %v6380
        %v6382 = vmul.f32 %v6322, 1.442695
        %v6383 = vpow.pop %v6382
        %v6384 = vmul.f32 %v6323, 1.442695
        %v6385 = vpow.pop %v6384
        %v6386 = vmul.f32 %v6324, 1.442695
        %v6387 = vpow.pop %v6386
        %v6388 = vmul.f32 %v6325, 1.442695
        %v6389 = vpow.pop %v6388
        %v6390 = vmul.f32 %v6326, 1.442695
        %v6391 = vpow.pop %v6390
        %v6392 = vmul.f32 %v6327, 1.442695
        %v6393 = vpow.pop %v6392
        %v6394 = vmul.f32 %v6328, 1.442695
        %v6395 = vpow.pop %v6394
        %v6396 = vmul.f32 %v6329, 1.442695
        %v6397 = vpow.pop %v6396
        %v6398 = vmul.f32 %v6330, 1.442695
        %v6399 = vpow.pop %v6398
        %v6400 = vmul.f32 %v6331, 1.442695
        %v6401 = vpow.pop %v6400
        %v6402 = vmul.f32 %v6332, 1.442695
        %v6403 = vpow.pop %v6402
        %v6404 = vmul.f32 %v6333, 1.442695
        %v6405 = vpow.pop %v6404
        %v6406 = vmul.f32 %v6334, 1.442695
        %v6407 = vpow.pop %v6406
        %v6408 = vmul.f32 %v6335, 1.442695
        %v6409 = vpow.pop %v6408
        %v6410 = vmul.f32 %v6336, 1.442695
        %v6411 = vpow.pop %v6410
        %v6412 = vmul.f32 %v6337, 1.442695
        %v6413 = vpow.pop %v6412
        %v6414 = vmul.f32 %v6338, 1.442695
        %v6415 = vpow.pop %v6414
        %v6416 = vmul.f32 %v6339, 1.442695
        %v6417 = vpow.pop %v6416
        %v6418 = vmul.f32 %v6340, 1.442695
        %v6419 = vpow.pop %v6418
        %v6420 = vmul.f32 %v6341, 1.442695
        %v6421 = vpow.pop %v6420
        %v6422 = vmul.f32 %v6342, 1.442695
        %v6423 = vpow.pop %v6422
        %v6424 = vmul.f32 %v6343, 1.442695
        %v6425 = vpow.pop %v6424
        %v6426 = vmul.f32 %v6344, 1.442695
        %v6427 = vpow.pop %v6426
        %v6428 = vmul.f32 %v6345, 1.442695
        %v6429 = vpow.pop %v6428
        %v6430 = vmul.f32 %v6346, 1.442695
        %v6431 = vpow.pop %v6430
        %v6432 = vmul.f32 %v6347, 1.442695
        %v6433 = vpow.pop %v6432
        %v6434 = vmul.f32 %v6348, 1.442695
        %v6435 = vpow.pop %v6434
        %v6436 = vmul.f32 %v6349, 1.442695
        %v6437 = vpow.pop %v6436
        %v6438 = vmul.f32 %v6350, 1.442695
        %v6439 = vpow.pop %v6438
        %v6440 = vmul.f32 %v6351, 1.442695
        %v6441 = vpow.pop %v6440
        %v6442 = vmul.f32 %v6352, 1.442695
        %v6443 = vpow.pop %v6442
        %v6444 = vmul.f32 %v6353, 1.442695
        %v6445 = vpow.pop %v6444
        %v6446 = vmul.f32 %v6354, 1.442695
        %v6447 = vpow.pop %v6446
        %v6448 = vmul.f32 %v6355, 1.442695
        %v6449 = vpow.pop %v6448
        %v6450 = vmul.f32 %v6356, 1.442695
        %v6451 = vpow.pop %v6450
        %v6452 = vmul.f32 %v6357, 1.442695
        %v6453 = vpow.pop %v6452
        %v6454 = vadd.f32 %v6359, 1.0
        %v6455 = vadd.f32 %v6361, 1.0
        %v6456 = vadd.f32 %v6363, 1.0
        %v6457 = vadd.f32 %v6365, 1.0
        %v6458 = vadd.f32 %v6367, 1.0
        %v6459 = vadd.f32 %v6369, 1.0
        %v6460 = vadd.f32 %v6371, 1.0
        %v6461 = vadd.f32 %v6373, 1.0
        %v6462 = vadd.f32 %v6375, 1.0
        %v6463 = vadd.f32 %v6377, 1.0
        %v6464 = vadd.f32 %v6379, 1.0
        %v6465 = vadd.f32 %v6381, 1.0
        %v6466 = vadd.f32 %v6383, 1.0
        %v6467 = vadd.f32 %v6385, 1.0
        %v6468 = vadd.f32 %v6387, 1.0
        %v6469 = vadd.f32 %v6389, 1.0
        %v6470 = vadd.f32 %v6391, 1.0
        %v6471 = vadd.f32 %v6393, 1.0
        %v6472 = vadd.f32 %v6395, 1.0
        %v6473 = vadd.f32 %v6397, 1.0
        %v6474 = vadd.f32 %v6399, 1.0
        %v6475 = vadd.f32 %v6401, 1.0
        %v6476 = vadd.f32 %v6403, 1.0
        %v6477 = vadd.f32 %v6405, 1.0
        %v6478 = vadd.f32 %v6407, 1.0
        %v6479 = vadd.f32 %v6409, 1.0
        %v6480 = vadd.f32 %v6411, 1.0
        %v6481 = vadd.f32 %v6413, 1.0
        %v6482 = vadd.f32 %v6415, 1.0
        %v6483 = vadd.f32 %v6417, 1.0
        %v6484 = vadd.f32 %v6419, 1.0
        %v6485 = vadd.f32 %v6421, 1.0
        %v6486 = vadd.f32 %v6423, 1.0
        %v6487 = vadd.f32 %v6425, 1.0
        %v6488 = vadd.f32 %v6427, 1.0
        %v6489 = vadd.f32 %v6429, 1.0
        %v6490 = vadd.f32 %v6431, 1.0
        %v6491 = vadd.f32 %v6433, 1.0
        %v6492 = vadd.f32 %v6435, 1.0
        %v6493 = vadd.f32 %v6437, 1.0
        %v6494 = vadd.f32 %v6439, 1.0
        %v6495 = vadd.f32 %v6441, 1.0
        %v6496 = vadd.f32 %v6443, 1.0
        %v6497 = vadd.f32 %v6445, 1.0
        %v6498 = vadd.f32 %v6447, 1.0
        %v6499 = vadd.f32 %v6449, 1.0
        %v6500 = vadd.f32 %v6451, 1.0
        %v6501 = vadd.f32 %v6453, 1.0
        %v6502 = vrcp.pop %v6454
        %v6503 = vmul.f32 1.0, %v6502
        %v6504 = vrcp.pop %v6455
        %v6505 = vmul.f32 1.0, %v6504
        %v6506 = vrcp.pop %v6456
        %v6507 = vmul.f32 1.0, %v6506
        %v6508 = vrcp.pop %v6457
        %v6509 = vmul.f32 1.0, %v6508
        %v6510 = vrcp.pop %v6458
        %v6511 = vmul.f32 1.0, %v6510
        %v6512 = vrcp.pop %v6459
        %v6513 = vmul.f32 1.0, %v6512
        %v6514 = vrcp.pop %v6460
        %v6515 = vmul.f32 1.0, %v6514
        %v6516 = vrcp.pop %v6461
        %v6517 = vmul.f32 1.0, %v6516
        %v6518 = vrcp.pop %v6462
        %v6519 = vmul.f32 1.0, %v6518
        %v6520 = vrcp.pop %v6463
        %v6521 = vmul.f32 1.0, %v6520
        %v6522 = vrcp.pop %v6464
        %v6523 = vmul.f32 1.0, %v6522
        %v6524 = vrcp.pop %v6465
        %v6525 = vmul.f32 1.0, %v6524
        %v6526 = vrcp.pop %v6466
        %v6527 = vmul.f32 1.0, %v6526
        %v6528 = vrcp.pop %v6467
        %v6529 = vmul.f32 1.0, %v6528
        %v6530 = vrcp.pop %v6468
        %v6531 = vmul.f32 1.0, %v6530
        %v6532 = vrcp.pop %v6469
        %v6533 = vmul.f32 1.0, %v6532
        %v6534 = vrcp.pop %v6470
        %v6535 = vmul.f32 1.0, %v6534
        %v6536 = vrcp.pop %v6471
        %v6537 = vmul.f32 1.0, %v6536
        %v6538 = vrcp.pop %v6472
        %v6539 = vmul.f32 1.0, %v6538
        %v6540 = vrcp.pop %v6473
        %v6541 = vmul.f32 1.0, %v6540
        %v6542 = vrcp.pop %v6474
        %v6543 = vmul.f32 1.0, %v6542
        %v6544 = vrcp.pop %v6475
        %v6545 = vmul.f32 1.0, %v6544
        %v6546 = vrcp.pop %v6476
        %v6547 = vmul.f32 1.0, %v6546
        %v6548 = vrcp.pop %v6477
        %v6549 = vmul.f32 1.0, %v6548
        %v6550 = vrcp.pop %v6478
        %v6551 = vmul.f32 1.0, %v6550
        %v6552 = vrcp.pop %v6479
        %v6553 = vmul.f32 1.0, %v6552
        %v6554 = vrcp.pop %v6480
        %v6555 = vmul.f32 1.0, %v6554
        %v6556 = vrcp.pop %v6481
        %v6557 = vmul.f32 1.0, %v6556
        %v6558 = vrcp.pop %v6482
        %v6559 = vmul.f32 1.0, %v6558
        %v6560 = vrcp.pop %v6483
        %v6561 = vmul.f32 1.0, %v6560
        %v6562 = vrcp.pop %v6484
        %v6563 = vmul.f32 1.0, %v6562
        %v6564 = vrcp.pop %v6485
        %v6565 = vmul.f32 1.0, %v6564
        %v6566 = vrcp.pop %v6486
        %v6567 = vmul.f32 1.0, %v6566
        %v6568 = vrcp.pop %v6487
        %v6569 = vmul.f32 1.0, %v6568
        %v6570 = vrcp.pop %v6488
        %v6571 = vmul.f32 1.0, %v6570
        %v6572 = vrcp.pop %v6489
        %v6573 = vmul.f32 1.0, %v6572
        %v6574 = vrcp.pop %v6490
        %v6575 = vmul.f32 1.0, %v6574
        %v6576 = vrcp.pop %v6491
        %v6577 = vmul.f32 1.0, %v6576
        %v6578 = vrcp.pop %v6492
        %v6579 = vmul.f32 1.0, %v6578
        %v6580 = vrcp.pop %v6493
        %v6581 = vmul.f32 1.0, %v6580
        %v6582 = vrcp.pop %v6494
        %v6583 = vmul.f32 1.0, %v6582
        %v6584 = vrcp.pop %v6495
        %v6585 = vmul.f32 1.0, %v6584
        %v6586 = vrcp.pop %v6496
        %v6587 = vmul.f32 1.0, %v6586
        %v6588 = vrcp.pop %v6497
        %v6589 = vmul.f32 1.0, %v6588
        %v6590 = vrcp.pop %v6498
        %v6591 = vmul.f32 1.0, %v6590
        %v6592 = vrcp.pop %v6499
        %v6593 = vmul.f32 1.0, %v6592
        %v6594 = vrcp.pop %v6500
        %v6595 = vmul.f32 1.0, %v6594
        %v6596 = vrcp.pop %v6501
        %v6597 = vmul.f32 1.0, %v6596
        %v6598 = vtanh.pop %v6249
        %v6599 = vtanh.pop %v6253
        %v6600 = vtanh.pop %v6257
        %v6601 = vtanh.pop %v6261
        %v6602 = vtanh.pop %v6265
        %v6603 = vtanh.pop %v6269
        %v6604 = vtanh.pop %v6273
        %v6605 = vtanh.pop %v6277
        %v6606 = vtanh.pop %v6281
        %v6607 = vtanh.pop %v6285
        %v6608 = vtanh.pop %v6289
        %v6609 = vtanh.pop %v6293
        %v6610 = vtanh.pop %v6297
        %v6611 = vtanh.pop %v6301
        %v6612 = vtanh.pop %v6305
        %v6613 = vtanh.pop %v6309
        %v6614 = vmul.f32 %v6505, %v5748
        %v6615 = vmul.f32 %v6511, %v5749
        %v6616 = vmul.f32 %v6517, %v5750
        %v6617 = vmul.f32 %v6523, %v5751
        %v6618 = vmul.f32 %v6529, %v5752
        %v6619 = vmul.f32 %v6535, %v5753
        %v6620 = vmul.f32 %v6541, %v5754
        %v6621 = vmul.f32 %v6547, %v5755
        %v6622 = vmul.f32 %v6553, %v5756
        %v6623 = vmul.f32 %v6559, %v5757
        %v6624 = vmul.f32 %v6565, %v5758
        %v6625 = vmul.f32 %v6571, %v5759
        %v6626 = vmul.f32 %v6577, %v5760
        %v6627 = vmul.f32 %v6583, %v5761
        %v6628 = vmul.f32 %v6589, %v5762
        %v6629 = vmul.f32 %v6595, %v5763
        %v6630 = vmul.f32 %v6503, %v6598
        %v6631 = vmul.f32 %v6509, %v6599
        %v6632 = vmul.f32 %v6515, %v6600
        %v6633 = vmul.f32 %v6521, %v6601
        %v6634 = vmul.f32 %v6527, %v6602
        %v6635 = vmul.f32 %v6533, %v6603
        %v6636 = vmul.f32 %v6539, %v6604
        %v6637 = vmul.f32 %v6545, %v6605
        %v6638 = vmul.f32 %v6551, %v6606
        %v6639 = vmul.f32 %v6557, %v6607
        %v6640 = vmul.f32 %v6563, %v6608
        %v6641 = vmul.f32 %v6569, %v6609
        %v6642 = vmul.f32 %v6575, %v6610
        %v6643 = vmul.f32 %v6581, %v6611
        %v6644 = vmul.f32 %v6587, %v6612
        %v6645 = vmul.f32 %v6593, %v6613
        %v6646 = vadd.f32 %v6614, %v6630
        %v6647 = vadd.f32 %v6615, %v6631
        %v6648 = vadd.f32 %v6616, %v6632
        %v6649 = vadd.f32 %v6617, %v6633
        %v6650 = vadd.f32 %v6618, %v6634
        %v6651 = vadd.f32 %v6619, %v6635
        %v6652 = vadd.f32 %v6620, %v6636
        %v6653 = vadd.f32 %v6621, %v6637
        %v6654 = vadd.f32 %v6622, %v6638
        %v6655 = vadd.f32 %v6623, %v6639
        %v6656 = vadd.f32 %v6624, %v6640
        %v6657 = vadd.f32 %v6625, %v6641
        %v6658 = vadd.f32 %v6626, %v6642
        %v6659 = vadd.f32 %v6627, %v6643
        %v6660 = vadd.f32 %v6628, %v6644
        %v6661 = vadd.f32 %v6629, %v6645
        %v6662 = vtanh.pop %v6646
        %v6663 = vtanh.pop %v6647
        %v6664 = vtanh.pop %v6648
        %v6665 = vtanh.pop %v6649
        %v6666 = vtanh.pop %v6650
        %v6667 = vtanh.pop %v6651
        %v6668 = vtanh.pop %v6652
        %v6669 = vtanh.pop %v6653
        %v6670 = vtanh.pop %v6654
        %v6671 = vtanh.pop %v6655
        %v6672 = vtanh.pop %v6656
        %v6673 = vtanh.pop %v6657
        %v6674 = vtanh.pop %v6658
        %v6675 = vtanh.pop %v6659
        %v6676 = vtanh.pop %v6660
        %v6677 = vtanh.pop %v6661
        %v6678 = vmul.f32 %v6507, %v6662
        %v6679 = vmul.f32 %v6513, %v6663
        %v6680 = vmul.f32 %v6519, %v6664
        %v6681 = vmul.f32 %v6525, %v6665
        %v6682 = vmul.f32 %v6531, %v6666
        %v6683 = vmul.f32 %v6537, %v6667
        %v6684 = vmul.f32 %v6543, %v6668
        %v6685 = vmul.f32 %v6549, %v6669
        %v6686 = vmul.f32 %v6555, %v6670
        %v6687 = vmul.f32 %v6561, %v6671
        %v6688 = vmul.f32 %v6567, %v6672
        %v6689 = vmul.f32 %v6573, %v6673
        %v6690 = vmul.f32 %v6579, %v6674
        %v6691 = vmul.f32 %v6585, %v6675
        %v6692 = vmul.f32 %v6591, %v6676
        %v6693 = vmul.f32 %v6597, %v6677
        %6694 = vset.pattern.permute.xlu0 7
        %6695 = vperm.xlu0 %6694, %v270
        %v6696 = vpop.permute.xlu0 %6695
        %6698 = vset.pattern.permute.xlu0 7
        %6699 = vperm.xlu0 %6698, %v271
        %v6700 = vpop.permute.xlu0 %6699
        %6702 = vset.pattern.permute.xlu0 7
        %6703 = vperm.xlu0 %6702, %v272
        %v6704 = vpop.permute.xlu0 %6703
        %6706 = vset.pattern.permute.xlu0 7
        %6707 = vperm.xlu0 %6706, %v273
        %v6708 = vpop.permute.xlu0 %6707
        %6710 = vset.pattern.permute.xlu0 7
        %6711 = vperm.xlu0 %6710, %v274
        %v6712 = vpop.permute.xlu0 %6711
        %6714 = vset.pattern.permute.xlu0 7
        %6715 = vperm.xlu0 %6714, %v275
        %v6716 = vpop.permute.xlu0 %6715
        %6718 = vset.pattern.permute.xlu0 7
        %6719 = vperm.xlu0 %6718, %v276
        %v6720 = vpop.permute.xlu0 %6719
        %6722 = vset.pattern.permute.xlu0 7
        %6723 = vperm.xlu0 %6722, %v277
        %v6724 = vpop.permute.xlu0 %6723
        %6726 = vset.pattern.permute.xlu0 7
        %6727 = vperm.xlu0 %6726, %v278
        %v6728 = vpop.permute.xlu0 %6727
        %6730 = vset.pattern.permute.xlu0 7
        %6731 = vperm.xlu0 %6730, %v279
        %v6732 = vpop.permute.xlu0 %6731
        %6734 = vset.pattern.permute.xlu0 7
        %6735 = vperm.xlu0 %6734, %v280
        %v6736 = vpop.permute.xlu0 %6735
        %6738 = vset.pattern.permute.xlu0 7
        %6739 = vperm.xlu0 %6738, %v281
        %v6740 = vpop.permute.xlu0 %6739
        %6742 = vset.pattern.permute.xlu0 7
        %6743 = vperm.xlu0 %6742, %v282
        %v6744 = vpop.permute.xlu0 %6743
        %6746 = vset.pattern.permute.xlu0 7
        %6747 = vperm.xlu0 %6746, %v283
        %v6748 = vpop.permute.xlu0 %6747
        %6750 = vset.pattern.permute.xlu0 7
        %6751 = vperm.xlu0 %6750, %v284
        %v6752 = vpop.permute.xlu0 %6751
        %6754 = vset.pattern.permute.xlu0 7
        %6755 = vperm.xlu0 %6754, %v285
        %v6756 = vpop.permute.xlu0 %6755
        %v6758 = vmul.f32 %v6696, %v434
        %v6759 = vmul.f32 %v6696, %v438
        %v6760 = vmul.f32 %v6696, %v442
        %v6761 = vmul.f32 %v6696, %v446
        %v6762 = vmul.f32 %v6700, %v434
        %v6763 = vmul.f32 %v6700, %v438
        %v6764 = vmul.f32 %v6700, %v442
        %v6765 = vmul.f32 %v6700, %v446
        %v6766 = vmul.f32 %v6704, %v434
        %v6767 = vmul.f32 %v6704, %v438
        %v6768 = vmul.f32 %v6704, %v442
        %v6769 = vmul.f32 %v6704, %v446
        %v6770 = vmul.f32 %v6708, %v434
        %v6771 = vmul.f32 %v6708, %v438
        %v6772 = vmul.f32 %v6708, %v442
        %v6773 = vmul.f32 %v6708, %v446
        %v6774 = vmul.f32 %v6712, %v434
        %v6775 = vmul.f32 %v6712, %v438
        %v6776 = vmul.f32 %v6712, %v442
        %v6777 = vmul.f32 %v6712, %v446
        %v6778 = vmul.f32 %v6716, %v434
        %v6779 = vmul.f32 %v6716, %v438
        %v6780 = vmul.f32 %v6716, %v442
        %v6781 = vmul.f32 %v6716, %v446
        %v6782 = vmul.f32 %v6720, %v434
        %v6783 = vmul.f32 %v6720, %v438
        %v6784 = vmul.f32 %v6720, %v442
        %v6785 = vmul.f32 %v6720, %v446
        %v6786 = vmul.f32 %v6724, %v434
        %v6787 = vmul.f32 %v6724, %v438
        %v6788 = vmul.f32 %v6724, %v442
        %v6789 = vmul.f32 %v6724, %v446
        %v6790 = vmul.f32 %v6728, %v434
        %v6791 = vmul.f32 %v6728, %v438
        %v6792 = vmul.f32 %v6728, %v442
        %v6793 = vmul.f32 %v6728, %v446
        %v6794 = vmul.f32 %v6732, %v434
        %v6795 = vmul.f32 %v6732, %v438
        %v6796 = vmul.f32 %v6732, %v442
        %v6797 = vmul.f32 %v6732, %v446
        %v6798 = vmul.f32 %v6736, %v434
        %v6799 = vmul.f32 %v6736, %v438
        %v6800 = vmul.f32 %v6736, %v442
        %v6801 = vmul.f32 %v6736, %v446
        %v6802 = vmul.f32 %v6740, %v434
        %v6803 = vmul.f32 %v6740, %v438
        %v6804 = vmul.f32 %v6740, %v442
        %v6805 = vmul.f32 %v6740, %v446
        %v6806 = vmul.f32 %v6744, %v434
        %v6807 = vmul.f32 %v6744, %v438
        %v6808 = vmul.f32 %v6744, %v442
        %v6809 = vmul.f32 %v6744, %v446
        %v6810 = vmul.f32 %v6748, %v434
        %v6811 = vmul.f32 %v6748, %v438
        %v6812 = vmul.f32 %v6748, %v442
        %v6813 = vmul.f32 %v6748, %v446
        %v6814 = vmul.f32 %v6752, %v434
        %v6815 = vmul.f32 %v6752, %v438
        %v6816 = vmul.f32 %v6752, %v442
        %v6817 = vmul.f32 %v6752, %v446
        %v6818 = vmul.f32 %v6756, %v434
        %v6819 = vmul.f32 %v6756, %v438
        %v6820 = vmul.f32 %v6756, %v442
        %v6821 = vmul.f32 %v6756, %v446
        %6822 = vmatprep.subr.mxu0 %v287
        %6823 = vmatpush1.msra.mxu0 %v286
        %6824 = vmatprep.subr.mxu0 %v291
        %6825 = vmatpush1.msra.mxu0 %v290
        %6826 = vmatprep.subr.mxu0 %v295
        %6827 = vmatpush1.msra.mxu0 %v294
        %6828 = vmatprep.subr.mxu0 %v299
        %6829 = vmatpush1.msra.mxu0 %v298
        %6830 = vmatprep.subr.mxu0 %v303
        %6831 = vmatpush1.msra.mxu0 %v302
        %6832 = vmatprep.subr.mxu0 %v307
        %6833 = vmatpush1.msra.mxu0 %v306
        %6834 = vmatprep.subr.mxu0 %v311
        %6835 = vmatpush1.msra.mxu0 %v310
        %6836 = vmatprep.subr.mxu0 %v315
        %6837 = vmatpush1.msra.mxu0 %v314
        %6838 = vmatprep.subr.mxu0 %v319
        %6839 = vmatpush1.msra.mxu0 %v318
        %6840 = vmatprep.subr.mxu0 %v323
        %6841 = vmatpush1.msra.mxu0 %v322
        %6842 = vmatprep.subr.mxu0 %v327
        %6843 = vmatpush1.msra.mxu0 %v326
        %6844 = vmatprep.subr.mxu0 %v331
        %6845 = vmatpush1.msra.mxu0 %v330
        %6846 = vmatprep.subr.mxu0 %v335
        %6847 = vmatpush1.msra.mxu0 %v334
        %6848 = vmatprep.subr.mxu0 %v339
        %6849 = vmatpush1.msra.mxu0 %v338
        %6850 = vmatprep.subr.mxu0 %v343
        %6851 = vmatpush1.msra.mxu0 %v342
        %6852 = vmatprep.subr.mxu0 %v347
        %6853 = vmatpush1.msra.mxu0 %v346
        %6854 = vmatprep.subr.mxu0 0.0
        %6855 = vmatpush1.msra.mxu0 0.0
        %6856 = vmatprep.subr.mxu0 0.0
        %6857 = vmatpush1.msra.mxu0 0.0
        %6858 = vmatprep.subr.mxu0 0.0
        %6859 = vmatpush1.msra.mxu0 0.0
        %6860 = vmatprep.subr.mxu0 0.0
        %6861 = vmatpush1.msra.mxu0 0.0
        %6862 = vmatprep.subr.mxu0 0.0
        %6863 = vmatpush1.msra.mxu0 0.0
        %6864 = vmatprep.subr.mxu0 0.0
        %6865 = vmatpush1.msra.mxu0 0.0
        %6866 = vmatprep.subr.mxu0 0.0
        %6867 = vmatpush1.msra.mxu0 0.0
        %6868 = vmatprep.subr.mxu0 0.0
        %6869 = vmatpush1.msra.mxu0 0.0
        %6870 = vmatprep.subr.mxu0 0.0
        %6871 = vmatpush1.msra.mxu0 0.0
        %6872 = vmatprep.subr.mxu0 0.0
        %6873 = vmatpush1.msra.mxu0 0.0
        %6874 = vmatprep.subr.mxu0 0.0
        %6875 = vmatpush1.msra.mxu0 0.0
        %6876 = vmatprep.subr.mxu0 0.0
        %6877 = vmatpush1.msra.mxu0 0.0
        %6878 = vmatprep.subr.mxu0 0.0
        %6879 = vmatpush1.msra.mxu0 0.0
        %6880 = vmatprep.subr.mxu0 0.0
        %6881 = vmatpush1.msra.mxu0 0.0
        %6882 = vmatprep.subr.mxu0 0.0
        %6883 = vmatpush1.msra.mxu0 0.0
        %6884 = vmatprep.subr.mxu0 0.0
        %6885 = vmatpush1.msra.mxu0 0.0
        %6886 = vmatprep.mubr.f32.mxu0 0.0
        %6887 = vmatmul.mubr.f32.gmra.mrb[0].mxu0 %v6678
        %v6888 = vpop.f32.mrb[0].mxu0
        %v6889 = vadd.f32 %v6758, %v6888
        %v6890 = vpop.f32.mrb[0].mxu0
        %v6891 = vadd.f32 %v6759, %v6890
        %6892 = vmatprep.mubr.f32.mxu0 0.0
        %6893 = vmatmul.mubr.f32.gmra.mrb[0].mxu0 %v6679
        %v6894 = vpop.f32.mrb[0].mxu0
        %v6895 = vadd.f32 %v6762, %v6894
        %v6896 = vpop.f32.mrb[0].mxu0
        %v6897 = vadd.f32 %v6763, %v6896
        %6898 = vmatprep.mubr.f32.mxu0 0.0
        %6899 = vmatmul.mubr.f32.gmra.mrb[0].mxu0 %v6680
        %v6900 = vpop.f32.mrb[0].mxu0
        %v6901 = vadd.f32 %v6766, %v6900
        %v6902 = vpop.f32.mrb[0].mxu0
        %v6903 = vadd.f32 %v6767, %v6902
        %6904 = vmatprep.mubr.f32.mxu0 0.0
        %6905 = vmatmul.mubr.f32.gmra.mrb[0].mxu0 %v6681
        %v6906 = vpop.f32.mrb[0].mxu0
        %v6907 = vadd.f32 %v6770, %v6906
        %v6908 = vpop.f32.mrb[0].mxu0
        %v6909 = vadd.f32 %v6771, %v6908
        %6910 = vmatprep.mubr.f32.mxu0 0.0
        %6911 = vmatmul.mubr.f32.gmra.mrb[0].mxu0 %v6682
        %v6912 = vpop.f32.mrb[0].mxu0
        %v6913 = vadd.f32 %v6774, %v6912
        %v6914 = vpop.f32.mrb[0].mxu0
        %v6915 = vadd.f32 %v6775, %v6914
        %6916 = vmatprep.mubr.f32.mxu0 0.0
        %6917 = vmatmul.mubr.f32.gmra.mrb[0].mxu0 %v6683
        %v6918 = vpop.f32.mrb[0].mxu0
        %v6919 = vadd.f32 %v6778, %v6918
        %v6920 = vpop.f32.mrb[0].mxu0
        %v6921 = vadd.f32 %v6779, %v6920
        %6922 = vmatprep.mubr.f32.mxu0 0.0
        %6923 = vmatmul.mubr.f32.gmra.mrb[0].mxu0 %v6684
        %v6924 = vpop.f32.mrb[0].mxu0
        %v6925 = vadd.f32 %v6782, %v6924
        %v6926 = vpop.f32.mrb[0].mxu0
        %v6927 = vadd.f32 %v6783, %v6926
        %6928 = vmatprep.mubr.f32.mxu0 0.0
        %6929 = vmatmul.mubr.f32.gmra.mrb[0].mxu0 %v6685
        %v6930 = vpop.f32.mrb[0].mxu0
        %v6931 = vadd.f32 %v6786, %v6930
        %v6932 = vpop.f32.mrb[0].mxu0
        %v6933 = vadd.f32 %v6787, %v6932
        %6934 = vmatprep.mubr.f32.mxu0 0.0
        %6935 = vmatmul.mubr.f32.gmra.mrb[0].mxu0 %v6686
        %v6936 = vpop.f32.mrb[0].mxu0
        %v6937 = vadd.f32 %v6790, %v6936
        %v6938 = vpop.f32.mrb[0].mxu0
        %v6939 = vadd.f32 %v6791, %v6938
        %6940 = vmatprep.mubr.f32.mxu0 0.0
        %6941 = vmatmul.mubr.f32.gmra.mrb[0].mxu0 %v6687
        %v6942 = vpop.f32.mrb[0].mxu0
        %v6943 = vadd.f32 %v6794, %v6942
        %v6944 = vpop.f32.mrb[0].mxu0
        %v6945 = vadd.f32 %v6795, %v6944
        %6946 = vmatprep.mubr.f32.mxu0 0.0
        %6947 = vmatmul.mubr.f32.gmra.mrb[0].mxu0 %v6688
        %v6948 = vpop.f32.mrb[0].mxu0
        %v6949 = vadd.f32 %v6798, %v6948
        %v6950 = vpop.f32.mrb[0].mxu0
        %v6951 = vadd.f32 %v6799, %v6950
        %6952 = vmatprep.mubr.f32.mxu0 0.0
        %6953 = vmatmul.mubr.f32.gmra.mrb[0].mxu0 %v6689
        %v6954 = vpop.f32.mrb[0].mxu0
        %v6955 = vadd.f32 %v6802, %v6954
        %v6956 = vpop.f32.mrb[0].mxu0
        %v6957 = vadd.f32 %v6803, %v6956
        %6958 = vmatprep.mubr.f32.mxu0 0.0
        %6959 = vmatmul.mubr.f32.gmra.mrb[0].mxu0 %v6690
        %v6960 = vpop.f32.mrb[0].mxu0
        %v6961 = vadd.f32 %v6806, %v6960
        %v6962 = vpop.f32.mrb[0].mxu0
        %v6963 = vadd.f32 %v6807, %v6962
        %6964 = vmatprep.mubr.f32.mxu0 0.0
        %6965 = vmatmul.mubr.f32.gmra.mrb[0].mxu0 %v6691
        %v6966 = vpop.f32.mrb[0].mxu0
        %v6967 = vadd.f32 %v6810, %v6966
        %v6968 = vpop.f32.mrb[0].mxu0
        %v6969 = vadd.f32 %v6811, %v6968
        %6970 = vmatprep.mubr.f32.mxu0 0.0
        %6971 = vmatmul.mubr.f32.gmra.mrb[0].mxu0 %v6692
        %v6972 = vpop.f32.mrb[0].mxu0
        %v6973 = vadd.f32 %v6814, %v6972
        %v6974 = vpop.f32.mrb[0].mxu0
        %v6975 = vadd.f32 %v6815, %v6974
        %6976 = vmatprep.mubr.f32.mxu0 0.0
        %6977 = vmatmul.mubr.f32.gmra.mrb[0].mxu0 %v6693
        %v6978 = vpop.f32.mrb[0].mxu0
        %v6979 = vadd.f32 %v6818, %v6978
        %v6980 = vpop.f32.mrb[0].mxu0
        %v6981 = vadd.f32 %v6819, %v6980
        %6982 = vdwg.mxu0
        %6983 = vmatprep.subr.mxu0 %v289
        %6984 = vmatpush1.msra.mxu0 %v288
        %6985 = vmatprep.subr.mxu0 %v293
        %6986 = vmatpush1.msra.mxu0 %v292
        %6987 = vmatprep.subr.mxu0 %v297
        %6988 = vmatpush1.msra.mxu0 %v296
        %6989 = vmatprep.subr.mxu0 %v301
        %6990 = vmatpush1.msra.mxu0 %v300
        %6991 = vmatprep.subr.mxu0 %v305
        %6992 = vmatpush1.msra.mxu0 %v304
        %6993 = vmatprep.subr.mxu0 %v309
        %6994 = vmatpush1.msra.mxu0 %v308
        %6995 = vmatprep.subr.mxu0 %v313
        %6996 = vmatpush1.msra.mxu0 %v312
        %6997 = vmatprep.subr.mxu0 %v317
        %6998 = vmatpush1.msra.mxu0 %v316
        %6999 = vmatprep.subr.mxu0 %v321
        %7000 = vmatpush1.msra.mxu0 %v320
        %7001 = vmatprep.subr.mxu0 %v325
        %7002 = vmatpush1.msra.mxu0 %v324
        %7003 = vmatprep.subr.mxu0 %v329
        %7004 = vmatpush1.msra.mxu0 %v328
        %7005 = vmatprep.subr.mxu0 %v333
        %7006 = vmatpush1.msra.mxu0 %v332
        %7007 = vmatprep.subr.mxu0 %v337
        %7008 = vmatpush1.msra.mxu0 %v336
        %7009 = vmatprep.subr.mxu0 %v341
        %7010 = vmatpush1.msra.mxu0 %v340
        %7011 = vmatprep.subr.mxu0 %v345
        %7012 = vmatpush1.msra.mxu0 %v344
        %7013 = vmatprep.subr.mxu0 %v349
        %7014 = vmatpush1.msra.mxu0 %v348
        %7015 = vmatprep.subr.mxu0 0.0
        %7016 = vmatpush1.msra.mxu0 0.0
        %7017 = vmatprep.subr.mxu0 0.0
        %7018 = vmatpush1.msra.mxu0 0.0
        %7019 = vmatprep.subr.mxu0 0.0
        %7020 = vmatpush1.msra.mxu0 0.0
        %7021 = vmatprep.subr.mxu0 0.0
        %7022 = vmatpush1.msra.mxu0 0.0
        %7023 = vmatprep.subr.mxu0 0.0
        %7024 = vmatpush1.msra.mxu0 0.0
        %7025 = vmatprep.subr.mxu0 0.0
        %7026 = vmatpush1.msra.mxu0 0.0
        %7027 = vmatprep.subr.mxu0 0.0
        %7028 = vmatpush1.msra.mxu0 0.0
        %7029 = vmatprep.subr.mxu0 0.0
        %7030 = vmatpush1.msra.mxu0 0.0
        %7031 = vmatprep.subr.mxu0 0.0
        %7032 = vmatpush1.msra.mxu0 0.0
        %7033 = vmatprep.subr.mxu0 0.0
        %7034 = vmatpush1.msra.mxu0 0.0
        %7035 = vmatprep.subr.mxu0 0.0
        %7036 = vmatpush1.msra.mxu0 0.0
        %7037 = vmatprep.subr.mxu0 0.0
        %7038 = vmatpush1.msra.mxu0 0.0
        %7039 = vmatprep.subr.mxu0 0.0
        %7040 = vmatpush1.msra.mxu0 0.0
        %7041 = vmatprep.subr.mxu0 0.0
        %7042 = vmatpush1.msra.mxu0 0.0
        %7043 = vmatprep.subr.mxu0 0.0
        %7044 = vmatpush1.msra.mxu0 0.0
        %7045 = vmatprep.subr.mxu0 0.0
        %7046 = vmatpush1.msra.mxu0 0.0
        %7047 = vmatprep.mubr.f32.mxu0 0.0
        %7048 = vmatmul.mubr.f32.gmra.mrb[0].mxu0 %v6678
        %v7049 = vpop.f32.mrb[0].mxu0
        %v7050 = vadd.f32 %v6760, %v7049
        %v7051 = vpop.f32.mrb[0].mxu0
        %v7052 = vadd.f32 %v6761, %v7051
        %7053 = vmatprep.mubr.f32.mxu0 0.0
        %7054 = vmatmul.mubr.f32.gmra.mrb[0].mxu0 %v6679
        %v7055 = vpop.f32.mrb[0].mxu0
        %v7056 = vadd.f32 %v6764, %v7055
        %v7057 = vpop.f32.mrb[0].mxu0
        %v7058 = vadd.f32 %v6765, %v7057
        %7059 = vmatprep.mubr.f32.mxu0 0.0
        %7060 = vmatmul.mubr.f32.gmra.mrb[0].mxu0 %v6680
        %v7061 = vpop.f32.mrb[0].mxu0
        %v7062 = vadd.f32 %v6768, %v7061
        %v7063 = vpop.f32.mrb[0].mxu0
        %v7064 = vadd.f32 %v6769, %v7063
        %7065 = vmatprep.mubr.f32.mxu0 0.0
        %7066 = vmatmul.mubr.f32.gmra.mrb[0].mxu0 %v6681
        %v7067 = vpop.f32.mrb[0].mxu0
        %v7068 = vadd.f32 %v6772, %v7067
        %v7069 = vpop.f32.mrb[0].mxu0
        %v7070 = vadd.f32 %v6773, %v7069
        %7071 = vmatprep.mubr.f32.mxu0 0.0
        %7072 = vmatmul.mubr.f32.gmra.mrb[0].mxu0 %v6682
        %v7073 = vpop.f32.mrb[0].mxu0
        %v7074 = vadd.f32 %v6776, %v7073
        %v7075 = vpop.f32.mrb[0].mxu0
        %v7076 = vadd.f32 %v6777, %v7075
        %7077 = vmatprep.mubr.f32.mxu0 0.0
        %7078 = vmatmul.mubr.f32.gmra.mrb[0].mxu0 %v6683
        %v7079 = vpop.f32.mrb[0].mxu0
        %v7080 = vadd.f32 %v6780, %v7079
        %v7081 = vpop.f32.mrb[0].mxu0
        %v7082 = vadd.f32 %v6781, %v7081
        %7083 = vmatprep.mubr.f32.mxu0 0.0
        %7084 = vmatmul.mubr.f32.gmra.mrb[0].mxu0 %v6684
        %v7085 = vpop.f32.mrb[0].mxu0
        %v7086 = vadd.f32 %v6784, %v7085
        %v7087 = vpop.f32.mrb[0].mxu0
        %v7088 = vadd.f32 %v6785, %v7087
        %7089 = vmatprep.mubr.f32.mxu0 0.0
        %7090 = vmatmul.mubr.f32.gmra.mrb[0].mxu0 %v6685
        %v7091 = vpop.f32.mrb[0].mxu0
        %v7092 = vadd.f32 %v6788, %v7091
        %v7093 = vpop.f32.mrb[0].mxu0
        %v7094 = vadd.f32 %v6789, %v7093
        %7095 = vmatprep.mubr.f32.mxu0 0.0
        %7096 = vmatmul.mubr.f32.gmra.mrb[0].mxu0 %v6686
        %v7097 = vpop.f32.mrb[0].mxu0
        %v7098 = vadd.f32 %v6792, %v7097
        %v7099 = vpop.f32.mrb[0].mxu0
        %v7100 = vadd.f32 %v6793, %v7099
        %7101 = vmatprep.mubr.f32.mxu0 0.0
        %7102 = vmatmul.mubr.f32.gmra.mrb[0].mxu0 %v6687
        %v7103 = vpop.f32.mrb[0].mxu0
        %v7104 = vadd.f32 %v6796, %v7103
        %v7105 = vpop.f32.mrb[0].mxu0
        %v7106 = vadd.f32 %v6797, %v7105
        %7107 = vmatprep.mubr.f32.mxu0 0.0
        %7108 = vmatmul.mubr.f32.gmra.mrb[0].mxu0 %v6688
        %v7109 = vpop.f32.mrb[0].mxu0
        %v7110 = vadd.f32 %v6800, %v7109
        %v7111 = vpop.f32.mrb[0].mxu0
        %v7112 = vadd.f32 %v6801, %v7111
        %7113 = vmatprep.mubr.f32.mxu0 0.0
        %7114 = vmatmul.mubr.f32.gmra.mrb[0].mxu0 %v6689
        %v7115 = vpop.f32.mrb[0].mxu0
        %v7116 = vadd.f32 %v6804, %v7115
        %v7117 = vpop.f32.mrb[0].mxu0
        %v7118 = vadd.f32 %v6805, %v7117
        %7119 = vmatprep.mubr.f32.mxu0 0.0
        %7120 = vmatmul.mubr.f32.gmra.mrb[0].mxu0 %v6690
        %v7121 = vpop.f32.mrb[0].mxu0
        %v7122 = vadd.f32 %v6808, %v7121
        %v7123 = vpop.f32.mrb[0].mxu0
        %v7124 = vadd.f32 %v6809, %v7123
        %7125 = vmatprep.mubr.f32.mxu0 0.0
        %7126 = vmatmul.mubr.f32.gmra.mrb[0].mxu0 %v6691
        %v7127 = vpop.f32.mrb[0].mxu0
        %v7128 = vadd.f32 %v6812, %v7127
        %v7129 = vpop.f32.mrb[0].mxu0
        %v7130 = vadd.f32 %v6813, %v7129
        %7131 = vmatprep.mubr.f32.mxu0 0.0
        %7132 = vmatmul.mubr.f32.gmra.mrb[0].mxu0 %v6692
        %v7133 = vpop.f32.mrb[0].mxu0
        %v7134 = vadd.f32 %v6816, %v7133
        %v7135 = vpop.f32.mrb[0].mxu0
        %v7136 = vadd.f32 %v6817, %v7135
        %7137 = vmatprep.mubr.f32.mxu0 0.0
        %7138 = vmatmul.mubr.f32.gmra.mrb[0].mxu0 %v6693
        %v7139 = vpop.f32.mrb[0].mxu0
        %v7140 = vadd.f32 %v6820, %v7139
        %v7141 = vpop.f32.mrb[0].mxu0
        %v7142 = vadd.f32 %v6821, %v7141
        %7143 = vdwg.mxu0
        %v7144 = vadd.f32 %v6889, %v841
        %v7145 = vadd.f32 %v6891, %v845
        %v7146 = vadd.f32 %v7050, %v849
        %v7147 = vadd.f32 %v7052, %v853
        %v7148 = vadd.f32 %v6895, %v841
        %v7149 = vadd.f32 %v6897, %v845
        %v7150 = vadd.f32 %v7056, %v849
        %v7151 = vadd.f32 %v7058, %v853
        %v7152 = vadd.f32 %v6901, %v841
        %v7153 = vadd.f32 %v6903, %v845
        %v7154 = vadd.f32 %v7062, %v849
        %v7155 = vadd.f32 %v7064, %v853
        %v7156 = vadd.f32 %v6907, %v841
        %v7157 = vadd.f32 %v6909, %v845
        %v7158 = vadd.f32 %v7068, %v849
        %v7159 = vadd.f32 %v7070, %v853
        %v7160 = vadd.f32 %v6913, %v841
        %v7161 = vadd.f32 %v6915, %v845
        %v7162 = vadd.f32 %v7074, %v849
        %v7163 = vadd.f32 %v7076, %v853
        %v7164 = vadd.f32 %v6919, %v841
        %v7165 = vadd.f32 %v6921, %v845
        %v7166 = vadd.f32 %v7080, %v849
        %v7167 = vadd.f32 %v7082, %v853
        %v7168 = vadd.f32 %v6925, %v841
        %v7169 = vadd.f32 %v6927, %v845
        %v7170 = vadd.f32 %v7086, %v849
        %v7171 = vadd.f32 %v7088, %v853
        %v7172 = vadd.f32 %v6931, %v841
        %v7173 = vadd.f32 %v6933, %v845
        %v7174 = vadd.f32 %v7092, %v849
        %v7175 = vadd.f32 %v7094, %v853
        %v7176 = vadd.f32 %v6937, %v841
        %v7177 = vadd.f32 %v6939, %v845
        %v7178 = vadd.f32 %v7098, %v849
        %v7179 = vadd.f32 %v7100, %v853
        %v7180 = vadd.f32 %v6943, %v841
        %v7181 = vadd.f32 %v6945, %v845
        %v7182 = vadd.f32 %v7104, %v849
        %v7183 = vadd.f32 %v7106, %v853
        %v7184 = vadd.f32 %v6949, %v841
        %v7185 = vadd.f32 %v6951, %v845
        %v7186 = vadd.f32 %v7110, %v849
        %v7187 = vadd.f32 %v7112, %v853
        %v7188 = vadd.f32 %v6955, %v841
        %v7189 = vadd.f32 %v6957, %v845
        %v7190 = vadd.f32 %v7116, %v849
        %v7191 = vadd.f32 %v7118, %v853
        %v7192 = vadd.f32 %v6961, %v841
        %v7193 = vadd.f32 %v6963, %v845
        %v7194 = vadd.f32 %v7122, %v849
        %v7195 = vadd.f32 %v7124, %v853
        %v7196 = vadd.f32 %v6967, %v841
        %v7197 = vadd.f32 %v6969, %v845
        %v7198 = vadd.f32 %v7128, %v849
        %v7199 = vadd.f32 %v7130, %v853
        %v7200 = vadd.f32 %v6973, %v841
        %v7201 = vadd.f32 %v6975, %v845
        %v7202 = vadd.f32 %v7134, %v849
        %v7203 = vadd.f32 %v7136, %v853
        %v7204 = vadd.f32 %v6979, %v841
        %v7205 = vadd.f32 %v6981, %v845
        %v7206 = vadd.f32 %v7140, %v849
        %v7207 = vadd.f32 %v7142, %v853
        %v7208 = vxor.u32 %v7144, 2147483648
        %v7209 = vxor.u32 %v7145, 2147483648
        %v7210 = vxor.u32 %v7146, 2147483648
        %v7211 = vxor.u32 %v7148, 2147483648
        %v7212 = vxor.u32 %v7149, 2147483648
        %v7213 = vxor.u32 %v7150, 2147483648
        %v7214 = vxor.u32 %v7152, 2147483648
        %v7215 = vxor.u32 %v7153, 2147483648
        %v7216 = vxor.u32 %v7154, 2147483648
        %v7217 = vxor.u32 %v7156, 2147483648
        %v7218 = vxor.u32 %v7157, 2147483648
        %v7219 = vxor.u32 %v7158, 2147483648
        %v7220 = vxor.u32 %v7160, 2147483648
        %v7221 = vxor.u32 %v7161, 2147483648
        %v7222 = vxor.u32 %v7162, 2147483648
        %v7223 = vxor.u32 %v7164, 2147483648
        %v7224 = vxor.u32 %v7165, 2147483648
        %v7225 = vxor.u32 %v7166, 2147483648
        %v7226 = vxor.u32 %v7168, 2147483648
        %v7227 = vxor.u32 %v7169, 2147483648
        %v7228 = vxor.u32 %v7170, 2147483648
        %v7229 = vxor.u32 %v7172, 2147483648
        %v7230 = vxor.u32 %v7173, 2147483648
        %v7231 = vxor.u32 %v7174, 2147483648
        %v7232 = vxor.u32 %v7176, 2147483648
        %v7233 = vxor.u32 %v7177, 2147483648
        %v7234 = vxor.u32 %v7178, 2147483648
        %v7235 = vxor.u32 %v7180, 2147483648
        %v7236 = vxor.u32 %v7181, 2147483648
        %v7237 = vxor.u32 %v7182, 2147483648
        %v7238 = vxor.u32 %v7184, 2147483648
        %v7239 = vxor.u32 %v7185, 2147483648
        %v7240 = vxor.u32 %v7186, 2147483648
        %v7241 = vxor.u32 %v7188, 2147483648
        %v7242 = vxor.u32 %v7189, 2147483648
        %v7243 = vxor.u32 %v7190, 2147483648
        %v7244 = vxor.u32 %v7192, 2147483648
        %v7245 = vxor.u32 %v7193, 2147483648
        %v7246 = vxor.u32 %v7194, 2147483648
        %v7247 = vxor.u32 %v7196, 2147483648
        %v7248 = vxor.u32 %v7197, 2147483648
        %v7249 = vxor.u32 %v7198, 2147483648
        %v7250 = vxor.u32 %v7200, 2147483648
        %v7251 = vxor.u32 %v7201, 2147483648
        %v7252 = vxor.u32 %v7202, 2147483648
        %v7253 = vxor.u32 %v7204, 2147483648
        %v7254 = vxor.u32 %v7205, 2147483648
        %v7255 = vxor.u32 %v7206, 2147483648
        %v7256 = vmul.f32 %v7208, 1.442695
        %v7257 = vpow.pop %v7256
        %v7258 = vmul.f32 %v7209, 1.442695
        %v7259 = vpow.pop %v7258
        %v7260 = vmul.f32 %v7210, 1.442695
        %v7261 = vpow.pop %v7260
        %v7262 = vmul.f32 %v7211, 1.442695
        %v7263 = vpow.pop %v7262
        %v7264 = vmul.f32 %v7212, 1.442695
        %v7265 = vpow.pop %v7264
        %v7266 = vmul.f32 %v7213, 1.442695
        %v7267 = vpow.pop %v7266
        %v7268 = vmul.f32 %v7214, 1.442695
        %v7269 = vpow.pop %v7268
        %v7270 = vmul.f32 %v7215, 1.442695
        %v7271 = vpow.pop %v7270
        %v7272 = vmul.f32 %v7216, 1.442695
        %v7273 = vpow.pop %v7272
        %v7274 = vmul.f32 %v7217, 1.442695
        %v7275 = vpow.pop %v7274
        %v7276 = vmul.f32 %v7218, 1.442695
        %v7277 = vpow.pop %v7276
        %v7278 = vmul.f32 %v7219, 1.442695
        %v7279 = vpow.pop %v7278
        %v7280 = vmul.f32 %v7220, 1.442695
        %v7281 = vpow.pop %v7280
        %v7282 = vmul.f32 %v7221, 1.442695
        %v7283 = vpow.pop %v7282
        %v7284 = vmul.f32 %v7222, 1.442695
        %v7285 = vpow.pop %v7284
        %v7286 = vmul.f32 %v7223, 1.442695
        %v7287 = vpow.pop %v7286
        %v7288 = vmul.f32 %v7224, 1.442695
        %v7289 = vpow.pop %v7288
        %v7290 = vmul.f32 %v7225, 1.442695
        %v7291 = vpow.pop %v7290
        %v7292 = vmul.f32 %v7226, 1.442695
        %v7293 = vpow.pop %v7292
        %v7294 = vmul.f32 %v7227, 1.442695
        %v7295 = vpow.pop %v7294
        %v7296 = vmul.f32 %v7228, 1.442695
        %v7297 = vpow.pop %v7296
        %v7298 = vmul.f32 %v7229, 1.442695
        %v7299 = vpow.pop %v7298
        %v7300 = vmul.f32 %v7230, 1.442695
        %v7301 = vpow.pop %v7300
        %v7302 = vmul.f32 %v7231, 1.442695
        %v7303 = vpow.pop %v7302
        %v7304 = vmul.f32 %v7232, 1.442695
        %v7305 = vpow.pop %v7304
        %v7306 = vmul.f32 %v7233, 1.442695
        %v7307 = vpow.pop %v7306
        %v7308 = vmul.f32 %v7234, 1.442695
        %v7309 = vpow.pop %v7308
        %v7310 = vmul.f32 %v7235, 1.442695
        %v7311 = vpow.pop %v7310
        %v7312 = vmul.f32 %v7236, 1.442695
        %v7313 = vpow.pop %v7312
        %v7314 = vmul.f32 %v7237, 1.442695
        %v7315 = vpow.pop %v7314
        %v7316 = vmul.f32 %v7238, 1.442695
        %v7317 = vpow.pop %v7316
        %v7318 = vmul.f32 %v7239, 1.442695
        %v7319 = vpow.pop %v7318
        %v7320 = vmul.f32 %v7240, 1.442695
        %v7321 = vpow.pop %v7320
        %v7322 = vmul.f32 %v7241, 1.442695
        %v7323 = vpow.pop %v7322
        %v7324 = vmul.f32 %v7242, 1.442695
        %v7325 = vpow.pop %v7324
        %v7326 = vmul.f32 %v7243, 1.442695
        %v7327 = vpow.pop %v7326
        %v7328 = vmul.f32 %v7244, 1.442695
        %v7329 = vpow.pop %v7328
        %v7330 = vmul.f32 %v7245, 1.442695
        %v7331 = vpow.pop %v7330
        %v7332 = vmul.f32 %v7246, 1.442695
        %v7333 = vpow.pop %v7332
        %v7334 = vmul.f32 %v7247, 1.442695
        %v7335 = vpow.pop %v7334
        %v7336 = vmul.f32 %v7248, 1.442695
        %v7337 = vpow.pop %v7336
        %v7338 = vmul.f32 %v7249, 1.442695
        %v7339 = vpow.pop %v7338
        %v7340 = vmul.f32 %v7250, 1.442695
        %v7341 = vpow.pop %v7340
        %v7342 = vmul.f32 %v7251, 1.442695
        %v7343 = vpow.pop %v7342
        %v7344 = vmul.f32 %v7252, 1.442695
        %v7345 = vpow.pop %v7344
        %v7346 = vmul.f32 %v7253, 1.442695
        %v7347 = vpow.pop %v7346
        %v7348 = vmul.f32 %v7254, 1.442695
        %v7349 = vpow.pop %v7348
        %v7350 = vmul.f32 %v7255, 1.442695
        %v7351 = vpow.pop %v7350
        %v7352 = vadd.f32 %v7257, 1.0
        %v7353 = vadd.f32 %v7259, 1.0
        %v7354 = vadd.f32 %v7261, 1.0
        %v7355 = vadd.f32 %v7263, 1.0
        %v7356 = vadd.f32 %v7265, 1.0
        %v7357 = vadd.f32 %v7267, 1.0
        %v7358 = vadd.f32 %v7269, 1.0
        %v7359 = vadd.f32 %v7271, 1.0
        %v7360 = vadd.f32 %v7273, 1.0
        %v7361 = vadd.f32 %v7275, 1.0
        %v7362 = vadd.f32 %v7277, 1.0
        %v7363 = vadd.f32 %v7279, 1.0
        %v7364 = vadd.f32 %v7281, 1.0
        %v7365 = vadd.f32 %v7283, 1.0
        %v7366 = vadd.f32 %v7285, 1.0
        %v7367 = vadd.f32 %v7287, 1.0
        %v7368 = vadd.f32 %v7289, 1.0
        %v7369 = vadd.f32 %v7291, 1.0
        %v7370 = vadd.f32 %v7293, 1.0
        %v7371 = vadd.f32 %v7295, 1.0
        %v7372 = vadd.f32 %v7297, 1.0
        %v7373 = vadd.f32 %v7299, 1.0
        %v7374 = vadd.f32 %v7301, 1.0
        %v7375 = vadd.f32 %v7303, 1.0
        %v7376 = vadd.f32 %v7305, 1.0
        %v7377 = vadd.f32 %v7307, 1.0
        %v7378 = vadd.f32 %v7309, 1.0
        %v7379 = vadd.f32 %v7311, 1.0
        %v7380 = vadd.f32 %v7313, 1.0
        %v7381 = vadd.f32 %v7315, 1.0
        %v7382 = vadd.f32 %v7317, 1.0
        %v7383 = vadd.f32 %v7319, 1.0
        %v7384 = vadd.f32 %v7321, 1.0
        %v7385 = vadd.f32 %v7323, 1.0
        %v7386 = vadd.f32 %v7325, 1.0
        %v7387 = vadd.f32 %v7327, 1.0
        %v7388 = vadd.f32 %v7329, 1.0
        %v7389 = vadd.f32 %v7331, 1.0
        %v7390 = vadd.f32 %v7333, 1.0
        %v7391 = vadd.f32 %v7335, 1.0
        %v7392 = vadd.f32 %v7337, 1.0
        %v7393 = vadd.f32 %v7339, 1.0
        %v7394 = vadd.f32 %v7341, 1.0
        %v7395 = vadd.f32 %v7343, 1.0
        %v7396 = vadd.f32 %v7345, 1.0
        %v7397 = vadd.f32 %v7347, 1.0
        %v7398 = vadd.f32 %v7349, 1.0
        %v7399 = vadd.f32 %v7351, 1.0
        %v7400 = vrcp.pop %v7352
        %v7401 = vmul.f32 1.0, %v7400
        %v7402 = vrcp.pop %v7353
        %v7403 = vmul.f32 1.0, %v7402
        %v7404 = vrcp.pop %v7354
        %v7405 = vmul.f32 1.0, %v7404
        %v7406 = vrcp.pop %v7355
        %v7407 = vmul.f32 1.0, %v7406
        %v7408 = vrcp.pop %v7356
        %v7409 = vmul.f32 1.0, %v7408
        %v7410 = vrcp.pop %v7357
        %v7411 = vmul.f32 1.0, %v7410
        %v7412 = vrcp.pop %v7358
        %v7413 = vmul.f32 1.0, %v7412
        %v7414 = vrcp.pop %v7359
        %v7415 = vmul.f32 1.0, %v7414
        %v7416 = vrcp.pop %v7360
        %v7417 = vmul.f32 1.0, %v7416
        %v7418 = vrcp.pop %v7361
        %v7419 = vmul.f32 1.0, %v7418
        %v7420 = vrcp.pop %v7362
        %v7421 = vmul.f32 1.0, %v7420
        %v7422 = vrcp.pop %v7363
        %v7423 = vmul.f32 1.0, %v7422
        %v7424 = vrcp.pop %v7364
        %v7425 = vmul.f32 1.0, %v7424
        %v7426 = vrcp.pop %v7365
        %v7427 = vmul.f32 1.0, %v7426
        %v7428 = vrcp.pop %v7366
        %v7429 = vmul.f32 1.0, %v7428
        %v7430 = vrcp.pop %v7367
        %v7431 = vmul.f32 1.0, %v7430
        %v7432 = vrcp.pop %v7368
        %v7433 = vmul.f32 1.0, %v7432
        %v7434 = vrcp.pop %v7369
        %v7435 = vmul.f32 1.0, %v7434
        %v7436 = vrcp.pop %v7370
        %v7437 = vmul.f32 1.0, %v7436
        %v7438 = vrcp.pop %v7371
        %v7439 = vmul.f32 1.0, %v7438
        %v7440 = vrcp.pop %v7372
        %v7441 = vmul.f32 1.0, %v7440
        %v7442 = vrcp.pop %v7373
        %v7443 = vmul.f32 1.0, %v7442
        %v7444 = vrcp.pop %v7374
        %v7445 = vmul.f32 1.0, %v7444
        %v7446 = vrcp.pop %v7375
        %v7447 = vmul.f32 1.0, %v7446
        %v7448 = vrcp.pop %v7376
        %v7449 = vmul.f32 1.0, %v7448
        %v7450 = vrcp.pop %v7377
        %v7451 = vmul.f32 1.0, %v7450
        %v7452 = vrcp.pop %v7378
        %v7453 = vmul.f32 1.0, %v7452
        %v7454 = vrcp.pop %v7379
        %v7455 = vmul.f32 1.0, %v7454
        %v7456 = vrcp.pop %v7380
        %v7457 = vmul.f32 1.0, %v7456
        %v7458 = vrcp.pop %v7381
        %v7459 = vmul.f32 1.0, %v7458
        %v7460 = vrcp.pop %v7382
        %v7461 = vmul.f32 1.0, %v7460
        %v7462 = vrcp.pop %v7383
        %v7463 = vmul.f32 1.0, %v7462
        %v7464 = vrcp.pop %v7384
        %v7465 = vmul.f32 1.0, %v7464
        %v7466 = vrcp.pop %v7385
        %v7467 = vmul.f32 1.0, %v7466
        %v7468 = vrcp.pop %v7386
        %v7469 = vmul.f32 1.0, %v7468
        %v7470 = vrcp.pop %v7387
        %v7471 = vmul.f32 1.0, %v7470
        %v7472 = vrcp.pop %v7388
        %v7473 = vmul.f32 1.0, %v7472
        %v7474 = vrcp.pop %v7389
        %v7475 = vmul.f32 1.0, %v7474
        %v7476 = vrcp.pop %v7390
        %v7477 = vmul.f32 1.0, %v7476
        %v7478 = vrcp.pop %v7391
        %v7479 = vmul.f32 1.0, %v7478
        %v7480 = vrcp.pop %v7392
        %v7481 = vmul.f32 1.0, %v7480
        %v7482 = vrcp.pop %v7393
        %v7483 = vmul.f32 1.0, %v7482
        %v7484 = vrcp.pop %v7394
        %v7485 = vmul.f32 1.0, %v7484
        %v7486 = vrcp.pop %v7395
        %v7487 = vmul.f32 1.0, %v7486
        %v7488 = vrcp.pop %v7396
        %v7489 = vmul.f32 1.0, %v7488
        %v7490 = vrcp.pop %v7397
        %v7491 = vmul.f32 1.0, %v7490
        %v7492 = vrcp.pop %v7398
        %v7493 = vmul.f32 1.0, %v7492
        %v7494 = vrcp.pop %v7399
        %v7495 = vmul.f32 1.0, %v7494
        %v7496 = vtanh.pop %v7147
        %v7497 = vtanh.pop %v7151
        %v7498 = vtanh.pop %v7155
        %v7499 = vtanh.pop %v7159
        %v7500 = vtanh.pop %v7163
        %v7501 = vtanh.pop %v7167
        %v7502 = vtanh.pop %v7171
        %v7503 = vtanh.pop %v7175
        %v7504 = vtanh.pop %v7179
        %v7505 = vtanh.pop %v7183
        %v7506 = vtanh.pop %v7187
        %v7507 = vtanh.pop %v7191
        %v7508 = vtanh.pop %v7195
        %v7509 = vtanh.pop %v7199
        %v7510 = vtanh.pop %v7203
        %v7511 = vtanh.pop %v7207
        %v7512 = vmul.f32 %v7403, %v6646
        %v7513 = vmul.f32 %v7409, %v6647
        %v7514 = vmul.f32 %v7415, %v6648
        %v7515 = vmul.f32 %v7421, %v6649
        %v7516 = vmul.f32 %v7427, %v6650
        %v7517 = vmul.f32 %v7433, %v6651
        %v7518 = vmul.f32 %v7439, %v6652
        %v7519 = vmul.f32 %v7445, %v6653
        %v7520 = vmul.f32 %v7451, %v6654
        %v7521 = vmul.f32 %v7457, %v6655
        %v7522 = vmul.f32 %v7463, %v6656
        %v7523 = vmul.f32 %v7469, %v6657
        %v7524 = vmul.f32 %v7475, %v6658
        %v7525 = vmul.f32 %v7481, %v6659
        %v7526 = vmul.f32 %v7487, %v6660
        %v7527 = vmul.f32 %v7493, %v6661
        %v7528 = vmul.f32 %v7401, %v7496
        %v7529 = vmul.f32 %v7407, %v7497
        %v7530 = vmul.f32 %v7413, %v7498
        %v7531 = vmul.f32 %v7419, %v7499
        %v7532 = vmul.f32 %v7425, %v7500
        %v7533 = vmul.f32 %v7431, %v7501
        %v7534 = vmul.f32 %v7437, %v7502
        %v7535 = vmul.f32 %v7443, %v7503
        %v7536 = vmul.f32 %v7449, %v7504
        %v7537 = vmul.f32 %v7455, %v7505
        %v7538 = vmul.f32 %v7461, %v7506
        %v7539 = vmul.f32 %v7467, %v7507
        %v7540 = vmul.f32 %v7473, %v7508
        %v7541 = vmul.f32 %v7479, %v7509
        %v7542 = vmul.f32 %v7485, %v7510
        %v7543 = vmul.f32 %v7491, %v7511
        %v7544 = vadd.f32 %v7512, %v7528
        %v7545 = vadd.f32 %v7513, %v7529
        %v7546 = vadd.f32 %v7514, %v7530
        %v7547 = vadd.f32 %v7515, %v7531
        %v7548 = vadd.f32 %v7516, %v7532
        %v7549 = vadd.f32 %v7517, %v7533
        %v7550 = vadd.f32 %v7518, %v7534
        %v7551 = vadd.f32 %v7519, %v7535
        %v7552 = vadd.f32 %v7520, %v7536
        %v7553 = vadd.f32 %v7521, %v7537
        %v7554 = vadd.f32 %v7522, %v7538
        %v7555 = vadd.f32 %v7523, %v7539
        %v7556 = vadd.f32 %v7524, %v7540
        %v7557 = vadd.f32 %v7525, %v7541
        %v7558 = vadd.f32 %v7526, %v7542
        %v7559 = vadd.f32 %v7527, %v7543
        %v7560 = vtanh.pop %v7544
        %v7561 = vtanh.pop %v7545
        %v7562 = vtanh.pop %v7546
        %v7563 = vtanh.pop %v7547
        %v7564 = vtanh.pop %v7548
        %v7565 = vtanh.pop %v7549
        %v7566 = vtanh.pop %v7550
        %v7567 = vtanh.pop %v7551
        %v7568 = vtanh.pop %v7552
        %v7569 = vtanh.pop %v7553
        %v7570 = vtanh.pop %v7554
        %v7571 = vtanh.pop %v7555
        %v7572 = vtanh.pop %v7556
        %v7573 = vtanh.pop %v7557
        %v7574 = vtanh.pop %v7558
        %v7575 = vtanh.pop %v7559
        %v7576 = vmul.f32 %v7405, %v7560
        %v7577 = vmul.f32 %v7411, %v7561
        %v7578 = vmul.f32 %v7417, %v7562
        %v7579 = vmul.f32 %v7423, %v7563
        %v7580 = vmul.f32 %v7429, %v7564
        %v7581 = vmul.f32 %v7435, %v7565
        %v7582 = vmul.f32 %v7441, %v7566
        %v7583 = vmul.f32 %v7447, %v7567
        %v7584 = vmul.f32 %v7453, %v7568
        %v7585 = vmul.f32 %v7459, %v7569
        %v7586 = vmul.f32 %v7465, %v7570
        %v7587 = vmul.f32 %v7471, %v7571
        %v7588 = vmul.f32 %v7477, %v7572
        %v7589 = vmul.f32 %v7483, %v7573
        %v7590 = vmul.f32 %v7489, %v7574
        %v7591 = vmul.f32 %v7495, %v7575
        %v7592 = vld [vmem:[%s4] sm:$0xff]
        %v7593 = vld [vmem:[%s4 + $0x8] sm:$0xff]
        %v7594 = vld [vmem:[%s4 + $0x10] sm:$0xff]
        %v7595 = vld [vmem:[%s4 + $0x18] sm:$0xff]
        %v7596 = vld [vmem:[%s4 + $0x20] sm:$0xff]
        %v7597 = vld [vmem:[%s4 + $0x28] sm:$0xff]
        %v7598 = vld [vmem:[%s4 + $0x30] sm:$0xff]
        %v7599 = vld [vmem:[%s4 + $0x38] sm:$0xff]
        %v7600 = vld [vmem:[%s4 + $0x40] sm:$0xff]
        %v7601 = vld [vmem:[%s4 + $0x48] sm:$0xff]
        %v7602 = vld [vmem:[%s4 + $0x50] sm:$0xff]
        %v7603 = vld [vmem:[%s4 + $0x58] sm:$0xff]
        %v7604 = vld [vmem:[%s4 + $0x60] sm:$0xff]
        %v7605 = vld [vmem:[%s4 + $0x68] sm:$0xff]
        %v7606 = vld [vmem:[%s4 + $0x70] sm:$0xff]
        %v7607 = vld [vmem:[%s4 + $0x78] sm:$0xff]
        %v7608 = vld [vmem:[#allocation2] sm:$0x1]
        %v7610 = vlaneseq
        %v7611 = vshrl.u32 %v7610, 7
        %v7612 = vsub.s32 0, %v7611
        %v7613 = vrot.slane %v7608, %v7612
        %7615 = vmatprep.subr.mxu0 0.0
        %7616 = vmatpush1.msra.mxu0 %v7592
        %7617 = vmatprep.subr.mxu0 0.0
        %7618 = vmatpush1.msra.mxu0 %v7593
        %7619 = vmatprep.subr.mxu0 0.0
        %7620 = vmatpush1.msra.mxu0 %v7594
        %7621 = vmatprep.subr.mxu0 0.0
        %7622 = vmatpush1.msra.mxu0 %v7595
        %7623 = vmatprep.subr.mxu0 0.0
        %7624 = vmatpush1.msra.mxu0 %v7596
        %7625 = vmatprep.subr.mxu0 0.0
        %7626 = vmatpush1.msra.mxu0 %v7597
        %7627 = vmatprep.subr.mxu0 0.0
        %7628 = vmatpush1.msra.mxu0 %v7598
        %7629 = vmatprep.subr.mxu0 0.0
        %7630 = vmatpush1.msra.mxu0 %v7599
        %7631 = vmatprep.subr.mxu0 0.0
        %7632 = vmatpush1.msra.mxu0 %v7600
        %7633 = vmatprep.subr.mxu0 0.0
        %7634 = vmatpush1.msra.mxu0 %v7601
        %7635 = vmatprep.subr.mxu0 0.0
        %7636 = vmatpush1.msra.mxu0 %v7602
        %7637 = vmatprep.subr.mxu0 0.0
        %7638 = vmatpush1.msra.mxu0 %v7603
        %7639 = vmatprep.subr.mxu0 0.0
        %7640 = vmatpush1.msra.mxu0 %v7604
        %7641 = vmatprep.subr.mxu0 0.0
        %7642 = vmatpush1.msra.mxu0 %v7605
        %7643 = vmatprep.subr.mxu0 0.0
        %7644 = vmatpush1.msra.mxu0 %v7606
        %7645 = vmatprep.subr.mxu0 0.0
        %7646 = vmatpush1.msra.mxu0 %v7607
        %7647 = vmatprep.subr.mxu0 0.0
        %7648 = vmatpush1.msra.mxu0 0.0
        %7649 = vmatprep.subr.mxu0 0.0
        %7650 = vmatpush1.msra.mxu0 0.0
        %7651 = vmatprep.subr.mxu0 0.0
        %7652 = vmatpush1.msra.mxu0 0.0
        %7653 = vmatprep.subr.mxu0 0.0
        %7654 = vmatpush1.msra.mxu0 0.0
        %7655 = vmatprep.subr.mxu0 0.0
        %7656 = vmatpush1.msra.mxu0 0.0
        %7657 = vmatprep.subr.mxu0 0.0
        %7658 = vmatpush1.msra.mxu0 0.0
        %7659 = vmatprep.subr.mxu0 0.0
        %7660 = vmatpush1.msra.mxu0 0.0
        %7661 = vmatprep.subr.mxu0 0.0
        %7662 = vmatpush1.msra.mxu0 0.0
        %7663 = vmatprep.subr.mxu0 0.0
        %7664 = vmatpush1.msra.mxu0 0.0
        %7665 = vmatprep.subr.mxu0 0.0
        %7666 = vmatpush1.msra.mxu0 0.0
        %7667 = vmatprep.subr.mxu0 0.0
        %7668 = vmatpush1.msra.mxu0 0.0
        %7669 = vmatprep.subr.mxu0 0.0
        %7670 = vmatpush1.msra.mxu0 0.0
        %7671 = vmatprep.subr.mxu0 0.0
        %7672 = vmatpush1.msra.mxu0 0.0
        %7673 = vmatprep.subr.mxu0 0.0
        %7674 = vmatpush1.msra.mxu0 0.0
        %7675 = vmatprep.subr.mxu0 0.0
        %7676 = vmatpush1.msra.mxu0 0.0
        %7677 = vmatprep.subr.mxu0 0.0
        %7678 = vmatpush1.msra.mxu0 0.0
        %7679 = vmatprep.mubr.f32.mxu0 0.0
        %7680 = vmatmul.mubr.f32.gmra.mrb[0].mxu0 %v7576
        %v7681 = vpop.f32.mrb[0].mxu0
        %v7682 = vadd.f32 %v7613, %v7681
        %v7683 = vpop.f32.mrb[0].mxu0
        %7684 = vmatprep.mubr.f32.mxu0 0.0
        %7685 = vmatmul.mubr.f32.gmra.mrb[0].mxu0 %v7577
        %v7686 = vpop.f32.mrb[0].mxu0
        %v7687 = vadd.f32 %v7613, %v7686
        %v7688 = vpop.f32.mrb[0].mxu0
        %7689 = vmatprep.mubr.f32.mxu0 0.0
        %7690 = vmatmul.mubr.f32.gmra.mrb[0].mxu0 %v7578
        %v7691 = vpop.f32.mrb[0].mxu0
        %v7692 = vadd.f32 %v7613, %v7691
        %v7693 = vpop.f32.mrb[0].mxu0
        %7694 = vmatprep.mubr.f32.mxu0 0.0
        %7695 = vmatmul.mubr.f32.gmra.mrb[0].mxu0 %v7579
        %v7696 = vpop.f32.mrb[0].mxu0
        %v7697 = vadd.f32 %v7613, %v7696
        %v7698 = vpop.f32.mrb[0].mxu0
        %7699 = vmatprep.mubr.f32.mxu0 0.0
        %7700 = vmatmul.mubr.f32.gmra.mrb[0].mxu0 %v7580
        %v7701 = vpop.f32.mrb[0].mxu0
        %v7702 = vadd.f32 %v7613, %v7701
        %v7703 = vpop.f32.mrb[0].mxu0
        %7704 = vmatprep.mubr.f32.mxu0 0.0
        %7705 = vmatmul.mubr.f32.gmra.mrb[0].mxu0 %v7581
        %v7706 = vpop.f32.mrb[0].mxu0
        %v7707 = vadd.f32 %v7613, %v7706
        %v7708 = vpop.f32.mrb[0].mxu0
        %7709 = vmatprep.mubr.f32.mxu0 0.0
        %7710 = vmatmul.mubr.f32.gmra.mrb[0].mxu0 %v7582
        %v7711 = vpop.f32.mrb[0].mxu0
        %v7712 = vadd.f32 %v7613, %v7711
        %v7713 = vpop.f32.mrb[0].mxu0
        %7714 = vmatprep.mubr.f32.mxu0 0.0
        %7715 = vmatmul.mubr.f32.gmra.mrb[0].mxu0 %v7583
        %v7716 = vpop.f32.mrb[0].mxu0
        %v7717 = vadd.f32 %v7613, %v7716
        %v7718 = vpop.f32.mrb[0].mxu0
        %7719 = vmatprep.mubr.f32.mxu0 0.0
        %7720 = vmatmul.mubr.f32.gmra.mrb[0].mxu0 %v7584
        %v7721 = vpop.f32.mrb[0].mxu0
        %v7722 = vadd.f32 %v7613, %v7721
        %v7723 = vpop.f32.mrb[0].mxu0
        %7724 = vmatprep.mubr.f32.mxu0 0.0
        %7725 = vmatmul.mubr.f32.gmra.mrb[0].mxu0 %v7585
        %v7726 = vpop.f32.mrb[0].mxu0
        %v7727 = vadd.f32 %v7613, %v7726
        %v7728 = vpop.f32.mrb[0].mxu0
        %7729 = vmatprep.mubr.f32.mxu0 0.0
        %7730 = vmatmul.mubr.f32.gmra.mrb[0].mxu0 %v7586
        %v7731 = vpop.f32.mrb[0].mxu0
        %v7732 = vadd.f32 %v7613, %v7731
        %v7733 = vpop.f32.mrb[0].mxu0
        %7734 = vmatprep.mubr.f32.mxu0 0.0
        %7735 = vmatmul.mubr.f32.gmra.mrb[0].mxu0 %v7587
        %v7736 = vpop.f32.mrb[0].mxu0
        %v7737 = vadd.f32 %v7613, %v7736
        %v7738 = vpop.f32.mrb[0].mxu0
        %7739 = vmatprep.mubr.f32.mxu0 0.0
        %7740 = vmatmul.mubr.f32.gmra.mrb[0].mxu0 %v7588
        %v7741 = vpop.f32.mrb[0].mxu0
        %v7742 = vadd.f32 %v7613, %v7741
        %v7743 = vpop.f32.mrb[0].mxu0
        %7744 = vmatprep.mubr.f32.mxu0 0.0
        %7745 = vmatmul.mubr.f32.gmra.mrb[0].mxu0 %v7589
        %v7746 = vpop.f32.mrb[0].mxu0
        %v7747 = vadd.f32 %v7613, %v7746
        %v7748 = vpop.f32.mrb[0].mxu0
        %7749 = vmatprep.mubr.f32.mxu0 0.0
        %7750 = vmatmul.mubr.f32.gmra.mrb[0].mxu0 %v7590
        %v7751 = vpop.f32.mrb[0].mxu0
        %v7752 = vadd.f32 %v7613, %v7751
        %v7753 = vpop.f32.mrb[0].mxu0
        %7754 = vmatprep.mubr.f32.mxu0 0.0
        %7755 = vmatmul.mubr.f32.gmra.mrb[0].mxu0 %v7591
        %v7756 = vpop.f32.mrb[0].mxu0
        %v7757 = vadd.f32 %v7613, %v7756
        %v7758 = vpop.f32.mrb[0].mxu0
        %7759 = vdwg.mxu0
        %7760 = vxpose.xlu0.b32.start [1/16] %v7682, 128
        %7761 = vxpose.xlu0.b32.cont [2/16] %v7687, 128
        %7762 = vxpose.xlu0.b32.cont [3/16] %v7692, 128
        %7763 = vxpose.xlu0.b32.cont [4/16] %v7697, 128
        %7764 = vxpose.xlu0.b32.cont [5/16] %v7702, 128
        %7765 = vxpose.xlu0.b32.cont [6/16] %v7707, 128
        %7766 = vxpose.xlu0.b32.cont [7/16] %v7712, 128
        %7767 = vxpose.xlu0.b32.cont [8/16] %v7717, 128
        %7768 = vxpose.xlu0.b32.cont [9/16] %v7722, 128
        %7769 = vxpose.xlu0.b32.cont [10/16] %v7727, 128
        %7770 = vxpose.xlu0.b32.cont [11/16] %v7732, 128
        %7771 = vxpose.xlu0.b32.cont [12/16] %v7737, 128
        %7772 = vxpose.xlu0.b32.cont [13/16] %v7742, 128
        %7773 = vxpose.xlu0.b32.cont [14/16] %v7747, 128
        %7774 = vxpose.xlu0.b32.cont [15/16] %v7752, 128
        %7775 = vxpose.xlu0.b32.end [16/16] %v7757, 128
        %v7776 = vpop.trf.xlu0
        %v7777 = vpop.trf.xlu0
        %v7778 = vpop.trf.xlu0
        %v7779 = vpop.trf.xlu0
        %v7780 = vpop.trf.xlu0
        %v7781 = vpop.trf.xlu0
        %v7782 = vpop.trf.xlu0
        %v7783 = vpop.trf.xlu0
        %v7784 = vpop.trf.xlu0
        %v7785 = vpop.trf.xlu0
        %v7786 = vpop.trf.xlu0
        %v7787 = vpop.trf.xlu0
        %v7788 = vpop.trf.xlu0
        %v7789 = vpop.trf.xlu0
        %v7790 = vpop.trf.xlu0
        %v7791 = vpop.trf.xlu0
        %7792 = vst [vmem:[%s261] sm:$0x1] %v7776
        %s7793 = sand.u32 %s162, 1
        %s7794 = scalar_lea.sflag [#allocation5], %s7793
        %s7795 = sand.u32 %s162, 1
        %s7796 = scalar_lea.vmem [#allocation6], %s7795
        // Predicated region
        $region49: #{tpu_custom_call.1} parent=43 // pred_check
          %p7797 = pneg %p172
        $region50: #{tpu_custom_call.1} parent=43 // pred_check_branch
          %7799 = sbr.rel (%p7797) target = $region52
        $region51: #{tpu_custom_call.1} parent=43 // pred_region
          %s7801 = ssub.s32 16, 16
          %7802 = vsyncadd %s7794, %s7801
          %s7803 = smul.addr %s23, 16
          %s7804 = scalar_lea.hbm %s6, %s7803
          %s7806 = sshll.u32 %s7796, 4
          %s7807 = int_to_ptr.vmem [resolvable:$true] %s7806
          %7809 = dma.vmem_to_hbm [thread:$0]  %s7807, 16, %s7804, %s7794
        $region52: #{tpu_custom_call.1} parent=43 // pred_fallthru
          _
      $region44: #{tpu_custom_call.1} parent=5 // pred_fallthru
        _
      %p7810 = scmp.le.s32.totalorder 2, %s18
      // Predicated region
      $region53: #{tpu_custom_call.1} parent=5 // pred_check
        %p7811 = pneg %p7810
      $region54: #{tpu_custom_call.1} parent=5 // pred_check_branch
        %7813 = sbr.rel (%p7811) target = $region56
      $region55: #{tpu_custom_call.1} parent=5 // pred_region
        %s7814 = ssub.s32 %s18, 2
        // Predicated region
        $region57: #{tpu_custom_call.1} parent=55 // pred_check
          %p7815 = pneg %p178
        $region58: #{tpu_custom_call.1} parent=55 // pred_check_branch
          %7817 = sbr.rel (%p7815) target = $region60
        $region59: #{tpu_custom_call.1} parent=55 // pred_region
          %s7818 = sand.u32 %s163, 1
          %s7819 = scalar_lea.sflag [#allocation5], %s7818
          %s7820 = sand.u32 %s163, 1
          %s7821 = scalar_lea.vmem [#allocation6], %s7820
          %7822 = dma.done %s7819, 16
        $region60: #{tpu_custom_call.1} parent=55 // pred_fallthru
          _
      $region56: #{tpu_custom_call.1} parent=5 // pred_fallthru
        _
    $region6: #{tpu_custom_call.1} parent=1 // loop_footer
      %s22 = sadd.s32 1, %s18
    $region7: #{tpu_custom_call.1} parent=1 // loop_footer_branch
      %17 = sbr.rel target = $region3
    $region8: #{tpu_custom_call.1} parent=1 // loop_exit
      _
    %7823 = vsyncpa [#allocation4], 1
    %s7824 = scalar_lea.sflag [#allocation4], 1
    %7825 = vsyncpa %s7824, 1
    %7826 = vsyncpa [#allocation5], 1
    %s7827 = scalar_lea.sflag [#allocation5], 1
    %7828 = vsyncpa %s7827, 1

</llo_original>
